<compile_context>
chip_gen: v5e
topology: v5e:2x2
jax: 0.10.0
libtpu: 0.0.40
codegen_flags: <defaults>
</compile_context>

<pallas_src>
import functools

import jax
import jax.numpy as jnp
import numpy as np
from jax import lax
from jax.experimental import pallas as pl
from jax.experimental.pallas import tpu as pltpu


# Zero guard rows above/below the padded activation image.  16 keeps every
# scratch store aligned for both f32 (8-row) and bf16 (16-row) sublane tiling.
_GUARD = 16


def _decoder_kernel(x_ref, w_sq_ref, b_sq_ref, w_f0_ref, b_f0_ref,
                    w_f1_ref, b_f1_ref, w_f2_ref, b_f2_ref,
                    o_ref, ypad0, ypad1, *, H, W):
    G = _GUARD
    HW = H * W
    f32 = jnp.float32

    # Row masks that zero 3x3-tap contributions which crossed an image-row
    # boundary in the flat layout (w-1 < 0 for left taps, w+1 >= W for right).
    col = lax.broadcasted_iota(jnp.int32, (HW, 1), 0) % W
    not_first_col = col != 0
    not_last_col = col != (W - 1)

    def store_padded(ypad_ref, y):
        # Pixel rows live at [G + W, G + W + HW); halo/guard rows are zero.
        c = y.shape[1]
        zeros = jnp.zeros((G + W, c), ypad_ref.dtype)
        ypad_ref[pl.ds(0, G + W), :] = zeros
        ypad_ref[pl.ds(G + W, HW), :] = y.astype(ypad_ref.dtype)
        ypad_ref[pl.ds(G + W + HW, G + W), :] = zeros

    def conv3x3(ypad_ref, w_ref, b_ref, relu):
        cout = w_ref.shape[-1]
        acc = jnp.zeros((HW, cout), f32)
        for dy in range(3):
            for dx in range(3):
                # Window chosen so slab[o] == padded input pixel
                # (h + dy - 1, w + dx - 1) for output pixel o = h*W + w.
                start = G + dy * W + (dx - 1)
                slab = ypad_ref[pl.ds(start, HW), :]          # (HW, Cin)
                contrib = jnp.dot(slab, w_ref[dy * 3 + dx],
                                  preferred_element_type=f32)
                if dx == 0:
                    contrib = jnp.where(not_first_col, contrib, 0.0)
                elif dx == 2:
                    contrib = jnp.where(not_last_col, contrib, 0.0)
                acc = acc + contrib
        acc = acc + b_ref[...]
        if relu:
            acc = jnp.maximum(acc, 0.0)
        return acc

    # ---- convs['squeeze'] : 1x1 conv (Cin -> 256) + ReLU -------------------
    x = x_ref[0]                                              # (HW, Cin)
    y0 = jnp.dot(x, w_sq_ref[...], preferred_element_type=f32)
    y0 = jnp.maximum(y0 + b_sq_ref[...], 0.0)                 # (HW, 256) f32
    store_padded(ypad0, y0)

    # ---- convs['foggy', 0] : 3x3 conv (256 -> 128), pad 1, + ReLU ----------
    y1 = conv3x3(ypad0, w_f0_ref, b_f0_ref, relu=True)
    store_padded(ypad1, y1)

    # ---- convs['foggy', 1] : 3x3 conv (128 -> 128), pad 1, + ReLU ----------
    y2 = conv3x3(ypad1, w_f1_ref, b_f1_ref, relu=True)        # (HW, 128) f32

    # ---- convs['foggy', 2] (1x1, 128 -> out) + mean(H, W) + 0.01 -----------
    # mean_hw(conv1x1(y)) == conv1x1(mean_hw(y)): the 1x1 conv is linear.
    m = jnp.sum(y2, axis=0, keepdims=True) * (1.0 / HW)       # (1, 128)
    out = 0.01 * (jnp.dot(m.astype(w_f2_ref.dtype), w_f2_ref[...],
                          preferred_element_type=f32) + b_f2_ref[...])
    o_ref[0] = out.astype(o_ref.dtype)                        # (1, out_dim)


def foggy_decoder_forward(input_features, params, out_dim=6,
                          compute_dtype=jnp.float32):
    """Matches FoggyDecoder.forward on the last encoder feature map."""
    x = input_features[-1]                     # (B, C_enc, H, W) NCHW
    x = jnp.transpose(x, (0, 2, 3, 1))         # -> NHWC
    B, H, W, c_in = x.shape
    if W % 8 != 0:
        # TODO(synk): row-tile the padded activation layout (and round W up to
        # a sublane multiple) to support arbitrary encoder resolutions and the
        # smaller v7x VMEM; 16x16 encoder maps fit a single block comfortably.
        raise NotImplementedError("W must be a multiple of 8")
    HW = H * W
    cdt = compute_dtype

    c0 = params["w_sq"].shape[1]               # 256
    c1 = params["w_f0"].shape[-1]              # 128
    c2 = params["w_f1"].shape[-1]              # 128
    rows = 2 * _GUARD + (H + 2) * W            # flat padded activation rows

    x2 = x.reshape(B, HW, c_in).astype(cdt)
    w_sq = params["w_sq"].astype(cdt)
    b_sq = params["b_sq"].reshape(1, c0).astype(jnp.float32)
    w_f0 = params["w_f0"].reshape(9, c0, c1).astype(cdt)
    b_f0 = params["b_f0"].reshape(1, c1).astype(jnp.float32)
    w_f1 = params["w_f1"].reshape(9, c1, c2).astype(cdt)
    b_f1 = params["b_f1"].reshape(1, c2).astype(jnp.float32)
    w_f2 = params["w_f2"].astype(cdt)
    b_f2 = params["b_f2"].reshape(1, out_dim).astype(jnp.float32)

    out = pl.pallas_call(
        functools.partial(_decoder_kernel, H=H, W=W),
        out_shape=jax.ShapeDtypeStruct((B, 1, out_dim), jnp.float32),
        grid=(B,),
        in_specs=[
            pl.BlockSpec((1, HW, c_in), lambda b: (b, 0, 0)),   # x
            pl.BlockSpec((c_in, c0), lambda b: (0, 0)),         # w_sq
            pl.BlockSpec((1, c0), lambda b: (0, 0)),            # b_sq
            pl.BlockSpec((9, c0, c1), lambda b: (0, 0, 0)),     # w_f0
            pl.BlockSpec((1, c1), lambda b: (0, 0)),            # b_f0
            pl.BlockSpec((9, c1, c2), lambda b: (0, 0, 0)),     # w_f1
            pl.BlockSpec((1, c2), lambda b: (0, 0)),            # b_f1
            pl.BlockSpec((c2, out_dim), lambda b: (0, 0)),      # w_f2
            pl.BlockSpec((1, out_dim), lambda b: (0, 0)),       # b_f2
        ],
        out_specs=pl.BlockSpec((1, 1, out_dim), lambda b: (b, 0, 0)),
        scratch_shapes=[
            pltpu.VMEM((rows, c0), cdt),        # padded squeeze activations
            pltpu.VMEM((rows, c1), cdt),        # padded foggy-0 activations
        ],
        compiler_params=pltpu.CompilerParams(
            dimension_semantics=("parallel",)),  # B axis -> v7x megacore split
    )(x2, w_sq, b_sq, w_f0, b_f0, w_f1, b_f1, w_f2, b_f2)
    return out.reshape(B, out_dim)


# ---------------- deterministic parameter init ----------------
def init_params(key, c_enc, out_dim=6):
    ks = jax.random.split(key, 8)

    def w(k, shape, fan_in):
        return jax.random.normal(k, shape, jnp.float32) / jnp.sqrt(fan_in)

    return dict(
        w_sq=w(ks[0], (c_enc, 256), c_enc),
        b_sq=w(ks[1], (256,), c_enc),
        w_f0=w(ks[2], (3, 3, 256, 128), 9 * 256),
        b_f0=w(ks[3], (128,), 256),
        w_f1=w(ks[4], (3, 3, 128, 128), 9 * 128),
        b_f1=w(ks[5], (128,), 128),
        w_f2=w(ks[6], (128, out_dim), 128),
        b_f2=w(ks[7], (out_dim,), 128),
    )


# ---------------- pure-JAX reference (for verification) ----------------
def reference(input_features, params, out_dim=6):
    x = jnp.transpose(input_features[-1], (0, 2, 3, 1))
    dn = ("NHWC", "HWIO", "NHWC")
    y = lax.conv_general_dilated(x, params["w_sq"][None, None], (1, 1),
                                 "VALID", dimension_numbers=dn) + params["b_sq"]
    y = jnp.maximum(y, 0.0)
    y = lax.conv_general_dilated(y, params["w_f0"], (1, 1), "SAME",
                                 dimension_numbers=dn) + params["b_f0"]
    y = jnp.maximum(y, 0.0)
    y = lax.conv_general_dilated(y, params["w_f1"], (1, 1), "SAME",
                                 dimension_numbers=dn) + params["b_f1"]
    y = jnp.maximum(y, 0.0)
    y = lax.conv_general_dilated(y, params["w_f2"][None, None], (1, 1),
                                 "VALID", dimension_numbers=dn) + params["b_f2"]
    y = jnp.mean(y, axis=(1, 2))
    return 0.01 * y.reshape(-1, out_dim)


if __name__ == "__main__":
    key = jax.random.PRNGKey(0)
    k_x, k_p = jax.random.split(key)

    B, C_ENC, H, W = 2, 4, 16, 16   # num_ch_enc[-1] = 4
    x = jax.random.normal(k_x, (B, C_ENC, H, W), jnp.float32)
    params = init_params(k_p, C_ENC, out_dim=6)

    input_features = [x]            # FoggyDecoder only uses the last map

    out = foggy_decoder_forward(input_features, params)
    out = jax.block_until_ready(out)
    assert out.shape == (B, 6), out.shape

    ref = reference(input_features, params)
    np.testing.assert_allclose(np.asarray(out), np.asarray(ref),
                               rtol=1e-4, atol=1e-5)
    print("KERNEL_OK")
</pallas_src>

<mosaic_0001>
module attributes {stable_mosaic.version = 11 : i64} {
  func.func @_decoder_kernel(%arg0: i32, %arg1: memref<1x256x4xf32, #tpu.memory_space<vmem>>, %arg2: memref<4x256xf32, #tpu.memory_space<vmem>>, %arg3: memref<1x256xf32, #tpu.memory_space<vmem>>, %arg4: memref<9x256x128xf32, #tpu.memory_space<vmem>>, %arg5: memref<1x128xf32, #tpu.memory_space<vmem>>, %arg6: memref<9x128x128xf32, #tpu.memory_space<vmem>>, %arg7: memref<1x128xf32, #tpu.memory_space<vmem>>, %arg8: memref<128x6xf32, #tpu.memory_space<vmem>>, %arg9: memref<1x6xf32, #tpu.memory_space<vmem>>, %arg10: memref<1x1x6xf32, #tpu.memory_space<vmem>>, %arg11: memref<320x256xf32, #tpu.memory_space<vmem>>, %arg12: memref<320x128xf32, #tpu.memory_space<vmem>>) attributes {dimension_semantics = [#tpu.dimension_semantics<parallel>], iteration_bounds = array<i64: 2>, scalar_prefetch = 0 : i64, scratch_operands = 2 : i64, tpu.core_type = #tpu.core_type<tc>, window_params = [{transform_indices = @transform_0, window_bounds = array<i64: 1, 256, 4>}, {pipeline_mode = #tpu.pipeline_mode<synchronous>, transform_indices = @transform_1, window_bounds = array<i64: 4, 256>}, {pipeline_mode = #tpu.pipeline_mode<synchronous>, transform_indices = @transform_2, window_bounds = array<i64: 1, 256>}, {pipeline_mode = #tpu.pipeline_mode<synchronous>, transform_indices = @transform_3, window_bounds = array<i64: 9, 256, 128>}, {pipeline_mode = #tpu.pipeline_mode<synchronous>, transform_indices = @transform_4, window_bounds = array<i64: 1, 128>}, {pipeline_mode = #tpu.pipeline_mode<synchronous>, transform_indices = @transform_5, window_bounds = array<i64: 9, 128, 128>}, {pipeline_mode = #tpu.pipeline_mode<synchronous>, transform_indices = @transform_6, window_bounds = array<i64: 1, 128>}, {pipeline_mode = #tpu.pipeline_mode<synchronous>, transform_indices = @transform_7, window_bounds = array<i64: 128, 6>}, {pipeline_mode = #tpu.pipeline_mode<synchronous>, transform_indices = @transform_8, window_bounds = array<i64: 1, 6>}, {transform_indices = @transform_9, window_bounds = array<i64: 1, 1, 6>}]} {
    %0 = tpu.iota {dimensions = array<i32: 0>} : vector<256x1xi32>
    %c16_i32 = arith.constant 16 : i32
    %c0_i32 = arith.constant 0 : i32
    %1 = arith.cmpi eq, %c16_i32, %c0_i32 : i32
    %c1_i32 = arith.constant 1 : i32
    %2 = arith.select %1, %c1_i32, %c16_i32 : i32
    %3 = vector.broadcast %2 : i32 to vector<256x1xi32>
    %4 = arith.remsi %0, %3 : vector<256x1xi32>
    %c0_i32_0 = arith.constant 0 : i32
    %5 = vector.broadcast %c0_i32_0 : i32 to vector<256x1xi32>
    %6 = arith.cmpi ne, %4, %5 : vector<256x1xi32>
    %c0_i32_1 = arith.constant 0 : i32
    %7 = vector.broadcast %c0_i32_1 : i32 to vector<256x1xi32>
    %8 = arith.cmpi slt, %4, %7 : vector<256x1xi32>
    %c0_i32_2 = arith.constant 0 : i32
    %9 = arith.cmpi slt, %2, %c0_i32_2 : i32
    %10 = vector.broadcast %9 : i1 to vector<256x1xi1>
    %11 = vector.broadcast %10 : vector<256x1xi1> to vector<256x1xi1>
    %12 = arith.xori %8, %11 : vector<256x1xi1>
    %13 = arith.andi %12, %6 : vector<256x1xi1>
    %14 = vector.broadcast %2 : i32 to vector<256x1xi32>
    %15 = arith.addi %4, %14 : vector<256x1xi32>
    %16 = arith.select %13, %15, %4 : vector<256x1xi1>, vector<256x1xi32>
    %c0_i32_3 = arith.constant 0 : i32
    %17 = vector.broadcast %c0_i32_3 : i32 to vector<256x1xi32>
    %18 = arith.cmpi ne, %16, %17 : vector<256x1xi32>
    %c15_i32 = arith.constant 15 : i32
    %19 = vector.broadcast %c15_i32 : i32 to vector<256x1xi32>
    %20 = arith.cmpi ne, %16, %19 : vector<256x1xi32>
    %c0 = arith.constant 0 : index
    %c0_4 = arith.constant 0 : index
    %c0_5 = arith.constant 0 : index
    %21 = vector.load %arg1[%c0, %c0_4, %c0_5] : memref<1x256x4xf32, #tpu.memory_space<vmem>>, vector<1x256x4xf32>
    %22 = vector.shape_cast %21 : vector<1x256x4xf32> to vector<256x4xf32>
    %c0_6 = arith.constant 0 : index
    %c0_7 = arith.constant 0 : index
    %23 = vector.load %arg2[%c0_6, %c0_7] : memref<4x256xf32, #tpu.memory_space<vmem>>, vector<4x256xf32>
    %cst = arith.constant dense<0.000000e+00> : vector<256x256xf32>
    %24 = tpu.matmul %22, %23, %cst {dimension_numbers = #tpu.dot_dimension_numbers<[1], [0], [0], [1], [0, 0, 1, 1], [], []>} : vector<256x4xf32>, vector<4x256xf32>, vector<256x256xf32> -> vector<256x256xf32>
    %c0_8 = arith.constant 0 : index
    %c0_9 = arith.constant 0 : index
    %25 = vector.load %arg3[%c0_8, %c0_9] : memref<1x256xf32, #tpu.memory_space<vmem>>, vector<1x256xf32>
    %26 = vector.broadcast %25 : vector<1x256xf32> to vector<256x256xf32>
    %27 = arith.addf %24, %26 : vector<256x256xf32>
    %cst_10 = arith.constant 0.000000e+00 : f32
    %28 = vector.broadcast %cst_10 : f32 to vector<256x256xf32>
    %29 = arith.maximumf %27, %28 : vector<256x256xf32>
    %cst_11 = arith.constant 0.000000e+00 : f32
    %30 = vector.broadcast %cst_11 : f32 to vector<32x256xf32>
    %c0_12 = arith.constant 0 : index
    %c0_13 = arith.constant 0 : index
    %31 = vector.load %arg11[%c0_12, %c0_13] : memref<320x256xf32, #tpu.memory_space<vmem>>, vector<32x256xf32>
    tpu.vector_store %arg11[%c0_12, %c0_13], %30 {strides = array<i32>} : memref<320x256xf32, #tpu.memory_space<vmem>>, vector<32x256xf32>,
    %c32 = arith.constant 32 : index
    %c0_14 = arith.constant 0 : index
    %32 = vector.load %arg11[%c32, %c0_14] : memref<320x256xf32, #tpu.memory_space<vmem>>, vector<256x256xf32>
    tpu.vector_store %arg11[%c32, %c0_14], %29 {strides = array<i32>} : memref<320x256xf32, #tpu.memory_space<vmem>>, vector<256x256xf32>,
    %c288 = arith.constant 288 : index
    %c0_15 = arith.constant 0 : index
    %33 = vector.load %arg11[%c288, %c0_15] : memref<320x256xf32, #tpu.memory_space<vmem>>, vector<32x256xf32>
    tpu.vector_store %arg11[%c288, %c0_15], %30 {strides = array<i32>} : memref<320x256xf32, #tpu.memory_space<vmem>>, vector<32x256xf32>,
    %cst_16 = arith.constant 0.000000e+00 : f32
    %34 = vector.broadcast %cst_16 : f32 to vector<256x128xf32>
    %c15 = arith.constant 15 : index
    %c0_17 = arith.constant 0 : index
    %35 = vector.load %arg11[%c15, %c0_17] : memref<320x256xf32, #tpu.memory_space<vmem>>, vector<256x256xf32>
    %c0_18 = arith.constant 0 : index
    %c0_19 = arith.constant 0 : index
    %c0_20 = arith.constant 0 : index
    %36 = vector.load %arg4[%c0_18, %c0_19, %c0_20] : memref<9x256x128xf32, #tpu.memory_space<vmem>>, vector<1x256x128xf32>
    %37 = vector.shape_cast %36 : vector<1x256x128xf32> to vector<256x128xf32>
    %cst_21 = arith.constant dense<0.000000e+00> : vector<256x128xf32>
    %38 = tpu.matmul %35, %37, %cst_21 {dimension_numbers = #tpu.dot_dimension_numbers<[1], [0], [0], [1], [0, 0, 1, 1], [], []>} : vector<256x256xf32>, vector<256x128xf32>, vector<256x128xf32> -> vector<256x128xf32>
    %cst_22 = arith.constant 0.000000e+00 : f32
    %39 = vector.shape_cast %18 : vector<256x1xi1> to vector<256x1xi1>
    %40 = vector.broadcast %39 : vector<256x1xi1> to vector<256x128xi1>
    %41 = vector.broadcast %cst_22 : f32 to vector<256x128xf32>
    %42 = arith.select %40, %38, %41 : vector<256x128xi1>, vector<256x128xf32>
    %43 = arith.addf %34, %42 : vector<256x128xf32>
    %c16 = arith.constant 16 : index
    %c0_23 = arith.constant 0 : index
    %44 = vector.load %arg11[%c16, %c0_23] : memref<320x256xf32, #tpu.memory_space<vmem>>, vector<256x256xf32>
    %c1 = arith.constant 1 : index
    %c0_24 = arith.constant 0 : index
    %c0_25 = arith.constant 0 : index
    %45 = vector.load %arg4[%c1, %c0_24, %c0_25] : memref<9x256x128xf32, #tpu.memory_space<vmem>>, vector<1x256x128xf32>
    %46 = vector.shape_cast %45 : vector<1x256x128xf32> to vector<256x128xf32>
    %cst_26 = arith.constant dense<0.000000e+00> : vector<256x128xf32>
    %47 = tpu.matmul %44, %46, %cst_26 {dimension_numbers = #tpu.dot_dimension_numbers<[1], [0], [0], [1], [0, 0, 1, 1], [], []>} : vector<256x256xf32>, vector<256x128xf32>, vector<256x128xf32> -> vector<256x128xf32>
    %48 = arith.addf %43, %47 : vector<256x128xf32>
    %c17 = arith.constant 17 : index
    %c0_27 = arith.constant 0 : index
    %49 = vector.load %arg11[%c17, %c0_27] : memref<320x256xf32, #tpu.memory_space<vmem>>, vector<256x256xf32>
    %c2 = arith.constant 2 : index
    %c0_28 = arith.constant 0 : index
    %c0_29 = arith.constant 0 : index
    %50 = vector.load %arg4[%c2, %c0_28, %c0_29] : memref<9x256x128xf32, #tpu.memory_space<vmem>>, vector<1x256x128xf32>
    %51 = vector.shape_cast %50 : vector<1x256x128xf32> to vector<256x128xf32>
    %cst_30 = arith.constant dense<0.000000e+00> : vector<256x128xf32>
    %52 = tpu.matmul %49, %51, %cst_30 {dimension_numbers = #tpu.dot_dimension_numbers<[1], [0], [0], [1], [0, 0, 1, 1], [], []>} : vector<256x256xf32>, vector<256x128xf32>, vector<256x128xf32> -> vector<256x128xf32>
    %cst_31 = arith.constant 0.000000e+00 : f32
    %53 = vector.shape_cast %20 : vector<256x1xi1> to vector<256x1xi1>
    %54 = vector.broadcast %53 : vector<256x1xi1> to vector<256x128xi1>
    %55 = vector.broadcast %cst_31 : f32 to vector<256x128xf32>
    %56 = arith.select %54, %52, %55 : vector<256x128xi1>, vector<256x128xf32>
    %57 = arith.addf %48, %56 : vector<256x128xf32>
    %c31 = arith.constant 31 : index
    %c0_32 = arith.constant 0 : index
    %58 = vector.load %arg11[%c31, %c0_32] : memref<320x256xf32, #tpu.memory_space<vmem>>, vector<256x256xf32>
    %c3 = arith.constant 3 : index
    %c0_33 = arith.constant 0 : index
    %c0_34 = arith.constant 0 : index
    %59 = vector.load %arg4[%c3, %c0_33, %c0_34] : memref<9x256x128xf32, #tpu.memory_space<vmem>>, vector<1x256x128xf32>
    %60 = vector.shape_cast %59 : vector<1x256x128xf32> to vector<256x128xf32>
    %cst_35 = arith.constant dense<0.000000e+00> : vector<256x128xf32>
    %61 = tpu.matmul %58, %60, %cst_35 {dimension_numbers = #tpu.dot_dimension_numbers<[1], [0], [0], [1], [0, 0, 1, 1], [], []>} : vector<256x256xf32>, vector<256x128xf32>, vector<256x128xf32> -> vector<256x128xf32>
    %cst_36 = arith.constant 0.000000e+00 : f32
    %62 = vector.shape_cast %18 : vector<256x1xi1> to vector<256x1xi1>
    %63 = vector.broadcast %62 : vector<256x1xi1> to vector<256x128xi1>
    %64 = vector.broadcast %cst_36 : f32 to vector<256x128xf32>
    %65 = arith.select %63, %61, %64 : vector<256x128xi1>, vector<256x128xf32>
    %66 = arith.addf %57, %65 : vector<256x128xf32>
    %c32_37 = arith.constant 32 : index
    %c0_38 = arith.constant 0 : index
    %67 = vector.load %arg11[%c32_37, %c0_38] : memref<320x256xf32, #tpu.memory_space<vmem>>, vector<256x256xf32>
    %c4 = arith.constant 4 : index
    %c0_39 = arith.constant 0 : index
    %c0_40 = arith.constant 0 : index
    %68 = vector.load %arg4[%c4, %c0_39, %c0_40] : memref<9x256x128xf32, #tpu.memory_space<vmem>>, vector<1x256x128xf32>
    %69 = vector.shape_cast %68 : vector<1x256x128xf32> to vector<256x128xf32>
    %cst_41 = arith.constant dense<0.000000e+00> : vector<256x128xf32>
    %70 = tpu.matmul %67, %69, %cst_41 {dimension_numbers = #tpu.dot_dimension_numbers<[1], [0], [0], [1], [0, 0, 1, 1], [], []>} : vector<256x256xf32>, vector<256x128xf32>, vector<256x128xf32> -> vector<256x128xf32>
    %71 = arith.addf %66, %70 : vector<256x128xf32>
    %c33 = arith.constant 33 : index
    %c0_42 = arith.constant 0 : index
    %72 = vector.load %arg11[%c33, %c0_42] : memref<320x256xf32, #tpu.memory_space<vmem>>, vector<256x256xf32>
    %c5 = arith.constant 5 : index
    %c0_43 = arith.constant 0 : index
    %c0_44 = arith.constant 0 : index
    %73 = vector.load %arg4[%c5, %c0_43, %c0_44] : memref<9x256x128xf32, #tpu.memory_space<vmem>>, vector<1x256x128xf32>
    %74 = vector.shape_cast %73 : vector<1x256x128xf32> to vector<256x128xf32>
    %cst_45 = arith.constant dense<0.000000e+00> : vector<256x128xf32>
    %75 = tpu.matmul %72, %74, %cst_45 {dimension_numbers = #tpu.dot_dimension_numbers<[1], [0], [0], [1], [0, 0, 1, 1], [], []>} : vector<256x256xf32>, vector<256x128xf32>, vector<256x128xf32> -> vector<256x128xf32>
    %cst_46 = arith.constant 0.000000e+00 : f32
    %76 = vector.shape_cast %20 : vector<256x1xi1> to vector<256x1xi1>
    %77 = vector.broadcast %76 : vector<256x1xi1> to vector<256x128xi1>
    %78 = vector.broadcast %cst_46 : f32 to vector<256x128xf32>
    %79 = arith.select %77, %75, %78 : vector<256x128xi1>, vector<256x128xf32>
    %80 = arith.addf %71, %79 : vector<256x128xf32>
    %c47 = arith.constant 47 : index
    %c0_47 = arith.constant 0 : index
    %81 = vector.load %arg11[%c47, %c0_47] : memref<320x256xf32, #tpu.memory_space<vmem>>, vector<256x256xf32>
    %c6 = arith.constant 6 : index
    %c0_48 = arith.constant 0 : index
    %c0_49 = arith.constant 0 : index
    %82 = vector.load %arg4[%c6, %c0_48, %c0_49] : memref<9x256x128xf32, #tpu.memory_space<vmem>>, vector<1x256x128xf32>
    %83 = vector.shape_cast %82 : vector<1x256x128xf32> to vector<256x128xf32>
    %cst_50 = arith.constant dense<0.000000e+00> : vector<256x128xf32>
    %84 = tpu.matmul %81, %83, %cst_50 {dimension_numbers = #tpu.dot_dimension_numbers<[1], [0], [0], [1], [0, 0, 1, 1], [], []>} : vector<256x256xf32>, vector<256x128xf32>, vector<256x128xf32> -> vector<256x128xf32>
    %cst_51 = arith.constant 0.000000e+00 : f32
    %85 = vector.shape_cast %18 : vector<256x1xi1> to vector<256x1xi1>
    %86 = vector.broadcast %85 : vector<256x1xi1> to vector<256x128xi1>
    %87 = vector.broadcast %cst_51 : f32 to vector<256x128xf32>
    %88 = arith.select %86, %84, %87 : vector<256x128xi1>, vector<256x128xf32>
    %89 = arith.addf %80, %88 : vector<256x128xf32>
    %c48 = arith.constant 48 : index
    %c0_52 = arith.constant 0 : index
    %90 = vector.load %arg11[%c48, %c0_52] : memref<320x256xf32, #tpu.memory_space<vmem>>, vector<256x256xf32>
    %c7 = arith.constant 7 : index
    %c0_53 = arith.constant 0 : index
    %c0_54 = arith.constant 0 : index
    %91 = vector.load %arg4[%c7, %c0_53, %c0_54] : memref<9x256x128xf32, #tpu.memory_space<vmem>>, vector<1x256x128xf32>
    %92 = vector.shape_cast %91 : vector<1x256x128xf32> to vector<256x128xf32>
    %cst_55 = arith.constant dense<0.000000e+00> : vector<256x128xf32>
    %93 = tpu.matmul %90, %92, %cst_55 {dimension_numbers = #tpu.dot_dimension_numbers<[1], [0], [0], [1], [0, 0, 1, 1], [], []>} : vector<256x256xf32>, vector<256x128xf32>, vector<256x128xf32> -> vector<256x128xf32>
    %94 = arith.addf %89, %93 : vector<256x128xf32>
    %c49 = arith.constant 49 : index
    %c0_56 = arith.constant 0 : index
    %95 = vector.load %arg11[%c49, %c0_56] : memref<320x256xf32, #tpu.memory_space<vmem>>, vector<256x256xf32>
    %c8 = arith.constant 8 : index
    %c0_57 = arith.constant 0 : index
    %c0_58 = arith.constant 0 : index
    %96 = vector.load %arg4[%c8, %c0_57, %c0_58] : memref<9x256x128xf32, #tpu.memory_space<vmem>>, vector<1x256x128xf32>
    %97 = vector.shape_cast %96 : vector<1x256x128xf32> to vector<256x128xf32>
    %cst_59 = arith.constant dense<0.000000e+00> : vector<256x128xf32>
    %98 = tpu.matmul %95, %97, %cst_59 {dimension_numbers = #tpu.dot_dimension_numbers<[1], [0], [0], [1], [0, 0, 1, 1], [], []>} : vector<256x256xf32>, vector<256x128xf32>, vector<256x128xf32> -> vector<256x128xf32>
    %cst_60 = arith.constant 0.000000e+00 : f32
    %99 = vector.shape_cast %20 : vector<256x1xi1> to vector<256x1xi1>
    %100 = vector.broadcast %99 : vector<256x1xi1> to vector<256x128xi1>
    %101 = vector.broadcast %cst_60 : f32 to vector<256x128xf32>
    %102 = arith.select %100, %98, %101 : vector<256x128xi1>, vector<256x128xf32>
    %103 = arith.addf %94, %102 : vector<256x128xf32>
    %c0_61 = arith.constant 0 : index
    %c0_62 = arith.constant 0 : index
    %104 = vector.load %arg5[%c0_61, %c0_62] : memref<1x128xf32, #tpu.memory_space<vmem>>, vector<1x128xf32>
    %105 = vector.broadcast %104 : vector<1x128xf32> to vector<256x128xf32>
    %106 = arith.addf %103, %105 : vector<256x128xf32>
    %cst_63 = arith.constant 0.000000e+00 : f32
    %107 = vector.broadcast %cst_63 : f32 to vector<256x128xf32>
    %108 = arith.maximumf %106, %107 : vector<256x128xf32>
    %cst_64 = arith.constant 0.000000e+00 : f32
    %109 = vector.broadcast %cst_64 : f32 to vector<32x128xf32>
    %c0_65 = arith.constant 0 : index
    %c0_66 = arith.constant 0 : index
    %110 = vector.load %arg12[%c0_65, %c0_66] : memref<320x128xf32, #tpu.memory_space<vmem>>, vector<32x128xf32>
    tpu.vector_store %arg12[%c0_65, %c0_66], %109 {strides = array<i32>} : memref<320x128xf32, #tpu.memory_space<vmem>>, vector<32x128xf32>,
    %c32_67 = arith.constant 32 : index
    %c0_68 = arith.constant 0 : index
    %111 = vector.load %arg12[%c32_67, %c0_68] : memref<320x128xf32, #tpu.memory_space<vmem>>, vector<256x128xf32>
    tpu.vector_store %arg12[%c32_67, %c0_68], %108 {strides = array<i32>} : memref<320x128xf32, #tpu.memory_space<vmem>>, vector<256x128xf32>,
    %c288_69 = arith.constant 288 : index
    %c0_70 = arith.constant 0 : index
    %112 = vector.load %arg12[%c288_69, %c0_70] : memref<320x128xf32, #tpu.memory_space<vmem>>, vector<32x128xf32>
    tpu.vector_store %arg12[%c288_69, %c0_70], %109 {strides = array<i32>} : memref<320x128xf32, #tpu.memory_space<vmem>>, vector<32x128xf32>,
    %cst_71 = arith.constant 0.000000e+00 : f32
    %113 = vector.broadcast %cst_71 : f32 to vector<256x128xf32>
    %c15_72 = arith.constant 15 : index
    %c0_73 = arith.constant 0 : index
    %114 = vector.load %arg12[%c15_72, %c0_73] : memref<320x128xf32, #tpu.memory_space<vmem>>, vector<256x128xf32>
    %c0_74 = arith.constant 0 : index
    %c0_75 = arith.constant 0 : index
    %c0_76 = arith.constant 0 : index
    %115 = vector.load %arg6[%c0_74, %c0_75, %c0_76] : memref<9x128x128xf32, #tpu.memory_space<vmem>>, vector<1x128x128xf32>
    %116 = vector.shape_cast %115 : vector<1x128x128xf32> to vector<128x128xf32>
    %cst_77 = arith.constant dense<0.000000e+00> : vector<256x128xf32>
    %117 = tpu.matmul %114, %116, %cst_77 {dimension_numbers = #tpu.dot_dimension_numbers<[1], [0], [0], [1], [0, 0, 1, 1], [], []>} : vector<256x128xf32>, vector<128x128xf32>, vector<256x128xf32> -> vector<256x128xf32>
    %cst_78 = arith.constant 0.000000e+00 : f32
    %118 = vector.shape_cast %18 : vector<256x1xi1> to vector<256x1xi1>
    %119 = vector.broadcast %118 : vector<256x1xi1> to vector<256x128xi1>
    %120 = vector.broadcast %cst_78 : f32 to vector<256x128xf32>
    %121 = arith.select %119, %117, %120 : vector<256x128xi1>, vector<256x128xf32>
    %122 = arith.addf %113, %121 : vector<256x128xf32>
    %c16_79 = arith.constant 16 : index
    %c0_80 = arith.constant 0 : index
    %123 = vector.load %arg12[%c16_79, %c0_80] : memref<320x128xf32, #tpu.memory_space<vmem>>, vector<256x128xf32>
    %c1_81 = arith.constant 1 : index
    %c0_82 = arith.constant 0 : index
    %c0_83 = arith.constant 0 : index
    %124 = vector.load %arg6[%c1_81, %c0_82, %c0_83] : memref<9x128x128xf32, #tpu.memory_space<vmem>>, vector<1x128x128xf32>
    %125 = vector.shape_cast %124 : vector<1x128x128xf32> to vector<128x128xf32>
    %cst_84 = arith.constant dense<0.000000e+00> : vector<256x128xf32>
    %126 = tpu.matmul %123, %125, %cst_84 {dimension_numbers = #tpu.dot_dimension_numbers<[1], [0], [0], [1], [0, 0, 1, 1], [], []>} : vector<256x128xf32>, vector<128x128xf32>, vector<256x128xf32> -> vector<256x128xf32>
    %127 = arith.addf %122, %126 : vector<256x128xf32>
    %c17_85 = arith.constant 17 : index
    %c0_86 = arith.constant 0 : index
    %128 = vector.load %arg12[%c17_85, %c0_86] : memref<320x128xf32, #tpu.memory_space<vmem>>, vector<256x128xf32>
    %c2_87 = arith.constant 2 : index
    %c0_88 = arith.constant 0 : index
    %c0_89 = arith.constant 0 : index
    %129 = vector.load %arg6[%c2_87, %c0_88, %c0_89] : memref<9x128x128xf32, #tpu.memory_space<vmem>>, vector<1x128x128xf32>
    %130 = vector.shape_cast %129 : vector<1x128x128xf32> to vector<128x128xf32>
    %cst_90 = arith.constant dense<0.000000e+00> : vector<256x128xf32>
    %131 = tpu.matmul %128, %130, %cst_90 {dimension_numbers = #tpu.dot_dimension_numbers<[1], [0], [0], [1], [0, 0, 1, 1], [], []>} : vector<256x128xf32>, vector<128x128xf32>, vector<256x128xf32> -> vector<256x128xf32>
    %cst_91 = arith.constant 0.000000e+00 : f32
    %132 = vector.shape_cast %20 : vector<256x1xi1> to vector<256x1xi1>
    %133 = vector.broadcast %132 : vector<256x1xi1> to vector<256x128xi1>
    %134 = vector.broadcast %cst_91 : f32 to vector<256x128xf32>
    %135 = arith.select %133, %131, %134 : vector<256x128xi1>, vector<256x128xf32>
    %136 = arith.addf %127, %135 : vector<256x128xf32>
    %c31_92 = arith.constant 31 : index
    %c0_93 = arith.constant 0 : index
    %137 = vector.load %arg12[%c31_92, %c0_93] : memref<320x128xf32, #tpu.memory_space<vmem>>, vector<256x128xf32>
    %c3_94 = arith.constant 3 : index
    %c0_95 = arith.constant 0 : index
    %c0_96 = arith.constant 0 : index
    %138 = vector.load %arg6[%c3_94, %c0_95, %c0_96] : memref<9x128x128xf32, #tpu.memory_space<vmem>>, vector<1x128x128xf32>
    %139 = vector.shape_cast %138 : vector<1x128x128xf32> to vector<128x128xf32>
    %cst_97 = arith.constant dense<0.000000e+00> : vector<256x128xf32>
    %140 = tpu.matmul %137, %139, %cst_97 {dimension_numbers = #tpu.dot_dimension_numbers<[1], [0], [0], [1], [0, 0, 1, 1], [], []>} : vector<256x128xf32>, vector<128x128xf32>, vector<256x128xf32> -> vector<256x128xf32>
    %cst_98 = arith.constant 0.000000e+00 : f32
    %141 = vector.shape_cast %18 : vector<256x1xi1> to vector<256x1xi1>
    %142 = vector.broadcast %141 : vector<256x1xi1> to vector<256x128xi1>
    %143 = vector.broadcast %cst_98 : f32 to vector<256x128xf32>
    %144 = arith.select %142, %140, %143 : vector<256x128xi1>, vector<256x128xf32>
    %145 = arith.addf %136, %144 : vector<256x128xf32>
    %c32_99 = arith.constant 32 : index
    %c0_100 = arith.constant 0 : index
    %146 = vector.load %arg12[%c32_99, %c0_100] : memref<320x128xf32, #tpu.memory_space<vmem>>, vector<256x128xf32>
    %c4_101 = arith.constant 4 : index
    %c0_102 = arith.constant 0 : index
    %c0_103 = arith.constant 0 : index
    %147 = vector.load %arg6[%c4_101, %c0_102, %c0_103] : memref<9x128x128xf32, #tpu.memory_space<vmem>>, vector<1x128x128xf32>
    %148 = vector.shape_cast %147 : vector<1x128x128xf32> to vector<128x128xf32>
    %cst_104 = arith.constant dense<0.000000e+00> : vector<256x128xf32>
    %149 = tpu.matmul %146, %148, %cst_104 {dimension_numbers = #tpu.dot_dimension_numbers<[1], [0], [0], [1], [0, 0, 1, 1], [], []>} : vector<256x128xf32>, vector<128x128xf32>, vector<256x128xf32> -> vector<256x128xf32>
    %150 = arith.addf %145, %149 : vector<256x128xf32>
    %c33_105 = arith.constant 33 : index
    %c0_106 = arith.constant 0 : index
    %151 = vector.load %arg12[%c33_105, %c0_106] : memref<320x128xf32, #tpu.memory_space<vmem>>, vector<256x128xf32>
    %c5_107 = arith.constant 5 : index
    %c0_108 = arith.constant 0 : index
    %c0_109 = arith.constant 0 : index
    %152 = vector.load %arg6[%c5_107, %c0_108, %c0_109] : memref<9x128x128xf32, #tpu.memory_space<vmem>>, vector<1x128x128xf32>
    %153 = vector.shape_cast %152 : vector<1x128x128xf32> to vector<128x128xf32>
    %cst_110 = arith.constant dense<0.000000e+00> : vector<256x128xf32>
    %154 = tpu.matmul %151, %153, %cst_110 {dimension_numbers = #tpu.dot_dimension_numbers<[1], [0], [0], [1], [0, 0, 1, 1], [], []>} : vector<256x128xf32>, vector<128x128xf32>, vector<256x128xf32> -> vector<256x128xf32>
    %cst_111 = arith.constant 0.000000e+00 : f32
    %155 = vector.shape_cast %20 : vector<256x1xi1> to vector<256x1xi1>
    %156 = vector.broadcast %155 : vector<256x1xi1> to vector<256x128xi1>
    %157 = vector.broadcast %cst_111 : f32 to vector<256x128xf32>
    %158 = arith.select %156, %154, %157 : vector<256x128xi1>, vector<256x128xf32>
    %159 = arith.addf %150, %158 : vector<256x128xf32>
    %c47_112 = arith.constant 47 : index
    %c0_113 = arith.constant 0 : index
    %160 = vector.load %arg12[%c47_112, %c0_113] : memref<320x128xf32, #tpu.memory_space<vmem>>, vector<256x128xf32>
    %c6_114 = arith.constant 6 : index
    %c0_115 = arith.constant 0 : index
    %c0_116 = arith.constant 0 : index
    %161 = vector.load %arg6[%c6_114, %c0_115, %c0_116] : memref<9x128x128xf32, #tpu.memory_space<vmem>>, vector<1x128x128xf32>
    %162 = vector.shape_cast %161 : vector<1x128x128xf32> to vector<128x128xf32>
    %cst_117 = arith.constant dense<0.000000e+00> : vector<256x128xf32>
    %163 = tpu.matmul %160, %162, %cst_117 {dimension_numbers = #tpu.dot_dimension_numbers<[1], [0], [0], [1], [0, 0, 1, 1], [], []>} : vector<256x128xf32>, vector<128x128xf32>, vector<256x128xf32> -> vector<256x128xf32>
    %cst_118 = arith.constant 0.000000e+00 : f32
    %164 = vector.shape_cast %18 : vector<256x1xi1> to vector<256x1xi1>
    %165 = vector.broadcast %164 : vector<256x1xi1> to vector<256x128xi1>
    %166 = vector.broadcast %cst_118 : f32 to vector<256x128xf32>
    %167 = arith.select %165, %163, %166 : vector<256x128xi1>, vector<256x128xf32>
    %168 = arith.addf %159, %167 : vector<256x128xf32>
    %c48_119 = arith.constant 48 : index
    %c0_120 = arith.constant 0 : index
    %169 = vector.load %arg12[%c48_119, %c0_120] : memref<320x128xf32, #tpu.memory_space<vmem>>, vector<256x128xf32>
    %c7_121 = arith.constant 7 : index
    %c0_122 = arith.constant 0 : index
    %c0_123 = arith.constant 0 : index
    %170 = vector.load %arg6[%c7_121, %c0_122, %c0_123] : memref<9x128x128xf32, #tpu.memory_space<vmem>>, vector<1x128x128xf32>
    %171 = vector.shape_cast %170 : vector<1x128x128xf32> to vector<128x128xf32>
    %cst_124 = arith.constant dense<0.000000e+00> : vector<256x128xf32>
    %172 = tpu.matmul %169, %171, %cst_124 {dimension_numbers = #tpu.dot_dimension_numbers<[1], [0], [0], [1], [0, 0, 1, 1], [], []>} : vector<256x128xf32>, vector<128x128xf32>, vector<256x128xf32> -> vector<256x128xf32>
    %173 = arith.addf %168, %172 : vector<256x128xf32>
    %c49_125 = arith.constant 49 : index
    %c0_126 = arith.constant 0 : index
    %174 = vector.load %arg12[%c49_125, %c0_126] : memref<320x128xf32, #tpu.memory_space<vmem>>, vector<256x128xf32>
    %c8_127 = arith.constant 8 : index
    %c0_128 = arith.constant 0 : index
    %c0_129 = arith.constant 0 : index
    %175 = vector.load %arg6[%c8_127, %c0_128, %c0_129] : memref<9x128x128xf32, #tpu.memory_space<vmem>>, vector<1x128x128xf32>
    %176 = vector.shape_cast %175 : vector<1x128x128xf32> to vector<128x128xf32>
    %cst_130 = arith.constant dense<0.000000e+00> : vector<256x128xf32>
    %177 = tpu.matmul %174, %176, %cst_130 {dimension_numbers = #tpu.dot_dimension_numbers<[1], [0], [0], [1], [0, 0, 1, 1], [], []>} : vector<256x128xf32>, vector<128x128xf32>, vector<256x128xf32> -> vector<256x128xf32>
    %cst_131 = arith.constant 0.000000e+00 : f32
    %178 = vector.shape_cast %20 : vector<256x1xi1> to vector<256x1xi1>
    %179 = vector.broadcast %178 : vector<256x1xi1> to vector<256x128xi1>
    %180 = vector.broadcast %cst_131 : f32 to vector<256x128xf32>
    %181 = arith.select %179, %177, %180 : vector<256x128xi1>, vector<256x128xf32>
    %182 = arith.addf %173, %181 : vector<256x128xf32>
    %c0_132 = arith.constant 0 : index
    %c0_133 = arith.constant 0 : index
    %183 = vector.load %arg7[%c0_132, %c0_133] : memref<1x128xf32, #tpu.memory_space<vmem>>, vector<1x128xf32>
    %184 = vector.broadcast %183 : vector<1x128xf32> to vector<256x128xf32>
    %185 = arith.addf %182, %184 : vector<256x128xf32>
    %cst_134 = arith.constant 0.000000e+00 : f32
    %186 = vector.broadcast %cst_134 : f32 to vector<256x128xf32>
    %187 = arith.maximumf %185, %186 : vector<256x128xf32>
    %cst_135 = arith.constant dense<0.000000e+00> : vector<128xf32>
    %188 = vector.multi_reduction <add>, %187, %cst_135 [0] : vector<256x128xf32> to vector<128xf32>
    %189 = vector.shape_cast %188 : vector<128xf32> to vector<1x128xf32>
    %cst_136 = arith.constant 3.906250e-03 : f32
    %190 = vector.broadcast %cst_136 : f32 to vector<1x128xf32>
    %191 = arith.mulf %189, %190 : vector<1x128xf32>
    %c0_137 = arith.constant 0 : index
    %c0_138 = arith.constant 0 : index
    %192 = vector.load %arg8[%c0_137, %c0_138] : memref<128x6xf32, #tpu.memory_space<vmem>>, vector<128x6xf32>
    %cst_139 = arith.constant dense<0.000000e+00> : vector<1x6xf32>
    %193 = tpu.matmul %191, %192, %cst_139 {dimension_numbers = #tpu.dot_dimension_numbers<[1], [0], [0], [1], [0, 0, 1, 1], [], []>} : vector<1x128xf32>, vector<128x6xf32>, vector<1x6xf32> -> vector<1x6xf32>
    %c0_140 = arith.constant 0 : index
    %c0_141 = arith.constant 0 : index
    %194 = vector.load %arg9[%c0_140, %c0_141] : memref<1x6xf32, #tpu.memory_space<vmem>>, vector<1x6xf32>
    %195 = arith.addf %193, %194 : vector<1x6xf32>
    %cst_142 = arith.constant 0.00999999977 : f32
    %196 = vector.broadcast %cst_142 : f32 to vector<1x6xf32>
    %197 = arith.mulf %196, %195 : vector<1x6xf32>
    %c0_143 = arith.constant 0 : index
    %c0_144 = arith.constant 0 : index
    %c0_145 = arith.constant 0 : index
    %198 = vector.load %arg10[%c0_143, %c0_144, %c0_145] : memref<1x1x6xf32, #tpu.memory_space<vmem>>, vector<1x1x6xf32>
    %199 = vector.shape_cast %198 : vector<1x1x6xf32> to vector<1x6xf32>
    %200 = vector.shape_cast %197 : vector<1x6xf32> to vector<1x1x6xf32>
    tpu.vector_store %arg10[%c0_143, %c0_144, %c0_145], %200 {strides = array<i32>} : memref<1x1x6xf32, #tpu.memory_space<vmem>>, vector<1x1x6xf32>,
    return
  }
  func.func @transform_0(%arg0: i32) -> (i32, i32, i32) {
    %c0_i32 = arith.constant 0 : i32
    %c0_i32_0 = arith.constant 0 : i32
    %c0_i32_1 = arith.constant 0 : i32
    return %arg0, %c0_i32, %c0_i32_0 : i32, i32, i32
  }
  func.func @transform_1(%arg0: i32) -> (i32, i32) {
    %c0_i32 = arith.constant 0 : i32
    %c0_i32_0 = arith.constant 0 : i32
    %c0_i32_1 = arith.constant 0 : i32
    return %c0_i32, %c0_i32_0 : i32, i32
  }
  func.func @transform_2(%arg0: i32) -> (i32, i32) {
    %c0_i32 = arith.constant 0 : i32
    %c0_i32_0 = arith.constant 0 : i32
    %c0_i32_1 = arith.constant 0 : i32
    return %c0_i32, %c0_i32_0 : i32, i32
  }
  func.func @transform_3(%arg0: i32) -> (i32, i32, i32) {
    %c0_i32 = arith.constant 0 : i32
    %c0_i32_0 = arith.constant 0 : i32
    %c0_i32_1 = arith.constant 0 : i32
    %c0_i32_2 = arith.constant 0 : i32
    return %c0_i32, %c0_i32_0, %c0_i32_1 : i32, i32, i32
  }
  func.func @transform_4(%arg0: i32) -> (i32, i32) {
    %c0_i32 = arith.constant 0 : i32
    %c0_i32_0 = arith.constant 0 : i32
    %c0_i32_1 = arith.constant 0 : i32
    return %c0_i32, %c0_i32_0 : i32, i32
  }
  func.func @transform_5(%arg0: i32) -> (i32, i32, i32) {
    %c0_i32 = arith.constant 0 : i32
    %c0_i32_0 = arith.constant 0 : i32
    %c0_i32_1 = arith.constant 0 : i32
    %c0_i32_2 = arith.constant 0 : i32
    return %c0_i32, %c0_i32_0, %c0_i32_1 : i32, i32, i32
  }
  func.func @transform_6(%arg0: i32) -> (i32, i32) {
    %c0_i32 = arith.constant 0 : i32
    %c0_i32_0 = arith.constant 0 : i32
    %c0_i32_1 = arith.constant 0 : i32
    return %c0_i32, %c0_i32_0 : i32, i32
  }
  func.func @transform_7(%arg0: i32) -> (i32, i32) {
    %c0_i32 = arith.constant 0 : i32
    %c0_i32_0 = arith.constant 0 : i32
    %c0_i32_1 = arith.constant 0 : i32
    return %c0_i32, %c0_i32_0 : i32, i32
  }
  func.func @transform_8(%arg0: i32) -> (i32, i32) {
    %c0_i32 = arith.constant 0 : i32
    %c0_i32_0 = arith.constant 0 : i32
    %c0_i32_1 = arith.constant 0 : i32
    return %c0_i32, %c0_i32_0 : i32, i32
  }
  func.func @transform_9(%arg0: i32) -> (i32, i32, i32) {
    %c0_i32 = arith.constant 0 : i32
    %c0_i32_0 = arith.constant 0 : i32
    %c0_i32_1 = arith.constant 0 : i32
    return %arg0, %c0_i32, %c0_i32_0 : i32, i32, i32
  }
}

</mosaic_0001>

<llo_original>
// kernel: tpu_custom_call.1
$region0: #{tpu_custom_call.1}
  #allocation0 [shape = 'u32[]', space=smem, size = 0x4, offset = 0x4, fixed_abs, tag = 'smem constant byte address 0x4 - core index']
  #allocation1 [shape = 'u32[72,128]{1,0:T(1,128)}', space=vmem, size = 0x9000, scoped, tag = 'internal scratch']
  #allocation2 [shape = 'f32[320,256]{1,0:T(8,128)}', space=vmem, size = 0x50000, scoped, tag = 'scratch operand']
  #allocation3 [shape = 'f32[320,128]{1,0:T(8,128)}', space=vmem, size = 0x28000, scoped, tag = 'scratch operand']
  %s0 = inlined_call_operand.vmem [shape: f32[2,256,4], index: 0, kind: input, shape index: {}]
  %s1 = inlined_call_operand.hbm [shape: f32[4,256], index: 1, kind: input, shape index: {}]
  %s2 = inlined_call_operand.hbm [shape: f32[1,256], index: 2, kind: input, shape index: {}]
  %s3 = inlined_call_operand.hbm [shape: f32[9,256,128], index: 3, kind: input, shape index: {}]
  %s4 = inlined_call_operand.hbm [shape: f32[1,128], index: 4, kind: input, shape index: {}]
  %s5 = inlined_call_operand.hbm [shape: f32[9,128,128], index: 5, kind: input, shape index: {}]
  %s6 = inlined_call_operand.hbm [shape: f32[1,128], index: 6, kind: input, shape index: {}]
  %s7 = inlined_call_operand.vmem [shape: f32[128,6], index: 7, kind: input, shape index: {}]
  %s8 = inlined_call_operand.hbm [shape: f32[1,6], index: 8, kind: input, shape index: {}]
  %s9 = inlined_call_operand.hbm [shape: f32[2,1,6], index: 9, kind: output, shape index: {}]
  %s10 = sld [smem:[#allocation0]]
  $region97: #{tpu_custom_call.1} parent=0
    _
  %s12 = ssub.s32 1, %s10
  %s13 = scalar_select 0, %s12, %s10
  $region1: #{tpu_custom_call.1} parent=0
    #allocation4 [shape = 'u8[4096]{0}', space=vmem, size = 0x1000, scoped, tag = 'input window, operand 1, single buffered']
    #allocation5 [shape = 's32[2]{0}', space=sflag, size = 0x8, scoped, tag = 'scoped memory for tpu_custom_call.1']
    #allocation6 [shape = 's32[2]{0}', space=sflag, size = 0x8, scoped, tag = 'scoped memory for tpu_custom_call.1']
    #allocation7 [shape = 'u8[1024]{0}', space=vmem, size = 0x400, scoped, tag = 'input window, operand 2, single buffered']
    #allocation8 [shape = 's32[1]{0}', space=sflag, size = 0x4, scoped, tag = 'scoped memory for tpu_custom_call.1']
    #allocation9 [shape = 'u8[1179648]{0}', space=vmem, size = 0x120000, scoped, tag = 'input window, operand 3, single buffered']
    #allocation10 [shape = 'u8[512]{0}', space=vmem, size = 0x400, scoped, tag = 'input window, operand 4, single buffered']
    #allocation11 [shape = 's32[1]{0}', space=sflag, size = 0x4, scoped, tag = 'scoped memory for tpu_custom_call.1']
    #allocation12 [shape = 'u8[589824]{0}', space=vmem, size = 0x90000, scoped, tag = 'input window, operand 5, single buffered']
    #allocation13 [shape = 'u8[512]{0}', space=vmem, size = 0x400, scoped, tag = 'input window, operand 6, single buffered']
    #allocation14 [shape = 's32[1]{0}', space=sflag, size = 0x4, scoped, tag = 'scoped memory for tpu_custom_call.1']
    #allocation15 [shape = 'u8[512]{0}', space=vmem, size = 0x400, scoped, tag = 'input window, operand 8, single buffered']
    #allocation16 [shape = 'u8[1024]{0}', space=vmem, size = 0x400, scoped, tag = 'output window, operand 0']
    %14 = vsyncpa [#allocation5], 0
    %15 = vsyncpa [#allocation8], 0
    %16 = vsyncpa [#allocation11], 0
    %17 = vsyncpa [#allocation14], 0
    %18 = vsyncpa [#allocation6], 0
    %s19 = scalar_lea.sflag [#allocation6], 1
    %20 = vsyncpa %s19, 0
    loop: start=0, step=1, limit=4
    $region2: #{tpu_custom_call.1} parent=1 // loop_pre_header
      _
    $region3: #{tpu_custom_call.1} parent=1 // loop_header
      %s22 = sphi 0, %s26
      %p23 = scmp.ge.s32.totalorder %s22, 4
      %s32 = sphi 0, %s34
      %s35 = sphi 0, %s32
      %s36 = sphi 0, %s35
      %s52 = sphi 0, %s36
      %s56 = sphi 0, %s56
      %s58 = sphi 0, %s56
      %s59 = sphi 0, %s58
      %s73 = sphi 0, %s59
      %s77 = sphi 0, %s77
      %s79 = sphi 0, %s77
      %s80 = sphi 0, %s79
      %s94 = sphi 0, %s80
      %s98 = sphi 0, %s98
      %s100 = sphi 0, %s98
      %s101 = sphi 0, %s100
      %s115 = sphi 0, %s101
      %s119 = sphi 0, %s119
      %s121 = sphi 0, %s119
      %s122 = sphi 0, %s121
      %s136 = sphi 0, %s122
      %s140 = sphi 0, %s140
      %s142 = sphi 0, %s140
      %s143 = sphi 0, %s142
      %s157 = sphi 0, %s143
      %s161 = sphi 0, %s161
      %s163 = sphi 0, %s161
      %s164 = sphi 0, %s163
      %s178 = sphi 0, %s164
      %s182 = sphi 0, %s182
      %s184 = sphi 0, %s182
      %s185 = sphi 0, %s184
      %s199 = sphi 0, %s185
      %s203 = sphi 0, %s203
      %s205 = sphi 0, %s203
      %s206 = sphi 0, %s205
      %s220 = sphi 0, %s206
      %s226 = sphi 0, %s228
      %s229 = sphi 0, %s226
      %s230 = sphi 0, %s229
      %s246 = sphi 0, %s230
    $region4: #{tpu_custom_call.1} parent=1 // loop_header_branch
      %25 = sbr.rel (%p23) target = $region8
    $region5: #{tpu_custom_call.1} parent=1 // loop_body
      %s27 = ssub.s32 %s22, 1
      %s28 = ssub.s32 %s22, 2
      %s29 = sadd.s32 %s22, 1
      %s30 = ssub.s32 %s22, %s29
      %p31 = scmp.eq.s32.totalorder %s30, 0
      %s33 = sadd.s32 %s32, 1
      %s34 = scalar_select %p31, %s32, %s33
      %p37 = pneg %p31
      %p38 = scmp.eq.s32.totalorder %s22, 1
      %p39 = por %p37, %p38
      %p40 = scmp.ne.s32.totalorder %s32, %s35
      %p41 = scmp.eq.s32.totalorder %s22, 0
      %p42 = por %p40, %p41
      %p43 = scmp.ne.s32.totalorder %s32, %s35
      %p44 = scmp.eq.s32.totalorder %s27, 1
      %p45 = por %p43, %p44
      %p46 = scmp.ne.s32.totalorder %s35, %s36
      %p47 = scmp.eq.s32.totalorder %s27, 0
      %p48 = por %p46, %p47
      %p49 = scmp.ne.s32.totalorder %s35, %s36
      %p50 = scmp.eq.s32.totalorder %s28, 1
      %p51 = por %p49, %p50
      %p53 = scmp.ne.s32.totalorder %s36, %s52
      %p54 = scmp.eq.s32.totalorder %s28, 0
      %p55 = por %p53, %p54
      %s57 = sadd.s32 %s56, 1
      %p60 = scmp.eq.s32.totalorder %s22, 1
      %p61 = scmp.ne.s32.totalorder %s56, %s58
      %p62 = scmp.eq.s32.totalorder %s22, 0
      %p63 = por %p61, %p62
      %p64 = scmp.ne.s32.totalorder %s56, %s58
      %p65 = scmp.eq.s32.totalorder %s27, 1
      %p66 = por %p64, %p65
      %p67 = scmp.ne.s32.totalorder %s58, %s59
      %p68 = scmp.eq.s32.totalorder %s27, 0
      %p69 = por %p67, %p68
      %p70 = scmp.ne.s32.totalorder %s58, %s59
      %p71 = scmp.eq.s32.totalorder %s28, 1
      %p72 = por %p70, %p71
      %p74 = scmp.ne.s32.totalorder %s59, %s73
      %p75 = scmp.eq.s32.totalorder %s28, 0
      %p76 = por %p74, %p75
      %s78 = sadd.s32 %s77, 1
      %p81 = scmp.eq.s32.totalorder %s22, 1
      %p82 = scmp.ne.s32.totalorder %s77, %s79
      %p83 = scmp.eq.s32.totalorder %s22, 0
      %p84 = por %p82, %p83
      %p85 = scmp.ne.s32.totalorder %s77, %s79
      %p86 = scmp.eq.s32.totalorder %s27, 1
      %p87 = por %p85, %p86
      %p88 = scmp.ne.s32.totalorder %s79, %s80
      %p89 = scmp.eq.s32.totalorder %s27, 0
      %p90 = por %p88, %p89
      %p91 = scmp.ne.s32.totalorder %s79, %s80
      %p92 = scmp.eq.s32.totalorder %s28, 1
      %p93 = por %p91, %p92
      %p95 = scmp.ne.s32.totalorder %s80, %s94
      %p96 = scmp.eq.s32.totalorder %s28, 0
      %p97 = por %p95, %p96
      %s99 = sadd.s32 %s98, 1
      %p102 = scmp.eq.s32.totalorder %s22, 1
      %p103 = scmp.ne.s32.totalorder %s98, %s100
      %p104 = scmp.eq.s32.totalorder %s22, 0
      %p105 = por %p103, %p104
      %p106 = scmp.ne.s32.totalorder %s98, %s100
      %p107 = scmp.eq.s32.totalorder %s27, 1
      %p108 = por %p106, %p107
      %p109 = scmp.ne.s32.totalorder %s100, %s101
      %p110 = scmp.eq.s32.totalorder %s27, 0
      %p111 = por %p109, %p110
      %p112 = scmp.ne.s32.totalorder %s100, %s101
      %p113 = scmp.eq.s32.totalorder %s28, 1
      %p114 = por %p112, %p113
      %p116 = scmp.ne.s32.totalorder %s101, %s115
      %p117 = scmp.eq.s32.totalorder %s28, 0
      %p118 = por %p116, %p117
      %s120 = sadd.s32 %s119, 1
      %p123 = scmp.eq.s32.totalorder %s22, 1
      %p124 = scmp.ne.s32.totalorder %s119, %s121
      %p125 = scmp.eq.s32.totalorder %s22, 0
      %p126 = por %p124, %p125
      %p127 = scmp.ne.s32.totalorder %s119, %s121
      %p128 = scmp.eq.s32.totalorder %s27, 1
      %p129 = por %p127, %p128
      %p130 = scmp.ne.s32.totalorder %s121, %s122
      %p131 = scmp.eq.s32.totalorder %s27, 0
      %p132 = por %p130, %p131
      %p133 = scmp.ne.s32.totalorder %s121, %s122
      %p134 = scmp.eq.s32.totalorder %s28, 1
      %p135 = por %p133, %p134
      %p137 = scmp.ne.s32.totalorder %s122, %s136
      %p138 = scmp.eq.s32.totalorder %s28, 0
      %p139 = por %p137, %p138
      %s141 = sadd.s32 %s140, 1
      %p144 = scmp.eq.s32.totalorder %s22, 1
      %p145 = scmp.ne.s32.totalorder %s140, %s142
      %p146 = scmp.eq.s32.totalorder %s22, 0
      %p147 = por %p145, %p146
      %p148 = scmp.ne.s32.totalorder %s140, %s142
      %p149 = scmp.eq.s32.totalorder %s27, 1
      %p150 = por %p148, %p149
      %p151 = scmp.ne.s32.totalorder %s142, %s143
      %p152 = scmp.eq.s32.totalorder %s27, 0
      %p153 = por %p151, %p152
      %p154 = scmp.ne.s32.totalorder %s142, %s143
      %p155 = scmp.eq.s32.totalorder %s28, 1
      %p156 = por %p154, %p155
      %p158 = scmp.ne.s32.totalorder %s143, %s157
      %p159 = scmp.eq.s32.totalorder %s28, 0
      %p160 = por %p158, %p159
      %s162 = sadd.s32 %s161, 1
      %p165 = scmp.eq.s32.totalorder %s22, 1
      %p166 = scmp.ne.s32.totalorder %s161, %s163
      %p167 = scmp.eq.s32.totalorder %s22, 0
      %p168 = por %p166, %p167
      %p169 = scmp.ne.s32.totalorder %s161, %s163
      %p170 = scmp.eq.s32.totalorder %s27, 1
      %p171 = por %p169, %p170
      %p172 = scmp.ne.s32.totalorder %s163, %s164
      %p173 = scmp.eq.s32.totalorder %s27, 0
      %p174 = por %p172, %p173
      %p175 = scmp.ne.s32.totalorder %s163, %s164
      %p176 = scmp.eq.s32.totalorder %s28, 1
      %p177 = por %p175, %p176
      %p179 = scmp.ne.s32.totalorder %s164, %s178
      %p180 = scmp.eq.s32.totalorder %s28, 0
      %p181 = por %p179, %p180
      %s183 = sadd.s32 %s182, 1
      %p186 = scmp.eq.s32.totalorder %s22, 1
      %p187 = scmp.ne.s32.totalorder %s182, %s184
      %p188 = scmp.eq.s32.totalorder %s22, 0
      %p189 = por %p187, %p188
      %p190 = scmp.ne.s32.totalorder %s182, %s184
      %p191 = scmp.eq.s32.totalorder %s27, 1
      %p192 = por %p190, %p191
      %p193 = scmp.ne.s32.totalorder %s184, %s185
      %p194 = scmp.eq.s32.totalorder %s27, 0
      %p195 = por %p193, %p194
      %p196 = scmp.ne.s32.totalorder %s184, %s185
      %p197 = scmp.eq.s32.totalorder %s28, 1
      %p198 = por %p196, %p197
      %p200 = scmp.ne.s32.totalorder %s185, %s199
      %p201 = scmp.eq.s32.totalorder %s28, 0
      %p202 = por %p200, %p201
      %s204 = sadd.s32 %s203, 1
      %p207 = scmp.eq.s32.totalorder %s22, 1
      %p208 = scmp.ne.s32.totalorder %s203, %s205
      %p209 = scmp.eq.s32.totalorder %s22, 0
      %p210 = por %p208, %p209
      %p211 = scmp.ne.s32.totalorder %s203, %s205
      %p212 = scmp.eq.s32.totalorder %s27, 1
      %p213 = por %p211, %p212
      %p214 = scmp.ne.s32.totalorder %s205, %s206
      %p215 = scmp.eq.s32.totalorder %s27, 0
      %p216 = por %p214, %p215
      %p217 = scmp.ne.s32.totalorder %s205, %s206
      %p218 = scmp.eq.s32.totalorder %s28, 1
      %p219 = por %p217, %p218
      %p221 = scmp.ne.s32.totalorder %s206, %s220
      %p222 = scmp.eq.s32.totalorder %s28, 0
      %p223 = por %p221, %p222
      %s224 = ssub.s32 %s22, %s29
      %p225 = scmp.eq.s32.totalorder %s224, 0
      %s227 = sadd.s32 %s226, 1
      %s228 = scalar_select %p225, %s226, %s227
      %p231 = pneg %p225
      %p232 = scmp.eq.s32.totalorder %s22, 1
      %p233 = por %p231, %p232
      %p234 = scmp.ne.s32.totalorder %s226, %s229
      %p235 = scmp.eq.s32.totalorder %s22, 0
      %p236 = por %p234, %p235
      %p237 = scmp.ne.s32.totalorder %s226, %s229
      %p238 = scmp.eq.s32.totalorder %s27, 1
      %p239 = por %p237, %p238
      %p240 = scmp.ne.s32.totalorder %s229, %s230
      %p241 = scmp.eq.s32.totalorder %s27, 0
      %p242 = por %p240, %p241
      %p243 = scmp.ne.s32.totalorder %s229, %s230
      %p244 = scmp.eq.s32.totalorder %s28, 1
      %p245 = por %p243, %p244
      %p247 = scmp.ne.s32.totalorder %s230, %s246
      %p248 = scmp.eq.s32.totalorder %s28, 0
      %p249 = por %p247, %p248
      %p250 = scmp.le.s32.totalorder 1, %s22
      %p251 = scmp.lt.s32.totalorder %s22, 3
      %p252 = pnand %p250, %p251
      %p253 = pneg %p252
      // Predicated region
      $region9: #{tpu_custom_call.1} parent=5 // pred_check
        _
      $region10: #{tpu_custom_call.1} parent=5 // pred_check_branch
        %255 = sbr.rel (%p252) target = $region12
      $region11: #{tpu_custom_call.1} parent=5 // pred_region
        %s256 = ssub.s32 %s22, 1
        // Predicated region
        $region13: #{tpu_custom_call.1} parent=11 // pred_check
          %p257 = pneg %p69
        $region14: #{tpu_custom_call.1} parent=11 // pred_check_branch
          %259 = sbr.rel (%p257) target = $region16
        $region15: #{tpu_custom_call.1} parent=11 // pred_region
          %261 = vsyncadd [#allocation5], 0
          %s263 = sshll.u32 %s1, 4
          %s264 = int_to_ptr.hbm [resolvable:$true] %s263
          %s265 = sshll.u32 [#allocation4], 4
          %s266 = int_to_ptr.vmem [resolvable:$true] %s265
          %268 = dma.hbm_to_vmem [thread:$0]  %s264, 128, %s266, [#allocation5]
        $region16: #{tpu_custom_call.1} parent=11 // pred_fallthru
          _
        // Predicated region
        $region17: #{tpu_custom_call.1} parent=11 // pred_check
          %p269 = pneg %p90
        $region18: #{tpu_custom_call.1} parent=11 // pred_check_branch
          %271 = sbr.rel (%p269) target = $region20
        $region19: #{tpu_custom_call.1} parent=11 // pred_region
          %273 = vsyncadd [#allocation8], 0
          %s275 = sshll.u32 %s2, 4
          %s276 = int_to_ptr.hbm [resolvable:$true] %s275
          %s277 = sshll.u32 [#allocation7], 4
          %s278 = int_to_ptr.vmem [resolvable:$true] %s277
          %280 = dma.hbm_to_vmem [thread:$0]  %s276, 32, %s278, [#allocation8]
        $region20: #{tpu_custom_call.1} parent=11 // pred_fallthru
          _
        // Predicated region
        $region21: #{tpu_custom_call.1} parent=11 // pred_check
          %p281 = pneg %p111
        $region22: #{tpu_custom_call.1} parent=11 // pred_check_branch
          %283 = sbr.rel (%p281) target = $region24
        $region23: #{tpu_custom_call.1} parent=11 // pred_region
          %285 = vsyncadd [#allocation8], 0
          %s286 = sshll.u32 %s3, 4
          %s287 = int_to_ptr.hbm [resolvable:$true] %s286
          %s288 = sshll.u32 [#allocation9], 4
          %s289 = int_to_ptr.vmem [resolvable:$true] %s288
          %294 = dma.hbm_to_vmem [thread:$0]  %s287, 36864, %s289, [#allocation8], 128, 128, 8
        $region24: #{tpu_custom_call.1} parent=11 // pred_fallthru
          _
        // Predicated region
        $region25: #{tpu_custom_call.1} parent=11 // pred_check
          %p295 = pneg %p132
        $region26: #{tpu_custom_call.1} parent=11 // pred_check_branch
          %297 = sbr.rel (%p295) target = $region28
        $region27: #{tpu_custom_call.1} parent=11 // pred_region
          %299 = vsyncadd [#allocation11], 0
          %s301 = sshll.u32 %s4, 4
          %s302 = int_to_ptr.hbm [resolvable:$true] %s301
          %s303 = sshll.u32 [#allocation10], 4
          %s304 = int_to_ptr.vmem [resolvable:$true] %s303
          %306 = dma.hbm_to_vmem [thread:$0]  %s302, 16, %s304, [#allocation11]
        $region28: #{tpu_custom_call.1} parent=11 // pred_fallthru
          _
        // Predicated region
        $region29: #{tpu_custom_call.1} parent=11 // pred_check
          %p307 = pneg %p153
        $region30: #{tpu_custom_call.1} parent=11 // pred_check_branch
          %309 = sbr.rel (%p307) target = $region32
        $region31: #{tpu_custom_call.1} parent=11 // pred_region
          %311 = vsyncadd [#allocation11], 0
          %s312 = sshll.u32 %s5, 4
          %s313 = int_to_ptr.hbm [resolvable:$true] %s312
          %s314 = sshll.u32 [#allocation12], 4
          %s315 = int_to_ptr.vmem [resolvable:$true] %s314
          %320 = dma.hbm_to_vmem [thread:$0]  %s313, 18432, %s315, [#allocation11], 128, 128, 8
        $region32: #{tpu_custom_call.1} parent=11 // pred_fallthru
          _
        // Predicated region
        $region33: #{tpu_custom_call.1} parent=11 // pred_check
          %p321 = pneg %p174
        $region34: #{tpu_custom_call.1} parent=11 // pred_check_branch
          %323 = sbr.rel (%p321) target = $region36
        $region35: #{tpu_custom_call.1} parent=11 // pred_region
          %325 = vsyncadd [#allocation14], 0
          %s327 = sshll.u32 %s6, 4
          %s328 = int_to_ptr.hbm [resolvable:$true] %s327
          %s329 = sshll.u32 [#allocation13], 4
          %s330 = int_to_ptr.vmem [resolvable:$true] %s329
          %332 = dma.hbm_to_vmem [thread:$0]  %s328, 16, %s330, [#allocation14]
        $region36: #{tpu_custom_call.1} parent=11 // pred_fallthru
          _
        // Predicated region
        $region37: #{tpu_custom_call.1} parent=11 // pred_check
          %p333 = pneg %p195
        $region38: #{tpu_custom_call.1} parent=11 // pred_check_branch
          %335 = sbr.rel (%p333) target = $region40
        $region39: #{tpu_custom_call.1} parent=11 // pred_region
          _
        $region40: #{tpu_custom_call.1} parent=11 // pred_fallthru
          _
        // Predicated region
        $region41: #{tpu_custom_call.1} parent=11 // pred_check
          %p336 = pneg %p216
        $region42: #{tpu_custom_call.1} parent=11 // pred_check_branch
          %338 = sbr.rel (%p336) target = $region44
        $region43: #{tpu_custom_call.1} parent=11 // pred_region
          %340 = vsyncadd [#allocation14], 0
          %s342 = sshll.u32 %s8, 4
          %s343 = int_to_ptr.hbm [resolvable:$true] %s342
          %s344 = sshll.u32 [#allocation15], 4
          %s345 = int_to_ptr.vmem [resolvable:$true] %s344
          %347 = dma.hbm_to_vmem [thread:$0]  %s343, 16, %s345, [#allocation14]
        $region44: #{tpu_custom_call.1} parent=11 // pred_fallthru
          _
      $region12: #{tpu_custom_call.1} parent=5 // pred_fallthru
        _
      %p348 = scmp.lt.s32.totalorder %s22, 2
      // Predicated region
      $region45: #{tpu_custom_call.1} parent=5 // pred_check
        %p349 = pneg %p348
      $region46: #{tpu_custom_call.1} parent=5 // pred_check_branch
        %351 = sbr.rel (%p349) target = $region48
      $region47: #{tpu_custom_call.1} parent=5 // pred_region
        // Predicated region
        $region49: #{tpu_custom_call.1} parent=47 // pred_check
          %p352 = pneg %p42
        $region50: #{tpu_custom_call.1} parent=47 // pred_check_branch
          %354 = sbr.rel (%p352) target = $region52
        $region51: #{tpu_custom_call.1} parent=47 // pred_region
          %p355 = scmp.lt.s32.totalorder %s22, 1
          %s356 = scalar_select %p355, %s22, 1
          %s357 = smul.addr %s356, 32
          %s358 = smul.addr %s357, 8
          %s359 = scalar_lea.vmem %s0, %s358
        $region52: #{tpu_custom_call.1} parent=47 // pred_fallthru
          _
      $region48: #{tpu_custom_call.1} parent=5 // pred_fallthru
        _
      %p360 = scmp.le.s32.totalorder 1, %s22
      %p361 = scmp.lt.s32.totalorder %s22, 3
      %p362 = pnand %p360, %p361
      %p363 = pneg %p362
      // Predicated region
      $region53: #{tpu_custom_call.1} parent=5 // pred_check
        _
      $region54: #{tpu_custom_call.1} parent=5 // pred_check_branch
        %365 = sbr.rel (%p362) target = $region56
      $region55: #{tpu_custom_call.1} parent=5 // pred_region
        %s366 = ssub.s32 %s22, 1
        // Predicated region
        $region57: #{tpu_custom_call.1} parent=55 // pred_check
          %p367 = pneg %p69
        $region58: #{tpu_custom_call.1} parent=55 // pred_check_branch
          %369 = sbr.rel (%p367) target = $region60
        $region59: #{tpu_custom_call.1} parent=55 // pred_region
          %371 = dma.done [#allocation5], 128
        $region60: #{tpu_custom_call.1} parent=55 // pred_fallthru
          _
        // Predicated region
        $region61: #{tpu_custom_call.1} parent=55 // pred_check
          %p372 = pneg %p90
        $region62: #{tpu_custom_call.1} parent=55 // pred_check_branch
          %374 = sbr.rel (%p372) target = $region64
        $region63: #{tpu_custom_call.1} parent=55 // pred_region
          %376 = dma.done [#allocation8], 32
        $region64: #{tpu_custom_call.1} parent=55 // pred_fallthru
          _
        // Predicated region
        $region65: #{tpu_custom_call.1} parent=55 // pred_check
          %p377 = pneg %p111
        $region66: #{tpu_custom_call.1} parent=55 // pred_check_branch
          %379 = sbr.rel (%p377) target = $region68
        $region67: #{tpu_custom_call.1} parent=55 // pred_region
          %381 = dma.done [#allocation8], 36864
        $region68: #{tpu_custom_call.1} parent=55 // pred_fallthru
          _
        // Predicated region
        $region69: #{tpu_custom_call.1} parent=55 // pred_check
          %p382 = pneg %p132
        $region70: #{tpu_custom_call.1} parent=55 // pred_check_branch
          %384 = sbr.rel (%p382) target = $region72
        $region71: #{tpu_custom_call.1} parent=55 // pred_region
          %386 = dma.done [#allocation11], 16
        $region72: #{tpu_custom_call.1} parent=55 // pred_fallthru
          _
        // Predicated region
        $region73: #{tpu_custom_call.1} parent=55 // pred_check
          %p387 = pneg %p153
        $region74: #{tpu_custom_call.1} parent=55 // pred_check_branch
          %389 = sbr.rel (%p387) target = $region76
        $region75: #{tpu_custom_call.1} parent=55 // pred_region
          %391 = dma.done [#allocation11], 18432
        $region76: #{tpu_custom_call.1} parent=55 // pred_fallthru
          _
        // Predicated region
        $region77: #{tpu_custom_call.1} parent=55 // pred_check
          %p392 = pneg %p174
        $region78: #{tpu_custom_call.1} parent=55 // pred_check_branch
          %394 = sbr.rel (%p392) target = $region80
        $region79: #{tpu_custom_call.1} parent=55 // pred_region
          %396 = dma.done [#allocation14], 16
        $region80: #{tpu_custom_call.1} parent=55 // pred_fallthru
          _
        // Predicated region
        $region81: #{tpu_custom_call.1} parent=55 // pred_check
          %p397 = pneg %p216
        $region82: #{tpu_custom_call.1} parent=55 // pred_check_branch
          %399 = sbr.rel (%p397) target = $region84
        $region83: #{tpu_custom_call.1} parent=55 // pred_region
          %401 = dma.done [#allocation14], 16
        $region84: #{tpu_custom_call.1} parent=55 // pred_fallthru
          _
        %p402 = scmp.lt.s32.totalorder %s27, 1
        %s403 = scalar_select %p402, %s27, 1
        %s404 = smul.addr %s403, 32
        %s405 = smul.addr %s404, 8
        %s406 = scalar_lea.vmem %s0, %s405
        %p407 = pneg %p48
        %p408 = pneg %p45
        %p409 = pneg %p69
        %p410 = pneg %p66
        %p411 = pneg %p90
        %p412 = pneg %p87
        %p413 = pneg %p111
        %p414 = pneg %p108
        %p415 = pneg %p132
        %p416 = pneg %p129
        %p417 = pneg %p153
        %p418 = pneg %p150
        %p419 = pneg %p174
        %p420 = pneg %p171
        %p421 = pneg %p195
        %p422 = pneg %p192
        %p423 = pneg %p216
        %p424 = pneg %p213
        %p425 = pneg %p242
        %p426 = pneg %p239
        %s427 = sand.u32 %s229, 1
        %s428 = scalar_lea.sflag [#allocation6], %s427
        %s429 = sand.u32 %s229, 1
        %s430 = scalar_lea.vmem [#allocation16], %s429
        %p431 = scmp.lt.s32.totalorder %s27, 1
        %s432 = scalar_select %p431, %s27, 1
        %s433 = smul.addr %s432, 32
        %s434 = smul.addr %s433, 8
        %s435 = scalar_lea.vmem %s0, %s434
        %v436 = vlaneseq
        %v437 = vshrl.u32 %v436, 7
        %v438 = vadd.s32 %v437, 8
        %v439 = vadd.s32 %v437, 16
        %v440 = vadd.s32 %v437, 24
        %v441 = vadd.s32 %v437, 32
        %v442 = vadd.s32 %v437, 40
        %v443 = vadd.s32 %v437, 48
        %v444 = vadd.s32 %v437, 56
        %v445 = vadd.s32 %v437, 64
        %v446 = vadd.s32 %v437, 72
        %v447 = vadd.s32 %v437, 80
        %v448 = vadd.s32 %v437, 88
        %v449 = vadd.s32 %v437, 96
        %v450 = vadd.s32 %v437, 104
        %v451 = vadd.s32 %v437, 112
        %v452 = vadd.s32 %v437, 120
        %v453 = vadd.s32 %v437, 128
        %v454 = vadd.s32 %v437, 136
        %v455 = vadd.s32 %v437, 144
        %v456 = vadd.s32 %v437, 152
        %v457 = vadd.s32 %v437, 160
        %v458 = vadd.s32 %v437, 168
        %v459 = vadd.s32 %v437, 176
        %v460 = vadd.s32 %v437, 184
        %v461 = vadd.s32 %v437, 192
        %v462 = vadd.s32 %v437, 200
        %v463 = vadd.s32 %v437, 208
        %v464 = vadd.s32 %v437, 216
        %v465 = vadd.s32 %v437, 224
        %v466 = vadd.s32 %v437, 232
        %v467 = vadd.s32 %v437, 240
        %v468 = vadd.s32 %v437, 248
        %vm469 = vcmp.lt.s32.totalorder %v437, 0
        %v470 = vsub.s32 0, %v437
        %v471 = vsel %vm469, %v470, %v437
        %v472 = vshrl.u32 %v471, 4
        %v473 = vand.u32 %v471, 15
        %v474 = vsub.s32 0, %v473
        %v475 = vsel %vm469, %v474, %v473
        %vm476 = vcmp.lt.s32.totalorder %v438, 0
        %v477 = vsub.s32 0, %v438
        %v478 = vsel %vm476, %v477, %v438
        %v479 = vshrl.u32 %v478, 4
        %v480 = vand.u32 %v478, 15
        %v481 = vsub.s32 0, %v480
        %v482 = vsel %vm476, %v481, %v480
        %vm483 = vcmp.lt.s32.totalorder %v439, 0
        %v484 = vsub.s32 0, %v439
        %v485 = vsel %vm483, %v484, %v439
        %v486 = vshrl.u32 %v485, 4
        %v487 = vand.u32 %v485, 15
        %v488 = vsub.s32 0, %v487
        %v489 = vsel %vm483, %v488, %v487
        %vm490 = vcmp.lt.s32.totalorder %v440, 0
        %v491 = vsub.s32 0, %v440
        %v492 = vsel %vm490, %v491, %v440
        %v493 = vshrl.u32 %v492, 4
        %v494 = vand.u32 %v492, 15
        %v495 = vsub.s32 0, %v494
        %v496 = vsel %vm490, %v495, %v494
        %vm497 = vcmp.lt.s32.totalorder %v441, 0
        %v498 = vsub.s32 0, %v441
        %v499 = vsel %vm497, %v498, %v441
        %v500 = vshrl.u32 %v499, 4
        %v501 = vand.u32 %v499, 15
        %v502 = vsub.s32 0, %v501
        %v503 = vsel %vm497, %v502, %v501
        %vm504 = vcmp.lt.s32.totalorder %v442, 0
        %v505 = vsub.s32 0, %v442
        %v506 = vsel %vm504, %v505, %v442
        %v507 = vshrl.u32 %v506, 4
        %v508 = vand.u32 %v506, 15
        %v509 = vsub.s32 0, %v508
        %v510 = vsel %vm504, %v509, %v508
        %vm511 = vcmp.lt.s32.totalorder %v443, 0
        %v512 = vsub.s32 0, %v443
        %v513 = vsel %vm511, %v512, %v443
        %v514 = vshrl.u32 %v513, 4
        %v515 = vand.u32 %v513, 15
        %v516 = vsub.s32 0, %v515
        %v517 = vsel %vm511, %v516, %v515
        %vm518 = vcmp.lt.s32.totalorder %v444, 0
        %v519 = vsub.s32 0, %v444
        %v520 = vsel %vm518, %v519, %v444
        %v521 = vshrl.u32 %v520, 4
        %v522 = vand.u32 %v520, 15
        %v523 = vsub.s32 0, %v522
        %v524 = vsel %vm518, %v523, %v522
        %vm525 = vcmp.lt.s32.totalorder %v445, 0
        %v526 = vsub.s32 0, %v445
        %v527 = vsel %vm525, %v526, %v445
        %v528 = vshrl.u32 %v527, 4
        %v529 = vand.u32 %v527, 15
        %v530 = vsub.s32 0, %v529
        %v531 = vsel %vm525, %v530, %v529
        %vm532 = vcmp.lt.s32.totalorder %v446, 0
        %v533 = vsub.s32 0, %v446
        %v534 = vsel %vm532, %v533, %v446
        %v535 = vshrl.u32 %v534, 4
        %v536 = vand.u32 %v534, 15
        %v537 = vsub.s32 0, %v536
        %v538 = vsel %vm532, %v537, %v536
        %vm539 = vcmp.lt.s32.totalorder %v447, 0
        %v540 = vsub.s32 0, %v447
        %v541 = vsel %vm539, %v540, %v447
        %v542 = vshrl.u32 %v541, 4
        %v543 = vand.u32 %v541, 15
        %v544 = vsub.s32 0, %v543
        %v545 = vsel %vm539, %v544, %v543
        %vm546 = vcmp.lt.s32.totalorder %v448, 0
        %v547 = vsub.s32 0, %v448
        %v548 = vsel %vm546, %v547, %v448
        %v549 = vshrl.u32 %v548, 4
        %v550 = vand.u32 %v548, 15
        %v551 = vsub.s32 0, %v550
        %v552 = vsel %vm546, %v551, %v550
        %vm553 = vcmp.lt.s32.totalorder %v449, 0
        %v554 = vsub.s32 0, %v449
        %v555 = vsel %vm553, %v554, %v449
        %v556 = vshrl.u32 %v555, 4
        %v557 = vand.u32 %v555, 15
        %v558 = vsub.s32 0, %v557
        %v559 = vsel %vm553, %v558, %v557
        %vm560 = vcmp.lt.s32.totalorder %v450, 0
        %v561 = vsub.s32 0, %v450
        %v562 = vsel %vm560, %v561, %v450
        %v563 = vshrl.u32 %v562, 4
        %v564 = vand.u32 %v562, 15
        %v565 = vsub.s32 0, %v564
        %v566 = vsel %vm560, %v565, %v564
        %vm567 = vcmp.lt.s32.totalorder %v451, 0
        %v568 = vsub.s32 0, %v451
        %v569 = vsel %vm567, %v568, %v451
        %v570 = vshrl.u32 %v569, 4
        %v571 = vand.u32 %v569, 15
        %v572 = vsub.s32 0, %v571
        %v573 = vsel %vm567, %v572, %v571
        %vm574 = vcmp.lt.s32.totalorder %v452, 0
        %v575 = vsub.s32 0, %v452
        %v576 = vsel %vm574, %v575, %v452
        %v577 = vshrl.u32 %v576, 4
        %v578 = vand.u32 %v576, 15
        %v579 = vsub.s32 0, %v578
        %v580 = vsel %vm574, %v579, %v578
        %vm581 = vcmp.lt.s32.totalorder %v453, 0
        %v582 = vsub.s32 0, %v453
        %v583 = vsel %vm581, %v582, %v453
        %v584 = vshrl.u32 %v583, 4
        %v585 = vand.u32 %v583, 15
        %v586 = vsub.s32 0, %v585
        %v587 = vsel %vm581, %v586, %v585
        %vm588 = vcmp.lt.s32.totalorder %v454, 0
        %v589 = vsub.s32 0, %v454
        %v590 = vsel %vm588, %v589, %v454
        %v591 = vshrl.u32 %v590, 4
        %v592 = vand.u32 %v590, 15
        %v593 = vsub.s32 0, %v592
        %v594 = vsel %vm588, %v593, %v592
        %vm595 = vcmp.lt.s32.totalorder %v455, 0
        %v596 = vsub.s32 0, %v455
        %v597 = vsel %vm595, %v596, %v455
        %v598 = vshrl.u32 %v597, 4
        %v599 = vand.u32 %v597, 15
        %v600 = vsub.s32 0, %v599
        %v601 = vsel %vm595, %v600, %v599
        %vm602 = vcmp.lt.s32.totalorder %v456, 0
        %v603 = vsub.s32 0, %v456
        %v604 = vsel %vm602, %v603, %v456
        %v605 = vshrl.u32 %v604, 4
        %v606 = vand.u32 %v604, 15
        %v607 = vsub.s32 0, %v606
        %v608 = vsel %vm602, %v607, %v606
        %vm609 = vcmp.lt.s32.totalorder %v457, 0
        %v610 = vsub.s32 0, %v457
        %v611 = vsel %vm609, %v610, %v457
        %v612 = vshrl.u32 %v611, 4
        %v613 = vand.u32 %v611, 15
        %v614 = vsub.s32 0, %v613
        %v615 = vsel %vm609, %v614, %v613
        %vm616 = vcmp.lt.s32.totalorder %v458, 0
        %v617 = vsub.s32 0, %v458
        %v618 = vsel %vm616, %v617, %v458
        %v619 = vshrl.u32 %v618, 4
        %v620 = vand.u32 %v618, 15
        %v621 = vsub.s32 0, %v620
        %v622 = vsel %vm616, %v621, %v620
        %vm623 = vcmp.lt.s32.totalorder %v459, 0
        %v624 = vsub.s32 0, %v459
        %v625 = vsel %vm623, %v624, %v459
        %v626 = vshrl.u32 %v625, 4
        %v627 = vand.u32 %v625, 15
        %v628 = vsub.s32 0, %v627
        %v629 = vsel %vm623, %v628, %v627
        %vm630 = vcmp.lt.s32.totalorder %v460, 0
        %v631 = vsub.s32 0, %v460
        %v632 = vsel %vm630, %v631, %v460
        %v633 = vshrl.u32 %v632, 4
        %v634 = vand.u32 %v632, 15
        %v635 = vsub.s32 0, %v634
        %v636 = vsel %vm630, %v635, %v634
        %vm637 = vcmp.lt.s32.totalorder %v461, 0
        %v638 = vsub.s32 0, %v461
        %v639 = vsel %vm637, %v638, %v461
        %v640 = vshrl.u32 %v639, 4
        %v641 = vand.u32 %v639, 15
        %v642 = vsub.s32 0, %v641
        %v643 = vsel %vm637, %v642, %v641
        %vm644 = vcmp.lt.s32.totalorder %v462, 0
        %v645 = vsub.s32 0, %v462
        %v646 = vsel %vm644, %v645, %v462
        %v647 = vshrl.u32 %v646, 4
        %v648 = vand.u32 %v646, 15
        %v649 = vsub.s32 0, %v648
        %v650 = vsel %vm644, %v649, %v648
        %vm651 = vcmp.lt.s32.totalorder %v463, 0
        %v652 = vsub.s32 0, %v463
        %v653 = vsel %vm651, %v652, %v463
        %v654 = vshrl.u32 %v653, 4
        %v655 = vand.u32 %v653, 15
        %v656 = vsub.s32 0, %v655
        %v657 = vsel %vm651, %v656, %v655
        %vm658 = vcmp.lt.s32.totalorder %v464, 0
        %v659 = vsub.s32 0, %v464
        %v660 = vsel %vm658, %v659, %v464
        %v661 = vshrl.u32 %v660, 4
        %v662 = vand.u32 %v660, 15
        %v663 = vsub.s32 0, %v662
        %v664 = vsel %vm658, %v663, %v662
        %vm665 = vcmp.lt.s32.totalorder %v465, 0
        %v666 = vsub.s32 0, %v465
        %v667 = vsel %vm665, %v666, %v465
        %v668 = vshrl.u32 %v667, 4
        %v669 = vand.u32 %v667, 15
        %v670 = vsub.s32 0, %v669
        %v671 = vsel %vm665, %v670, %v669
        %vm672 = vcmp.lt.s32.totalorder %v466, 0
        %v673 = vsub.s32 0, %v466
        %v674 = vsel %vm672, %v673, %v466
        %v675 = vshrl.u32 %v674, 4
        %v676 = vand.u32 %v674, 15
        %v677 = vsub.s32 0, %v676
        %v678 = vsel %vm672, %v677, %v676
        %vm679 = vcmp.lt.s32.totalorder %v467, 0
        %v680 = vsub.s32 0, %v467
        %v681 = vsel %vm679, %v680, %v467
        %v682 = vshrl.u32 %v681, 4
        %v683 = vand.u32 %v681, 15
        %v684 = vsub.s32 0, %v683
        %v685 = vsel %vm679, %v684, %v683
        %vm686 = vcmp.lt.s32.totalorder %v468, 0
        %v687 = vsub.s32 0, %v468
        %v688 = vsel %vm686, %v687, %v468
        %v689 = vshrl.u32 %v688, 4
        %v690 = vand.u32 %v688, 15
        %v691 = vsub.s32 0, %v690
        %v692 = vsel %vm686, %v691, %v690
        %vm693 = vcmp.ne.s32.totalorder %v475, 0
        %vm694 = vcmp.ne.s32.totalorder %v482, 0
        %vm695 = vcmp.ne.s32.totalorder %v489, 0
        %vm696 = vcmp.ne.s32.totalorder %v496, 0
        %vm697 = vcmp.ne.s32.totalorder %v503, 0
        %vm698 = vcmp.ne.s32.totalorder %v510, 0
        %vm699 = vcmp.ne.s32.totalorder %v517, 0
        %vm700 = vcmp.ne.s32.totalorder %v524, 0
        %vm701 = vcmp.ne.s32.totalorder %v531, 0
        %vm702 = vcmp.ne.s32.totalorder %v538, 0
        %vm703 = vcmp.ne.s32.totalorder %v545, 0
        %vm704 = vcmp.ne.s32.totalorder %v552, 0
        %vm705 = vcmp.ne.s32.totalorder %v559, 0
        %vm706 = vcmp.ne.s32.totalorder %v566, 0
        %vm707 = vcmp.ne.s32.totalorder %v573, 0
        %vm708 = vcmp.ne.s32.totalorder %v580, 0
        %vm709 = vcmp.ne.s32.totalorder %v587, 0
        %vm710 = vcmp.ne.s32.totalorder %v594, 0
        %vm711 = vcmp.ne.s32.totalorder %v601, 0
        %vm712 = vcmp.ne.s32.totalorder %v608, 0
        %vm713 = vcmp.ne.s32.totalorder %v615, 0
        %vm714 = vcmp.ne.s32.totalorder %v622, 0
        %vm715 = vcmp.ne.s32.totalorder %v629, 0
        %vm716 = vcmp.ne.s32.totalorder %v636, 0
        %vm717 = vcmp.ne.s32.totalorder %v643, 0
        %vm718 = vcmp.ne.s32.totalorder %v650, 0
        %vm719 = vcmp.ne.s32.totalorder %v657, 0
        %vm720 = vcmp.ne.s32.totalorder %v664, 0
        %vm721 = vcmp.ne.s32.totalorder %v671, 0
        %vm722 = vcmp.ne.s32.totalorder %v678, 0
        %vm723 = vcmp.ne.s32.totalorder %v685, 0
        %vm724 = vcmp.ne.s32.totalorder %v692, 0
        %vm725 = vcmp.lt.s32.totalorder %v475, 0
        %vm726 = vcmp.lt.s32.totalorder %v482, 0
        %vm727 = vcmp.lt.s32.totalorder %v489, 0
        %vm728 = vcmp.lt.s32.totalorder %v496, 0
        %vm729 = vcmp.lt.s32.totalorder %v503, 0
        %vm730 = vcmp.lt.s32.totalorder %v510, 0
        %vm731 = vcmp.lt.s32.totalorder %v517, 0
        %vm732 = vcmp.lt.s32.totalorder %v524, 0
        %vm733 = vcmp.lt.s32.totalorder %v531, 0
        %vm734 = vcmp.lt.s32.totalorder %v538, 0
        %vm735 = vcmp.lt.s32.totalorder %v545, 0
        %vm736 = vcmp.lt.s32.totalorder %v552, 0
        %vm737 = vcmp.lt.s32.totalorder %v559, 0
        %vm738 = vcmp.lt.s32.totalorder %v566, 0
        %vm739 = vcmp.lt.s32.totalorder %v573, 0
        %vm740 = vcmp.lt.s32.totalorder %v580, 0
        %vm741 = vcmp.lt.s32.totalorder %v587, 0
        %vm742 = vcmp.lt.s32.totalorder %v594, 0
        %vm743 = vcmp.lt.s32.totalorder %v601, 0
        %vm744 = vcmp.lt.s32.totalorder %v608, 0
        %vm745 = vcmp.lt.s32.totalorder %v615, 0
        %vm746 = vcmp.lt.s32.totalorder %v622, 0
        %vm747 = vcmp.lt.s32.totalorder %v629, 0
        %vm748 = vcmp.lt.s32.totalorder %v636, 0
        %vm749 = vcmp.lt.s32.totalorder %v643, 0
        %vm750 = vcmp.lt.s32.totalorder %v650, 0
        %vm751 = vcmp.lt.s32.totalorder %v657, 0
        %vm752 = vcmp.lt.s32.totalorder %v664, 0
        %vm753 = vcmp.lt.s32.totalorder %v671, 0
        %vm754 = vcmp.lt.s32.totalorder %v678, 0
        %vm755 = vcmp.lt.s32.totalorder %v685, 0
        %vm756 = vcmp.lt.s32.totalorder %v692, 0
        %vm757 = vmand %vm725, %vm693
        %vm758 = vmand %vm726, %vm694
        %vm759 = vmand %vm727, %vm695
        %vm760 = vmand %vm728, %vm696
        %vm761 = vmand %vm729, %vm697
        %vm762 = vmand %vm730, %vm698
        %vm763 = vmand %vm731, %vm699
        %vm764 = vmand %vm732, %vm700
        %vm765 = vmand %vm733, %vm701
        %vm766 = vmand %vm734, %vm702
        %vm767 = vmand %vm735, %vm703
        %vm768 = vmand %vm736, %vm704
        %vm769 = vmand %vm737, %vm705
        %vm770 = vmand %vm738, %vm706
        %vm771 = vmand %vm739, %vm707
        %vm772 = vmand %vm740, %vm708
        %vm773 = vmand %vm741, %vm709
        %vm774 = vmand %vm742, %vm710
        %vm775 = vmand %vm743, %vm711
        %vm776 = vmand %vm744, %vm712
        %vm777 = vmand %vm745, %vm713
        %vm778 = vmand %vm746, %vm714
        %vm779 = vmand %vm747, %vm715
        %vm780 = vmand %vm748, %vm716
        %vm781 = vmand %vm749, %vm717
        %vm782 = vmand %vm750, %vm718
        %vm783 = vmand %vm751, %vm719
        %vm784 = vmand %vm752, %vm720
        %vm785 = vmand %vm753, %vm721
        %vm786 = vmand %vm754, %vm722
        %vm787 = vmand %vm755, %vm723
        %vm788 = vmand %vm756, %vm724
        %v789 = vadd.s32 %v475, 16
        %v790 = vadd.s32 %v482, 16
        %v791 = vadd.s32 %v489, 16
        %v792 = vadd.s32 %v496, 16
        %v793 = vadd.s32 %v503, 16
        %v794 = vadd.s32 %v510, 16
        %v795 = vadd.s32 %v517, 16
        %v796 = vadd.s32 %v524, 16
        %v797 = vadd.s32 %v531, 16
        %v798 = vadd.s32 %v538, 16
        %v799 = vadd.s32 %v545, 16
        %v800 = vadd.s32 %v552, 16
        %v801 = vadd.s32 %v559, 16
        %v802 = vadd.s32 %v566, 16
        %v803 = vadd.s32 %v573, 16
        %v804 = vadd.s32 %v580, 16
        %v805 = vadd.s32 %v587, 16
        %v806 = vadd.s32 %v594, 16
        %v807 = vadd.s32 %v601, 16
        %v808 = vadd.s32 %v608, 16
        %v809 = vadd.s32 %v615, 16
        %v810 = vadd.s32 %v622, 16
        %v811 = vadd.s32 %v629, 16
        %v812 = vadd.s32 %v636, 16
        %v813 = vadd.s32 %v643, 16
        %v814 = vadd.s32 %v650, 16
        %v815 = vadd.s32 %v657, 16
        %v816 = vadd.s32 %v664, 16
        %v817 = vadd.s32 %v671, 16
        %v818 = vadd.s32 %v678, 16
        %v819 = vadd.s32 %v685, 16
        %v820 = vadd.s32 %v692, 16
        %v821 = vsel %vm757, %v789, %v475
        %v822 = vsel %vm758, %v790, %v482
        %v823 = vsel %vm759, %v791, %v489
        %v824 = vsel %vm760, %v792, %v496
        %v825 = vsel %vm761, %v793, %v503
        %v826 = vsel %vm762, %v794, %v510
        %v827 = vsel %vm763, %v795, %v517
        %v828 = vsel %vm764, %v796, %v524
        %v829 = vsel %vm765, %v797, %v531
        %v830 = vsel %vm766, %v798, %v538
        %v831 = vsel %vm767, %v799, %v545
        %v832 = vsel %vm768, %v800, %v552
        %v833 = vsel %vm769, %v801, %v559
        %v834 = vsel %vm770, %v802, %v566
        %v835 = vsel %vm771, %v803, %v573
        %v836 = vsel %vm772, %v804, %v580
        %v837 = vsel %vm773, %v805, %v587
        %v838 = vsel %vm774, %v806, %v594
        %v839 = vsel %vm775, %v807, %v601
        %v840 = vsel %vm776, %v808, %v608
        %v841 = vsel %vm777, %v809, %v615
        %v842 = vsel %vm778, %v810, %v622
        %v843 = vsel %vm779, %v811, %v629
        %v844 = vsel %vm780, %v812, %v636
        %v845 = vsel %vm781, %v813, %v643
        %v846 = vsel %vm782, %v814, %v650
        %v847 = vsel %vm783, %v815, %v657
        %v848 = vsel %vm784, %v816, %v664
        %v849 = vsel %vm785, %v817, %v671
        %v850 = vsel %vm786, %v818, %v678
        %v851 = vsel %vm787, %v819, %v685
        %v852 = vsel %vm788, %v820, %v692
        %vm853 = vcmp.ne.s32.totalorder %v821, 0
        %vm854 = vcmp.ne.s32.totalorder %v822, 0
        %vm855 = vcmp.ne.s32.totalorder %v823, 0
        %vm856 = vcmp.ne.s32.totalorder %v824, 0
        %vm857 = vcmp.ne.s32.totalorder %v825, 0
        %vm858 = vcmp.ne.s32.totalorder %v826, 0
        %vm859 = vcmp.ne.s32.totalorder %v827, 0
        %vm860 = vcmp.ne.s32.totalorder %v828, 0
        %vm861 = vcmp.ne.s32.totalorder %v829, 0
        %vm862 = vcmp.ne.s32.totalorder %v830, 0
        %vm863 = vcmp.ne.s32.totalorder %v831, 0
        %vm864 = vcmp.ne.s32.totalorder %v832, 0
        %vm865 = vcmp.ne.s32.totalorder %v833, 0
        %vm866 = vcmp.ne.s32.totalorder %v834, 0
        %vm867 = vcmp.ne.s32.totalorder %v835, 0
        %vm868 = vcmp.ne.s32.totalorder %v836, 0
        %vm869 = vcmp.ne.s32.totalorder %v837, 0
        %vm870 = vcmp.ne.s32.totalorder %v838, 0
        %vm871 = vcmp.ne.s32.totalorder %v839, 0
        %vm872 = vcmp.ne.s32.totalorder %v840, 0
        %vm873 = vcmp.ne.s32.totalorder %v841, 0
        %vm874 = vcmp.ne.s32.totalorder %v842, 0
        %vm875 = vcmp.ne.s32.totalorder %v843, 0
        %vm876 = vcmp.ne.s32.totalorder %v844, 0
        %vm877 = vcmp.ne.s32.totalorder %v845, 0
        %vm878 = vcmp.ne.s32.totalorder %v846, 0
        %vm879 = vcmp.ne.s32.totalorder %v847, 0
        %vm880 = vcmp.ne.s32.totalorder %v848, 0
        %vm881 = vcmp.ne.s32.totalorder %v849, 0
        %vm882 = vcmp.ne.s32.totalorder %v850, 0
        %vm883 = vcmp.ne.s32.totalorder %v851, 0
        %vm884 = vcmp.ne.s32.totalorder %v852, 0
        %vm885 = vcmp.ne.s32.totalorder %v821, 15
        %vm886 = vcmp.ne.s32.totalorder %v822, 15
        %vm887 = vcmp.ne.s32.totalorder %v823, 15
        %vm888 = vcmp.ne.s32.totalorder %v824, 15
        %vm889 = vcmp.ne.s32.totalorder %v825, 15
        %vm890 = vcmp.ne.s32.totalorder %v826, 15
        %vm891 = vcmp.ne.s32.totalorder %v827, 15
        %vm892 = vcmp.ne.s32.totalorder %v828, 15
        %vm893 = vcmp.ne.s32.totalorder %v829, 15
        %vm894 = vcmp.ne.s32.totalorder %v830, 15
        %vm895 = vcmp.ne.s32.totalorder %v831, 15
        %vm896 = vcmp.ne.s32.totalorder %v832, 15
        %vm897 = vcmp.ne.s32.totalorder %v833, 15
        %vm898 = vcmp.ne.s32.totalorder %v834, 15
        %vm899 = vcmp.ne.s32.totalorder %v835, 15
        %vm900 = vcmp.ne.s32.totalorder %v836, 15
        %vm901 = vcmp.ne.s32.totalorder %v837, 15
        %vm902 = vcmp.ne.s32.totalorder %v838, 15
        %vm903 = vcmp.ne.s32.totalorder %v839, 15
        %vm904 = vcmp.ne.s32.totalorder %v840, 15
        %vm905 = vcmp.ne.s32.totalorder %v841, 15
        %vm906 = vcmp.ne.s32.totalorder %v842, 15
        %vm907 = vcmp.ne.s32.totalorder %v843, 15
        %vm908 = vcmp.ne.s32.totalorder %v844, 15
        %vm909 = vcmp.ne.s32.totalorder %v845, 15
        %vm910 = vcmp.ne.s32.totalorder %v846, 15
        %vm911 = vcmp.ne.s32.totalorder %v847, 15
        %vm912 = vcmp.ne.s32.totalorder %v848, 15
        %vm913 = vcmp.ne.s32.totalorder %v849, 15
        %vm914 = vcmp.ne.s32.totalorder %v850, 15
        %vm915 = vcmp.ne.s32.totalorder %v851, 15
        %vm916 = vcmp.ne.s32.totalorder %v852, 15
        %v917 = vld [vmem:[%s435] sm:$0xff]
        %v918 = vld [vmem:[%s435 + $0x8] sm:$0xff]
        %v919 = vld [vmem:[%s435 + $0x10] sm:$0xff]
        %v920 = vld [vmem:[%s435 + $0x18] sm:$0xff]
        %v921 = vld [vmem:[%s435 + $0x20] sm:$0xff]
        %v922 = vld [vmem:[%s435 + $0x28] sm:$0xff]
        %v923 = vld [vmem:[%s435 + $0x30] sm:$0xff]
        %v924 = vld [vmem:[%s435 + $0x38] sm:$0xff]
        %v925 = vld [vmem:[%s435 + $0x40] sm:$0xff]
        %v926 = vld [vmem:[%s435 + $0x48] sm:$0xff]
        %v927 = vld [vmem:[%s435 + $0x50] sm:$0xff]
        %v928 = vld [vmem:[%s435 + $0x58] sm:$0xff]
        %v929 = vld [vmem:[%s435 + $0x60] sm:$0xff]
        %v930 = vld [vmem:[%s435 + $0x68] sm:$0xff]
        %v931 = vld [vmem:[%s435 + $0x70] sm:$0xff]
        %v932 = vld [vmem:[%s435 + $0x78] sm:$0xff]
        %v933 = vld [vmem:[%s435 + $0x80] sm:$0xff]
        %v934 = vld [vmem:[%s435 + $0x88] sm:$0xff]
        %v935 = vld [vmem:[%s435 + $0x90] sm:$0xff]
        %v936 = vld [vmem:[%s435 + $0x98] sm:$0xff]
        %v937 = vld [vmem:[%s435 + $0xa0] sm:$0xff]
        %v938 = vld [vmem:[%s435 + $0xa8] sm:$0xff]
        %v939 = vld [vmem:[%s435 + $0xb0] sm:$0xff]
        %v940 = vld [vmem:[%s435 + $0xb8] sm:$0xff]
        %v941 = vld [vmem:[%s435 + $0xc0] sm:$0xff]
        %v942 = vld [vmem:[%s435 + $0xc8] sm:$0xff]
        %v943 = vld [vmem:[%s435 + $0xd0] sm:$0xff]
        %v944 = vld [vmem:[%s435 + $0xd8] sm:$0xff]
        %v945 = vld [vmem:[%s435 + $0xe0] sm:$0xff]
        %v946 = vld [vmem:[%s435 + $0xe8] sm:$0xff]
        %v947 = vld [vmem:[%s435 + $0xf0] sm:$0xff]
        %v948 = vld [vmem:[%s435 + $0xf8] sm:$0xff]
        %v949 = vld [vmem:[#allocation4] sm:$0xff]
        %v950 = vld [vmem:[#allocation7] sm:$0x3]
        %v952 = vperm.slane %v950, 0
        %v953 = vperm.slane %v950, 1
        %957 = vst [vmem:[#allocation1] ss:$2 sm:$0xff] %v949
        %v958 = vld.sshfl [vmem:[#allocation1] sm:$0xff pattern:$0x75316420]
        %v959 = vld.sshfl [vmem:[#allocation1 + $0x8] sm:$0xff pattern:$0x75316420]
        %vm960 = vcmask 31744
        %v962 = vsel %vm960, %v917, 0
        %v965 = vsel %vm960, %v918, 0
        %v968 = vsel %vm960, %v919, 0
        %v971 = vsel %vm960, %v920, 0
        %v974 = vsel %vm960, %v921, 0
        %v977 = vsel %vm960, %v922, 0
        %v980 = vsel %vm960, %v923, 0
        %v983 = vsel %vm960, %v924, 0
        %v986 = vsel %vm960, %v925, 0
        %v989 = vsel %vm960, %v926, 0
        %v992 = vsel %vm960, %v927, 0
        %v995 = vsel %vm960, %v928, 0
        %v998 = vsel %vm960, %v929, 0
        %v1001 = vsel %vm960, %v930, 0
        %v1004 = vsel %vm960, %v931, 0
        %v1007 = vsel %vm960, %v932, 0
        %v1010 = vsel %vm960, %v933, 0
        %v1013 = vsel %vm960, %v934, 0
        %v1016 = vsel %vm960, %v935, 0
        %v1019 = vsel %vm960, %v936, 0
        %v1022 = vsel %vm960, %v937, 0
        %v1025 = vsel %vm960, %v938, 0
        %v1028 = vsel %vm960, %v939, 0
        %v1031 = vsel %vm960, %v940, 0
        %v1034 = vsel %vm960, %v941, 0
        %v1037 = vsel %vm960, %v942, 0
        %v1040 = vsel %vm960, %v943, 0
        %v1043 = vsel %vm960, %v944, 0
        %v1046 = vsel %vm960, %v945, 0
        %v1049 = vsel %vm960, %v946, 0
        %v1052 = vsel %vm960, %v947, 0
        %v1055 = vsel %vm960, %v948, 0
        %vm1057 = vcmask 1043456
        %v1058 = vsel %vm1057, %v958, 0
        %v1060 = vsel %vm1057, %v959, 0
        %1062 = vmatpush.msra.mxu0 0.0
        %1063 = vmatpush.msra.mxu0 0.0
        %1064 = vmatpush.msra.mxu0 0.0
        %1065 = vmatpush.msra.mxu0 0.0
        %1066 = vmatpush.msra.mxu0 0.0
        %1067 = vmatpush.msra.mxu0 0.0
        %1068 = vmatpush.msra.mxu0 0.0
        %1069 = vmatpush.msra.mxu0 0.0
        %1070 = vmatpush.msra.mxu0 0.0
        %1071 = vmatpush.msra.mxu0 0.0
        %1072 = vmatpush.msra.mxu0 0.0
        %1073 = vmatpush.msra.mxu0 0.0
        %1074 = vmatpush.msra.mxu0 0.0
        %1075 = vmatpush.msra.mxu0 0.0
        %1076 = vmatpush.msra.mxu0 0.0
        %1077 = vmatpush.msra.mxu0 %v1058
        %1078 = vmatmul.f32.gmra.mxu0 %v962
        %v1079 = vpop.f32.mrf.mxu0
        %v1080 = vadd.f32 %v952, %v1079
        %1081 = vmatmul.f32.gmra.mxu0 %v965
        %v1082 = vpop.f32.mrf.mxu0
        %v1083 = vadd.f32 %v952, %v1082
        %1084 = vmatmul.f32.gmra.mxu0 %v968
        %v1085 = vpop.f32.mrf.mxu0
        %v1086 = vadd.f32 %v952, %v1085
        %1087 = vmatmul.f32.gmra.mxu0 %v971
        %v1088 = vpop.f32.mrf.mxu0
        %v1089 = vadd.f32 %v952, %v1088
        %1090 = vmatmul.f32.gmra.mxu0 %v974
        %v1091 = vpop.f32.mrf.mxu0
        %v1092 = vadd.f32 %v952, %v1091
        %1093 = vmatmul.f32.gmra.mxu0 %v977
        %v1094 = vpop.f32.mrf.mxu0
        %v1095 = vadd.f32 %v952, %v1094
        %1096 = vmatmul.f32.gmra.mxu0 %v980
        %v1097 = vpop.f32.mrf.mxu0
        %v1098 = vadd.f32 %v952, %v1097
        %1099 = vmatmul.f32.gmra.mxu0 %v983
        %v1100 = vpop.f32.mrf.mxu0
        %v1101 = vadd.f32 %v952, %v1100
        %1102 = vmatmul.f32.gmra.mxu0 %v986
        %v1103 = vpop.f32.mrf.mxu0
        %v1104 = vadd.f32 %v952, %v1103
        %1105 = vmatmul.f32.gmra.mxu0 %v989
        %v1106 = vpop.f32.mrf.mxu0
        %v1107 = vadd.f32 %v952, %v1106
        %1108 = vmatmul.f32.gmra.mxu0 %v992
        %v1109 = vpop.f32.mrf.mxu0
        %v1110 = vadd.f32 %v952, %v1109
        %1111 = vmatmul.f32.gmra.mxu0 %v995
        %v1112 = vpop.f32.mrf.mxu0
        %v1113 = vadd.f32 %v952, %v1112
        %1114 = vmatmul.f32.gmra.mxu0 %v998
        %v1115 = vpop.f32.mrf.mxu0
        %v1116 = vadd.f32 %v952, %v1115
        %1117 = vmatmul.f32.gmra.mxu0 %v1001
        %v1118 = vpop.f32.mrf.mxu0
        %v1119 = vadd.f32 %v952, %v1118
        %1120 = vmatmul.f32.gmra.mxu0 %v1004
        %v1121 = vpop.f32.mrf.mxu0
        %v1122 = vadd.f32 %v952, %v1121
        %1123 = vmatmul.f32.gmra.mxu0 %v1007
        %v1124 = vpop.f32.mrf.mxu0
        %v1125 = vadd.f32 %v952, %v1124
        %1126 = vmatmul.f32.gmra.mxu0 %v1010
        %v1127 = vpop.f32.mrf.mxu0
        %v1128 = vadd.f32 %v952, %v1127
        %1129 = vmatmul.f32.gmra.mxu0 %v1013
        %v1130 = vpop.f32.mrf.mxu0
        %v1131 = vadd.f32 %v952, %v1130
        %1132 = vmatmul.f32.gmra.mxu0 %v1016
        %v1133 = vpop.f32.mrf.mxu0
        %v1134 = vadd.f32 %v952, %v1133
        %1135 = vmatmul.f32.gmra.mxu0 %v1019
        %v1136 = vpop.f32.mrf.mxu0
        %v1137 = vadd.f32 %v952, %v1136
        %1138 = vmatmul.f32.gmra.mxu0 %v1022
        %v1139 = vpop.f32.mrf.mxu0
        %v1140 = vadd.f32 %v952, %v1139
        %1141 = vmatmul.f32.gmra.mxu0 %v1025
        %v1142 = vpop.f32.mrf.mxu0
        %v1143 = vadd.f32 %v952, %v1142
        %1144 = vmatmul.f32.gmra.mxu0 %v1028
        %v1145 = vpop.f32.mrf.mxu0
        %v1146 = vadd.f32 %v952, %v1145
        %1147 = vmatmul.f32.gmra.mxu0 %v1031
        %v1148 = vpop.f32.mrf.mxu0
        %v1149 = vadd.f32 %v952, %v1148
        %1150 = vmatmul.f32.gmra.mxu0 %v1034
        %v1151 = vpop.f32.mrf.mxu0
        %v1152 = vadd.f32 %v952, %v1151
        %1153 = vmatmul.f32.gmra.mxu0 %v1037
        %v1154 = vpop.f32.mrf.mxu0
        %v1155 = vadd.f32 %v952, %v1154
        %1156 = vmatmul.f32.gmra.mxu0 %v1040
        %v1157 = vpop.f32.mrf.mxu0
        %v1158 = vadd.f32 %v952, %v1157
        %1159 = vmatmul.f32.gmra.mxu0 %v1043
        %v1160 = vpop.f32.mrf.mxu0
        %v1161 = vadd.f32 %v952, %v1160
        %1162 = vmatmul.f32.gmra.mxu0 %v1046
        %v1163 = vpop.f32.mrf.mxu0
        %v1164 = vadd.f32 %v952, %v1163
        %1165 = vmatmul.f32.gmra.mxu0 %v1049
        %v1166 = vpop.f32.mrf.mxu0
        %v1167 = vadd.f32 %v952, %v1166
        %1168 = vmatmul.f32.gmra.mxu0 %v1052
        %v1169 = vpop.f32.mrf.mxu0
        %v1170 = vadd.f32 %v952, %v1169
        %1171 = vmatmul.f32.gmra.mxu0 %v1055
        %v1172 = vpop.f32.mrf.mxu0
        %v1173 = vadd.f32 %v952, %v1172
        %1174 = vdwg.mxu0
        %1175 = vmatpush.msra.mxu0 0.0
        %1176 = vmatpush.msra.mxu0 0.0
        %1177 = vmatpush.msra.mxu0 0.0
        %1178 = vmatpush.msra.mxu0 0.0
        %1179 = vmatpush.msra.mxu0 0.0
        %1180 = vmatpush.msra.mxu0 0.0
        %1181 = vmatpush.msra.mxu0 0.0
        %1182 = vmatpush.msra.mxu0 0.0
        %1183 = vmatpush.msra.mxu0 0.0
        %1184 = vmatpush.msra.mxu0 0.0
        %1185 = vmatpush.msra.mxu0 0.0
        %1186 = vmatpush.msra.mxu0 0.0
        %1187 = vmatpush.msra.mxu0 0.0
        %1188 = vmatpush.msra.mxu0 0.0
        %1189 = vmatpush.msra.mxu0 0.0
        %1190 = vmatpush.msra.mxu0 %v1060
        %1191 = vmatmul.f32.gmra.mxu0 %v962
        %v1192 = vpop.f32.mrf.mxu0
        %v1193 = vadd.f32 %v953, %v1192
        %1194 = vmatmul.f32.gmra.mxu0 %v965
        %v1195 = vpop.f32.mrf.mxu0
        %v1196 = vadd.f32 %v953, %v1195
        %1197 = vmatmul.f32.gmra.mxu0 %v968
        %v1198 = vpop.f32.mrf.mxu0
        %v1199 = vadd.f32 %v953, %v1198
        %1200 = vmatmul.f32.gmra.mxu0 %v971
        %v1201 = vpop.f32.mrf.mxu0
        %v1202 = vadd.f32 %v953, %v1201
        %1203 = vmatmul.f32.gmra.mxu0 %v974
        %v1204 = vpop.f32.mrf.mxu0
        %v1205 = vadd.f32 %v953, %v1204
        %1206 = vmatmul.f32.gmra.mxu0 %v977
        %v1207 = vpop.f32.mrf.mxu0
        %v1208 = vadd.f32 %v953, %v1207
        %1209 = vmatmul.f32.gmra.mxu0 %v980
        %v1210 = vpop.f32.mrf.mxu0
        %v1211 = vadd.f32 %v953, %v1210
        %1212 = vmatmul.f32.gmra.mxu0 %v983
        %v1213 = vpop.f32.mrf.mxu0
        %v1214 = vadd.f32 %v953, %v1213
        %1215 = vmatmul.f32.gmra.mxu0 %v986
        %v1216 = vpop.f32.mrf.mxu0
        %v1217 = vadd.f32 %v953, %v1216
        %1218 = vmatmul.f32.gmra.mxu0 %v989
        %v1219 = vpop.f32.mrf.mxu0
        %v1220 = vadd.f32 %v953, %v1219
        %1221 = vmatmul.f32.gmra.mxu0 %v992
        %v1222 = vpop.f32.mrf.mxu0
        %v1223 = vadd.f32 %v953, %v1222
        %1224 = vmatmul.f32.gmra.mxu0 %v995
        %v1225 = vpop.f32.mrf.mxu0
        %v1226 = vadd.f32 %v953, %v1225
        %1227 = vmatmul.f32.gmra.mxu0 %v998
        %v1228 = vpop.f32.mrf.mxu0
        %v1229 = vadd.f32 %v953, %v1228
        %1230 = vmatmul.f32.gmra.mxu0 %v1001
        %v1231 = vpop.f32.mrf.mxu0
        %v1232 = vadd.f32 %v953, %v1231
        %1233 = vmatmul.f32.gmra.mxu0 %v1004
        %v1234 = vpop.f32.mrf.mxu0
        %v1235 = vadd.f32 %v953, %v1234
        %1236 = vmatmul.f32.gmra.mxu0 %v1007
        %v1237 = vpop.f32.mrf.mxu0
        %v1238 = vadd.f32 %v953, %v1237
        %1239 = vmatmul.f32.gmra.mxu0 %v1010
        %v1240 = vpop.f32.mrf.mxu0
        %v1241 = vadd.f32 %v953, %v1240
        %1242 = vmatmul.f32.gmra.mxu0 %v1013
        %v1243 = vpop.f32.mrf.mxu0
        %v1244 = vadd.f32 %v953, %v1243
        %1245 = vmatmul.f32.gmra.mxu0 %v1016
        %v1246 = vpop.f32.mrf.mxu0
        %v1247 = vadd.f32 %v953, %v1246
        %1248 = vmatmul.f32.gmra.mxu0 %v1019
        %v1249 = vpop.f32.mrf.mxu0
        %v1250 = vadd.f32 %v953, %v1249
        %1251 = vmatmul.f32.gmra.mxu0 %v1022
        %v1252 = vpop.f32.mrf.mxu0
        %v1253 = vadd.f32 %v953, %v1252
        %1254 = vmatmul.f32.gmra.mxu0 %v1025
        %v1255 = vpop.f32.mrf.mxu0
        %v1256 = vadd.f32 %v953, %v1255
        %1257 = vmatmul.f32.gmra.mxu0 %v1028
        %v1258 = vpop.f32.mrf.mxu0
        %v1259 = vadd.f32 %v953, %v1258
        %1260 = vmatmul.f32.gmra.mxu0 %v1031
        %v1261 = vpop.f32.mrf.mxu0
        %v1262 = vadd.f32 %v953, %v1261
        %1263 = vmatmul.f32.gmra.mxu0 %v1034
        %v1264 = vpop.f32.mrf.mxu0
        %v1265 = vadd.f32 %v953, %v1264
        %1266 = vmatmul.f32.gmra.mxu0 %v1037
        %v1267 = vpop.f32.mrf.mxu0
        %v1268 = vadd.f32 %v953, %v1267
        %1269 = vmatmul.f32.gmra.mxu0 %v1040
        %v1270 = vpop.f32.mrf.mxu0
        %v1271 = vadd.f32 %v953, %v1270
        %1272 = vmatmul.f32.gmra.mxu0 %v1043
        %v1273 = vpop.f32.mrf.mxu0
        %v1274 = vadd.f32 %v953, %v1273
        %1275 = vmatmul.f32.gmra.mxu0 %v1046
        %v1276 = vpop.f32.mrf.mxu0
        %v1277 = vadd.f32 %v953, %v1276
        %1278 = vmatmul.f32.gmra.mxu0 %v1049
        %v1279 = vpop.f32.mrf.mxu0
        %v1280 = vadd.f32 %v953, %v1279
        %1281 = vmatmul.f32.gmra.mxu0 %v1052
        %v1282 = vpop.f32.mrf.mxu0
        %v1283 = vadd.f32 %v953, %v1282
        %1284 = vmatmul.f32.gmra.mxu0 %v1055
        %v1285 = vpop.f32.mrf.mxu0
        %v1286 = vadd.f32 %v953, %v1285
        %1287 = vdwg.mxu0
        %v1288 = vmax.f32 %v1080, 0.0
        %v1289 = vmax.f32 %v1193, 0.0
        %v1290 = vmax.f32 %v1083, 0.0
        %v1291 = vmax.f32 %v1196, 0.0
        %v1292 = vmax.f32 %v1086, 0.0
        %v1293 = vmax.f32 %v1199, 0.0
        %v1294 = vmax.f32 %v1089, 0.0
        %v1295 = vmax.f32 %v1202, 0.0
        %v1296 = vmax.f32 %v1092, 0.0
        %v1297 = vmax.f32 %v1205, 0.0
        %v1298 = vmax.f32 %v1095, 0.0
        %v1299 = vmax.f32 %v1208, 0.0
        %v1300 = vmax.f32 %v1098, 0.0
        %v1301 = vmax.f32 %v1211, 0.0
        %v1302 = vmax.f32 %v1101, 0.0
        %v1303 = vmax.f32 %v1214, 0.0
        %v1304 = vmax.f32 %v1104, 0.0
        %v1305 = vmax.f32 %v1217, 0.0
        %v1306 = vmax.f32 %v1107, 0.0
        %v1307 = vmax.f32 %v1220, 0.0
        %v1308 = vmax.f32 %v1110, 0.0
        %v1309 = vmax.f32 %v1223, 0.0
        %v1310 = vmax.f32 %v1113, 0.0
        %v1311 = vmax.f32 %v1226, 0.0
        %v1312 = vmax.f32 %v1116, 0.0
        %v1313 = vmax.f32 %v1229, 0.0
        %v1314 = vmax.f32 %v1119, 0.0
        %v1315 = vmax.f32 %v1232, 0.0
        %v1316 = vmax.f32 %v1122, 0.0
        %v1317 = vmax.f32 %v1235, 0.0
        %v1318 = vmax.f32 %v1125, 0.0
        %v1319 = vmax.f32 %v1238, 0.0
        %v1320 = vmax.f32 %v1128, 0.0
        %v1321 = vmax.f32 %v1241, 0.0
        %v1322 = vmax.f32 %v1131, 0.0
        %v1323 = vmax.f32 %v1244, 0.0
        %v1324 = vmax.f32 %v1134, 0.0
        %v1325 = vmax.f32 %v1247, 0.0
        %v1326 = vmax.f32 %v1137, 0.0
        %v1327 = vmax.f32 %v1250, 0.0
        %v1328 = vmax.f32 %v1140, 0.0
        %v1329 = vmax.f32 %v1253, 0.0
        %v1330 = vmax.f32 %v1143, 0.0
        %v1331 = vmax.f32 %v1256, 0.0
        %v1332 = vmax.f32 %v1146, 0.0
        %v1333 = vmax.f32 %v1259, 0.0
        %v1334 = vmax.f32 %v1149, 0.0
        %v1335 = vmax.f32 %v1262, 0.0
        %v1336 = vmax.f32 %v1152, 0.0
        %v1337 = vmax.f32 %v1265, 0.0
        %v1338 = vmax.f32 %v1155, 0.0
        %v1339 = vmax.f32 %v1268, 0.0
        %v1340 = vmax.f32 %v1158, 0.0
        %v1341 = vmax.f32 %v1271, 0.0
        %v1342 = vmax.f32 %v1161, 0.0
        %v1343 = vmax.f32 %v1274, 0.0
        %v1344 = vmax.f32 %v1164, 0.0
        %v1345 = vmax.f32 %v1277, 0.0
        %v1346 = vmax.f32 %v1167, 0.0
        %v1347 = vmax.f32 %v1280, 0.0
        %v1348 = vmax.f32 %v1170, 0.0
        %v1349 = vmax.f32 %v1283, 0.0
        %v1350 = vmax.f32 %v1173, 0.0
        %v1351 = vmax.f32 %v1286, 0.0
        %1352 = vst [vmem:[#allocation2] sm:$0xff] 0.0
        %1353 = vst [vmem:[#allocation2 + $0x8] sm:$0xff] 0.0
        %1354 = vst [vmem:[#allocation2 + $0x10] sm:$0xff] 0.0
        %1355 = vst [vmem:[#allocation2 + $0x18] sm:$0xff] 0.0
        %1356 = vst [vmem:[#allocation2 + $0x20] sm:$0xff] 0.0
        %1357 = vst [vmem:[#allocation2 + $0x28] sm:$0xff] 0.0
        %1358 = vst [vmem:[#allocation2 + $0x30] sm:$0xff] 0.0
        %1359 = vst [vmem:[#allocation2 + $0x38] sm:$0xff] 0.0
        %1360 = vst [vmem:[#allocation2 + $0x40] sm:$0xff] %v1288
        %1361 = vst [vmem:[#allocation2 + $0x48] sm:$0xff] %v1289
        %1362 = vst [vmem:[#allocation2 + $0x50] sm:$0xff] %v1290
        %1363 = vst [vmem:[#allocation2 + $0x58] sm:$0xff] %v1291
        %1364 = vst [vmem:[#allocation2 + $0x60] sm:$0xff] %v1292
        %1365 = vst [vmem:[#allocation2 + $0x68] sm:$0xff] %v1293
        %1366 = vst [vmem:[#allocation2 + $0x70] sm:$0xff] %v1294
        %1367 = vst [vmem:[#allocation2 + $0x78] sm:$0xff] %v1295
        %1368 = vst [vmem:[#allocation2 + $0x80] sm:$0xff] %v1296
        %1369 = vst [vmem:[#allocation2 + $0x88] sm:$0xff] %v1297
        %1370 = vst [vmem:[#allocation2 + $0x90] sm:$0xff] %v1298
        %1371 = vst [vmem:[#allocation2 + $0x98] sm:$0xff] %v1299
        %1372 = vst [vmem:[#allocation2 + $0xa0] sm:$0xff] %v1300
        %1373 = vst [vmem:[#allocation2 + $0xa8] sm:$0xff] %v1301
        %1374 = vst [vmem:[#allocation2 + $0xb0] sm:$0xff] %v1302
        %1375 = vst [vmem:[#allocation2 + $0xb8] sm:$0xff] %v1303
        %1376 = vst [vmem:[#allocation2 + $0xc0] sm:$0xff] %v1304
        %1377 = vst [vmem:[#allocation2 + $0xc8] sm:$0xff] %v1305
        %1378 = vst [vmem:[#allocation2 + $0xd0] sm:$0xff] %v1306
        %1379 = vst [vmem:[#allocation2 + $0xd8] sm:$0xff] %v1307
        %1380 = vst [vmem:[#allocation2 + $0xe0] sm:$0xff] %v1308
        %1381 = vst [vmem:[#allocation2 + $0xe8] sm:$0xff] %v1309
        %1382 = vst [vmem:[#allocation2 + $0xf0] sm:$0xff] %v1310
        %1383 = vst [vmem:[#allocation2 + $0xf8] sm:$0xff] %v1311
        %1384 = vst [vmem:[#allocation2 + $0x100] sm:$0xff] %v1312
        %1385 = vst [vmem:[#allocation2 + $0x108] sm:$0xff] %v1313
        %1386 = vst [vmem:[#allocation2 + $0x110] sm:$0xff] %v1314
        %1387 = vst [vmem:[#allocation2 + $0x118] sm:$0xff] %v1315
        %1388 = vst [vmem:[#allocation2 + $0x120] sm:$0xff] %v1316
        %1389 = vst [vmem:[#allocation2 + $0x128] sm:$0xff] %v1317
        %1390 = vst [vmem:[#allocation2 + $0x130] sm:$0xff] %v1318
        %1391 = vst [vmem:[#allocation2 + $0x138] sm:$0xff] %v1319
        %1392 = vst [vmem:[#allocation2 + $0x140] sm:$0xff] %v1320
        %1393 = vst [vmem:[#allocation2 + $0x148] sm:$0xff] %v1321
        %1394 = vst [vmem:[#allocation2 + $0x150] sm:$0xff] %v1322
        %1395 = vst [vmem:[#allocation2 + $0x158] sm:$0xff] %v1323
        %1396 = vst [vmem:[#allocation2 + $0x160] sm:$0xff] %v1324
        %1397 = vst [vmem:[#allocation2 + $0x168] sm:$0xff] %v1325
        %1398 = vst [vmem:[#allocation2 + $0x170] sm:$0xff] %v1326
        %1399 = vst [vmem:[#allocation2 + $0x178] sm:$0xff] %v1327
        %1400 = vst [vmem:[#allocation2 + $0x180] sm:$0xff] %v1328
        %1401 = vst [vmem:[#allocation2 + $0x188] sm:$0xff] %v1329
        %1402 = vst [vmem:[#allocation2 + $0x190] sm:$0xff] %v1330
        %1403 = vst [vmem:[#allocation2 + $0x198] sm:$0xff] %v1331
        %1404 = vst [vmem:[#allocation2 + $0x1a0] sm:$0xff] %v1332
        %1405 = vst [vmem:[#allocation2 + $0x1a8] sm:$0xff] %v1333
        %1406 = vst [vmem:[#allocation2 + $0x1b0] sm:$0xff] %v1334
        %1407 = vst [vmem:[#allocation2 + $0x1b8] sm:$0xff] %v1335
        %1408 = vst [vmem:[#allocation2 + $0x1c0] sm:$0xff] %v1336
        %1409 = vst [vmem:[#allocation2 + $0x1c8] sm:$0xff] %v1337
        %1410 = vst [vmem:[#allocation2 + $0x1d0] sm:$0xff] %v1338
        %1411 = vst [vmem:[#allocation2 + $0x1d8] sm:$0xff] %v1339
        %1412 = vst [vmem:[#allocation2 + $0x1e0] sm:$0xff] %v1340
        %1413 = vst [vmem:[#allocation2 + $0x1e8] sm:$0xff] %v1341
        %1414 = vst [vmem:[#allocation2 + $0x1f0] sm:$0xff] %v1342
        %1415 = vst [vmem:[#allocation2 + $0x1f8] sm:$0xff] %v1343
        %1416 = vst [vmem:[#allocation2 + $0x200] sm:$0xff] %v1344
        %1417 = vst [vmem:[#allocation2 + $0x208] sm:$0xff] %v1345
        %1418 = vst [vmem:[#allocation2 + $0x210] sm:$0xff] %v1346
        %1419 = vst [vmem:[#allocation2 + $0x218] sm:$0xff] %v1347
        %1420 = vst [vmem:[#allocation2 + $0x220] sm:$0xff] %v1348
        %1421 = vst [vmem:[#allocation2 + $0x228] sm:$0xff] %v1349
        %1422 = vst [vmem:[#allocation2 + $0x230] sm:$0xff] %v1350
        %1423 = vst [vmem:[#allocation2 + $0x238] sm:$0xff] %v1351
        %1424 = vst [vmem:[#allocation2 + $0x240] sm:$0xff] 0.0
        %1425 = vst [vmem:[#allocation2 + $0x248] sm:$0xff] 0.0
        %1426 = vst [vmem:[#allocation2 + $0x250] sm:$0xff] 0.0
        %1427 = vst [vmem:[#allocation2 + $0x258] sm:$0xff] 0.0
        %1428 = vst [vmem:[#allocation2 + $0x260] sm:$0xff] 0.0
        %1429 = vst [vmem:[#allocation2 + $0x268] sm:$0xff] 0.0
        %1430 = vst [vmem:[#allocation2 + $0x270] sm:$0xff] 0.0
        %1431 = vst [vmem:[#allocation2 + $0x278] sm:$0xff] 0.0
        %v1432 = vld [vmem:[#allocation2 + $0x10] sm:$0x80]
        %v1433 = vld [vmem:[#allocation2 + $0x18] sm:$0x80]
        %v1434 = vld [vmem:[#allocation2 + $0x20] sm:$0xff]
        %v1435 = vld [vmem:[#allocation2 + $0x28] sm:$0xff]
        %v1436 = vld [vmem:[#allocation2 + $0x30] sm:$0xff]
        %v1437 = vld [vmem:[#allocation2 + $0x38] sm:$0xff]
        %v1438 = vld [vmem:[#allocation2 + $0x40] sm:$0xff]
        %v1439 = vld [vmem:[#allocation2 + $0x48] sm:$0xff]
        %v1440 = vld [vmem:[#allocation2 + $0x50] sm:$0xff]
        %v1441 = vld [vmem:[#allocation2 + $0x58] sm:$0xff]
        %v1442 = vld [vmem:[#allocation2 + $0x60] sm:$0xff]
        %v1443 = vld [vmem:[#allocation2 + $0x68] sm:$0xff]
        %v1444 = vld [vmem:[#allocation2 + $0x70] sm:$0xff]
        %v1445 = vld [vmem:[#allocation2 + $0x78] sm:$0xff]
        %v1446 = vld [vmem:[#allocation2 + $0x80] sm:$0xff]
        %v1447 = vld [vmem:[#allocation2 + $0x88] sm:$0xff]
        %v1448 = vld [vmem:[#allocation2 + $0x90] sm:$0xff]
        %v1449 = vld [vmem:[#allocation2 + $0x98] sm:$0xff]
        %v1450 = vld [vmem:[#allocation2 + $0xa0] sm:$0xff]
        %v1451 = vld [vmem:[#allocation2 + $0xa8] sm:$0xff]
        %v1452 = vld [vmem:[#allocation2 + $0xb0] sm:$0xff]
        %v1453 = vld [vmem:[#allocation2 + $0xb8] sm:$0xff]
        %v1454 = vld [vmem:[#allocation2 + $0xc0] sm:$0xff]
        %v1455 = vld [vmem:[#allocation2 + $0xc8] sm:$0xff]
        %v1456 = vld [vmem:[#allocation2 + $0xd0] sm:$0xff]
        %v1457 = vld [vmem:[#allocation2 + $0xd8] sm:$0xff]
        %v1458 = vld [vmem:[#allocation2 + $0xe0] sm:$0xff]
        %v1459 = vld [vmem:[#allocation2 + $0xe8] sm:$0xff]
        %v1460 = vld [vmem:[#allocation2 + $0xf0] sm:$0xff]
        %v1461 = vld [vmem:[#allocation2 + $0xf8] sm:$0xff]
        %v1462 = vld [vmem:[#allocation2 + $0x100] sm:$0xff]
        %v1463 = vld [vmem:[#allocation2 + $0x108] sm:$0xff]
        %v1464 = vld [vmem:[#allocation2 + $0x110] sm:$0xff]
        %v1465 = vld [vmem:[#allocation2 + $0x118] sm:$0xff]
        %v1466 = vld [vmem:[#allocation2 + $0x120] sm:$0xff]
        %v1467 = vld [vmem:[#allocation2 + $0x128] sm:$0xff]
        %v1468 = vld [vmem:[#allocation2 + $0x130] sm:$0xff]
        %v1469 = vld [vmem:[#allocation2 + $0x138] sm:$0xff]
        %v1470 = vld [vmem:[#allocation2 + $0x140] sm:$0xff]
        %v1471 = vld [vmem:[#allocation2 + $0x148] sm:$0xff]
        %v1472 = vld [vmem:[#allocation2 + $0x150] sm:$0xff]
        %v1473 = vld [vmem:[#allocation2 + $0x158] sm:$0xff]
        %v1474 = vld [vmem:[#allocation2 + $0x160] sm:$0xff]
        %v1475 = vld [vmem:[#allocation2 + $0x168] sm:$0xff]
        %v1476 = vld [vmem:[#allocation2 + $0x170] sm:$0xff]
        %v1477 = vld [vmem:[#allocation2 + $0x178] sm:$0xff]
        %v1478 = vld [vmem:[#allocation2 + $0x180] sm:$0xff]
        %v1479 = vld [vmem:[#allocation2 + $0x188] sm:$0xff]
        %v1480 = vld [vmem:[#allocation2 + $0x190] sm:$0xff]
        %v1481 = vld [vmem:[#allocation2 + $0x198] sm:$0xff]
        %v1482 = vld [vmem:[#allocation2 + $0x1a0] sm:$0xff]
        %v1483 = vld [vmem:[#allocation2 + $0x1a8] sm:$0xff]
        %v1484 = vld [vmem:[#allocation2 + $0x1b0] sm:$0xff]
        %v1485 = vld [vmem:[#allocation2 + $0x1b8] sm:$0xff]
        %v1486 = vld [vmem:[#allocation2 + $0x1c0] sm:$0xff]
        %v1487 = vld [vmem:[#allocation2 + $0x1c8] sm:$0xff]
        %v1488 = vld [vmem:[#allocation2 + $0x1d0] sm:$0xff]
        %v1489 = vld [vmem:[#allocation2 + $0x1d8] sm:$0xff]
        %v1490 = vld [vmem:[#allocation2 + $0x1e0] sm:$0xff]
        %v1491 = vld [vmem:[#allocation2 + $0x1e8] sm:$0xff]
        %v1492 = vld [vmem:[#allocation2 + $0x1f0] sm:$0xff]
        %v1493 = vld [vmem:[#allocation2 + $0x1f8] sm:$0xff]
        %v1494 = vld [vmem:[#allocation2 + $0x200] sm:$0xff]
        %v1495 = vld [vmem:[#allocation2 + $0x208] sm:$0xff]
        %v1496 = vld [vmem:[#allocation2 + $0x210] sm:$0x7f]
        %v1497 = vld [vmem:[#allocation2 + $0x218] sm:$0x7f]
        %v1498 = vld [vmem:[#allocation9] sm:$0xff]
        %v1499 = vld [vmem:[#allocation9 + $0x8] sm:$0xff]
        %v1500 = vld [vmem:[#allocation9 + $0x10] sm:$0xff]
        %v1501 = vld [vmem:[#allocation9 + $0x18] sm:$0xff]
        %v1502 = vld [vmem:[#allocation9 + $0x20] sm:$0xff]
        %v1503 = vld [vmem:[#allocation9 + $0x28] sm:$0xff]
        %v1504 = vld [vmem:[#allocation9 + $0x30] sm:$0xff]
        %v1505 = vld [vmem:[#allocation9 + $0x38] sm:$0xff]
        %v1506 = vld [vmem:[#allocation9 + $0x40] sm:$0xff]
        %v1507 = vld [vmem:[#allocation9 + $0x48] sm:$0xff]
        %v1508 = vld [vmem:[#allocation9 + $0x50] sm:$0xff]
        %v1509 = vld [vmem:[#allocation9 + $0x58] sm:$0xff]
        %v1510 = vld [vmem:[#allocation9 + $0x60] sm:$0xff]
        %v1511 = vld [vmem:[#allocation9 + $0x68] sm:$0xff]
        %v1512 = vld [vmem:[#allocation9 + $0x70] sm:$0xff]
        %v1513 = vld [vmem:[#allocation9 + $0x78] sm:$0xff]
        %v1514 = vld [vmem:[#allocation9 + $0x80] sm:$0xff]
        %v1515 = vld [vmem:[#allocation9 + $0x88] sm:$0xff]
        %v1516 = vld [vmem:[#allocation9 + $0x90] sm:$0xff]
        %v1517 = vld [vmem:[#allocation9 + $0x98] sm:$0xff]
        %v1518 = vld [vmem:[#allocation9 + $0xa0] sm:$0xff]
        %v1519 = vld [vmem:[#allocation9 + $0xa8] sm:$0xff]
        %v1520 = vld [vmem:[#allocation9 + $0xb0] sm:$0xff]
        %v1521 = vld [vmem:[#allocation9 + $0xb8] sm:$0xff]
        %v1522 = vld [vmem:[#allocation9 + $0xc0] sm:$0xff]
        %v1523 = vld [vmem:[#allocation9 + $0xc8] sm:$0xff]
        %v1524 = vld [vmem:[#allocation9 + $0xd0] sm:$0xff]
        %v1525 = vld [vmem:[#allocation9 + $0xd8] sm:$0xff]
        %v1526 = vld [vmem:[#allocation9 + $0xe0] sm:$0xff]
        %v1527 = vld [vmem:[#allocation9 + $0xe8] sm:$0xff]
        %v1528 = vld [vmem:[#allocation9 + $0xf0] sm:$0xff]
        %v1529 = vld [vmem:[#allocation9 + $0xf8] sm:$0xff]
        %vm1596 = vcmask 1040384
        %v1597 = vrot.slane %v1432, 7
        %v1598 = vrot.slane %v1434, 7
        %v1599 = vsel %vm1596, %v1597, %v1598
        %v1600 = vrot.slane %v1433, 7
        %v1601 = vrot.slane %v1435, 7
        %v1602 = vsel %vm1596, %v1600, %v1601
        %v1603 = vrot.slane %v1436, 7
        %v1604 = vsel %vm1596, %v1598, %v1603
        %v1605 = vrot.slane %v1437, 7
        %v1606 = vsel %vm1596, %v1601, %v1605
        %v1607 = vrot.slane %v1438, 7
        %v1608 = vsel %vm1596, %v1603, %v1607
        %v1609 = vrot.slane %v1439, 7
        %v1610 = vsel %vm1596, %v1605, %v1609
        %v1611 = vrot.slane %v1440, 7
        %v1612 = vsel %vm1596, %v1607, %v1611
        %v1613 = vrot.slane %v1441, 7
        %v1614 = vsel %vm1596, %v1609, %v1613
        %v1615 = vrot.slane %v1442, 7
        %v1616 = vsel %vm1596, %v1611, %v1615
        %v1617 = vrot.slane %v1443, 7
        %v1618 = vsel %vm1596, %v1613, %v1617
        %v1619 = vrot.slane %v1444, 7
        %v1620 = vsel %vm1596, %v1615, %v1619
        %v1621 = vrot.slane %v1445, 7
        %v1622 = vsel %vm1596, %v1617, %v1621
        %v1623 = vrot.slane %v1446, 7
        %v1624 = vsel %vm1596, %v1619, %v1623
        %v1625 = vrot.slane %v1447, 7
        %v1626 = vsel %vm1596, %v1621, %v1625
        %v1627 = vrot.slane %v1448, 7
        %v1628 = vsel %vm1596, %v1623, %v1627
        %v1629 = vrot.slane %v1449, 7
        %v1630 = vsel %vm1596, %v1625, %v1629
        %v1631 = vrot.slane %v1450, 7
        %v1632 = vsel %vm1596, %v1627, %v1631
        %v1633 = vrot.slane %v1451, 7
        %v1634 = vsel %vm1596, %v1629, %v1633
        %v1635 = vrot.slane %v1452, 7
        %v1636 = vsel %vm1596, %v1631, %v1635
        %v1637 = vrot.slane %v1453, 7
        %v1638 = vsel %vm1596, %v1633, %v1637
        %v1639 = vrot.slane %v1454, 7
        %v1640 = vsel %vm1596, %v1635, %v1639
        %v1641 = vrot.slane %v1455, 7
        %v1642 = vsel %vm1596, %v1637, %v1641
        %v1643 = vrot.slane %v1456, 7
        %v1644 = vsel %vm1596, %v1639, %v1643
        %v1645 = vrot.slane %v1457, 7
        %v1646 = vsel %vm1596, %v1641, %v1645
        %v1647 = vrot.slane %v1458, 7
        %v1648 = vsel %vm1596, %v1643, %v1647
        %v1649 = vrot.slane %v1459, 7
        %v1650 = vsel %vm1596, %v1645, %v1649
        %v1651 = vrot.slane %v1460, 7
        %v1652 = vsel %vm1596, %v1647, %v1651
        %v1653 = vrot.slane %v1461, 7
        %v1654 = vsel %vm1596, %v1649, %v1653
        %v1655 = vrot.slane %v1462, 7
        %v1656 = vsel %vm1596, %v1651, %v1655
        %v1657 = vrot.slane %v1463, 7
        %v1658 = vsel %vm1596, %v1653, %v1657
        %v1659 = vrot.slane %v1464, 7
        %v1660 = vsel %vm1596, %v1655, %v1659
        %v1661 = vrot.slane %v1465, 7
        %v1662 = vsel %vm1596, %v1657, %v1661
        %v1663 = vrot.slane %v1466, 7
        %v1664 = vsel %vm1596, %v1659, %v1663
        %v1665 = vrot.slane %v1467, 7
        %v1666 = vsel %vm1596, %v1661, %v1665
        %v1667 = vrot.slane %v1468, 7
        %v1668 = vsel %vm1596, %v1663, %v1667
        %v1669 = vrot.slane %v1469, 7
        %v1670 = vsel %vm1596, %v1665, %v1669
        %v1671 = vrot.slane %v1470, 7
        %v1672 = vsel %vm1596, %v1667, %v1671
        %v1673 = vrot.slane %v1471, 7
        %v1674 = vsel %vm1596, %v1669, %v1673
        %v1675 = vrot.slane %v1472, 7
        %v1676 = vsel %vm1596, %v1671, %v1675
        %v1677 = vrot.slane %v1473, 7
        %v1678 = vsel %vm1596, %v1673, %v1677
        %v1679 = vrot.slane %v1474, 7
        %v1680 = vsel %vm1596, %v1675, %v1679
        %v1681 = vrot.slane %v1475, 7
        %v1682 = vsel %vm1596, %v1677, %v1681
        %v1683 = vrot.slane %v1476, 7
        %v1684 = vsel %vm1596, %v1679, %v1683
        %v1685 = vrot.slane %v1477, 7
        %v1686 = vsel %vm1596, %v1681, %v1685
        %v1687 = vrot.slane %v1478, 7
        %v1688 = vsel %vm1596, %v1683, %v1687
        %v1689 = vrot.slane %v1479, 7
        %v1690 = vsel %vm1596, %v1685, %v1689
        %v1691 = vrot.slane %v1480, 7
        %v1692 = vsel %vm1596, %v1687, %v1691
        %v1693 = vrot.slane %v1481, 7
        %v1694 = vsel %vm1596, %v1689, %v1693
        %v1695 = vrot.slane %v1482, 7
        %v1696 = vsel %vm1596, %v1691, %v1695
        %v1697 = vrot.slane %v1483, 7
        %v1698 = vsel %vm1596, %v1693, %v1697
        %v1699 = vrot.slane %v1484, 7
        %v1700 = vsel %vm1596, %v1695, %v1699
        %v1701 = vrot.slane %v1485, 7
        %v1702 = vsel %vm1596, %v1697, %v1701
        %v1703 = vrot.slane %v1486, 7
        %v1704 = vsel %vm1596, %v1699, %v1703
        %v1705 = vrot.slane %v1487, 7
        %v1706 = vsel %vm1596, %v1701, %v1705
        %v1707 = vrot.slane %v1488, 7
        %v1708 = vsel %vm1596, %v1703, %v1707
        %v1709 = vrot.slane %v1489, 7
        %v1710 = vsel %vm1596, %v1705, %v1709
        %v1711 = vrot.slane %v1490, 7
        %v1712 = vsel %vm1596, %v1707, %v1711
        %v1713 = vrot.slane %v1491, 7
        %v1714 = vsel %vm1596, %v1709, %v1713
        %v1715 = vrot.slane %v1492, 7
        %v1716 = vsel %vm1596, %v1711, %v1715
        %v1717 = vrot.slane %v1493, 7
        %v1718 = vsel %vm1596, %v1713, %v1717
        %v1719 = vrot.slane %v1494, 7
        %v1720 = vsel %vm1596, %v1715, %v1719
        %v1721 = vrot.slane %v1495, 7
        %v1722 = vsel %vm1596, %v1717, %v1721
        %v1723 = vrot.slane %v1496, 7
        %v1724 = vsel %vm1596, %v1719, %v1723
        %v1725 = vrot.slane %v1497, 7
        %v1726 = vsel %vm1596, %v1721, %v1725
        %1791 = vmatpush.msra.mxu0 %v1513
        %1792 = vmatpush.msra.mxu0 %v1512
        %1793 = vmatpush.msra.mxu0 %v1511
        %1794 = vmatpush.msra.mxu0 %v1510
        %1795 = vmatpush.msra.mxu0 %v1509
        %1796 = vmatpush.msra.mxu0 %v1508
        %1797 = vmatpush.msra.mxu0 %v1507
        %1798 = vmatpush.msra.mxu0 %v1506
        %1799 = vmatpush.msra.mxu0 %v1505
        %1800 = vmatpush.msra.mxu0 %v1504
        %1801 = vmatpush.msra.mxu0 %v1503
        %1802 = vmatpush.msra.mxu0 %v1502
        %1803 = vmatpush.msra.mxu0 %v1501
        %1804 = vmatpush.msra.mxu0 %v1500
        %1805 = vmatpush.msra.mxu0 %v1499
        %1806 = vmatpush.msra.mxu0 %v1498
        %1807 = vmatmul.f32.gmra.mxu0 %v1599
        %v1808 = vpop.f32.mrf.mxu0
        %v1809 = vadd.f32 0.0, %v1808
        %1810 = vmatmul.f32.gmra.mxu0 %v1604
        %v1811 = vpop.f32.mrf.mxu0
        %v1812 = vadd.f32 0.0, %v1811
        %1813 = vmatmul.f32.gmra.mxu0 %v1608
        %v1814 = vpop.f32.mrf.mxu0
        %v1815 = vadd.f32 0.0, %v1814
        %1816 = vmatmul.f32.gmra.mxu0 %v1612
        %v1817 = vpop.f32.mrf.mxu0
        %v1818 = vadd.f32 0.0, %v1817
        %1819 = vmatmul.f32.gmra.mxu0 %v1616
        %v1820 = vpop.f32.mrf.mxu0
        %v1821 = vadd.f32 0.0, %v1820
        %1822 = vmatmul.f32.gmra.mxu0 %v1620
        %v1823 = vpop.f32.mrf.mxu0
        %v1824 = vadd.f32 0.0, %v1823
        %1825 = vmatmul.f32.gmra.mxu0 %v1624
        %v1826 = vpop.f32.mrf.mxu0
        %v1827 = vadd.f32 0.0, %v1826
        %1828 = vmatmul.f32.gmra.mxu0 %v1628
        %v1829 = vpop.f32.mrf.mxu0
        %v1830 = vadd.f32 0.0, %v1829
        %1831 = vmatmul.f32.gmra.mxu0 %v1632
        %v1832 = vpop.f32.mrf.mxu0
        %v1833 = vadd.f32 0.0, %v1832
        %1834 = vmatmul.f32.gmra.mxu0 %v1636
        %v1835 = vpop.f32.mrf.mxu0
        %v1836 = vadd.f32 0.0, %v1835
        %1837 = vmatmul.f32.gmra.mxu0 %v1640
        %v1838 = vpop.f32.mrf.mxu0
        %v1839 = vadd.f32 0.0, %v1838
        %1840 = vmatmul.f32.gmra.mxu0 %v1644
        %v1841 = vpop.f32.mrf.mxu0
        %v1842 = vadd.f32 0.0, %v1841
        %1843 = vmatmul.f32.gmra.mxu0 %v1648
        %v1844 = vpop.f32.mrf.mxu0
        %v1845 = vadd.f32 0.0, %v1844
        %1846 = vmatmul.f32.gmra.mxu0 %v1652
        %v1847 = vpop.f32.mrf.mxu0
        %v1848 = vadd.f32 0.0, %v1847
        %1849 = vmatmul.f32.gmra.mxu0 %v1656
        %v1850 = vpop.f32.mrf.mxu0
        %v1851 = vadd.f32 0.0, %v1850
        %1852 = vmatmul.f32.gmra.mxu0 %v1660
        %v1853 = vpop.f32.mrf.mxu0
        %v1854 = vadd.f32 0.0, %v1853
        %1855 = vmatmul.f32.gmra.mxu0 %v1664
        %v1856 = vpop.f32.mrf.mxu0
        %v1857 = vadd.f32 0.0, %v1856
        %1858 = vmatmul.f32.gmra.mxu0 %v1668
        %v1859 = vpop.f32.mrf.mxu0
        %v1860 = vadd.f32 0.0, %v1859
        %1861 = vmatmul.f32.gmra.mxu0 %v1672
        %v1862 = vpop.f32.mrf.mxu0
        %v1863 = vadd.f32 0.0, %v1862
        %1864 = vmatmul.f32.gmra.mxu0 %v1676
        %v1865 = vpop.f32.mrf.mxu0
        %v1866 = vadd.f32 0.0, %v1865
        %1867 = vmatmul.f32.gmra.mxu0 %v1680
        %v1868 = vpop.f32.mrf.mxu0
        %v1869 = vadd.f32 0.0, %v1868
        %1870 = vmatmul.f32.gmra.mxu0 %v1684
        %v1871 = vpop.f32.mrf.mxu0
        %v1872 = vadd.f32 0.0, %v1871
        %1873 = vmatmul.f32.gmra.mxu0 %v1688
        %v1874 = vpop.f32.mrf.mxu0
        %v1875 = vadd.f32 0.0, %v1874
        %1876 = vmatmul.f32.gmra.mxu0 %v1692
        %v1877 = vpop.f32.mrf.mxu0
        %v1878 = vadd.f32 0.0, %v1877
        %1879 = vmatmul.f32.gmra.mxu0 %v1696
        %v1880 = vpop.f32.mrf.mxu0
        %v1881 = vadd.f32 0.0, %v1880
        %1882 = vmatmul.f32.gmra.mxu0 %v1700
        %v1883 = vpop.f32.mrf.mxu0
        %v1884 = vadd.f32 0.0, %v1883
        %1885 = vmatmul.f32.gmra.mxu0 %v1704
        %v1886 = vpop.f32.mrf.mxu0
        %v1887 = vadd.f32 0.0, %v1886
        %1888 = vmatmul.f32.gmra.mxu0 %v1708
        %v1889 = vpop.f32.mrf.mxu0
        %v1890 = vadd.f32 0.0, %v1889
        %1891 = vmatmul.f32.gmra.mxu0 %v1712
        %v1892 = vpop.f32.mrf.mxu0
        %v1893 = vadd.f32 0.0, %v1892
        %1894 = vmatmul.f32.gmra.mxu0 %v1716
        %v1895 = vpop.f32.mrf.mxu0
        %v1896 = vadd.f32 0.0, %v1895
        %1897 = vmatmul.f32.gmra.mxu0 %v1720
        %v1898 = vpop.f32.mrf.mxu0
        %v1899 = vadd.f32 0.0, %v1898
        %1900 = vmatmul.f32.gmra.mxu0 %v1724
        %v1901 = vpop.f32.mrf.mxu0
        %v1902 = vadd.f32 0.0, %v1901
        %1903 = vdwg.mxu0
        %1904 = vmatpush.msra.mxu0 %v1529
        %1905 = vmatpush.msra.mxu0 %v1528
        %1906 = vmatpush.msra.mxu0 %v1527
        %1907 = vmatpush.msra.mxu0 %v1526
        %1908 = vmatpush.msra.mxu0 %v1525
        %1909 = vmatpush.msra.mxu0 %v1524
        %1910 = vmatpush.msra.mxu0 %v1523
        %1911 = vmatpush.msra.mxu0 %v1522
        %1912 = vmatpush.msra.mxu0 %v1521
        %1913 = vmatpush.msra.mxu0 %v1520
        %1914 = vmatpush.msra.mxu0 %v1519
        %1915 = vmatpush.msra.mxu0 %v1518
        %1916 = vmatpush.msra.mxu0 %v1517
        %1917 = vmatpush.msra.mxu0 %v1516
        %1918 = vmatpush.msra.mxu0 %v1515
        %1919 = vmatpush.msra.mxu0 %v1514
        %1920 = vmatmul.f32.gmra.mxu0 %v1602
        %v1921 = vpop.f32.mrf.mxu0
        %v1922 = vadd.f32 %v1809, %v1921
        %1923 = vmatmul.f32.gmra.mxu0 %v1606
        %v1924 = vpop.f32.mrf.mxu0
        %v1925 = vadd.f32 %v1812, %v1924
        %1926 = vmatmul.f32.gmra.mxu0 %v1610
        %v1927 = vpop.f32.mrf.mxu0
        %v1928 = vadd.f32 %v1815, %v1927
        %1929 = vmatmul.f32.gmra.mxu0 %v1614
        %v1930 = vpop.f32.mrf.mxu0
        %v1931 = vadd.f32 %v1818, %v1930
        %1932 = vmatmul.f32.gmra.mxu0 %v1618
        %v1933 = vpop.f32.mrf.mxu0
        %v1934 = vadd.f32 %v1821, %v1933
        %1935 = vmatmul.f32.gmra.mxu0 %v1622
        %v1936 = vpop.f32.mrf.mxu0
        %v1937 = vadd.f32 %v1824, %v1936
        %1938 = vmatmul.f32.gmra.mxu0 %v1626
        %v1939 = vpop.f32.mrf.mxu0
        %v1940 = vadd.f32 %v1827, %v1939
        %1941 = vmatmul.f32.gmra.mxu0 %v1630
        %v1942 = vpop.f32.mrf.mxu0
        %v1943 = vadd.f32 %v1830, %v1942
        %1944 = vmatmul.f32.gmra.mxu0 %v1634
        %v1945 = vpop.f32.mrf.mxu0
        %v1946 = vadd.f32 %v1833, %v1945
        %1947 = vmatmul.f32.gmra.mxu0 %v1638
        %v1948 = vpop.f32.mrf.mxu0
        %v1949 = vadd.f32 %v1836, %v1948
        %1950 = vmatmul.f32.gmra.mxu0 %v1642
        %v1951 = vpop.f32.mrf.mxu0
        %v1952 = vadd.f32 %v1839, %v1951
        %1953 = vmatmul.f32.gmra.mxu0 %v1646
        %v1954 = vpop.f32.mrf.mxu0
        %v1955 = vadd.f32 %v1842, %v1954
        %1956 = vmatmul.f32.gmra.mxu0 %v1650
        %v1957 = vpop.f32.mrf.mxu0
        %v1958 = vadd.f32 %v1845, %v1957
        %1959 = vmatmul.f32.gmra.mxu0 %v1654
        %v1960 = vpop.f32.mrf.mxu0
        %v1961 = vadd.f32 %v1848, %v1960
        %1962 = vmatmul.f32.gmra.mxu0 %v1658
        %v1963 = vpop.f32.mrf.mxu0
        %v1964 = vadd.f32 %v1851, %v1963
        %1965 = vmatmul.f32.gmra.mxu0 %v1662
        %v1966 = vpop.f32.mrf.mxu0
        %v1967 = vadd.f32 %v1854, %v1966
        %1968 = vmatmul.f32.gmra.mxu0 %v1666
        %v1969 = vpop.f32.mrf.mxu0
        %v1970 = vadd.f32 %v1857, %v1969
        %1971 = vmatmul.f32.gmra.mxu0 %v1670
        %v1972 = vpop.f32.mrf.mxu0
        %v1973 = vadd.f32 %v1860, %v1972
        %1974 = vmatmul.f32.gmra.mxu0 %v1674
        %v1975 = vpop.f32.mrf.mxu0
        %v1976 = vadd.f32 %v1863, %v1975
        %1977 = vmatmul.f32.gmra.mxu0 %v1678
        %v1978 = vpop.f32.mrf.mxu0
        %v1979 = vadd.f32 %v1866, %v1978
        %1980 = vmatmul.f32.gmra.mxu0 %v1682
        %v1981 = vpop.f32.mrf.mxu0
        %v1982 = vadd.f32 %v1869, %v1981
        %1983 = vmatmul.f32.gmra.mxu0 %v1686
        %v1984 = vpop.f32.mrf.mxu0
        %v1985 = vadd.f32 %v1872, %v1984
        %1986 = vmatmul.f32.gmra.mxu0 %v1690
        %v1987 = vpop.f32.mrf.mxu0
        %v1988 = vadd.f32 %v1875, %v1987
        %1989 = vmatmul.f32.gmra.mxu0 %v1694
        %v1990 = vpop.f32.mrf.mxu0
        %v1991 = vadd.f32 %v1878, %v1990
        %1992 = vmatmul.f32.gmra.mxu0 %v1698
        %v1993 = vpop.f32.mrf.mxu0
        %v1994 = vadd.f32 %v1881, %v1993
        %1995 = vmatmul.f32.gmra.mxu0 %v1702
        %v1996 = vpop.f32.mrf.mxu0
        %v1997 = vadd.f32 %v1884, %v1996
        %1998 = vmatmul.f32.gmra.mxu0 %v1706
        %v1999 = vpop.f32.mrf.mxu0
        %v2000 = vadd.f32 %v1887, %v1999
        %2001 = vmatmul.f32.gmra.mxu0 %v1710
        %v2002 = vpop.f32.mrf.mxu0
        %v2003 = vadd.f32 %v1890, %v2002
        %2004 = vmatmul.f32.gmra.mxu0 %v1714
        %v2005 = vpop.f32.mrf.mxu0
        %v2006 = vadd.f32 %v1893, %v2005
        %2007 = vmatmul.f32.gmra.mxu0 %v1718
        %v2008 = vpop.f32.mrf.mxu0
        %v2009 = vadd.f32 %v1896, %v2008
        %2010 = vmatmul.f32.gmra.mxu0 %v1722
        %v2011 = vpop.f32.mrf.mxu0
        %v2012 = vadd.f32 %v1899, %v2011
        %2013 = vmatmul.f32.gmra.mxu0 %v1726
        %v2014 = vpop.f32.mrf.mxu0
        %v2015 = vadd.f32 %v1902, %v2014
        %2016 = vdwg.mxu0
        %v2017 = vsel %vm853, 1, 0
        %v2018 = vsel %vm854, 1, 0
        %v2019 = vsel %vm855, 1, 0
        %v2020 = vsel %vm856, 1, 0
        %v2021 = vsel %vm857, 1, 0
        %v2022 = vsel %vm858, 1, 0
        %v2023 = vsel %vm859, 1, 0
        %v2024 = vsel %vm860, 1, 0
        %v2025 = vsel %vm861, 1, 0
        %v2026 = vsel %vm862, 1, 0
        %v2027 = vsel %vm863, 1, 0
        %v2028 = vsel %vm864, 1, 0
        %v2029 = vsel %vm865, 1, 0
        %v2030 = vsel %vm866, 1, 0
        %v2031 = vsel %vm867, 1, 0
        %v2032 = vsel %vm868, 1, 0
        %v2033 = vsel %vm869, 1, 0
        %v2034 = vsel %vm870, 1, 0
        %v2035 = vsel %vm871, 1, 0
        %v2036 = vsel %vm872, 1, 0
        %v2037 = vsel %vm873, 1, 0
        %v2038 = vsel %vm874, 1, 0
        %v2039 = vsel %vm875, 1, 0
        %v2040 = vsel %vm876, 1, 0
        %v2041 = vsel %vm877, 1, 0
        %v2042 = vsel %vm878, 1, 0
        %v2043 = vsel %vm879, 1, 0
        %v2044 = vsel %vm880, 1, 0
        %v2045 = vsel %vm881, 1, 0
        %v2046 = vsel %vm882, 1, 0
        %v2047 = vsel %vm883, 1, 0
        %v2048 = vsel %vm884, 1, 0
        %vm2049 = vcmp.eq.s32.totalorder %v2017, 1
        %vm2050 = vcmp.eq.s32.totalorder %v2018, 1
        %vm2051 = vcmp.eq.s32.totalorder %v2019, 1
        %vm2052 = vcmp.eq.s32.totalorder %v2020, 1
        %vm2053 = vcmp.eq.s32.totalorder %v2021, 1
        %vm2054 = vcmp.eq.s32.totalorder %v2022, 1
        %vm2055 = vcmp.eq.s32.totalorder %v2023, 1
        %vm2056 = vcmp.eq.s32.totalorder %v2024, 1
        %vm2057 = vcmp.eq.s32.totalorder %v2025, 1
        %vm2058 = vcmp.eq.s32.totalorder %v2026, 1
        %vm2059 = vcmp.eq.s32.totalorder %v2027, 1
        %vm2060 = vcmp.eq.s32.totalorder %v2028, 1
        %vm2061 = vcmp.eq.s32.totalorder %v2029, 1
        %vm2062 = vcmp.eq.s32.totalorder %v2030, 1
        %vm2063 = vcmp.eq.s32.totalorder %v2031, 1
        %vm2064 = vcmp.eq.s32.totalorder %v2032, 1
        %vm2065 = vcmp.eq.s32.totalorder %v2033, 1
        %vm2066 = vcmp.eq.s32.totalorder %v2034, 1
        %vm2067 = vcmp.eq.s32.totalorder %v2035, 1
        %vm2068 = vcmp.eq.s32.totalorder %v2036, 1
        %vm2069 = vcmp.eq.s32.totalorder %v2037, 1
        %vm2070 = vcmp.eq.s32.totalorder %v2038, 1
        %vm2071 = vcmp.eq.s32.totalorder %v2039, 1
        %vm2072 = vcmp.eq.s32.totalorder %v2040, 1
        %vm2073 = vcmp.eq.s32.totalorder %v2041, 1
        %vm2074 = vcmp.eq.s32.totalorder %v2042, 1
        %vm2075 = vcmp.eq.s32.totalorder %v2043, 1
        %vm2076 = vcmp.eq.s32.totalorder %v2044, 1
        %vm2077 = vcmp.eq.s32.totalorder %v2045, 1
        %vm2078 = vcmp.eq.s32.totalorder %v2046, 1
        %vm2079 = vcmp.eq.s32.totalorder %v2047, 1
        %vm2080 = vcmp.eq.s32.totalorder %v2048, 1
        %v2081 = vsel %vm2049, %v1922, 0.0
        %v2082 = vsel %vm2050, %v1925, 0.0
        %v2083 = vsel %vm2051, %v1928, 0.0
        %v2084 = vsel %vm2052, %v1931, 0.0
        %v2085 = vsel %vm2053, %v1934, 0.0
        %v2086 = vsel %vm2054, %v1937, 0.0
        %v2087 = vsel %vm2055, %v1940, 0.0
        %v2088 = vsel %vm2056, %v1943, 0.0
        %v2089 = vsel %vm2057, %v1946, 0.0
        %v2090 = vsel %vm2058, %v1949, 0.0
        %v2091 = vsel %vm2059, %v1952, 0.0
        %v2092 = vsel %vm2060, %v1955, 0.0
        %v2093 = vsel %vm2061, %v1958, 0.0
        %v2094 = vsel %vm2062, %v1961, 0.0
        %v2095 = vsel %vm2063, %v1964, 0.0
        %v2096 = vsel %vm2064, %v1967, 0.0
        %v2097 = vsel %vm2065, %v1970, 0.0
        %v2098 = vsel %vm2066, %v1973, 0.0
        %v2099 = vsel %vm2067, %v1976, 0.0
        %v2100 = vsel %vm2068, %v1979, 0.0
        %v2101 = vsel %vm2069, %v1982, 0.0
        %v2102 = vsel %vm2070, %v1985, 0.0
        %v2103 = vsel %vm2071, %v1988, 0.0
        %v2104 = vsel %vm2072, %v1991, 0.0
        %v2105 = vsel %vm2073, %v1994, 0.0
        %v2106 = vsel %vm2074, %v1997, 0.0
        %v2107 = vsel %vm2075, %v2000, 0.0
        %v2108 = vsel %vm2076, %v2003, 0.0
        %v2109 = vsel %vm2077, %v2006, 0.0
        %v2110 = vsel %vm2078, %v2009, 0.0
        %v2111 = vsel %vm2079, %v2012, 0.0
        %v2112 = vsel %vm2080, %v2015, 0.0
        %v2113 = vadd.f32 %v2081, 0.0
        %v2114 = vadd.f32 %v2082, 0.0
        %v2115 = vadd.f32 %v2083, 0.0
        %v2116 = vadd.f32 %v2084, 0.0
        %v2117 = vadd.f32 %v2085, 0.0
        %v2118 = vadd.f32 %v2086, 0.0
        %v2119 = vadd.f32 %v2087, 0.0
        %v2120 = vadd.f32 %v2088, 0.0
        %v2121 = vadd.f32 %v2089, 0.0
        %v2122 = vadd.f32 %v2090, 0.0
        %v2123 = vadd.f32 %v2091, 0.0
        %v2124 = vadd.f32 %v2092, 0.0
        %v2125 = vadd.f32 %v2093, 0.0
        %v2126 = vadd.f32 %v2094, 0.0
        %v2127 = vadd.f32 %v2095, 0.0
        %v2128 = vadd.f32 %v2096, 0.0
        %v2129 = vadd.f32 %v2097, 0.0
        %v2130 = vadd.f32 %v2098, 0.0
        %v2131 = vadd.f32 %v2099, 0.0
        %v2132 = vadd.f32 %v2100, 0.0
        %v2133 = vadd.f32 %v2101, 0.0
        %v2134 = vadd.f32 %v2102, 0.0
        %v2135 = vadd.f32 %v2103, 0.0
        %v2136 = vadd.f32 %v2104, 0.0
        %v2137 = vadd.f32 %v2105, 0.0
        %v2138 = vadd.f32 %v2106, 0.0
        %v2139 = vadd.f32 %v2107, 0.0
        %v2140 = vadd.f32 %v2108, 0.0
        %v2141 = vadd.f32 %v2109, 0.0
        %v2142 = vadd.f32 %v2110, 0.0
        %v2143 = vadd.f32 %v2111, 0.0
        %v2144 = vadd.f32 %v2112, 0.0
        %v2145 = vld [vmem:[#allocation2 + $0x210] sm:$0xff]
        %v2146 = vld [vmem:[#allocation2 + $0x218] sm:$0xff]
        %s2147 = scalar_lea.vmem [#allocation9], 256
        %v2148 = vld [vmem:[%s2147] sm:$0xff]
        %v2149 = vld [vmem:[%s2147 + $0x8] sm:$0xff]
        %v2150 = vld [vmem:[%s2147 + $0x10] sm:$0xff]
        %v2151 = vld [vmem:[%s2147 + $0x18] sm:$0xff]
        %v2152 = vld [vmem:[%s2147 + $0x20] sm:$0xff]
        %v2153 = vld [vmem:[%s2147 + $0x28] sm:$0xff]
        %v2154 = vld [vmem:[%s2147 + $0x30] sm:$0xff]
        %v2155 = vld [vmem:[%s2147 + $0x38] sm:$0xff]
        %v2156 = vld [vmem:[%s2147 + $0x40] sm:$0xff]
        %v2157 = vld [vmem:[%s2147 + $0x48] sm:$0xff]
        %v2158 = vld [vmem:[%s2147 + $0x50] sm:$0xff]
        %v2159 = vld [vmem:[%s2147 + $0x58] sm:$0xff]
        %v2160 = vld [vmem:[%s2147 + $0x60] sm:$0xff]
        %v2161 = vld [vmem:[%s2147 + $0x68] sm:$0xff]
        %v2162 = vld [vmem:[%s2147 + $0x70] sm:$0xff]
        %v2163 = vld [vmem:[%s2147 + $0x78] sm:$0xff]
        %v2164 = vld [vmem:[%s2147 + $0x80] sm:$0xff]
        %v2165 = vld [vmem:[%s2147 + $0x88] sm:$0xff]
        %v2166 = vld [vmem:[%s2147 + $0x90] sm:$0xff]
        %v2167 = vld [vmem:[%s2147 + $0x98] sm:$0xff]
        %v2168 = vld [vmem:[%s2147 + $0xa0] sm:$0xff]
        %v2169 = vld [vmem:[%s2147 + $0xa8] sm:$0xff]
        %v2170 = vld [vmem:[%s2147 + $0xb0] sm:$0xff]
        %v2171 = vld [vmem:[%s2147 + $0xb8] sm:$0xff]
        %v2172 = vld [vmem:[%s2147 + $0xc0] sm:$0xff]
        %v2173 = vld [vmem:[%s2147 + $0xc8] sm:$0xff]
        %v2174 = vld [vmem:[%s2147 + $0xd0] sm:$0xff]
        %v2175 = vld [vmem:[%s2147 + $0xd8] sm:$0xff]
        %v2176 = vld [vmem:[%s2147 + $0xe0] sm:$0xff]
        %v2177 = vld [vmem:[%s2147 + $0xe8] sm:$0xff]
        %v2178 = vld [vmem:[%s2147 + $0xf0] sm:$0xff]
        %v2179 = vld [vmem:[%s2147 + $0xf8] sm:$0xff]
        %2180 = vmatpush.msra.mxu0 %v2163
        %2181 = vmatpush.msra.mxu0 %v2162
        %2182 = vmatpush.msra.mxu0 %v2161
        %2183 = vmatpush.msra.mxu0 %v2160
        %2184 = vmatpush.msra.mxu0 %v2159
        %2185 = vmatpush.msra.mxu0 %v2158
        %2186 = vmatpush.msra.mxu0 %v2157
        %2187 = vmatpush.msra.mxu0 %v2156
        %2188 = vmatpush.msra.mxu0 %v2155
        %2189 = vmatpush.msra.mxu0 %v2154
        %2190 = vmatpush.msra.mxu0 %v2153
        %2191 = vmatpush.msra.mxu0 %v2152
        %2192 = vmatpush.msra.mxu0 %v2151
        %2193 = vmatpush.msra.mxu0 %v2150
        %2194 = vmatpush.msra.mxu0 %v2149
        %2195 = vmatpush.msra.mxu0 %v2148
        %2196 = vmatmul.f32.gmra.mxu0 %v1434
        %v2197 = vpop.f32.mrf.mxu0
        %v2198 = vadd.f32 0.0, %v2197
        %2199 = vmatmul.f32.gmra.mxu0 %v1436
        %v2200 = vpop.f32.mrf.mxu0
        %v2201 = vadd.f32 0.0, %v2200
        %2202 = vmatmul.f32.gmra.mxu0 %v1438
        %v2203 = vpop.f32.mrf.mxu0
        %v2204 = vadd.f32 0.0, %v2203
        %2205 = vmatmul.f32.gmra.mxu0 %v1440
        %v2206 = vpop.f32.mrf.mxu0
        %v2207 = vadd.f32 0.0, %v2206
        %2208 = vmatmul.f32.gmra.mxu0 %v1442
        %v2209 = vpop.f32.mrf.mxu0
        %v2210 = vadd.f32 0.0, %v2209
        %2211 = vmatmul.f32.gmra.mxu0 %v1444
        %v2212 = vpop.f32.mrf.mxu0
        %v2213 = vadd.f32 0.0, %v2212
        %2214 = vmatmul.f32.gmra.mxu0 %v1446
        %v2215 = vpop.f32.mrf.mxu0
        %v2216 = vadd.f32 0.0, %v2215
        %2217 = vmatmul.f32.gmra.mxu0 %v1448
        %v2218 = vpop.f32.mrf.mxu0
        %v2219 = vadd.f32 0.0, %v2218
        %2220 = vmatmul.f32.gmra.mxu0 %v1450
        %v2221 = vpop.f32.mrf.mxu0
        %v2222 = vadd.f32 0.0, %v2221
        %2223 = vmatmul.f32.gmra.mxu0 %v1452
        %v2224 = vpop.f32.mrf.mxu0
        %v2225 = vadd.f32 0.0, %v2224
        %2226 = vmatmul.f32.gmra.mxu0 %v1454
        %v2227 = vpop.f32.mrf.mxu0
        %v2228 = vadd.f32 0.0, %v2227
        %2229 = vmatmul.f32.gmra.mxu0 %v1456
        %v2230 = vpop.f32.mrf.mxu0
        %v2231 = vadd.f32 0.0, %v2230
        %2232 = vmatmul.f32.gmra.mxu0 %v1458
        %v2233 = vpop.f32.mrf.mxu0
        %v2234 = vadd.f32 0.0, %v2233
        %2235 = vmatmul.f32.gmra.mxu0 %v1460
        %v2236 = vpop.f32.mrf.mxu0
        %v2237 = vadd.f32 0.0, %v2236
        %2238 = vmatmul.f32.gmra.mxu0 %v1462
        %v2239 = vpop.f32.mrf.mxu0
        %v2240 = vadd.f32 0.0, %v2239
        %2241 = vmatmul.f32.gmra.mxu0 %v1464
        %v2242 = vpop.f32.mrf.mxu0
        %v2243 = vadd.f32 0.0, %v2242
        %2244 = vmatmul.f32.gmra.mxu0 %v1466
        %v2245 = vpop.f32.mrf.mxu0
        %v2246 = vadd.f32 0.0, %v2245
        %2247 = vmatmul.f32.gmra.mxu0 %v1468
        %v2248 = vpop.f32.mrf.mxu0
        %v2249 = vadd.f32 0.0, %v2248
        %2250 = vmatmul.f32.gmra.mxu0 %v1470
        %v2251 = vpop.f32.mrf.mxu0
        %v2252 = vadd.f32 0.0, %v2251
        %2253 = vmatmul.f32.gmra.mxu0 %v1472
        %v2254 = vpop.f32.mrf.mxu0
        %v2255 = vadd.f32 0.0, %v2254
        %2256 = vmatmul.f32.gmra.mxu0 %v1474
        %v2257 = vpop.f32.mrf.mxu0
        %v2258 = vadd.f32 0.0, %v2257
        %2259 = vmatmul.f32.gmra.mxu0 %v1476
        %v2260 = vpop.f32.mrf.mxu0
        %v2261 = vadd.f32 0.0, %v2260
        %2262 = vmatmul.f32.gmra.mxu0 %v1478
        %v2263 = vpop.f32.mrf.mxu0
        %v2264 = vadd.f32 0.0, %v2263
        %2265 = vmatmul.f32.gmra.mxu0 %v1480
        %v2266 = vpop.f32.mrf.mxu0
        %v2267 = vadd.f32 0.0, %v2266
        %2268 = vmatmul.f32.gmra.mxu0 %v1482
        %v2269 = vpop.f32.mrf.mxu0
        %v2270 = vadd.f32 0.0, %v2269
        %2271 = vmatmul.f32.gmra.mxu0 %v1484
        %v2272 = vpop.f32.mrf.mxu0
        %v2273 = vadd.f32 0.0, %v2272
        %2274 = vmatmul.f32.gmra.mxu0 %v1486
        %v2275 = vpop.f32.mrf.mxu0
        %v2276 = vadd.f32 0.0, %v2275
        %2277 = vmatmul.f32.gmra.mxu0 %v1488
        %v2278 = vpop.f32.mrf.mxu0
        %v2279 = vadd.f32 0.0, %v2278
        %2280 = vmatmul.f32.gmra.mxu0 %v1490
        %v2281 = vpop.f32.mrf.mxu0
        %v2282 = vadd.f32 0.0, %v2281
        %2283 = vmatmul.f32.gmra.mxu0 %v1492
        %v2284 = vpop.f32.mrf.mxu0
        %v2285 = vadd.f32 0.0, %v2284
        %2286 = vmatmul.f32.gmra.mxu0 %v1494
        %v2287 = vpop.f32.mrf.mxu0
        %v2288 = vadd.f32 0.0, %v2287
        %2289 = vmatmul.f32.gmra.mxu0 %v2145
        %v2290 = vpop.f32.mrf.mxu0
        %v2291 = vadd.f32 0.0, %v2290
        %2292 = vdwg.mxu0
        %2293 = vmatpush.msra.mxu0 %v2179
        %2294 = vmatpush.msra.mxu0 %v2178
        %2295 = vmatpush.msra.mxu0 %v2177
        %2296 = vmatpush.msra.mxu0 %v2176
        %2297 = vmatpush.msra.mxu0 %v2175
        %2298 = vmatpush.msra.mxu0 %v2174
        %2299 = vmatpush.msra.mxu0 %v2173
        %2300 = vmatpush.msra.mxu0 %v2172
        %2301 = vmatpush.msra.mxu0 %v2171
        %2302 = vmatpush.msra.mxu0 %v2170
        %2303 = vmatpush.msra.mxu0 %v2169
        %2304 = vmatpush.msra.mxu0 %v2168
        %2305 = vmatpush.msra.mxu0 %v2167
        %2306 = vmatpush.msra.mxu0 %v2166
        %2307 = vmatpush.msra.mxu0 %v2165
        %2308 = vmatpush.msra.mxu0 %v2164
        %2309 = vmatmul.f32.gmra.mxu0 %v1435
        %v2310 = vpop.f32.mrf.mxu0
        %v2311 = vadd.f32 %v2198, %v2310
        %2312 = vmatmul.f32.gmra.mxu0 %v1437
        %v2313 = vpop.f32.mrf.mxu0
        %v2314 = vadd.f32 %v2201, %v2313
        %2315 = vmatmul.f32.gmra.mxu0 %v1439
        %v2316 = vpop.f32.mrf.mxu0
        %v2317 = vadd.f32 %v2204, %v2316
        %2318 = vmatmul.f32.gmra.mxu0 %v1441
        %v2319 = vpop.f32.mrf.mxu0
        %v2320 = vadd.f32 %v2207, %v2319
        %2321 = vmatmul.f32.gmra.mxu0 %v1443
        %v2322 = vpop.f32.mrf.mxu0
        %v2323 = vadd.f32 %v2210, %v2322
        %2324 = vmatmul.f32.gmra.mxu0 %v1445
        %v2325 = vpop.f32.mrf.mxu0
        %v2326 = vadd.f32 %v2213, %v2325
        %2327 = vmatmul.f32.gmra.mxu0 %v1447
        %v2328 = vpop.f32.mrf.mxu0
        %v2329 = vadd.f32 %v2216, %v2328
        %2330 = vmatmul.f32.gmra.mxu0 %v1449
        %v2331 = vpop.f32.mrf.mxu0
        %v2332 = vadd.f32 %v2219, %v2331
        %2333 = vmatmul.f32.gmra.mxu0 %v1451
        %v2334 = vpop.f32.mrf.mxu0
        %v2335 = vadd.f32 %v2222, %v2334
        %2336 = vmatmul.f32.gmra.mxu0 %v1453
        %v2337 = vpop.f32.mrf.mxu0
        %v2338 = vadd.f32 %v2225, %v2337
        %2339 = vmatmul.f32.gmra.mxu0 %v1455
        %v2340 = vpop.f32.mrf.mxu0
        %v2341 = vadd.f32 %v2228, %v2340
        %2342 = vmatmul.f32.gmra.mxu0 %v1457
        %v2343 = vpop.f32.mrf.mxu0
        %v2344 = vadd.f32 %v2231, %v2343
        %2345 = vmatmul.f32.gmra.mxu0 %v1459
        %v2346 = vpop.f32.mrf.mxu0
        %v2347 = vadd.f32 %v2234, %v2346
        %2348 = vmatmul.f32.gmra.mxu0 %v1461
        %v2349 = vpop.f32.mrf.mxu0
        %v2350 = vadd.f32 %v2237, %v2349
        %2351 = vmatmul.f32.gmra.mxu0 %v1463
        %v2352 = vpop.f32.mrf.mxu0
        %v2353 = vadd.f32 %v2240, %v2352
        %2354 = vmatmul.f32.gmra.mxu0 %v1465
        %v2355 = vpop.f32.mrf.mxu0
        %v2356 = vadd.f32 %v2243, %v2355
        %2357 = vmatmul.f32.gmra.mxu0 %v1467
        %v2358 = vpop.f32.mrf.mxu0
        %v2359 = vadd.f32 %v2246, %v2358
        %2360 = vmatmul.f32.gmra.mxu0 %v1469
        %v2361 = vpop.f32.mrf.mxu0
        %v2362 = vadd.f32 %v2249, %v2361
        %2363 = vmatmul.f32.gmra.mxu0 %v1471
        %v2364 = vpop.f32.mrf.mxu0
        %v2365 = vadd.f32 %v2252, %v2364
        %2366 = vmatmul.f32.gmra.mxu0 %v1473
        %v2367 = vpop.f32.mrf.mxu0
        %v2368 = vadd.f32 %v2255, %v2367
        %2369 = vmatmul.f32.gmra.mxu0 %v1475
        %v2370 = vpop.f32.mrf.mxu0
        %v2371 = vadd.f32 %v2258, %v2370
        %2372 = vmatmul.f32.gmra.mxu0 %v1477
        %v2373 = vpop.f32.mrf.mxu0
        %v2374 = vadd.f32 %v2261, %v2373
        %2375 = vmatmul.f32.gmra.mxu0 %v1479
        %v2376 = vpop.f32.mrf.mxu0
        %v2377 = vadd.f32 %v2264, %v2376
        %2378 = vmatmul.f32.gmra.mxu0 %v1481
        %v2379 = vpop.f32.mrf.mxu0
        %v2380 = vadd.f32 %v2267, %v2379
        %2381 = vmatmul.f32.gmra.mxu0 %v1483
        %v2382 = vpop.f32.mrf.mxu0
        %v2383 = vadd.f32 %v2270, %v2382
        %2384 = vmatmul.f32.gmra.mxu0 %v1485
        %v2385 = vpop.f32.mrf.mxu0
        %v2386 = vadd.f32 %v2273, %v2385
        %2387 = vmatmul.f32.gmra.mxu0 %v1487
        %v2388 = vpop.f32.mrf.mxu0
        %v2389 = vadd.f32 %v2276, %v2388
        %2390 = vmatmul.f32.gmra.mxu0 %v1489
        %v2391 = vpop.f32.mrf.mxu0
        %v2392 = vadd.f32 %v2279, %v2391
        %2393 = vmatmul.f32.gmra.mxu0 %v1491
        %v2394 = vpop.f32.mrf.mxu0
        %v2395 = vadd.f32 %v2282, %v2394
        %2396 = vmatmul.f32.gmra.mxu0 %v1493
        %v2397 = vpop.f32.mrf.mxu0
        %v2398 = vadd.f32 %v2285, %v2397
        %2399 = vmatmul.f32.gmra.mxu0 %v1495
        %v2400 = vpop.f32.mrf.mxu0
        %v2401 = vadd.f32 %v2288, %v2400
        %2402 = vmatmul.f32.gmra.mxu0 %v2146
        %v2403 = vpop.f32.mrf.mxu0
        %v2404 = vadd.f32 %v2291, %v2403
        %2405 = vdwg.mxu0
        %v2406 = vadd.f32 %v2113, %v2311
        %v2407 = vadd.f32 %v2114, %v2314
        %v2408 = vadd.f32 %v2115, %v2317
        %v2409 = vadd.f32 %v2116, %v2320
        %v2410 = vadd.f32 %v2117, %v2323
        %v2411 = vadd.f32 %v2118, %v2326
        %v2412 = vadd.f32 %v2119, %v2329
        %v2413 = vadd.f32 %v2120, %v2332
        %v2414 = vadd.f32 %v2121, %v2335
        %v2415 = vadd.f32 %v2122, %v2338
        %v2416 = vadd.f32 %v2123, %v2341
        %v2417 = vadd.f32 %v2124, %v2344
        %v2418 = vadd.f32 %v2125, %v2347
        %v2419 = vadd.f32 %v2126, %v2350
        %v2420 = vadd.f32 %v2127, %v2353
        %v2421 = vadd.f32 %v2128, %v2356
        %v2422 = vadd.f32 %v2129, %v2359
        %v2423 = vadd.f32 %v2130, %v2362
        %v2424 = vadd.f32 %v2131, %v2365
        %v2425 = vadd.f32 %v2132, %v2368
        %v2426 = vadd.f32 %v2133, %v2371
        %v2427 = vadd.f32 %v2134, %v2374
        %v2428 = vadd.f32 %v2135, %v2377
        %v2429 = vadd.f32 %v2136, %v2380
        %v2430 = vadd.f32 %v2137, %v2383
        %v2431 = vadd.f32 %v2138, %v2386
        %v2432 = vadd.f32 %v2139, %v2389
        %v2433 = vadd.f32 %v2140, %v2392
        %v2434 = vadd.f32 %v2141, %v2395
        %v2435 = vadd.f32 %v2142, %v2398
        %v2436 = vadd.f32 %v2143, %v2401
        %v2437 = vadd.f32 %v2144, %v2404
        %v2438 = vld [vmem:[#allocation2 + $0x20] sm:$0xfe]
        %v2439 = vld [vmem:[#allocation2 + $0x28] sm:$0xfe]
        %v2440 = vld [vmem:[#allocation2 + $0x30] sm:$0xff]
        %v2441 = vld [vmem:[#allocation2 + $0x38] sm:$0xff]
        %v2442 = vld [vmem:[#allocation2 + $0x40] sm:$0xff]
        %v2443 = vld [vmem:[#allocation2 + $0x48] sm:$0xff]
        %v2444 = vld [vmem:[#allocation2 + $0x50] sm:$0xff]
        %v2445 = vld [vmem:[#allocation2 + $0x58] sm:$0xff]
        %v2446 = vld [vmem:[#allocation2 + $0x60] sm:$0xff]
        %v2447 = vld [vmem:[#allocation2 + $0x68] sm:$0xff]
        %v2448 = vld [vmem:[#allocation2 + $0x70] sm:$0xff]
        %v2449 = vld [vmem:[#allocation2 + $0x78] sm:$0xff]
        %v2450 = vld [vmem:[#allocation2 + $0x80] sm:$0xff]
        %v2451 = vld [vmem:[#allocation2 + $0x88] sm:$0xff]
        %v2452 = vld [vmem:[#allocation2 + $0x90] sm:$0xff]
        %v2453 = vld [vmem:[#allocation2 + $0x98] sm:$0xff]
        %v2454 = vld [vmem:[#allocation2 + $0xa0] sm:$0xff]
        %v2455 = vld [vmem:[#allocation2 + $0xa8] sm:$0xff]
        %v2456 = vld [vmem:[#allocation2 + $0xb0] sm:$0xff]
        %v2457 = vld [vmem:[#allocation2 + $0xb8] sm:$0xff]
        %v2458 = vld [vmem:[#allocation2 + $0xc0] sm:$0xff]
        %v2459 = vld [vmem:[#allocation2 + $0xc8] sm:$0xff]
        %v2460 = vld [vmem:[#allocation2 + $0xd0] sm:$0xff]
        %v2461 = vld [vmem:[#allocation2 + $0xd8] sm:$0xff]
        %v2462 = vld [vmem:[#allocation2 + $0xe0] sm:$0xff]
        %v2463 = vld [vmem:[#allocation2 + $0xe8] sm:$0xff]
        %v2464 = vld [vmem:[#allocation2 + $0xf0] sm:$0xff]
        %v2465 = vld [vmem:[#allocation2 + $0xf8] sm:$0xff]
        %v2466 = vld [vmem:[#allocation2 + $0x100] sm:$0xff]
        %v2467 = vld [vmem:[#allocation2 + $0x108] sm:$0xff]
        %v2468 = vld [vmem:[#allocation2 + $0x110] sm:$0xff]
        %v2469 = vld [vmem:[#allocation2 + $0x118] sm:$0xff]
        %v2470 = vld [vmem:[#allocation2 + $0x120] sm:$0xff]
        %v2471 = vld [vmem:[#allocation2 + $0x128] sm:$0xff]
        %v2472 = vld [vmem:[#allocation2 + $0x130] sm:$0xff]
        %v2473 = vld [vmem:[#allocation2 + $0x138] sm:$0xff]
        %v2474 = vld [vmem:[#allocation2 + $0x140] sm:$0xff]
        %v2475 = vld [vmem:[#allocation2 + $0x148] sm:$0xff]
        %v2476 = vld [vmem:[#allocation2 + $0x150] sm:$0xff]
        %v2477 = vld [vmem:[#allocation2 + $0x158] sm:$0xff]
        %v2478 = vld [vmem:[#allocation2 + $0x160] sm:$0xff]
        %v2479 = vld [vmem:[#allocation2 + $0x168] sm:$0xff]
        %v2480 = vld [vmem:[#allocation2 + $0x170] sm:$0xff]
        %v2481 = vld [vmem:[#allocation2 + $0x178] sm:$0xff]
        %v2482 = vld [vmem:[#allocation2 + $0x180] sm:$0xff]
        %v2483 = vld [vmem:[#allocation2 + $0x188] sm:$0xff]
        %v2484 = vld [vmem:[#allocation2 + $0x190] sm:$0xff]
        %v2485 = vld [vmem:[#allocation2 + $0x198] sm:$0xff]
        %v2486 = vld [vmem:[#allocation2 + $0x1a0] sm:$0xff]
        %v2487 = vld [vmem:[#allocation2 + $0x1a8] sm:$0xff]
        %v2488 = vld [vmem:[#allocation2 + $0x1b0] sm:$0xff]
        %v2489 = vld [vmem:[#allocation2 + $0x1b8] sm:$0xff]
        %v2490 = vld [vmem:[#allocation2 + $0x1c0] sm:$0xff]
        %v2491 = vld [vmem:[#allocation2 + $0x1c8] sm:$0xff]
        %v2492 = vld [vmem:[#allocation2 + $0x1d0] sm:$0xff]
        %v2493 = vld [vmem:[#allocation2 + $0x1d8] sm:$0xff]
        %v2494 = vld [vmem:[#allocation2 + $0x1e0] sm:$0xff]
        %v2495 = vld [vmem:[#allocation2 + $0x1e8] sm:$0xff]
        %v2496 = vld [vmem:[#allocation2 + $0x1f0] sm:$0xff]
        %v2497 = vld [vmem:[#allocation2 + $0x1f8] sm:$0xff]
        %v2498 = vld [vmem:[#allocation2 + $0x200] sm:$0xff]
        %v2499 = vld [vmem:[#allocation2 + $0x208] sm:$0xff]
        %v2500 = vld [vmem:[#allocation2 + $0x210] sm:$0xff]
        %v2501 = vld [vmem:[#allocation2 + $0x218] sm:$0xff]
        %v2502 = vld [vmem:[#allocation2 + $0x220] sm:$0x1]
        %v2503 = vld [vmem:[#allocation2 + $0x228] sm:$0x1]
        %s2504 = scalar_lea.vmem [#allocation9], 512
        %v2505 = vld [vmem:[%s2504] sm:$0xff]
        %v2506 = vld [vmem:[%s2504 + $0x8] sm:$0xff]
        %v2507 = vld [vmem:[%s2504 + $0x10] sm:$0xff]
        %v2508 = vld [vmem:[%s2504 + $0x18] sm:$0xff]
        %v2509 = vld [vmem:[%s2504 + $0x20] sm:$0xff]
        %v2510 = vld [vmem:[%s2504 + $0x28] sm:$0xff]
        %v2511 = vld [vmem:[%s2504 + $0x30] sm:$0xff]
        %v2512 = vld [vmem:[%s2504 + $0x38] sm:$0xff]
        %v2513 = vld [vmem:[%s2504 + $0x40] sm:$0xff]
        %v2514 = vld [vmem:[%s2504 + $0x48] sm:$0xff]
        %v2515 = vld [vmem:[%s2504 + $0x50] sm:$0xff]
        %v2516 = vld [vmem:[%s2504 + $0x58] sm:$0xff]
        %v2517 = vld [vmem:[%s2504 + $0x60] sm:$0xff]
        %v2518 = vld [vmem:[%s2504 + $0x68] sm:$0xff]
        %v2519 = vld [vmem:[%s2504 + $0x70] sm:$0xff]
        %v2520 = vld [vmem:[%s2504 + $0x78] sm:$0xff]
        %v2521 = vld [vmem:[%s2504 + $0x80] sm:$0xff]
        %v2522 = vld [vmem:[%s2504 + $0x88] sm:$0xff]
        %v2523 = vld [vmem:[%s2504 + $0x90] sm:$0xff]
        %v2524 = vld [vmem:[%s2504 + $0x98] sm:$0xff]
        %v2525 = vld [vmem:[%s2504 + $0xa0] sm:$0xff]
        %v2526 = vld [vmem:[%s2504 + $0xa8] sm:$0xff]
        %v2527 = vld [vmem:[%s2504 + $0xb0] sm:$0xff]
        %v2528 = vld [vmem:[%s2504 + $0xb8] sm:$0xff]
        %v2529 = vld [vmem:[%s2504 + $0xc0] sm:$0xff]
        %v2530 = vld [vmem:[%s2504 + $0xc8] sm:$0xff]
        %v2531 = vld [vmem:[%s2504 + $0xd0] sm:$0xff]
        %v2532 = vld [vmem:[%s2504 + $0xd8] sm:$0xff]
        %v2533 = vld [vmem:[%s2504 + $0xe0] sm:$0xff]
        %v2534 = vld [vmem:[%s2504 + $0xe8] sm:$0xff]
        %v2535 = vld [vmem:[%s2504 + $0xf0] sm:$0xff]
        %v2536 = vld [vmem:[%s2504 + $0xf8] sm:$0xff]
        %vm2603 = vcmask 1046528
        %v2604 = vrot.slane %v2438, 1
        %v2605 = vrot.slane %v2440, 1
        %v2606 = vsel %vm2603, %v2604, %v2605
        %v2607 = vrot.slane %v2439, 1
        %v2608 = vrot.slane %v2441, 1
        %v2609 = vsel %vm2603, %v2607, %v2608
        %v2610 = vrot.slane %v2442, 1
        %v2611 = vsel %vm2603, %v2605, %v2610
        %v2612 = vrot.slane %v2443, 1
        %v2613 = vsel %vm2603, %v2608, %v2612
        %v2614 = vrot.slane %v2444, 1
        %v2615 = vsel %vm2603, %v2610, %v2614
        %v2616 = vrot.slane %v2445, 1
        %v2617 = vsel %vm2603, %v2612, %v2616
        %v2618 = vrot.slane %v2446, 1
        %v2619 = vsel %vm2603, %v2614, %v2618
        %v2620 = vrot.slane %v2447, 1
        %v2621 = vsel %vm2603, %v2616, %v2620
        %v2622 = vrot.slane %v2448, 1
        %v2623 = vsel %vm2603, %v2618, %v2622
        %v2624 = vrot.slane %v2449, 1
        %v2625 = vsel %vm2603, %v2620, %v2624
        %v2626 = vrot.slane %v2450, 1
        %v2627 = vsel %vm2603, %v2622, %v2626
        %v2628 = vrot.slane %v2451, 1
        %v2629 = vsel %vm2603, %v2624, %v2628
        %v2630 = vrot.slane %v2452, 1
        %v2631 = vsel %vm2603, %v2626, %v2630
        %v2632 = vrot.slane %v2453, 1
        %v2633 = vsel %vm2603, %v2628, %v2632
        %v2634 = vrot.slane %v2454, 1
        %v2635 = vsel %vm2603, %v2630, %v2634
        %v2636 = vrot.slane %v2455, 1
        %v2637 = vsel %vm2603, %v2632, %v2636
        %v2638 = vrot.slane %v2456, 1
        %v2639 = vsel %vm2603, %v2634, %v2638
        %v2640 = vrot.slane %v2457, 1
        %v2641 = vsel %vm2603, %v2636, %v2640
        %v2642 = vrot.slane %v2458, 1
        %v2643 = vsel %vm2603, %v2638, %v2642
        %v2644 = vrot.slane %v2459, 1
        %v2645 = vsel %vm2603, %v2640, %v2644
        %v2646 = vrot.slane %v2460, 1
        %v2647 = vsel %vm2603, %v2642, %v2646
        %v2648 = vrot.slane %v2461, 1
        %v2649 = vsel %vm2603, %v2644, %v2648
        %v2650 = vrot.slane %v2462, 1
        %v2651 = vsel %vm2603, %v2646, %v2650
        %v2652 = vrot.slane %v2463, 1
        %v2653 = vsel %vm2603, %v2648, %v2652
        %v2654 = vrot.slane %v2464, 1
        %v2655 = vsel %vm2603, %v2650, %v2654
        %v2656 = vrot.slane %v2465, 1
        %v2657 = vsel %vm2603, %v2652, %v2656
        %v2658 = vrot.slane %v2466, 1
        %v2659 = vsel %vm2603, %v2654, %v2658
        %v2660 = vrot.slane %v2467, 1
        %v2661 = vsel %vm2603, %v2656, %v2660
        %v2662 = vrot.slane %v2468, 1
        %v2663 = vsel %vm2603, %v2658, %v2662
        %v2664 = vrot.slane %v2469, 1
        %v2665 = vsel %vm2603, %v2660, %v2664
        %v2666 = vrot.slane %v2470, 1
        %v2667 = vsel %vm2603, %v2662, %v2666
        %v2668 = vrot.slane %v2471, 1
        %v2669 = vsel %vm2603, %v2664, %v2668
        %v2670 = vrot.slane %v2472, 1
        %v2671 = vsel %vm2603, %v2666, %v2670
        %v2672 = vrot.slane %v2473, 1
        %v2673 = vsel %vm2603, %v2668, %v2672
        %v2674 = vrot.slane %v2474, 1
        %v2675 = vsel %vm2603, %v2670, %v2674
        %v2676 = vrot.slane %v2475, 1
        %v2677 = vsel %vm2603, %v2672, %v2676
        %v2678 = vrot.slane %v2476, 1
        %v2679 = vsel %vm2603, %v2674, %v2678
        %v2680 = vrot.slane %v2477, 1
        %v2681 = vsel %vm2603, %v2676, %v2680
        %v2682 = vrot.slane %v2478, 1
        %v2683 = vsel %vm2603, %v2678, %v2682
        %v2684 = vrot.slane %v2479, 1
        %v2685 = vsel %vm2603, %v2680, %v2684
        %v2686 = vrot.slane %v2480, 1
        %v2687 = vsel %vm2603, %v2682, %v2686
        %v2688 = vrot.slane %v2481, 1
        %v2689 = vsel %vm2603, %v2684, %v2688
        %v2690 = vrot.slane %v2482, 1
        %v2691 = vsel %vm2603, %v2686, %v2690
        %v2692 = vrot.slane %v2483, 1
        %v2693 = vsel %vm2603, %v2688, %v2692
        %v2694 = vrot.slane %v2484, 1
        %v2695 = vsel %vm2603, %v2690, %v2694
        %v2696 = vrot.slane %v2485, 1
        %v2697 = vsel %vm2603, %v2692, %v2696
        %v2698 = vrot.slane %v2486, 1
        %v2699 = vsel %vm2603, %v2694, %v2698
        %v2700 = vrot.slane %v2487, 1
        %v2701 = vsel %vm2603, %v2696, %v2700
        %v2702 = vrot.slane %v2488, 1
        %v2703 = vsel %vm2603, %v2698, %v2702
        %v2704 = vrot.slane %v2489, 1
        %v2705 = vsel %vm2603, %v2700, %v2704
        %v2706 = vrot.slane %v2490, 1
        %v2707 = vsel %vm2603, %v2702, %v2706
        %v2708 = vrot.slane %v2491, 1
        %v2709 = vsel %vm2603, %v2704, %v2708
        %v2710 = vrot.slane %v2492, 1
        %v2711 = vsel %vm2603, %v2706, %v2710
        %v2712 = vrot.slane %v2493, 1
        %v2713 = vsel %vm2603, %v2708, %v2712
        %v2714 = vrot.slane %v2494, 1
        %v2715 = vsel %vm2603, %v2710, %v2714
        %v2716 = vrot.slane %v2495, 1
        %v2717 = vsel %vm2603, %v2712, %v2716
        %v2718 = vrot.slane %v2496, 1
        %v2719 = vsel %vm2603, %v2714, %v2718
        %v2720 = vrot.slane %v2497, 1
        %v2721 = vsel %vm2603, %v2716, %v2720
        %v2722 = vrot.slane %v2498, 1
        %v2723 = vsel %vm2603, %v2718, %v2722
        %v2724 = vrot.slane %v2499, 1
        %v2725 = vsel %vm2603, %v2720, %v2724
        %v2726 = vrot.slane %v2500, 1
        %v2727 = vsel %vm2603, %v2722, %v2726
        %v2728 = vrot.slane %v2501, 1
        %v2729 = vsel %vm2603, %v2724, %v2728
        %v2730 = vrot.slane %v2502, 1
        %v2731 = vsel %vm2603, %v2726, %v2730
        %v2732 = vrot.slane %v2503, 1
        %v2733 = vsel %vm2603, %v2728, %v2732
        %2798 = vmatpush.msra.mxu0 %v2520
        %2799 = vmatpush.msra.mxu0 %v2519
        %2800 = vmatpush.msra.mxu0 %v2518
        %2801 = vmatpush.msra.mxu0 %v2517
        %2802 = vmatpush.msra.mxu0 %v2516
        %2803 = vmatpush.msra.mxu0 %v2515
        %2804 = vmatpush.msra.mxu0 %v2514
        %2805 = vmatpush.msra.mxu0 %v2513
        %2806 = vmatpush.msra.mxu0 %v2512
        %2807 = vmatpush.msra.mxu0 %v2511
        %2808 = vmatpush.msra.mxu0 %v2510
        %2809 = vmatpush.msra.mxu0 %v2509
        %2810 = vmatpush.msra.mxu0 %v2508
        %2811 = vmatpush.msra.mxu0 %v2507
        %2812 = vmatpush.msra.mxu0 %v2506
        %2813 = vmatpush.msra.mxu0 %v2505
        %2814 = vmatmul.f32.gmra.mxu0 %v2606
        %v2815 = vpop.f32.mrf.mxu0
        %v2816 = vadd.f32 0.0, %v2815
        %2817 = vmatmul.f32.gmra.mxu0 %v2611
        %v2818 = vpop.f32.mrf.mxu0
        %v2819 = vadd.f32 0.0, %v2818
        %2820 = vmatmul.f32.gmra.mxu0 %v2615
        %v2821 = vpop.f32.mrf.mxu0
        %v2822 = vadd.f32 0.0, %v2821
        %2823 = vmatmul.f32.gmra.mxu0 %v2619
        %v2824 = vpop.f32.mrf.mxu0
        %v2825 = vadd.f32 0.0, %v2824
        %2826 = vmatmul.f32.gmra.mxu0 %v2623
        %v2827 = vpop.f32.mrf.mxu0
        %v2828 = vadd.f32 0.0, %v2827
        %2829 = vmatmul.f32.gmra.mxu0 %v2627
        %v2830 = vpop.f32.mrf.mxu0
        %v2831 = vadd.f32 0.0, %v2830
        %2832 = vmatmul.f32.gmra.mxu0 %v2631
        %v2833 = vpop.f32.mrf.mxu0
        %v2834 = vadd.f32 0.0, %v2833
        %2835 = vmatmul.f32.gmra.mxu0 %v2635
        %v2836 = vpop.f32.mrf.mxu0
        %v2837 = vadd.f32 0.0, %v2836
        %2838 = vmatmul.f32.gmra.mxu0 %v2639
        %v2839 = vpop.f32.mrf.mxu0
        %v2840 = vadd.f32 0.0, %v2839
        %2841 = vmatmul.f32.gmra.mxu0 %v2643
        %v2842 = vpop.f32.mrf.mxu0
        %v2843 = vadd.f32 0.0, %v2842
        %2844 = vmatmul.f32.gmra.mxu0 %v2647
        %v2845 = vpop.f32.mrf.mxu0
        %v2846 = vadd.f32 0.0, %v2845
        %2847 = vmatmul.f32.gmra.mxu0 %v2651
        %v2848 = vpop.f32.mrf.mxu0
        %v2849 = vadd.f32 0.0, %v2848
        %2850 = vmatmul.f32.gmra.mxu0 %v2655
        %v2851 = vpop.f32.mrf.mxu0
        %v2852 = vadd.f32 0.0, %v2851
        %2853 = vmatmul.f32.gmra.mxu0 %v2659
        %v2854 = vpop.f32.mrf.mxu0
        %v2855 = vadd.f32 0.0, %v2854
        %2856 = vmatmul.f32.gmra.mxu0 %v2663
        %v2857 = vpop.f32.mrf.mxu0
        %v2858 = vadd.f32 0.0, %v2857
        %2859 = vmatmul.f32.gmra.mxu0 %v2667
        %v2860 = vpop.f32.mrf.mxu0
        %v2861 = vadd.f32 0.0, %v2860
        %2862 = vmatmul.f32.gmra.mxu0 %v2671
        %v2863 = vpop.f32.mrf.mxu0
        %v2864 = vadd.f32 0.0, %v2863
        %2865 = vmatmul.f32.gmra.mxu0 %v2675
        %v2866 = vpop.f32.mrf.mxu0
        %v2867 = vadd.f32 0.0, %v2866
        %2868 = vmatmul.f32.gmra.mxu0 %v2679
        %v2869 = vpop.f32.mrf.mxu0
        %v2870 = vadd.f32 0.0, %v2869
        %2871 = vmatmul.f32.gmra.mxu0 %v2683
        %v2872 = vpop.f32.mrf.mxu0
        %v2873 = vadd.f32 0.0, %v2872
        %2874 = vmatmul.f32.gmra.mxu0 %v2687
        %v2875 = vpop.f32.mrf.mxu0
        %v2876 = vadd.f32 0.0, %v2875
        %2877 = vmatmul.f32.gmra.mxu0 %v2691
        %v2878 = vpop.f32.mrf.mxu0
        %v2879 = vadd.f32 0.0, %v2878
        %2880 = vmatmul.f32.gmra.mxu0 %v2695
        %v2881 = vpop.f32.mrf.mxu0
        %v2882 = vadd.f32 0.0, %v2881
        %2883 = vmatmul.f32.gmra.mxu0 %v2699
        %v2884 = vpop.f32.mrf.mxu0
        %v2885 = vadd.f32 0.0, %v2884
        %2886 = vmatmul.f32.gmra.mxu0 %v2703
        %v2887 = vpop.f32.mrf.mxu0
        %v2888 = vadd.f32 0.0, %v2887
        %2889 = vmatmul.f32.gmra.mxu0 %v2707
        %v2890 = vpop.f32.mrf.mxu0
        %v2891 = vadd.f32 0.0, %v2890
        %2892 = vmatmul.f32.gmra.mxu0 %v2711
        %v2893 = vpop.f32.mrf.mxu0
        %v2894 = vadd.f32 0.0, %v2893
        %2895 = vmatmul.f32.gmra.mxu0 %v2715
        %v2896 = vpop.f32.mrf.mxu0
        %v2897 = vadd.f32 0.0, %v2896
        %2898 = vmatmul.f32.gmra.mxu0 %v2719
        %v2899 = vpop.f32.mrf.mxu0
        %v2900 = vadd.f32 0.0, %v2899
        %2901 = vmatmul.f32.gmra.mxu0 %v2723
        %v2902 = vpop.f32.mrf.mxu0
        %v2903 = vadd.f32 0.0, %v2902
        %2904 = vmatmul.f32.gmra.mxu0 %v2727
        %v2905 = vpop.f32.mrf.mxu0
        %v2906 = vadd.f32 0.0, %v2905
        %2907 = vmatmul.f32.gmra.mxu0 %v2731
        %v2908 = vpop.f32.mrf.mxu0
        %v2909 = vadd.f32 0.0, %v2908
        %2910 = vdwg.mxu0
        %2911 = vmatpush.msra.mxu0 %v2536
        %2912 = vmatpush.msra.mxu0 %v2535
        %2913 = vmatpush.msra.mxu0 %v2534
        %2914 = vmatpush.msra.mxu0 %v2533
        %2915 = vmatpush.msra.mxu0 %v2532
        %2916 = vmatpush.msra.mxu0 %v2531
        %2917 = vmatpush.msra.mxu0 %v2530
        %2918 = vmatpush.msra.mxu0 %v2529
        %2919 = vmatpush.msra.mxu0 %v2528
        %2920 = vmatpush.msra.mxu0 %v2527
        %2921 = vmatpush.msra.mxu0 %v2526
        %2922 = vmatpush.msra.mxu0 %v2525
        %2923 = vmatpush.msra.mxu0 %v2524
        %2924 = vmatpush.msra.mxu0 %v2523
        %2925 = vmatpush.msra.mxu0 %v2522
        %2926 = vmatpush.msra.mxu0 %v2521
        %2927 = vmatmul.f32.gmra.mxu0 %v2609
        %v2928 = vpop.f32.mrf.mxu0
        %v2929 = vadd.f32 %v2816, %v2928
        %2930 = vmatmul.f32.gmra.mxu0 %v2613
        %v2931 = vpop.f32.mrf.mxu0
        %v2932 = vadd.f32 %v2819, %v2931
        %2933 = vmatmul.f32.gmra.mxu0 %v2617
        %v2934 = vpop.f32.mrf.mxu0
        %v2935 = vadd.f32 %v2822, %v2934
        %2936 = vmatmul.f32.gmra.mxu0 %v2621
        %v2937 = vpop.f32.mrf.mxu0
        %v2938 = vadd.f32 %v2825, %v2937
        %2939 = vmatmul.f32.gmra.mxu0 %v2625
        %v2940 = vpop.f32.mrf.mxu0
        %v2941 = vadd.f32 %v2828, %v2940
        %2942 = vmatmul.f32.gmra.mxu0 %v2629
        %v2943 = vpop.f32.mrf.mxu0
        %v2944 = vadd.f32 %v2831, %v2943
        %2945 = vmatmul.f32.gmra.mxu0 %v2633
        %v2946 = vpop.f32.mrf.mxu0
        %v2947 = vadd.f32 %v2834, %v2946
        %2948 = vmatmul.f32.gmra.mxu0 %v2637
        %v2949 = vpop.f32.mrf.mxu0
        %v2950 = vadd.f32 %v2837, %v2949
        %2951 = vmatmul.f32.gmra.mxu0 %v2641
        %v2952 = vpop.f32.mrf.mxu0
        %v2953 = vadd.f32 %v2840, %v2952
        %2954 = vmatmul.f32.gmra.mxu0 %v2645
        %v2955 = vpop.f32.mrf.mxu0
        %v2956 = vadd.f32 %v2843, %v2955
        %2957 = vmatmul.f32.gmra.mxu0 %v2649
        %v2958 = vpop.f32.mrf.mxu0
        %v2959 = vadd.f32 %v2846, %v2958
        %2960 = vmatmul.f32.gmra.mxu0 %v2653
        %v2961 = vpop.f32.mrf.mxu0
        %v2962 = vadd.f32 %v2849, %v2961
        %2963 = vmatmul.f32.gmra.mxu0 %v2657
        %v2964 = vpop.f32.mrf.mxu0
        %v2965 = vadd.f32 %v2852, %v2964
        %2966 = vmatmul.f32.gmra.mxu0 %v2661
        %v2967 = vpop.f32.mrf.mxu0
        %v2968 = vadd.f32 %v2855, %v2967
        %2969 = vmatmul.f32.gmra.mxu0 %v2665
        %v2970 = vpop.f32.mrf.mxu0
        %v2971 = vadd.f32 %v2858, %v2970
        %2972 = vmatmul.f32.gmra.mxu0 %v2669
        %v2973 = vpop.f32.mrf.mxu0
        %v2974 = vadd.f32 %v2861, %v2973
        %2975 = vmatmul.f32.gmra.mxu0 %v2673
        %v2976 = vpop.f32.mrf.mxu0
        %v2977 = vadd.f32 %v2864, %v2976
        %2978 = vmatmul.f32.gmra.mxu0 %v2677
        %v2979 = vpop.f32.mrf.mxu0
        %v2980 = vadd.f32 %v2867, %v2979
        %2981 = vmatmul.f32.gmra.mxu0 %v2681
        %v2982 = vpop.f32.mrf.mxu0
        %v2983 = vadd.f32 %v2870, %v2982
        %2984 = vmatmul.f32.gmra.mxu0 %v2685
        %v2985 = vpop.f32.mrf.mxu0
        %v2986 = vadd.f32 %v2873, %v2985
        %2987 = vmatmul.f32.gmra.mxu0 %v2689
        %v2988 = vpop.f32.mrf.mxu0
        %v2989 = vadd.f32 %v2876, %v2988
        %2990 = vmatmul.f32.gmra.mxu0 %v2693
        %v2991 = vpop.f32.mrf.mxu0
        %v2992 = vadd.f32 %v2879, %v2991
        %2993 = vmatmul.f32.gmra.mxu0 %v2697
        %v2994 = vpop.f32.mrf.mxu0
        %v2995 = vadd.f32 %v2882, %v2994
        %2996 = vmatmul.f32.gmra.mxu0 %v2701
        %v2997 = vpop.f32.mrf.mxu0
        %v2998 = vadd.f32 %v2885, %v2997
        %2999 = vmatmul.f32.gmra.mxu0 %v2705
        %v3000 = vpop.f32.mrf.mxu0
        %v3001 = vadd.f32 %v2888, %v3000
        %3002 = vmatmul.f32.gmra.mxu0 %v2709
        %v3003 = vpop.f32.mrf.mxu0
        %v3004 = vadd.f32 %v2891, %v3003
        %3005 = vmatmul.f32.gmra.mxu0 %v2713
        %v3006 = vpop.f32.mrf.mxu0
        %v3007 = vadd.f32 %v2894, %v3006
        %3008 = vmatmul.f32.gmra.mxu0 %v2717
        %v3009 = vpop.f32.mrf.mxu0
        %v3010 = vadd.f32 %v2897, %v3009
        %3011 = vmatmul.f32.gmra.mxu0 %v2721
        %v3012 = vpop.f32.mrf.mxu0
        %v3013 = vadd.f32 %v2900, %v3012
        %3014 = vmatmul.f32.gmra.mxu0 %v2725
        %v3015 = vpop.f32.mrf.mxu0
        %v3016 = vadd.f32 %v2903, %v3015
        %3017 = vmatmul.f32.gmra.mxu0 %v2729
        %v3018 = vpop.f32.mrf.mxu0
        %v3019 = vadd.f32 %v2906, %v3018
        %3020 = vmatmul.f32.gmra.mxu0 %v2733
        %v3021 = vpop.f32.mrf.mxu0
        %v3022 = vadd.f32 %v2909, %v3021
        %3023 = vdwg.mxu0
        %v3024 = vsel %vm885, 1, 0
        %v3025 = vsel %vm886, 1, 0
        %v3026 = vsel %vm887, 1, 0
        %v3027 = vsel %vm888, 1, 0
        %v3028 = vsel %vm889, 1, 0
        %v3029 = vsel %vm890, 1, 0
        %v3030 = vsel %vm891, 1, 0
        %v3031 = vsel %vm892, 1, 0
        %v3032 = vsel %vm893, 1, 0
        %v3033 = vsel %vm894, 1, 0
        %v3034 = vsel %vm895, 1, 0
        %v3035 = vsel %vm896, 1, 0
        %v3036 = vsel %vm897, 1, 0
        %v3037 = vsel %vm898, 1, 0
        %v3038 = vsel %vm899, 1, 0
        %v3039 = vsel %vm900, 1, 0
        %v3040 = vsel %vm901, 1, 0
        %v3041 = vsel %vm902, 1, 0
        %v3042 = vsel %vm903, 1, 0
        %v3043 = vsel %vm904, 1, 0
        %v3044 = vsel %vm905, 1, 0
        %v3045 = vsel %vm906, 1, 0
        %v3046 = vsel %vm907, 1, 0
        %v3047 = vsel %vm908, 1, 0
        %v3048 = vsel %vm909, 1, 0
        %v3049 = vsel %vm910, 1, 0
        %v3050 = vsel %vm911, 1, 0
        %v3051 = vsel %vm912, 1, 0
        %v3052 = vsel %vm913, 1, 0
        %v3053 = vsel %vm914, 1, 0
        %v3054 = vsel %vm915, 1, 0
        %v3055 = vsel %vm916, 1, 0
        %vm3056 = vcmp.eq.s32.totalorder %v3024, 1
        %vm3057 = vcmp.eq.s32.totalorder %v3025, 1
        %vm3058 = vcmp.eq.s32.totalorder %v3026, 1
        %vm3059 = vcmp.eq.s32.totalorder %v3027, 1
        %vm3060 = vcmp.eq.s32.totalorder %v3028, 1
        %vm3061 = vcmp.eq.s32.totalorder %v3029, 1
        %vm3062 = vcmp.eq.s32.totalorder %v3030, 1
        %vm3063 = vcmp.eq.s32.totalorder %v3031, 1
        %vm3064 = vcmp.eq.s32.totalorder %v3032, 1
        %vm3065 = vcmp.eq.s32.totalorder %v3033, 1
        %vm3066 = vcmp.eq.s32.totalorder %v3034, 1
        %vm3067 = vcmp.eq.s32.totalorder %v3035, 1
        %vm3068 = vcmp.eq.s32.totalorder %v3036, 1
        %vm3069 = vcmp.eq.s32.totalorder %v3037, 1
        %vm3070 = vcmp.eq.s32.totalorder %v3038, 1
        %vm3071 = vcmp.eq.s32.totalorder %v3039, 1
        %vm3072 = vcmp.eq.s32.totalorder %v3040, 1
        %vm3073 = vcmp.eq.s32.totalorder %v3041, 1
        %vm3074 = vcmp.eq.s32.totalorder %v3042, 1
        %vm3075 = vcmp.eq.s32.totalorder %v3043, 1
        %vm3076 = vcmp.eq.s32.totalorder %v3044, 1
        %vm3077 = vcmp.eq.s32.totalorder %v3045, 1
        %vm3078 = vcmp.eq.s32.totalorder %v3046, 1
        %vm3079 = vcmp.eq.s32.totalorder %v3047, 1
        %vm3080 = vcmp.eq.s32.totalorder %v3048, 1
        %vm3081 = vcmp.eq.s32.totalorder %v3049, 1
        %vm3082 = vcmp.eq.s32.totalorder %v3050, 1
        %vm3083 = vcmp.eq.s32.totalorder %v3051, 1
        %vm3084 = vcmp.eq.s32.totalorder %v3052, 1
        %vm3085 = vcmp.eq.s32.totalorder %v3053, 1
        %vm3086 = vcmp.eq.s32.totalorder %v3054, 1
        %vm3087 = vcmp.eq.s32.totalorder %v3055, 1
        %v3088 = vsel %vm3056, %v2929, 0.0
        %v3089 = vsel %vm3057, %v2932, 0.0
        %v3090 = vsel %vm3058, %v2935, 0.0
        %v3091 = vsel %vm3059, %v2938, 0.0
        %v3092 = vsel %vm3060, %v2941, 0.0
        %v3093 = vsel %vm3061, %v2944, 0.0
        %v3094 = vsel %vm3062, %v2947, 0.0
        %v3095 = vsel %vm3063, %v2950, 0.0
        %v3096 = vsel %vm3064, %v2953, 0.0
        %v3097 = vsel %vm3065, %v2956, 0.0
        %v3098 = vsel %vm3066, %v2959, 0.0
        %v3099 = vsel %vm3067, %v2962, 0.0
        %v3100 = vsel %vm3068, %v2965, 0.0
        %v3101 = vsel %vm3069, %v2968, 0.0
        %v3102 = vsel %vm3070, %v2971, 0.0
        %v3103 = vsel %vm3071, %v2974, 0.0
        %v3104 = vsel %vm3072, %v2977, 0.0
        %v3105 = vsel %vm3073, %v2980, 0.0
        %v3106 = vsel %vm3074, %v2983, 0.0
        %v3107 = vsel %vm3075, %v2986, 0.0
        %v3108 = vsel %vm3076, %v2989, 0.0
        %v3109 = vsel %vm3077, %v2992, 0.0
        %v3110 = vsel %vm3078, %v2995, 0.0
        %v3111 = vsel %vm3079, %v2998, 0.0
        %v3112 = vsel %vm3080, %v3001, 0.0
        %v3113 = vsel %vm3081, %v3004, 0.0
        %v3114 = vsel %vm3082, %v3007, 0.0
        %v3115 = vsel %vm3083, %v3010, 0.0
        %v3116 = vsel %vm3084, %v3013, 0.0
        %v3117 = vsel %vm3085, %v3016, 0.0
        %v3118 = vsel %vm3086, %v3019, 0.0
        %v3119 = vsel %vm3087, %v3022, 0.0
        %v3120 = vadd.f32 %v2406, %v3088
        %v3121 = vadd.f32 %v2407, %v3089
        %v3122 = vadd.f32 %v2408, %v3090
        %v3123 = vadd.f32 %v2409, %v3091
        %v3124 = vadd.f32 %v2410, %v3092
        %v3125 = vadd.f32 %v2411, %v3093
        %v3126 = vadd.f32 %v2412, %v3094
        %v3127 = vadd.f32 %v2413, %v3095
        %v3128 = vadd.f32 %v2414, %v3096
        %v3129 = vadd.f32 %v2415, %v3097
        %v3130 = vadd.f32 %v2416, %v3098
        %v3131 = vadd.f32 %v2417, %v3099
        %v3132 = vadd.f32 %v2418, %v3100
        %v3133 = vadd.f32 %v2419, %v3101
        %v3134 = vadd.f32 %v2420, %v3102
        %v3135 = vadd.f32 %v2421, %v3103
        %v3136 = vadd.f32 %v2422, %v3104
        %v3137 = vadd.f32 %v2423, %v3105
        %v3138 = vadd.f32 %v2424, %v3106
        %v3139 = vadd.f32 %v2425, %v3107
        %v3140 = vadd.f32 %v2426, %v3108
        %v3141 = vadd.f32 %v2427, %v3109
        %v3142 = vadd.f32 %v2428, %v3110
        %v3143 = vadd.f32 %v2429, %v3111
        %v3144 = vadd.f32 %v2430, %v3112
        %v3145 = vadd.f32 %v2431, %v3113
        %v3146 = vadd.f32 %v2432, %v3114
        %v3147 = vadd.f32 %v2433, %v3115
        %v3148 = vadd.f32 %v2434, %v3116
        %v3149 = vadd.f32 %v2435, %v3117
        %v3150 = vadd.f32 %v2436, %v3118
        %v3151 = vadd.f32 %v2437, %v3119
        %v3152 = vld [vmem:[#allocation2 + $0x30] sm:$0x80]
        %v3153 = vld [vmem:[#allocation2 + $0x38] sm:$0x80]
        %v3154 = vld [vmem:[#allocation2 + $0x40] sm:$0xff]
        %v3155 = vld [vmem:[#allocation2 + $0x48] sm:$0xff]
        %v3156 = vld [vmem:[#allocation2 + $0x50] sm:$0xff]
        %v3157 = vld [vmem:[#allocation2 + $0x58] sm:$0xff]
        %v3158 = vld [vmem:[#allocation2 + $0x60] sm:$0xff]
        %v3159 = vld [vmem:[#allocation2 + $0x68] sm:$0xff]
        %v3160 = vld [vmem:[#allocation2 + $0x70] sm:$0xff]
        %v3161 = vld [vmem:[#allocation2 + $0x78] sm:$0xff]
        %v3162 = vld [vmem:[#allocation2 + $0x80] sm:$0xff]
        %v3163 = vld [vmem:[#allocation2 + $0x88] sm:$0xff]
        %v3164 = vld [vmem:[#allocation2 + $0x90] sm:$0xff]
        %v3165 = vld [vmem:[#allocation2 + $0x98] sm:$0xff]
        %v3166 = vld [vmem:[#allocation2 + $0xa0] sm:$0xff]
        %v3167 = vld [vmem:[#allocation2 + $0xa8] sm:$0xff]
        %v3168 = vld [vmem:[#allocation2 + $0xb0] sm:$0xff]
        %v3169 = vld [vmem:[#allocation2 + $0xb8] sm:$0xff]
        %v3170 = vld [vmem:[#allocation2 + $0xc0] sm:$0xff]
        %v3171 = vld [vmem:[#allocation2 + $0xc8] sm:$0xff]
        %v3172 = vld [vmem:[#allocation2 + $0xd0] sm:$0xff]
        %v3173 = vld [vmem:[#allocation2 + $0xd8] sm:$0xff]
        %v3174 = vld [vmem:[#allocation2 + $0xe0] sm:$0xff]
        %v3175 = vld [vmem:[#allocation2 + $0xe8] sm:$0xff]
        %v3176 = vld [vmem:[#allocation2 + $0xf0] sm:$0xff]
        %v3177 = vld [vmem:[#allocation2 + $0xf8] sm:$0xff]
        %v3178 = vld [vmem:[#allocation2 + $0x100] sm:$0xff]
        %v3179 = vld [vmem:[#allocation2 + $0x108] sm:$0xff]
        %v3180 = vld [vmem:[#allocation2 + $0x110] sm:$0xff]
        %v3181 = vld [vmem:[#allocation2 + $0x118] sm:$0xff]
        %v3182 = vld [vmem:[#allocation2 + $0x120] sm:$0xff]
        %v3183 = vld [vmem:[#allocation2 + $0x128] sm:$0xff]
        %v3184 = vld [vmem:[#allocation2 + $0x130] sm:$0xff]
        %v3185 = vld [vmem:[#allocation2 + $0x138] sm:$0xff]
        %v3186 = vld [vmem:[#allocation2 + $0x140] sm:$0xff]
        %v3187 = vld [vmem:[#allocation2 + $0x148] sm:$0xff]
        %v3188 = vld [vmem:[#allocation2 + $0x150] sm:$0xff]
        %v3189 = vld [vmem:[#allocation2 + $0x158] sm:$0xff]
        %v3190 = vld [vmem:[#allocation2 + $0x160] sm:$0xff]
        %v3191 = vld [vmem:[#allocation2 + $0x168] sm:$0xff]
        %v3192 = vld [vmem:[#allocation2 + $0x170] sm:$0xff]
        %v3193 = vld [vmem:[#allocation2 + $0x178] sm:$0xff]
        %v3194 = vld [vmem:[#allocation2 + $0x180] sm:$0xff]
        %v3195 = vld [vmem:[#allocation2 + $0x188] sm:$0xff]
        %v3196 = vld [vmem:[#allocation2 + $0x190] sm:$0xff]
        %v3197 = vld [vmem:[#allocation2 + $0x198] sm:$0xff]
        %v3198 = vld [vmem:[#allocation2 + $0x1a0] sm:$0xff]
        %v3199 = vld [vmem:[#allocation2 + $0x1a8] sm:$0xff]
        %v3200 = vld [vmem:[#allocation2 + $0x1b0] sm:$0xff]
        %v3201 = vld [vmem:[#allocation2 + $0x1b8] sm:$0xff]
        %v3202 = vld [vmem:[#allocation2 + $0x1c0] sm:$0xff]
        %v3203 = vld [vmem:[#allocation2 + $0x1c8] sm:$0xff]
        %v3204 = vld [vmem:[#allocation2 + $0x1d0] sm:$0xff]
        %v3205 = vld [vmem:[#allocation2 + $0x1d8] sm:$0xff]
        %v3206 = vld [vmem:[#allocation2 + $0x1e0] sm:$0xff]
        %v3207 = vld [vmem:[#allocation2 + $0x1e8] sm:$0xff]
        %v3208 = vld [vmem:[#allocation2 + $0x1f0] sm:$0xff]
        %v3209 = vld [vmem:[#allocation2 + $0x1f8] sm:$0xff]
        %v3210 = vld [vmem:[#allocation2 + $0x200] sm:$0xff]
        %v3211 = vld [vmem:[#allocation2 + $0x208] sm:$0xff]
        %v3212 = vld [vmem:[#allocation2 + $0x210] sm:$0xff]
        %v3213 = vld [vmem:[#allocation2 + $0x218] sm:$0xff]
        %v3214 = vld [vmem:[#allocation2 + $0x220] sm:$0xff]
        %v3215 = vld [vmem:[#allocation2 + $0x228] sm:$0xff]
        %v3216 = vld [vmem:[#allocation2 + $0x230] sm:$0x7f]
        %v3217 = vld [vmem:[#allocation2 + $0x238] sm:$0x7f]
        %s3218 = scalar_lea.vmem [#allocation9], 768
        %v3219 = vld [vmem:[%s3218] sm:$0xff]
        %v3220 = vld [vmem:[%s3218 + $0x8] sm:$0xff]
        %v3221 = vld [vmem:[%s3218 + $0x10] sm:$0xff]
        %v3222 = vld [vmem:[%s3218 + $0x18] sm:$0xff]
        %v3223 = vld [vmem:[%s3218 + $0x20] sm:$0xff]
        %v3224 = vld [vmem:[%s3218 + $0x28] sm:$0xff]
        %v3225 = vld [vmem:[%s3218 + $0x30] sm:$0xff]
        %v3226 = vld [vmem:[%s3218 + $0x38] sm:$0xff]
        %v3227 = vld [vmem:[%s3218 + $0x40] sm:$0xff]
        %v3228 = vld [vmem:[%s3218 + $0x48] sm:$0xff]
        %v3229 = vld [vmem:[%s3218 + $0x50] sm:$0xff]
        %v3230 = vld [vmem:[%s3218 + $0x58] sm:$0xff]
        %v3231 = vld [vmem:[%s3218 + $0x60] sm:$0xff]
        %v3232 = vld [vmem:[%s3218 + $0x68] sm:$0xff]
        %v3233 = vld [vmem:[%s3218 + $0x70] sm:$0xff]
        %v3234 = vld [vmem:[%s3218 + $0x78] sm:$0xff]
        %v3235 = vld [vmem:[%s3218 + $0x80] sm:$0xff]
        %v3236 = vld [vmem:[%s3218 + $0x88] sm:$0xff]
        %v3237 = vld [vmem:[%s3218 + $0x90] sm:$0xff]
        %v3238 = vld [vmem:[%s3218 + $0x98] sm:$0xff]
        %v3239 = vld [vmem:[%s3218 + $0xa0] sm:$0xff]
        %v3240 = vld [vmem:[%s3218 + $0xa8] sm:$0xff]
        %v3241 = vld [vmem:[%s3218 + $0xb0] sm:$0xff]
        %v3242 = vld [vmem:[%s3218 + $0xb8] sm:$0xff]
        %v3243 = vld [vmem:[%s3218 + $0xc0] sm:$0xff]
        %v3244 = vld [vmem:[%s3218 + $0xc8] sm:$0xff]
        %v3245 = vld [vmem:[%s3218 + $0xd0] sm:$0xff]
        %v3246 = vld [vmem:[%s3218 + $0xd8] sm:$0xff]
        %v3247 = vld [vmem:[%s3218 + $0xe0] sm:$0xff]
        %v3248 = vld [vmem:[%s3218 + $0xe8] sm:$0xff]
        %v3249 = vld [vmem:[%s3218 + $0xf0] sm:$0xff]
        %v3250 = vld [vmem:[%s3218 + $0xf8] sm:$0xff]
        %v3317 = vrot.slane %v3152, 7
        %v3318 = vrot.slane %v3154, 7
        %v3319 = vsel %vm1596, %v3317, %v3318
        %v3320 = vrot.slane %v3153, 7
        %v3321 = vrot.slane %v3155, 7
        %v3322 = vsel %vm1596, %v3320, %v3321
        %v3323 = vrot.slane %v3156, 7
        %v3324 = vsel %vm1596, %v3318, %v3323
        %v3325 = vrot.slane %v3157, 7
        %v3326 = vsel %vm1596, %v3321, %v3325
        %v3327 = vrot.slane %v3158, 7
        %v3328 = vsel %vm1596, %v3323, %v3327
        %v3329 = vrot.slane %v3159, 7
        %v3330 = vsel %vm1596, %v3325, %v3329
        %v3331 = vrot.slane %v3160, 7
        %v3332 = vsel %vm1596, %v3327, %v3331
        %v3333 = vrot.slane %v3161, 7
        %v3334 = vsel %vm1596, %v3329, %v3333
        %v3335 = vrot.slane %v3162, 7
        %v3336 = vsel %vm1596, %v3331, %v3335
        %v3337 = vrot.slane %v3163, 7
        %v3338 = vsel %vm1596, %v3333, %v3337
        %v3339 = vrot.slane %v3164, 7
        %v3340 = vsel %vm1596, %v3335, %v3339
        %v3341 = vrot.slane %v3165, 7
        %v3342 = vsel %vm1596, %v3337, %v3341
        %v3343 = vrot.slane %v3166, 7
        %v3344 = vsel %vm1596, %v3339, %v3343
        %v3345 = vrot.slane %v3167, 7
        %v3346 = vsel %vm1596, %v3341, %v3345
        %v3347 = vrot.slane %v3168, 7
        %v3348 = vsel %vm1596, %v3343, %v3347
        %v3349 = vrot.slane %v3169, 7
        %v3350 = vsel %vm1596, %v3345, %v3349
        %v3351 = vrot.slane %v3170, 7
        %v3352 = vsel %vm1596, %v3347, %v3351
        %v3353 = vrot.slane %v3171, 7
        %v3354 = vsel %vm1596, %v3349, %v3353
        %v3355 = vrot.slane %v3172, 7
        %v3356 = vsel %vm1596, %v3351, %v3355
        %v3357 = vrot.slane %v3173, 7
        %v3358 = vsel %vm1596, %v3353, %v3357
        %v3359 = vrot.slane %v3174, 7
        %v3360 = vsel %vm1596, %v3355, %v3359
        %v3361 = vrot.slane %v3175, 7
        %v3362 = vsel %vm1596, %v3357, %v3361
        %v3363 = vrot.slane %v3176, 7
        %v3364 = vsel %vm1596, %v3359, %v3363
        %v3365 = vrot.slane %v3177, 7
        %v3366 = vsel %vm1596, %v3361, %v3365
        %v3367 = vrot.slane %v3178, 7
        %v3368 = vsel %vm1596, %v3363, %v3367
        %v3369 = vrot.slane %v3179, 7
        %v3370 = vsel %vm1596, %v3365, %v3369
        %v3371 = vrot.slane %v3180, 7
        %v3372 = vsel %vm1596, %v3367, %v3371
        %v3373 = vrot.slane %v3181, 7
        %v3374 = vsel %vm1596, %v3369, %v3373
        %v3375 = vrot.slane %v3182, 7
        %v3376 = vsel %vm1596, %v3371, %v3375
        %v3377 = vrot.slane %v3183, 7
        %v3378 = vsel %vm1596, %v3373, %v3377
        %v3379 = vrot.slane %v3184, 7
        %v3380 = vsel %vm1596, %v3375, %v3379
        %v3381 = vrot.slane %v3185, 7
        %v3382 = vsel %vm1596, %v3377, %v3381
        %v3383 = vrot.slane %v3186, 7
        %v3384 = vsel %vm1596, %v3379, %v3383
        %v3385 = vrot.slane %v3187, 7
        %v3386 = vsel %vm1596, %v3381, %v3385
        %v3387 = vrot.slane %v3188, 7
        %v3388 = vsel %vm1596, %v3383, %v3387
        %v3389 = vrot.slane %v3189, 7
        %v3390 = vsel %vm1596, %v3385, %v3389
        %v3391 = vrot.slane %v3190, 7
        %v3392 = vsel %vm1596, %v3387, %v3391
        %v3393 = vrot.slane %v3191, 7
        %v3394 = vsel %vm1596, %v3389, %v3393
        %v3395 = vrot.slane %v3192, 7
        %v3396 = vsel %vm1596, %v3391, %v3395
        %v3397 = vrot.slane %v3193, 7
        %v3398 = vsel %vm1596, %v3393, %v3397
        %v3399 = vrot.slane %v3194, 7
        %v3400 = vsel %vm1596, %v3395, %v3399
        %v3401 = vrot.slane %v3195, 7
        %v3402 = vsel %vm1596, %v3397, %v3401
        %v3403 = vrot.slane %v3196, 7
        %v3404 = vsel %vm1596, %v3399, %v3403
        %v3405 = vrot.slane %v3197, 7
        %v3406 = vsel %vm1596, %v3401, %v3405
        %v3407 = vrot.slane %v3198, 7
        %v3408 = vsel %vm1596, %v3403, %v3407
        %v3409 = vrot.slane %v3199, 7
        %v3410 = vsel %vm1596, %v3405, %v3409
        %v3411 = vrot.slane %v3200, 7
        %v3412 = vsel %vm1596, %v3407, %v3411
        %v3413 = vrot.slane %v3201, 7
        %v3414 = vsel %vm1596, %v3409, %v3413
        %v3415 = vrot.slane %v3202, 7
        %v3416 = vsel %vm1596, %v3411, %v3415
        %v3417 = vrot.slane %v3203, 7
        %v3418 = vsel %vm1596, %v3413, %v3417
        %v3419 = vrot.slane %v3204, 7
        %v3420 = vsel %vm1596, %v3415, %v3419
        %v3421 = vrot.slane %v3205, 7
        %v3422 = vsel %vm1596, %v3417, %v3421
        %v3423 = vrot.slane %v3206, 7
        %v3424 = vsel %vm1596, %v3419, %v3423
        %v3425 = vrot.slane %v3207, 7
        %v3426 = vsel %vm1596, %v3421, %v3425
        %v3427 = vrot.slane %v3208, 7
        %v3428 = vsel %vm1596, %v3423, %v3427
        %v3429 = vrot.slane %v3209, 7
        %v3430 = vsel %vm1596, %v3425, %v3429
        %v3431 = vrot.slane %v3210, 7
        %v3432 = vsel %vm1596, %v3427, %v3431
        %v3433 = vrot.slane %v3211, 7
        %v3434 = vsel %vm1596, %v3429, %v3433
        %v3435 = vrot.slane %v3212, 7
        %v3436 = vsel %vm1596, %v3431, %v3435
        %v3437 = vrot.slane %v3213, 7
        %v3438 = vsel %vm1596, %v3433, %v3437
        %v3439 = vrot.slane %v3214, 7
        %v3440 = vsel %vm1596, %v3435, %v3439
        %v3441 = vrot.slane %v3215, 7
        %v3442 = vsel %vm1596, %v3437, %v3441
        %v3443 = vrot.slane %v3216, 7
        %v3444 = vsel %vm1596, %v3439, %v3443
        %v3445 = vrot.slane %v3217, 7
        %v3446 = vsel %vm1596, %v3441, %v3445
        %3511 = vmatpush.msra.mxu0 %v3234
        %3512 = vmatpush.msra.mxu0 %v3233
        %3513 = vmatpush.msra.mxu0 %v3232
        %3514 = vmatpush.msra.mxu0 %v3231
        %3515 = vmatpush.msra.mxu0 %v3230
        %3516 = vmatpush.msra.mxu0 %v3229
        %3517 = vmatpush.msra.mxu0 %v3228
        %3518 = vmatpush.msra.mxu0 %v3227
        %3519 = vmatpush.msra.mxu0 %v3226
        %3520 = vmatpush.msra.mxu0 %v3225
        %3521 = vmatpush.msra.mxu0 %v3224
        %3522 = vmatpush.msra.mxu0 %v3223
        %3523 = vmatpush.msra.mxu0 %v3222
        %3524 = vmatpush.msra.mxu0 %v3221
        %3525 = vmatpush.msra.mxu0 %v3220
        %3526 = vmatpush.msra.mxu0 %v3219
        %3527 = vmatmul.f32.gmra.mxu0 %v3319
        %v3528 = vpop.f32.mrf.mxu0
        %v3529 = vadd.f32 0.0, %v3528
        %3530 = vmatmul.f32.gmra.mxu0 %v3324
        %v3531 = vpop.f32.mrf.mxu0
        %v3532 = vadd.f32 0.0, %v3531
        %3533 = vmatmul.f32.gmra.mxu0 %v3328
        %v3534 = vpop.f32.mrf.mxu0
        %v3535 = vadd.f32 0.0, %v3534
        %3536 = vmatmul.f32.gmra.mxu0 %v3332
        %v3537 = vpop.f32.mrf.mxu0
        %v3538 = vadd.f32 0.0, %v3537
        %3539 = vmatmul.f32.gmra.mxu0 %v3336
        %v3540 = vpop.f32.mrf.mxu0
        %v3541 = vadd.f32 0.0, %v3540
        %3542 = vmatmul.f32.gmra.mxu0 %v3340
        %v3543 = vpop.f32.mrf.mxu0
        %v3544 = vadd.f32 0.0, %v3543
        %3545 = vmatmul.f32.gmra.mxu0 %v3344
        %v3546 = vpop.f32.mrf.mxu0
        %v3547 = vadd.f32 0.0, %v3546
        %3548 = vmatmul.f32.gmra.mxu0 %v3348
        %v3549 = vpop.f32.mrf.mxu0
        %v3550 = vadd.f32 0.0, %v3549
        %3551 = vmatmul.f32.gmra.mxu0 %v3352
        %v3552 = vpop.f32.mrf.mxu0
        %v3553 = vadd.f32 0.0, %v3552
        %3554 = vmatmul.f32.gmra.mxu0 %v3356
        %v3555 = vpop.f32.mrf.mxu0
        %v3556 = vadd.f32 0.0, %v3555
        %3557 = vmatmul.f32.gmra.mxu0 %v3360
        %v3558 = vpop.f32.mrf.mxu0
        %v3559 = vadd.f32 0.0, %v3558
        %3560 = vmatmul.f32.gmra.mxu0 %v3364
        %v3561 = vpop.f32.mrf.mxu0
        %v3562 = vadd.f32 0.0, %v3561
        %3563 = vmatmul.f32.gmra.mxu0 %v3368
        %v3564 = vpop.f32.mrf.mxu0
        %v3565 = vadd.f32 0.0, %v3564
        %3566 = vmatmul.f32.gmra.mxu0 %v3372
        %v3567 = vpop.f32.mrf.mxu0
        %v3568 = vadd.f32 0.0, %v3567
        %3569 = vmatmul.f32.gmra.mxu0 %v3376
        %v3570 = vpop.f32.mrf.mxu0
        %v3571 = vadd.f32 0.0, %v3570
        %3572 = vmatmul.f32.gmra.mxu0 %v3380
        %v3573 = vpop.f32.mrf.mxu0
        %v3574 = vadd.f32 0.0, %v3573
        %3575 = vmatmul.f32.gmra.mxu0 %v3384
        %v3576 = vpop.f32.mrf.mxu0
        %v3577 = vadd.f32 0.0, %v3576
        %3578 = vmatmul.f32.gmra.mxu0 %v3388
        %v3579 = vpop.f32.mrf.mxu0
        %v3580 = vadd.f32 0.0, %v3579
        %3581 = vmatmul.f32.gmra.mxu0 %v3392
        %v3582 = vpop.f32.mrf.mxu0
        %v3583 = vadd.f32 0.0, %v3582
        %3584 = vmatmul.f32.gmra.mxu0 %v3396
        %v3585 = vpop.f32.mrf.mxu0
        %v3586 = vadd.f32 0.0, %v3585
        %3587 = vmatmul.f32.gmra.mxu0 %v3400
        %v3588 = vpop.f32.mrf.mxu0
        %v3589 = vadd.f32 0.0, %v3588
        %3590 = vmatmul.f32.gmra.mxu0 %v3404
        %v3591 = vpop.f32.mrf.mxu0
        %v3592 = vadd.f32 0.0, %v3591
        %3593 = vmatmul.f32.gmra.mxu0 %v3408
        %v3594 = vpop.f32.mrf.mxu0
        %v3595 = vadd.f32 0.0, %v3594
        %3596 = vmatmul.f32.gmra.mxu0 %v3412
        %v3597 = vpop.f32.mrf.mxu0
        %v3598 = vadd.f32 0.0, %v3597
        %3599 = vmatmul.f32.gmra.mxu0 %v3416
        %v3600 = vpop.f32.mrf.mxu0
        %v3601 = vadd.f32 0.0, %v3600
        %3602 = vmatmul.f32.gmra.mxu0 %v3420
        %v3603 = vpop.f32.mrf.mxu0
        %v3604 = vadd.f32 0.0, %v3603
        %3605 = vmatmul.f32.gmra.mxu0 %v3424
        %v3606 = vpop.f32.mrf.mxu0
        %v3607 = vadd.f32 0.0, %v3606
        %3608 = vmatmul.f32.gmra.mxu0 %v3428
        %v3609 = vpop.f32.mrf.mxu0
        %v3610 = vadd.f32 0.0, %v3609
        %3611 = vmatmul.f32.gmra.mxu0 %v3432
        %v3612 = vpop.f32.mrf.mxu0
        %v3613 = vadd.f32 0.0, %v3612
        %3614 = vmatmul.f32.gmra.mxu0 %v3436
        %v3615 = vpop.f32.mrf.mxu0
        %v3616 = vadd.f32 0.0, %v3615
        %3617 = vmatmul.f32.gmra.mxu0 %v3440
        %v3618 = vpop.f32.mrf.mxu0
        %v3619 = vadd.f32 0.0, %v3618
        %3620 = vmatmul.f32.gmra.mxu0 %v3444
        %v3621 = vpop.f32.mrf.mxu0
        %v3622 = vadd.f32 0.0, %v3621
        %3623 = vdwg.mxu0
        %3624 = vmatpush.msra.mxu0 %v3250
        %3625 = vmatpush.msra.mxu0 %v3249
        %3626 = vmatpush.msra.mxu0 %v3248
        %3627 = vmatpush.msra.mxu0 %v3247
        %3628 = vmatpush.msra.mxu0 %v3246
        %3629 = vmatpush.msra.mxu0 %v3245
        %3630 = vmatpush.msra.mxu0 %v3244
        %3631 = vmatpush.msra.mxu0 %v3243
        %3632 = vmatpush.msra.mxu0 %v3242
        %3633 = vmatpush.msra.mxu0 %v3241
        %3634 = vmatpush.msra.mxu0 %v3240
        %3635 = vmatpush.msra.mxu0 %v3239
        %3636 = vmatpush.msra.mxu0 %v3238
        %3637 = vmatpush.msra.mxu0 %v3237
        %3638 = vmatpush.msra.mxu0 %v3236
        %3639 = vmatpush.msra.mxu0 %v3235
        %3640 = vmatmul.f32.gmra.mxu0 %v3322
        %v3641 = vpop.f32.mrf.mxu0
        %v3642 = vadd.f32 %v3529, %v3641
        %3643 = vmatmul.f32.gmra.mxu0 %v3326
        %v3644 = vpop.f32.mrf.mxu0
        %v3645 = vadd.f32 %v3532, %v3644
        %3646 = vmatmul.f32.gmra.mxu0 %v3330
        %v3647 = vpop.f32.mrf.mxu0
        %v3648 = vadd.f32 %v3535, %v3647
        %3649 = vmatmul.f32.gmra.mxu0 %v3334
        %v3650 = vpop.f32.mrf.mxu0
        %v3651 = vadd.f32 %v3538, %v3650
        %3652 = vmatmul.f32.gmra.mxu0 %v3338
        %v3653 = vpop.f32.mrf.mxu0
        %v3654 = vadd.f32 %v3541, %v3653
        %3655 = vmatmul.f32.gmra.mxu0 %v3342
        %v3656 = vpop.f32.mrf.mxu0
        %v3657 = vadd.f32 %v3544, %v3656
        %3658 = vmatmul.f32.gmra.mxu0 %v3346
        %v3659 = vpop.f32.mrf.mxu0
        %v3660 = vadd.f32 %v3547, %v3659
        %3661 = vmatmul.f32.gmra.mxu0 %v3350
        %v3662 = vpop.f32.mrf.mxu0
        %v3663 = vadd.f32 %v3550, %v3662
        %3664 = vmatmul.f32.gmra.mxu0 %v3354
        %v3665 = vpop.f32.mrf.mxu0
        %v3666 = vadd.f32 %v3553, %v3665
        %3667 = vmatmul.f32.gmra.mxu0 %v3358
        %v3668 = vpop.f32.mrf.mxu0
        %v3669 = vadd.f32 %v3556, %v3668
        %3670 = vmatmul.f32.gmra.mxu0 %v3362
        %v3671 = vpop.f32.mrf.mxu0
        %v3672 = vadd.f32 %v3559, %v3671
        %3673 = vmatmul.f32.gmra.mxu0 %v3366
        %v3674 = vpop.f32.mrf.mxu0
        %v3675 = vadd.f32 %v3562, %v3674
        %3676 = vmatmul.f32.gmra.mxu0 %v3370
        %v3677 = vpop.f32.mrf.mxu0
        %v3678 = vadd.f32 %v3565, %v3677
        %3679 = vmatmul.f32.gmra.mxu0 %v3374
        %v3680 = vpop.f32.mrf.mxu0
        %v3681 = vadd.f32 %v3568, %v3680
        %3682 = vmatmul.f32.gmra.mxu0 %v3378
        %v3683 = vpop.f32.mrf.mxu0
        %v3684 = vadd.f32 %v3571, %v3683
        %3685 = vmatmul.f32.gmra.mxu0 %v3382
        %v3686 = vpop.f32.mrf.mxu0
        %v3687 = vadd.f32 %v3574, %v3686
        %3688 = vmatmul.f32.gmra.mxu0 %v3386
        %v3689 = vpop.f32.mrf.mxu0
        %v3690 = vadd.f32 %v3577, %v3689
        %3691 = vmatmul.f32.gmra.mxu0 %v3390
        %v3692 = vpop.f32.mrf.mxu0
        %v3693 = vadd.f32 %v3580, %v3692
        %3694 = vmatmul.f32.gmra.mxu0 %v3394
        %v3695 = vpop.f32.mrf.mxu0
        %v3696 = vadd.f32 %v3583, %v3695
        %3697 = vmatmul.f32.gmra.mxu0 %v3398
        %v3698 = vpop.f32.mrf.mxu0
        %v3699 = vadd.f32 %v3586, %v3698
        %3700 = vmatmul.f32.gmra.mxu0 %v3402
        %v3701 = vpop.f32.mrf.mxu0
        %v3702 = vadd.f32 %v3589, %v3701
        %3703 = vmatmul.f32.gmra.mxu0 %v3406
        %v3704 = vpop.f32.mrf.mxu0
        %v3705 = vadd.f32 %v3592, %v3704
        %3706 = vmatmul.f32.gmra.mxu0 %v3410
        %v3707 = vpop.f32.mrf.mxu0
        %v3708 = vadd.f32 %v3595, %v3707
        %3709 = vmatmul.f32.gmra.mxu0 %v3414
        %v3710 = vpop.f32.mrf.mxu0
        %v3711 = vadd.f32 %v3598, %v3710
        %3712 = vmatmul.f32.gmra.mxu0 %v3418
        %v3713 = vpop.f32.mrf.mxu0
        %v3714 = vadd.f32 %v3601, %v3713
        %3715 = vmatmul.f32.gmra.mxu0 %v3422
        %v3716 = vpop.f32.mrf.mxu0
        %v3717 = vadd.f32 %v3604, %v3716
        %3718 = vmatmul.f32.gmra.mxu0 %v3426
        %v3719 = vpop.f32.mrf.mxu0
        %v3720 = vadd.f32 %v3607, %v3719
        %3721 = vmatmul.f32.gmra.mxu0 %v3430
        %v3722 = vpop.f32.mrf.mxu0
        %v3723 = vadd.f32 %v3610, %v3722
        %3724 = vmatmul.f32.gmra.mxu0 %v3434
        %v3725 = vpop.f32.mrf.mxu0
        %v3726 = vadd.f32 %v3613, %v3725
        %3727 = vmatmul.f32.gmra.mxu0 %v3438
        %v3728 = vpop.f32.mrf.mxu0
        %v3729 = vadd.f32 %v3616, %v3728
        %3730 = vmatmul.f32.gmra.mxu0 %v3442
        %v3731 = vpop.f32.mrf.mxu0
        %v3732 = vadd.f32 %v3619, %v3731
        %3733 = vmatmul.f32.gmra.mxu0 %v3446
        %v3734 = vpop.f32.mrf.mxu0
        %v3735 = vadd.f32 %v3622, %v3734
        %3736 = vdwg.mxu0
        %v3737 = vsel %vm2049, %v3642, 0.0
        %v3738 = vsel %vm2050, %v3645, 0.0
        %v3739 = vsel %vm2051, %v3648, 0.0
        %v3740 = vsel %vm2052, %v3651, 0.0
        %v3741 = vsel %vm2053, %v3654, 0.0
        %v3742 = vsel %vm2054, %v3657, 0.0
        %v3743 = vsel %vm2055, %v3660, 0.0
        %v3744 = vsel %vm2056, %v3663, 0.0
        %v3745 = vsel %vm2057, %v3666, 0.0
        %v3746 = vsel %vm2058, %v3669, 0.0
        %v3747 = vsel %vm2059, %v3672, 0.0
        %v3748 = vsel %vm2060, %v3675, 0.0
        %v3749 = vsel %vm2061, %v3678, 0.0
        %v3750 = vsel %vm2062, %v3681, 0.0
        %v3751 = vsel %vm2063, %v3684, 0.0
        %v3752 = vsel %vm2064, %v3687, 0.0
        %v3753 = vsel %vm2065, %v3690, 0.0
        %v3754 = vsel %vm2066, %v3693, 0.0
        %v3755 = vsel %vm2067, %v3696, 0.0
        %v3756 = vsel %vm2068, %v3699, 0.0
        %v3757 = vsel %vm2069, %v3702, 0.0
        %v3758 = vsel %vm2070, %v3705, 0.0
        %v3759 = vsel %vm2071, %v3708, 0.0
        %v3760 = vsel %vm2072, %v3711, 0.0
        %v3761 = vsel %vm2073, %v3714, 0.0
        %v3762 = vsel %vm2074, %v3717, 0.0
        %v3763 = vsel %vm2075, %v3720, 0.0
        %v3764 = vsel %vm2076, %v3723, 0.0
        %v3765 = vsel %vm2077, %v3726, 0.0
        %v3766 = vsel %vm2078, %v3729, 0.0
        %v3767 = vsel %vm2079, %v3732, 0.0
        %v3768 = vsel %vm2080, %v3735, 0.0
        %v3769 = vadd.f32 %v3120, %v3737
        %v3770 = vadd.f32 %v3121, %v3738
        %v3771 = vadd.f32 %v3122, %v3739
        %v3772 = vadd.f32 %v3123, %v3740
        %v3773 = vadd.f32 %v3124, %v3741
        %v3774 = vadd.f32 %v3125, %v3742
        %v3775 = vadd.f32 %v3126, %v3743
        %v3776 = vadd.f32 %v3127, %v3744
        %v3777 = vadd.f32 %v3128, %v3745
        %v3778 = vadd.f32 %v3129, %v3746
        %v3779 = vadd.f32 %v3130, %v3747
        %v3780 = vadd.f32 %v3131, %v3748
        %v3781 = vadd.f32 %v3132, %v3749
        %v3782 = vadd.f32 %v3133, %v3750
        %v3783 = vadd.f32 %v3134, %v3751
        %v3784 = vadd.f32 %v3135, %v3752
        %v3785 = vadd.f32 %v3136, %v3753
        %v3786 = vadd.f32 %v3137, %v3754
        %v3787 = vadd.f32 %v3138, %v3755
        %v3788 = vadd.f32 %v3139, %v3756
        %v3789 = vadd.f32 %v3140, %v3757
        %v3790 = vadd.f32 %v3141, %v3758
        %v3791 = vadd.f32 %v3142, %v3759
        %v3792 = vadd.f32 %v3143, %v3760
        %v3793 = vadd.f32 %v3144, %v3761
        %v3794 = vadd.f32 %v3145, %v3762
        %v3795 = vadd.f32 %v3146, %v3763
        %v3796 = vadd.f32 %v3147, %v3764
        %v3797 = vadd.f32 %v3148, %v3765
        %v3798 = vadd.f32 %v3149, %v3766
        %v3799 = vadd.f32 %v3150, %v3767
        %v3800 = vadd.f32 %v3151, %v3768
        %v3801 = vld [vmem:[#allocation2 + $0x230] sm:$0xff]
        %v3802 = vld [vmem:[#allocation2 + $0x238] sm:$0xff]
        %s3803 = scalar_lea.vmem [#allocation9], 1024
        %v3804 = vld [vmem:[%s3803] sm:$0xff]
        %v3805 = vld [vmem:[%s3803 + $0x8] sm:$0xff]
        %v3806 = vld [vmem:[%s3803 + $0x10] sm:$0xff]
        %v3807 = vld [vmem:[%s3803 + $0x18] sm:$0xff]
        %v3808 = vld [vmem:[%s3803 + $0x20] sm:$0xff]
        %v3809 = vld [vmem:[%s3803 + $0x28] sm:$0xff]
        %v3810 = vld [vmem:[%s3803 + $0x30] sm:$0xff]
        %v3811 = vld [vmem:[%s3803 + $0x38] sm:$0xff]
        %v3812 = vld [vmem:[%s3803 + $0x40] sm:$0xff]
        %v3813 = vld [vmem:[%s3803 + $0x48] sm:$0xff]
        %v3814 = vld [vmem:[%s3803 + $0x50] sm:$0xff]
        %v3815 = vld [vmem:[%s3803 + $0x58] sm:$0xff]
        %v3816 = vld [vmem:[%s3803 + $0x60] sm:$0xff]
        %v3817 = vld [vmem:[%s3803 + $0x68] sm:$0xff]
        %v3818 = vld [vmem:[%s3803 + $0x70] sm:$0xff]
        %v3819 = vld [vmem:[%s3803 + $0x78] sm:$0xff]
        %v3820 = vld [vmem:[%s3803 + $0x80] sm:$0xff]
        %v3821 = vld [vmem:[%s3803 + $0x88] sm:$0xff]
        %v3822 = vld [vmem:[%s3803 + $0x90] sm:$0xff]
        %v3823 = vld [vmem:[%s3803 + $0x98] sm:$0xff]
        %v3824 = vld [vmem:[%s3803 + $0xa0] sm:$0xff]
        %v3825 = vld [vmem:[%s3803 + $0xa8] sm:$0xff]
        %v3826 = vld [vmem:[%s3803 + $0xb0] sm:$0xff]
        %v3827 = vld [vmem:[%s3803 + $0xb8] sm:$0xff]
        %v3828 = vld [vmem:[%s3803 + $0xc0] sm:$0xff]
        %v3829 = vld [vmem:[%s3803 + $0xc8] sm:$0xff]
        %v3830 = vld [vmem:[%s3803 + $0xd0] sm:$0xff]
        %v3831 = vld [vmem:[%s3803 + $0xd8] sm:$0xff]
        %v3832 = vld [vmem:[%s3803 + $0xe0] sm:$0xff]
        %v3833 = vld [vmem:[%s3803 + $0xe8] sm:$0xff]
        %v3834 = vld [vmem:[%s3803 + $0xf0] sm:$0xff]
        %v3835 = vld [vmem:[%s3803 + $0xf8] sm:$0xff]
        %3836 = vmatpush.msra.mxu0 %v3819
        %3837 = vmatpush.msra.mxu0 %v3818
        %3838 = vmatpush.msra.mxu0 %v3817
        %3839 = vmatpush.msra.mxu0 %v3816
        %3840 = vmatpush.msra.mxu0 %v3815
        %3841 = vmatpush.msra.mxu0 %v3814
        %3842 = vmatpush.msra.mxu0 %v3813
        %3843 = vmatpush.msra.mxu0 %v3812
        %3844 = vmatpush.msra.mxu0 %v3811
        %3845 = vmatpush.msra.mxu0 %v3810
        %3846 = vmatpush.msra.mxu0 %v3809
        %3847 = vmatpush.msra.mxu0 %v3808
        %3848 = vmatpush.msra.mxu0 %v3807
        %3849 = vmatpush.msra.mxu0 %v3806
        %3850 = vmatpush.msra.mxu0 %v3805
        %3851 = vmatpush.msra.mxu0 %v3804
        %3852 = vmatmul.f32.gmra.mxu0 %v3154
        %v3853 = vpop.f32.mrf.mxu0
        %v3854 = vadd.f32 0.0, %v3853
        %3855 = vmatmul.f32.gmra.mxu0 %v3156
        %v3856 = vpop.f32.mrf.mxu0
        %v3857 = vadd.f32 0.0, %v3856
        %3858 = vmatmul.f32.gmra.mxu0 %v3158
        %v3859 = vpop.f32.mrf.mxu0
        %v3860 = vadd.f32 0.0, %v3859
        %3861 = vmatmul.f32.gmra.mxu0 %v3160
        %v3862 = vpop.f32.mrf.mxu0
        %v3863 = vadd.f32 0.0, %v3862
        %3864 = vmatmul.f32.gmra.mxu0 %v3162
        %v3865 = vpop.f32.mrf.mxu0
        %v3866 = vadd.f32 0.0, %v3865
        %3867 = vmatmul.f32.gmra.mxu0 %v3164
        %v3868 = vpop.f32.mrf.mxu0
        %v3869 = vadd.f32 0.0, %v3868
        %3870 = vmatmul.f32.gmra.mxu0 %v3166
        %v3871 = vpop.f32.mrf.mxu0
        %v3872 = vadd.f32 0.0, %v3871
        %3873 = vmatmul.f32.gmra.mxu0 %v3168
        %v3874 = vpop.f32.mrf.mxu0
        %v3875 = vadd.f32 0.0, %v3874
        %3876 = vmatmul.f32.gmra.mxu0 %v3170
        %v3877 = vpop.f32.mrf.mxu0
        %v3878 = vadd.f32 0.0, %v3877
        %3879 = vmatmul.f32.gmra.mxu0 %v3172
        %v3880 = vpop.f32.mrf.mxu0
        %v3881 = vadd.f32 0.0, %v3880
        %3882 = vmatmul.f32.gmra.mxu0 %v3174
        %v3883 = vpop.f32.mrf.mxu0
        %v3884 = vadd.f32 0.0, %v3883
        %3885 = vmatmul.f32.gmra.mxu0 %v3176
        %v3886 = vpop.f32.mrf.mxu0
        %v3887 = vadd.f32 0.0, %v3886
        %3888 = vmatmul.f32.gmra.mxu0 %v3178
        %v3889 = vpop.f32.mrf.mxu0
        %v3890 = vadd.f32 0.0, %v3889
        %3891 = vmatmul.f32.gmra.mxu0 %v3180
        %v3892 = vpop.f32.mrf.mxu0
        %v3893 = vadd.f32 0.0, %v3892
        %3894 = vmatmul.f32.gmra.mxu0 %v3182
        %v3895 = vpop.f32.mrf.mxu0
        %v3896 = vadd.f32 0.0, %v3895
        %3897 = vmatmul.f32.gmra.mxu0 %v3184
        %v3898 = vpop.f32.mrf.mxu0
        %v3899 = vadd.f32 0.0, %v3898
        %3900 = vmatmul.f32.gmra.mxu0 %v3186
        %v3901 = vpop.f32.mrf.mxu0
        %v3902 = vadd.f32 0.0, %v3901
        %3903 = vmatmul.f32.gmra.mxu0 %v3188
        %v3904 = vpop.f32.mrf.mxu0
        %v3905 = vadd.f32 0.0, %v3904
        %3906 = vmatmul.f32.gmra.mxu0 %v3190
        %v3907 = vpop.f32.mrf.mxu0
        %v3908 = vadd.f32 0.0, %v3907
        %3909 = vmatmul.f32.gmra.mxu0 %v3192
        %v3910 = vpop.f32.mrf.mxu0
        %v3911 = vadd.f32 0.0, %v3910
        %3912 = vmatmul.f32.gmra.mxu0 %v3194
        %v3913 = vpop.f32.mrf.mxu0
        %v3914 = vadd.f32 0.0, %v3913
        %3915 = vmatmul.f32.gmra.mxu0 %v3196
        %v3916 = vpop.f32.mrf.mxu0
        %v3917 = vadd.f32 0.0, %v3916
        %3918 = vmatmul.f32.gmra.mxu0 %v3198
        %v3919 = vpop.f32.mrf.mxu0
        %v3920 = vadd.f32 0.0, %v3919
        %3921 = vmatmul.f32.gmra.mxu0 %v3200
        %v3922 = vpop.f32.mrf.mxu0
        %v3923 = vadd.f32 0.0, %v3922
        %3924 = vmatmul.f32.gmra.mxu0 %v3202
        %v3925 = vpop.f32.mrf.mxu0
        %v3926 = vadd.f32 0.0, %v3925
        %3927 = vmatmul.f32.gmra.mxu0 %v3204
        %v3928 = vpop.f32.mrf.mxu0
        %v3929 = vadd.f32 0.0, %v3928
        %3930 = vmatmul.f32.gmra.mxu0 %v3206
        %v3931 = vpop.f32.mrf.mxu0
        %v3932 = vadd.f32 0.0, %v3931
        %3933 = vmatmul.f32.gmra.mxu0 %v3208
        %v3934 = vpop.f32.mrf.mxu0
        %v3935 = vadd.f32 0.0, %v3934
        %3936 = vmatmul.f32.gmra.mxu0 %v3210
        %v3937 = vpop.f32.mrf.mxu0
        %v3938 = vadd.f32 0.0, %v3937
        %3939 = vmatmul.f32.gmra.mxu0 %v3212
        %v3940 = vpop.f32.mrf.mxu0
        %v3941 = vadd.f32 0.0, %v3940
        %3942 = vmatmul.f32.gmra.mxu0 %v3214
        %v3943 = vpop.f32.mrf.mxu0
        %v3944 = vadd.f32 0.0, %v3943
        %3945 = vmatmul.f32.gmra.mxu0 %v3801
        %v3946 = vpop.f32.mrf.mxu0
        %v3947 = vadd.f32 0.0, %v3946
        %3948 = vdwg.mxu0
        %3949 = vmatpush.msra.mxu0 %v3835
        %3950 = vmatpush.msra.mxu0 %v3834
        %3951 = vmatpush.msra.mxu0 %v3833
        %3952 = vmatpush.msra.mxu0 %v3832
        %3953 = vmatpush.msra.mxu0 %v3831
        %3954 = vmatpush.msra.mxu0 %v3830
        %3955 = vmatpush.msra.mxu0 %v3829
        %3956 = vmatpush.msra.mxu0 %v3828
        %3957 = vmatpush.msra.mxu0 %v3827
        %3958 = vmatpush.msra.mxu0 %v3826
        %3959 = vmatpush.msra.mxu0 %v3825
        %3960 = vmatpush.msra.mxu0 %v3824
        %3961 = vmatpush.msra.mxu0 %v3823
        %3962 = vmatpush.msra.mxu0 %v3822
        %3963 = vmatpush.msra.mxu0 %v3821
        %3964 = vmatpush.msra.mxu0 %v3820
        %3965 = vmatmul.f32.gmra.mxu0 %v3155
        %v3966 = vpop.f32.mrf.mxu0
        %v3967 = vadd.f32 %v3854, %v3966
        %3968 = vmatmul.f32.gmra.mxu0 %v3157
        %v3969 = vpop.f32.mrf.mxu0
        %v3970 = vadd.f32 %v3857, %v3969
        %3971 = vmatmul.f32.gmra.mxu0 %v3159
        %v3972 = vpop.f32.mrf.mxu0
        %v3973 = vadd.f32 %v3860, %v3972
        %3974 = vmatmul.f32.gmra.mxu0 %v3161
        %v3975 = vpop.f32.mrf.mxu0
        %v3976 = vadd.f32 %v3863, %v3975
        %3977 = vmatmul.f32.gmra.mxu0 %v3163
        %v3978 = vpop.f32.mrf.mxu0
        %v3979 = vadd.f32 %v3866, %v3978
        %3980 = vmatmul.f32.gmra.mxu0 %v3165
        %v3981 = vpop.f32.mrf.mxu0
        %v3982 = vadd.f32 %v3869, %v3981
        %3983 = vmatmul.f32.gmra.mxu0 %v3167
        %v3984 = vpop.f32.mrf.mxu0
        %v3985 = vadd.f32 %v3872, %v3984
        %3986 = vmatmul.f32.gmra.mxu0 %v3169
        %v3987 = vpop.f32.mrf.mxu0
        %v3988 = vadd.f32 %v3875, %v3987
        %3989 = vmatmul.f32.gmra.mxu0 %v3171
        %v3990 = vpop.f32.mrf.mxu0
        %v3991 = vadd.f32 %v3878, %v3990
        %3992 = vmatmul.f32.gmra.mxu0 %v3173
        %v3993 = vpop.f32.mrf.mxu0
        %v3994 = vadd.f32 %v3881, %v3993
        %3995 = vmatmul.f32.gmra.mxu0 %v3175
        %v3996 = vpop.f32.mrf.mxu0
        %v3997 = vadd.f32 %v3884, %v3996
        %3998 = vmatmul.f32.gmra.mxu0 %v3177
        %v3999 = vpop.f32.mrf.mxu0
        %v4000 = vadd.f32 %v3887, %v3999
        %4001 = vmatmul.f32.gmra.mxu0 %v3179
        %v4002 = vpop.f32.mrf.mxu0
        %v4003 = vadd.f32 %v3890, %v4002
        %4004 = vmatmul.f32.gmra.mxu0 %v3181
        %v4005 = vpop.f32.mrf.mxu0
        %v4006 = vadd.f32 %v3893, %v4005
        %4007 = vmatmul.f32.gmra.mxu0 %v3183
        %v4008 = vpop.f32.mrf.mxu0
        %v4009 = vadd.f32 %v3896, %v4008
        %4010 = vmatmul.f32.gmra.mxu0 %v3185
        %v4011 = vpop.f32.mrf.mxu0
        %v4012 = vadd.f32 %v3899, %v4011
        %4013 = vmatmul.f32.gmra.mxu0 %v3187
        %v4014 = vpop.f32.mrf.mxu0
        %v4015 = vadd.f32 %v3902, %v4014
        %4016 = vmatmul.f32.gmra.mxu0 %v3189
        %v4017 = vpop.f32.mrf.mxu0
        %v4018 = vadd.f32 %v3905, %v4017
        %4019 = vmatmul.f32.gmra.mxu0 %v3191
        %v4020 = vpop.f32.mrf.mxu0
        %v4021 = vadd.f32 %v3908, %v4020
        %4022 = vmatmul.f32.gmra.mxu0 %v3193
        %v4023 = vpop.f32.mrf.mxu0
        %v4024 = vadd.f32 %v3911, %v4023
        %4025 = vmatmul.f32.gmra.mxu0 %v3195
        %v4026 = vpop.f32.mrf.mxu0
        %v4027 = vadd.f32 %v3914, %v4026
        %4028 = vmatmul.f32.gmra.mxu0 %v3197
        %v4029 = vpop.f32.mrf.mxu0
        %v4030 = vadd.f32 %v3917, %v4029
        %4031 = vmatmul.f32.gmra.mxu0 %v3199
        %v4032 = vpop.f32.mrf.mxu0
        %v4033 = vadd.f32 %v3920, %v4032
        %4034 = vmatmul.f32.gmra.mxu0 %v3201
        %v4035 = vpop.f32.mrf.mxu0
        %v4036 = vadd.f32 %v3923, %v4035
        %4037 = vmatmul.f32.gmra.mxu0 %v3203
        %v4038 = vpop.f32.mrf.mxu0
        %v4039 = vadd.f32 %v3926, %v4038
        %4040 = vmatmul.f32.gmra.mxu0 %v3205
        %v4041 = vpop.f32.mrf.mxu0
        %v4042 = vadd.f32 %v3929, %v4041
        %4043 = vmatmul.f32.gmra.mxu0 %v3207
        %v4044 = vpop.f32.mrf.mxu0
        %v4045 = vadd.f32 %v3932, %v4044
        %4046 = vmatmul.f32.gmra.mxu0 %v3209
        %v4047 = vpop.f32.mrf.mxu0
        %v4048 = vadd.f32 %v3935, %v4047
        %4049 = vmatmul.f32.gmra.mxu0 %v3211
        %v4050 = vpop.f32.mrf.mxu0
        %v4051 = vadd.f32 %v3938, %v4050
        %4052 = vmatmul.f32.gmra.mxu0 %v3213
        %v4053 = vpop.f32.mrf.mxu0
        %v4054 = vadd.f32 %v3941, %v4053
        %4055 = vmatmul.f32.gmra.mxu0 %v3215
        %v4056 = vpop.f32.mrf.mxu0
        %v4057 = vadd.f32 %v3944, %v4056
        %4058 = vmatmul.f32.gmra.mxu0 %v3802
        %v4059 = vpop.f32.mrf.mxu0
        %v4060 = vadd.f32 %v3947, %v4059
        %4061 = vdwg.mxu0
        %v4062 = vadd.f32 %v3769, %v3967
        %v4063 = vadd.f32 %v3770, %v3970
        %v4064 = vadd.f32 %v3771, %v3973
        %v4065 = vadd.f32 %v3772, %v3976
        %v4066 = vadd.f32 %v3773, %v3979
        %v4067 = vadd.f32 %v3774, %v3982
        %v4068 = vadd.f32 %v3775, %v3985
        %v4069 = vadd.f32 %v3776, %v3988
        %v4070 = vadd.f32 %v3777, %v3991
        %v4071 = vadd.f32 %v3778, %v3994
        %v4072 = vadd.f32 %v3779, %v3997
        %v4073 = vadd.f32 %v3780, %v4000
        %v4074 = vadd.f32 %v3781, %v4003
        %v4075 = vadd.f32 %v3782, %v4006
        %v4076 = vadd.f32 %v3783, %v4009
        %v4077 = vadd.f32 %v3784, %v4012
        %v4078 = vadd.f32 %v3785, %v4015
        %v4079 = vadd.f32 %v3786, %v4018
        %v4080 = vadd.f32 %v3787, %v4021
        %v4081 = vadd.f32 %v3788, %v4024
        %v4082 = vadd.f32 %v3789, %v4027
        %v4083 = vadd.f32 %v3790, %v4030
        %v4084 = vadd.f32 %v3791, %v4033
        %v4085 = vadd.f32 %v3792, %v4036
        %v4086 = vadd.f32 %v3793, %v4039
        %v4087 = vadd.f32 %v3794, %v4042
        %v4088 = vadd.f32 %v3795, %v4045
        %v4089 = vadd.f32 %v3796, %v4048
        %v4090 = vadd.f32 %v3797, %v4051
        %v4091 = vadd.f32 %v3798, %v4054
        %v4092 = vadd.f32 %v3799, %v4057
        %v4093 = vadd.f32 %v3800, %v4060
        %v4094 = vld [vmem:[#allocation2 + $0x40] sm:$0xfe]
        %v4095 = vld [vmem:[#allocation2 + $0x48] sm:$0xfe]
        %v4096 = vld [vmem:[#allocation2 + $0x50] sm:$0xff]
        %v4097 = vld [vmem:[#allocation2 + $0x58] sm:$0xff]
        %v4098 = vld [vmem:[#allocation2 + $0x60] sm:$0xff]
        %v4099 = vld [vmem:[#allocation2 + $0x68] sm:$0xff]
        %v4100 = vld [vmem:[#allocation2 + $0x70] sm:$0xff]
        %v4101 = vld [vmem:[#allocation2 + $0x78] sm:$0xff]
        %v4102 = vld [vmem:[#allocation2 + $0x80] sm:$0xff]
        %v4103 = vld [vmem:[#allocation2 + $0x88] sm:$0xff]
        %v4104 = vld [vmem:[#allocation2 + $0x90] sm:$0xff]
        %v4105 = vld [vmem:[#allocation2 + $0x98] sm:$0xff]
        %v4106 = vld [vmem:[#allocation2 + $0xa0] sm:$0xff]
        %v4107 = vld [vmem:[#allocation2 + $0xa8] sm:$0xff]
        %v4108 = vld [vmem:[#allocation2 + $0xb0] sm:$0xff]
        %v4109 = vld [vmem:[#allocation2 + $0xb8] sm:$0xff]
        %v4110 = vld [vmem:[#allocation2 + $0xc0] sm:$0xff]
        %v4111 = vld [vmem:[#allocation2 + $0xc8] sm:$0xff]
        %v4112 = vld [vmem:[#allocation2 + $0xd0] sm:$0xff]
        %v4113 = vld [vmem:[#allocation2 + $0xd8] sm:$0xff]
        %v4114 = vld [vmem:[#allocation2 + $0xe0] sm:$0xff]
        %v4115 = vld [vmem:[#allocation2 + $0xe8] sm:$0xff]
        %v4116 = vld [vmem:[#allocation2 + $0xf0] sm:$0xff]
        %v4117 = vld [vmem:[#allocation2 + $0xf8] sm:$0xff]
        %v4118 = vld [vmem:[#allocation2 + $0x100] sm:$0xff]
        %v4119 = vld [vmem:[#allocation2 + $0x108] sm:$0xff]
        %v4120 = vld [vmem:[#allocation2 + $0x110] sm:$0xff]
        %v4121 = vld [vmem:[#allocation2 + $0x118] sm:$0xff]
        %v4122 = vld [vmem:[#allocation2 + $0x120] sm:$0xff]
        %v4123 = vld [vmem:[#allocation2 + $0x128] sm:$0xff]
        %v4124 = vld [vmem:[#allocation2 + $0x130] sm:$0xff]
        %v4125 = vld [vmem:[#allocation2 + $0x138] sm:$0xff]
        %v4126 = vld [vmem:[#allocation2 + $0x140] sm:$0xff]
        %v4127 = vld [vmem:[#allocation2 + $0x148] sm:$0xff]
        %v4128 = vld [vmem:[#allocation2 + $0x150] sm:$0xff]
        %v4129 = vld [vmem:[#allocation2 + $0x158] sm:$0xff]
        %v4130 = vld [vmem:[#allocation2 + $0x160] sm:$0xff]
        %v4131 = vld [vmem:[#allocation2 + $0x168] sm:$0xff]
        %v4132 = vld [vmem:[#allocation2 + $0x170] sm:$0xff]
        %v4133 = vld [vmem:[#allocation2 + $0x178] sm:$0xff]
        %v4134 = vld [vmem:[#allocation2 + $0x180] sm:$0xff]
        %v4135 = vld [vmem:[#allocation2 + $0x188] sm:$0xff]
        %v4136 = vld [vmem:[#allocation2 + $0x190] sm:$0xff]
        %v4137 = vld [vmem:[#allocation2 + $0x198] sm:$0xff]
        %v4138 = vld [vmem:[#allocation2 + $0x1a0] sm:$0xff]
        %v4139 = vld [vmem:[#allocation2 + $0x1a8] sm:$0xff]
        %v4140 = vld [vmem:[#allocation2 + $0x1b0] sm:$0xff]
        %v4141 = vld [vmem:[#allocation2 + $0x1b8] sm:$0xff]
        %v4142 = vld [vmem:[#allocation2 + $0x1c0] sm:$0xff]
        %v4143 = vld [vmem:[#allocation2 + $0x1c8] sm:$0xff]
        %v4144 = vld [vmem:[#allocation2 + $0x1d0] sm:$0xff]
        %v4145 = vld [vmem:[#allocation2 + $0x1d8] sm:$0xff]
        %v4146 = vld [vmem:[#allocation2 + $0x1e0] sm:$0xff]
        %v4147 = vld [vmem:[#allocation2 + $0x1e8] sm:$0xff]
        %v4148 = vld [vmem:[#allocation2 + $0x1f0] sm:$0xff]
        %v4149 = vld [vmem:[#allocation2 + $0x1f8] sm:$0xff]
        %v4150 = vld [vmem:[#allocation2 + $0x200] sm:$0xff]
        %v4151 = vld [vmem:[#allocation2 + $0x208] sm:$0xff]
        %v4152 = vld [vmem:[#allocation2 + $0x210] sm:$0xff]
        %v4153 = vld [vmem:[#allocation2 + $0x218] sm:$0xff]
        %v4154 = vld [vmem:[#allocation2 + $0x220] sm:$0xff]
        %v4155 = vld [vmem:[#allocation2 + $0x228] sm:$0xff]
        %v4156 = vld [vmem:[#allocation2 + $0x230] sm:$0xff]
        %v4157 = vld [vmem:[#allocation2 + $0x238] sm:$0xff]
        %v4158 = vld [vmem:[#allocation2 + $0x240] sm:$0x1]
        %v4159 = vld [vmem:[#allocation2 + $0x248] sm:$0x1]
        %s4160 = scalar_lea.vmem [#allocation9], 1280
        %v4161 = vld [vmem:[%s4160] sm:$0xff]
        %v4162 = vld [vmem:[%s4160 + $0x8] sm:$0xff]
        %v4163 = vld [vmem:[%s4160 + $0x10] sm:$0xff]
        %v4164 = vld [vmem:[%s4160 + $0x18] sm:$0xff]
        %v4165 = vld [vmem:[%s4160 + $0x20] sm:$0xff]
        %v4166 = vld [vmem:[%s4160 + $0x28] sm:$0xff]
        %v4167 = vld [vmem:[%s4160 + $0x30] sm:$0xff]
        %v4168 = vld [vmem:[%s4160 + $0x38] sm:$0xff]
        %v4169 = vld [vmem:[%s4160 + $0x40] sm:$0xff]
        %v4170 = vld [vmem:[%s4160 + $0x48] sm:$0xff]
        %v4171 = vld [vmem:[%s4160 + $0x50] sm:$0xff]
        %v4172 = vld [vmem:[%s4160 + $0x58] sm:$0xff]
        %v4173 = vld [vmem:[%s4160 + $0x60] sm:$0xff]
        %v4174 = vld [vmem:[%s4160 + $0x68] sm:$0xff]
        %v4175 = vld [vmem:[%s4160 + $0x70] sm:$0xff]
        %v4176 = vld [vmem:[%s4160 + $0x78] sm:$0xff]
        %v4177 = vld [vmem:[%s4160 + $0x80] sm:$0xff]
        %v4178 = vld [vmem:[%s4160 + $0x88] sm:$0xff]
        %v4179 = vld [vmem:[%s4160 + $0x90] sm:$0xff]
        %v4180 = vld [vmem:[%s4160 + $0x98] sm:$0xff]
        %v4181 = vld [vmem:[%s4160 + $0xa0] sm:$0xff]
        %v4182 = vld [vmem:[%s4160 + $0xa8] sm:$0xff]
        %v4183 = vld [vmem:[%s4160 + $0xb0] sm:$0xff]
        %v4184 = vld [vmem:[%s4160 + $0xb8] sm:$0xff]
        %v4185 = vld [vmem:[%s4160 + $0xc0] sm:$0xff]
        %v4186 = vld [vmem:[%s4160 + $0xc8] sm:$0xff]
        %v4187 = vld [vmem:[%s4160 + $0xd0] sm:$0xff]
        %v4188 = vld [vmem:[%s4160 + $0xd8] sm:$0xff]
        %v4189 = vld [vmem:[%s4160 + $0xe0] sm:$0xff]
        %v4190 = vld [vmem:[%s4160 + $0xe8] sm:$0xff]
        %v4191 = vld [vmem:[%s4160 + $0xf0] sm:$0xff]
        %v4192 = vld [vmem:[%s4160 + $0xf8] sm:$0xff]
        %v4259 = vrot.slane %v4094, 1
        %v4260 = vrot.slane %v4096, 1
        %v4261 = vsel %vm2603, %v4259, %v4260
        %v4262 = vrot.slane %v4095, 1
        %v4263 = vrot.slane %v4097, 1
        %v4264 = vsel %vm2603, %v4262, %v4263
        %v4265 = vrot.slane %v4098, 1
        %v4266 = vsel %vm2603, %v4260, %v4265
        %v4267 = vrot.slane %v4099, 1
        %v4268 = vsel %vm2603, %v4263, %v4267
        %v4269 = vrot.slane %v4100, 1
        %v4270 = vsel %vm2603, %v4265, %v4269
        %v4271 = vrot.slane %v4101, 1
        %v4272 = vsel %vm2603, %v4267, %v4271
        %v4273 = vrot.slane %v4102, 1
        %v4274 = vsel %vm2603, %v4269, %v4273
        %v4275 = vrot.slane %v4103, 1
        %v4276 = vsel %vm2603, %v4271, %v4275
        %v4277 = vrot.slane %v4104, 1
        %v4278 = vsel %vm2603, %v4273, %v4277
        %v4279 = vrot.slane %v4105, 1
        %v4280 = vsel %vm2603, %v4275, %v4279
        %v4281 = vrot.slane %v4106, 1
        %v4282 = vsel %vm2603, %v4277, %v4281
        %v4283 = vrot.slane %v4107, 1
        %v4284 = vsel %vm2603, %v4279, %v4283
        %v4285 = vrot.slane %v4108, 1
        %v4286 = vsel %vm2603, %v4281, %v4285
        %v4287 = vrot.slane %v4109, 1
        %v4288 = vsel %vm2603, %v4283, %v4287
        %v4289 = vrot.slane %v4110, 1
        %v4290 = vsel %vm2603, %v4285, %v4289
        %v4291 = vrot.slane %v4111, 1
        %v4292 = vsel %vm2603, %v4287, %v4291
        %v4293 = vrot.slane %v4112, 1
        %v4294 = vsel %vm2603, %v4289, %v4293
        %v4295 = vrot.slane %v4113, 1
        %v4296 = vsel %vm2603, %v4291, %v4295
        %v4297 = vrot.slane %v4114, 1
        %v4298 = vsel %vm2603, %v4293, %v4297
        %v4299 = vrot.slane %v4115, 1
        %v4300 = vsel %vm2603, %v4295, %v4299
        %v4301 = vrot.slane %v4116, 1
        %v4302 = vsel %vm2603, %v4297, %v4301
        %v4303 = vrot.slane %v4117, 1
        %v4304 = vsel %vm2603, %v4299, %v4303
        %v4305 = vrot.slane %v4118, 1
        %v4306 = vsel %vm2603, %v4301, %v4305
        %v4307 = vrot.slane %v4119, 1
        %v4308 = vsel %vm2603, %v4303, %v4307
        %v4309 = vrot.slane %v4120, 1
        %v4310 = vsel %vm2603, %v4305, %v4309
        %v4311 = vrot.slane %v4121, 1
        %v4312 = vsel %vm2603, %v4307, %v4311
        %v4313 = vrot.slane %v4122, 1
        %v4314 = vsel %vm2603, %v4309, %v4313
        %v4315 = vrot.slane %v4123, 1
        %v4316 = vsel %vm2603, %v4311, %v4315
        %v4317 = vrot.slane %v4124, 1
        %v4318 = vsel %vm2603, %v4313, %v4317
        %v4319 = vrot.slane %v4125, 1
        %v4320 = vsel %vm2603, %v4315, %v4319
        %v4321 = vrot.slane %v4126, 1
        %v4322 = vsel %vm2603, %v4317, %v4321
        %v4323 = vrot.slane %v4127, 1
        %v4324 = vsel %vm2603, %v4319, %v4323
        %v4325 = vrot.slane %v4128, 1
        %v4326 = vsel %vm2603, %v4321, %v4325
        %v4327 = vrot.slane %v4129, 1
        %v4328 = vsel %vm2603, %v4323, %v4327
        %v4329 = vrot.slane %v4130, 1
        %v4330 = vsel %vm2603, %v4325, %v4329
        %v4331 = vrot.slane %v4131, 1
        %v4332 = vsel %vm2603, %v4327, %v4331
        %v4333 = vrot.slane %v4132, 1
        %v4334 = vsel %vm2603, %v4329, %v4333
        %v4335 = vrot.slane %v4133, 1
        %v4336 = vsel %vm2603, %v4331, %v4335
        %v4337 = vrot.slane %v4134, 1
        %v4338 = vsel %vm2603, %v4333, %v4337
        %v4339 = vrot.slane %v4135, 1
        %v4340 = vsel %vm2603, %v4335, %v4339
        %v4341 = vrot.slane %v4136, 1
        %v4342 = vsel %vm2603, %v4337, %v4341
        %v4343 = vrot.slane %v4137, 1
        %v4344 = vsel %vm2603, %v4339, %v4343
        %v4345 = vrot.slane %v4138, 1
        %v4346 = vsel %vm2603, %v4341, %v4345
        %v4347 = vrot.slane %v4139, 1
        %v4348 = vsel %vm2603, %v4343, %v4347
        %v4349 = vrot.slane %v4140, 1
        %v4350 = vsel %vm2603, %v4345, %v4349
        %v4351 = vrot.slane %v4141, 1
        %v4352 = vsel %vm2603, %v4347, %v4351
        %v4353 = vrot.slane %v4142, 1
        %v4354 = vsel %vm2603, %v4349, %v4353
        %v4355 = vrot.slane %v4143, 1
        %v4356 = vsel %vm2603, %v4351, %v4355
        %v4357 = vrot.slane %v4144, 1
        %v4358 = vsel %vm2603, %v4353, %v4357
        %v4359 = vrot.slane %v4145, 1
        %v4360 = vsel %vm2603, %v4355, %v4359
        %v4361 = vrot.slane %v4146, 1
        %v4362 = vsel %vm2603, %v4357, %v4361
        %v4363 = vrot.slane %v4147, 1
        %v4364 = vsel %vm2603, %v4359, %v4363
        %v4365 = vrot.slane %v4148, 1
        %v4366 = vsel %vm2603, %v4361, %v4365
        %v4367 = vrot.slane %v4149, 1
        %v4368 = vsel %vm2603, %v4363, %v4367
        %v4369 = vrot.slane %v4150, 1
        %v4370 = vsel %vm2603, %v4365, %v4369
        %v4371 = vrot.slane %v4151, 1
        %v4372 = vsel %vm2603, %v4367, %v4371
        %v4373 = vrot.slane %v4152, 1
        %v4374 = vsel %vm2603, %v4369, %v4373
        %v4375 = vrot.slane %v4153, 1
        %v4376 = vsel %vm2603, %v4371, %v4375
        %v4377 = vrot.slane %v4154, 1
        %v4378 = vsel %vm2603, %v4373, %v4377
        %v4379 = vrot.slane %v4155, 1
        %v4380 = vsel %vm2603, %v4375, %v4379
        %v4381 = vrot.slane %v4156, 1
        %v4382 = vsel %vm2603, %v4377, %v4381
        %v4383 = vrot.slane %v4157, 1
        %v4384 = vsel %vm2603, %v4379, %v4383
        %v4385 = vrot.slane %v4158, 1
        %v4386 = vsel %vm2603, %v4381, %v4385
        %v4387 = vrot.slane %v4159, 1
        %v4388 = vsel %vm2603, %v4383, %v4387
        %4453 = vmatpush.msra.mxu0 %v4176
        %4454 = vmatpush.msra.mxu0 %v4175
        %4455 = vmatpush.msra.mxu0 %v4174
        %4456 = vmatpush.msra.mxu0 %v4173
        %4457 = vmatpush.msra.mxu0 %v4172
        %4458 = vmatpush.msra.mxu0 %v4171
        %4459 = vmatpush.msra.mxu0 %v4170
        %4460 = vmatpush.msra.mxu0 %v4169
        %4461 = vmatpush.msra.mxu0 %v4168
        %4462 = vmatpush.msra.mxu0 %v4167
        %4463 = vmatpush.msra.mxu0 %v4166
        %4464 = vmatpush.msra.mxu0 %v4165
        %4465 = vmatpush.msra.mxu0 %v4164
        %4466 = vmatpush.msra.mxu0 %v4163
        %4467 = vmatpush.msra.mxu0 %v4162
        %4468 = vmatpush.msra.mxu0 %v4161
        %4469 = vmatmul.f32.gmra.mxu0 %v4261
        %v4470 = vpop.f32.mrf.mxu0
        %v4471 = vadd.f32 0.0, %v4470
        %4472 = vmatmul.f32.gmra.mxu0 %v4266
        %v4473 = vpop.f32.mrf.mxu0
        %v4474 = vadd.f32 0.0, %v4473
        %4475 = vmatmul.f32.gmra.mxu0 %v4270
        %v4476 = vpop.f32.mrf.mxu0
        %v4477 = vadd.f32 0.0, %v4476
        %4478 = vmatmul.f32.gmra.mxu0 %v4274
        %v4479 = vpop.f32.mrf.mxu0
        %v4480 = vadd.f32 0.0, %v4479
        %4481 = vmatmul.f32.gmra.mxu0 %v4278
        %v4482 = vpop.f32.mrf.mxu0
        %v4483 = vadd.f32 0.0, %v4482
        %4484 = vmatmul.f32.gmra.mxu0 %v4282
        %v4485 = vpop.f32.mrf.mxu0
        %v4486 = vadd.f32 0.0, %v4485
        %4487 = vmatmul.f32.gmra.mxu0 %v4286
        %v4488 = vpop.f32.mrf.mxu0
        %v4489 = vadd.f32 0.0, %v4488
        %4490 = vmatmul.f32.gmra.mxu0 %v4290
        %v4491 = vpop.f32.mrf.mxu0
        %v4492 = vadd.f32 0.0, %v4491
        %4493 = vmatmul.f32.gmra.mxu0 %v4294
        %v4494 = vpop.f32.mrf.mxu0
        %v4495 = vadd.f32 0.0, %v4494
        %4496 = vmatmul.f32.gmra.mxu0 %v4298
        %v4497 = vpop.f32.mrf.mxu0
        %v4498 = vadd.f32 0.0, %v4497
        %4499 = vmatmul.f32.gmra.mxu0 %v4302
        %v4500 = vpop.f32.mrf.mxu0
        %v4501 = vadd.f32 0.0, %v4500
        %4502 = vmatmul.f32.gmra.mxu0 %v4306
        %v4503 = vpop.f32.mrf.mxu0
        %v4504 = vadd.f32 0.0, %v4503
        %4505 = vmatmul.f32.gmra.mxu0 %v4310
        %v4506 = vpop.f32.mrf.mxu0
        %v4507 = vadd.f32 0.0, %v4506
        %4508 = vmatmul.f32.gmra.mxu0 %v4314
        %v4509 = vpop.f32.mrf.mxu0
        %v4510 = vadd.f32 0.0, %v4509
        %4511 = vmatmul.f32.gmra.mxu0 %v4318
        %v4512 = vpop.f32.mrf.mxu0
        %v4513 = vadd.f32 0.0, %v4512
        %4514 = vmatmul.f32.gmra.mxu0 %v4322
        %v4515 = vpop.f32.mrf.mxu0
        %v4516 = vadd.f32 0.0, %v4515
        %4517 = vmatmul.f32.gmra.mxu0 %v4326
        %v4518 = vpop.f32.mrf.mxu0
        %v4519 = vadd.f32 0.0, %v4518
        %4520 = vmatmul.f32.gmra.mxu0 %v4330
        %v4521 = vpop.f32.mrf.mxu0
        %v4522 = vadd.f32 0.0, %v4521
        %4523 = vmatmul.f32.gmra.mxu0 %v4334
        %v4524 = vpop.f32.mrf.mxu0
        %v4525 = vadd.f32 0.0, %v4524
        %4526 = vmatmul.f32.gmra.mxu0 %v4338
        %v4527 = vpop.f32.mrf.mxu0
        %v4528 = vadd.f32 0.0, %v4527
        %4529 = vmatmul.f32.gmra.mxu0 %v4342
        %v4530 = vpop.f32.mrf.mxu0
        %v4531 = vadd.f32 0.0, %v4530
        %4532 = vmatmul.f32.gmra.mxu0 %v4346
        %v4533 = vpop.f32.mrf.mxu0
        %v4534 = vadd.f32 0.0, %v4533
        %4535 = vmatmul.f32.gmra.mxu0 %v4350
        %v4536 = vpop.f32.mrf.mxu0
        %v4537 = vadd.f32 0.0, %v4536
        %4538 = vmatmul.f32.gmra.mxu0 %v4354
        %v4539 = vpop.f32.mrf.mxu0
        %v4540 = vadd.f32 0.0, %v4539
        %4541 = vmatmul.f32.gmra.mxu0 %v4358
        %v4542 = vpop.f32.mrf.mxu0
        %v4543 = vadd.f32 0.0, %v4542
        %4544 = vmatmul.f32.gmra.mxu0 %v4362
        %v4545 = vpop.f32.mrf.mxu0
        %v4546 = vadd.f32 0.0, %v4545
        %4547 = vmatmul.f32.gmra.mxu0 %v4366
        %v4548 = vpop.f32.mrf.mxu0
        %v4549 = vadd.f32 0.0, %v4548
        %4550 = vmatmul.f32.gmra.mxu0 %v4370
        %v4551 = vpop.f32.mrf.mxu0
        %v4552 = vadd.f32 0.0, %v4551
        %4553 = vmatmul.f32.gmra.mxu0 %v4374
        %v4554 = vpop.f32.mrf.mxu0
        %v4555 = vadd.f32 0.0, %v4554
        %4556 = vmatmul.f32.gmra.mxu0 %v4378
        %v4557 = vpop.f32.mrf.mxu0
        %v4558 = vadd.f32 0.0, %v4557
        %4559 = vmatmul.f32.gmra.mxu0 %v4382
        %v4560 = vpop.f32.mrf.mxu0
        %v4561 = vadd.f32 0.0, %v4560
        %4562 = vmatmul.f32.gmra.mxu0 %v4386
        %v4563 = vpop.f32.mrf.mxu0
        %v4564 = vadd.f32 0.0, %v4563
        %4565 = vdwg.mxu0
        %4566 = vmatpush.msra.mxu0 %v4192
        %4567 = vmatpush.msra.mxu0 %v4191
        %4568 = vmatpush.msra.mxu0 %v4190
        %4569 = vmatpush.msra.mxu0 %v4189
        %4570 = vmatpush.msra.mxu0 %v4188
        %4571 = vmatpush.msra.mxu0 %v4187
        %4572 = vmatpush.msra.mxu0 %v4186
        %4573 = vmatpush.msra.mxu0 %v4185
        %4574 = vmatpush.msra.mxu0 %v4184
        %4575 = vmatpush.msra.mxu0 %v4183
        %4576 = vmatpush.msra.mxu0 %v4182
        %4577 = vmatpush.msra.mxu0 %v4181
        %4578 = vmatpush.msra.mxu0 %v4180
        %4579 = vmatpush.msra.mxu0 %v4179
        %4580 = vmatpush.msra.mxu0 %v4178
        %4581 = vmatpush.msra.mxu0 %v4177
        %4582 = vmatmul.f32.gmra.mxu0 %v4264
        %v4583 = vpop.f32.mrf.mxu0
        %v4584 = vadd.f32 %v4471, %v4583
        %4585 = vmatmul.f32.gmra.mxu0 %v4268
        %v4586 = vpop.f32.mrf.mxu0
        %v4587 = vadd.f32 %v4474, %v4586
        %4588 = vmatmul.f32.gmra.mxu0 %v4272
        %v4589 = vpop.f32.mrf.mxu0
        %v4590 = vadd.f32 %v4477, %v4589
        %4591 = vmatmul.f32.gmra.mxu0 %v4276
        %v4592 = vpop.f32.mrf.mxu0
        %v4593 = vadd.f32 %v4480, %v4592
        %4594 = vmatmul.f32.gmra.mxu0 %v4280
        %v4595 = vpop.f32.mrf.mxu0
        %v4596 = vadd.f32 %v4483, %v4595
        %4597 = vmatmul.f32.gmra.mxu0 %v4284
        %v4598 = vpop.f32.mrf.mxu0
        %v4599 = vadd.f32 %v4486, %v4598
        %4600 = vmatmul.f32.gmra.mxu0 %v4288
        %v4601 = vpop.f32.mrf.mxu0
        %v4602 = vadd.f32 %v4489, %v4601
        %4603 = vmatmul.f32.gmra.mxu0 %v4292
        %v4604 = vpop.f32.mrf.mxu0
        %v4605 = vadd.f32 %v4492, %v4604
        %4606 = vmatmul.f32.gmra.mxu0 %v4296
        %v4607 = vpop.f32.mrf.mxu0
        %v4608 = vadd.f32 %v4495, %v4607
        %4609 = vmatmul.f32.gmra.mxu0 %v4300
        %v4610 = vpop.f32.mrf.mxu0
        %v4611 = vadd.f32 %v4498, %v4610
        %4612 = vmatmul.f32.gmra.mxu0 %v4304
        %v4613 = vpop.f32.mrf.mxu0
        %v4614 = vadd.f32 %v4501, %v4613
        %4615 = vmatmul.f32.gmra.mxu0 %v4308
        %v4616 = vpop.f32.mrf.mxu0
        %v4617 = vadd.f32 %v4504, %v4616
        %4618 = vmatmul.f32.gmra.mxu0 %v4312
        %v4619 = vpop.f32.mrf.mxu0
        %v4620 = vadd.f32 %v4507, %v4619
        %4621 = vmatmul.f32.gmra.mxu0 %v4316
        %v4622 = vpop.f32.mrf.mxu0
        %v4623 = vadd.f32 %v4510, %v4622
        %4624 = vmatmul.f32.gmra.mxu0 %v4320
        %v4625 = vpop.f32.mrf.mxu0
        %v4626 = vadd.f32 %v4513, %v4625
        %4627 = vmatmul.f32.gmra.mxu0 %v4324
        %v4628 = vpop.f32.mrf.mxu0
        %v4629 = vadd.f32 %v4516, %v4628
        %4630 = vmatmul.f32.gmra.mxu0 %v4328
        %v4631 = vpop.f32.mrf.mxu0
        %v4632 = vadd.f32 %v4519, %v4631
        %4633 = vmatmul.f32.gmra.mxu0 %v4332
        %v4634 = vpop.f32.mrf.mxu0
        %v4635 = vadd.f32 %v4522, %v4634
        %4636 = vmatmul.f32.gmra.mxu0 %v4336
        %v4637 = vpop.f32.mrf.mxu0
        %v4638 = vadd.f32 %v4525, %v4637
        %4639 = vmatmul.f32.gmra.mxu0 %v4340
        %v4640 = vpop.f32.mrf.mxu0
        %v4641 = vadd.f32 %v4528, %v4640
        %4642 = vmatmul.f32.gmra.mxu0 %v4344
        %v4643 = vpop.f32.mrf.mxu0
        %v4644 = vadd.f32 %v4531, %v4643
        %4645 = vmatmul.f32.gmra.mxu0 %v4348
        %v4646 = vpop.f32.mrf.mxu0
        %v4647 = vadd.f32 %v4534, %v4646
        %4648 = vmatmul.f32.gmra.mxu0 %v4352
        %v4649 = vpop.f32.mrf.mxu0
        %v4650 = vadd.f32 %v4537, %v4649
        %4651 = vmatmul.f32.gmra.mxu0 %v4356
        %v4652 = vpop.f32.mrf.mxu0
        %v4653 = vadd.f32 %v4540, %v4652
        %4654 = vmatmul.f32.gmra.mxu0 %v4360
        %v4655 = vpop.f32.mrf.mxu0
        %v4656 = vadd.f32 %v4543, %v4655
        %4657 = vmatmul.f32.gmra.mxu0 %v4364
        %v4658 = vpop.f32.mrf.mxu0
        %v4659 = vadd.f32 %v4546, %v4658
        %4660 = vmatmul.f32.gmra.mxu0 %v4368
        %v4661 = vpop.f32.mrf.mxu0
        %v4662 = vadd.f32 %v4549, %v4661
        %4663 = vmatmul.f32.gmra.mxu0 %v4372
        %v4664 = vpop.f32.mrf.mxu0
        %v4665 = vadd.f32 %v4552, %v4664
        %4666 = vmatmul.f32.gmra.mxu0 %v4376
        %v4667 = vpop.f32.mrf.mxu0
        %v4668 = vadd.f32 %v4555, %v4667
        %4669 = vmatmul.f32.gmra.mxu0 %v4380
        %v4670 = vpop.f32.mrf.mxu0
        %v4671 = vadd.f32 %v4558, %v4670
        %4672 = vmatmul.f32.gmra.mxu0 %v4384
        %v4673 = vpop.f32.mrf.mxu0
        %v4674 = vadd.f32 %v4561, %v4673
        %4675 = vmatmul.f32.gmra.mxu0 %v4388
        %v4676 = vpop.f32.mrf.mxu0
        %v4677 = vadd.f32 %v4564, %v4676
        %4678 = vdwg.mxu0
        %v4679 = vsel %vm3056, %v4584, 0.0
        %v4680 = vsel %vm3057, %v4587, 0.0
        %v4681 = vsel %vm3058, %v4590, 0.0
        %v4682 = vsel %vm3059, %v4593, 0.0
        %v4683 = vsel %vm3060, %v4596, 0.0
        %v4684 = vsel %vm3061, %v4599, 0.0
        %v4685 = vsel %vm3062, %v4602, 0.0
        %v4686 = vsel %vm3063, %v4605, 0.0
        %v4687 = vsel %vm3064, %v4608, 0.0
        %v4688 = vsel %vm3065, %v4611, 0.0
        %v4689 = vsel %vm3066, %v4614, 0.0
        %v4690 = vsel %vm3067, %v4617, 0.0
        %v4691 = vsel %vm3068, %v4620, 0.0
        %v4692 = vsel %vm3069, %v4623, 0.0
        %v4693 = vsel %vm3070, %v4626, 0.0
        %v4694 = vsel %vm3071, %v4629, 0.0
        %v4695 = vsel %vm3072, %v4632, 0.0
        %v4696 = vsel %vm3073, %v4635, 0.0
        %v4697 = vsel %vm3074, %v4638, 0.0
        %v4698 = vsel %vm3075, %v4641, 0.0
        %v4699 = vsel %vm3076, %v4644, 0.0
        %v4700 = vsel %vm3077, %v4647, 0.0
        %v4701 = vsel %vm3078, %v4650, 0.0
        %v4702 = vsel %vm3079, %v4653, 0.0
        %v4703 = vsel %vm3080, %v4656, 0.0
        %v4704 = vsel %vm3081, %v4659, 0.0
        %v4705 = vsel %vm3082, %v4662, 0.0
        %v4706 = vsel %vm3083, %v4665, 0.0
        %v4707 = vsel %vm3084, %v4668, 0.0
        %v4708 = vsel %vm3085, %v4671, 0.0
        %v4709 = vsel %vm3086, %v4674, 0.0
        %v4710 = vsel %vm3087, %v4677, 0.0
        %v4711 = vadd.f32 %v4062, %v4679
        %v4712 = vadd.f32 %v4063, %v4680
        %v4713 = vadd.f32 %v4064, %v4681
        %v4714 = vadd.f32 %v4065, %v4682
        %v4715 = vadd.f32 %v4066, %v4683
        %v4716 = vadd.f32 %v4067, %v4684
        %v4717 = vadd.f32 %v4068, %v4685
        %v4718 = vadd.f32 %v4069, %v4686
        %v4719 = vadd.f32 %v4070, %v4687
        %v4720 = vadd.f32 %v4071, %v4688
        %v4721 = vadd.f32 %v4072, %v4689
        %v4722 = vadd.f32 %v4073, %v4690
        %v4723 = vadd.f32 %v4074, %v4691
        %v4724 = vadd.f32 %v4075, %v4692
        %v4725 = vadd.f32 %v4076, %v4693
        %v4726 = vadd.f32 %v4077, %v4694
        %v4727 = vadd.f32 %v4078, %v4695
        %v4728 = vadd.f32 %v4079, %v4696
        %v4729 = vadd.f32 %v4080, %v4697
        %v4730 = vadd.f32 %v4081, %v4698
        %v4731 = vadd.f32 %v4082, %v4699
        %v4732 = vadd.f32 %v4083, %v4700
        %v4733 = vadd.f32 %v4084, %v4701
        %v4734 = vadd.f32 %v4085, %v4702
        %v4735 = vadd.f32 %v4086, %v4703
        %v4736 = vadd.f32 %v4087, %v4704
        %v4737 = vadd.f32 %v4088, %v4705
        %v4738 = vadd.f32 %v4089, %v4706
        %v4739 = vadd.f32 %v4090, %v4707
        %v4740 = vadd.f32 %v4091, %v4708
        %v4741 = vadd.f32 %v4092, %v4709
        %v4742 = vadd.f32 %v4093, %v4710
        %v4743 = vld [vmem:[#allocation2 + $0x50] sm:$0x80]
        %v4744 = vld [vmem:[#allocation2 + $0x58] sm:$0x80]
        %v4745 = vld [vmem:[#allocation2 + $0x60] sm:$0xff]
        %v4746 = vld [vmem:[#allocation2 + $0x68] sm:$0xff]
        %v4747 = vld [vmem:[#allocation2 + $0x70] sm:$0xff]
        %v4748 = vld [vmem:[#allocation2 + $0x78] sm:$0xff]
        %v4749 = vld [vmem:[#allocation2 + $0x80] sm:$0xff]
        %v4750 = vld [vmem:[#allocation2 + $0x88] sm:$0xff]
        %v4751 = vld [vmem:[#allocation2 + $0x90] sm:$0xff]
        %v4752 = vld [vmem:[#allocation2 + $0x98] sm:$0xff]
        %v4753 = vld [vmem:[#allocation2 + $0xa0] sm:$0xff]
        %v4754 = vld [vmem:[#allocation2 + $0xa8] sm:$0xff]
        %v4755 = vld [vmem:[#allocation2 + $0xb0] sm:$0xff]
        %v4756 = vld [vmem:[#allocation2 + $0xb8] sm:$0xff]
        %v4757 = vld [vmem:[#allocation2 + $0xc0] sm:$0xff]
        %v4758 = vld [vmem:[#allocation2 + $0xc8] sm:$0xff]
        %v4759 = vld [vmem:[#allocation2 + $0xd0] sm:$0xff]
        %v4760 = vld [vmem:[#allocation2 + $0xd8] sm:$0xff]
        %v4761 = vld [vmem:[#allocation2 + $0xe0] sm:$0xff]
        %v4762 = vld [vmem:[#allocation2 + $0xe8] sm:$0xff]
        %v4763 = vld [vmem:[#allocation2 + $0xf0] sm:$0xff]
        %v4764 = vld [vmem:[#allocation2 + $0xf8] sm:$0xff]
        %v4765 = vld [vmem:[#allocation2 + $0x100] sm:$0xff]
        %v4766 = vld [vmem:[#allocation2 + $0x108] sm:$0xff]
        %v4767 = vld [vmem:[#allocation2 + $0x110] sm:$0xff]
        %v4768 = vld [vmem:[#allocation2 + $0x118] sm:$0xff]
        %v4769 = vld [vmem:[#allocation2 + $0x120] sm:$0xff]
        %v4770 = vld [vmem:[#allocation2 + $0x128] sm:$0xff]
        %v4771 = vld [vmem:[#allocation2 + $0x130] sm:$0xff]
        %v4772 = vld [vmem:[#allocation2 + $0x138] sm:$0xff]
        %v4773 = vld [vmem:[#allocation2 + $0x140] sm:$0xff]
        %v4774 = vld [vmem:[#allocation2 + $0x148] sm:$0xff]
        %v4775 = vld [vmem:[#allocation2 + $0x150] sm:$0xff]
        %v4776 = vld [vmem:[#allocation2 + $0x158] sm:$0xff]
        %v4777 = vld [vmem:[#allocation2 + $0x160] sm:$0xff]
        %v4778 = vld [vmem:[#allocation2 + $0x168] sm:$0xff]
        %v4779 = vld [vmem:[#allocation2 + $0x170] sm:$0xff]
        %v4780 = vld [vmem:[#allocation2 + $0x178] sm:$0xff]
        %v4781 = vld [vmem:[#allocation2 + $0x180] sm:$0xff]
        %v4782 = vld [vmem:[#allocation2 + $0x188] sm:$0xff]
        %v4783 = vld [vmem:[#allocation2 + $0x190] sm:$0xff]
        %v4784 = vld [vmem:[#allocation2 + $0x198] sm:$0xff]
        %v4785 = vld [vmem:[#allocation2 + $0x1a0] sm:$0xff]
        %v4786 = vld [vmem:[#allocation2 + $0x1a8] sm:$0xff]
        %v4787 = vld [vmem:[#allocation2 + $0x1b0] sm:$0xff]
        %v4788 = vld [vmem:[#allocation2 + $0x1b8] sm:$0xff]
        %v4789 = vld [vmem:[#allocation2 + $0x1c0] sm:$0xff]
        %v4790 = vld [vmem:[#allocation2 + $0x1c8] sm:$0xff]
        %v4791 = vld [vmem:[#allocation2 + $0x1d0] sm:$0xff]
        %v4792 = vld [vmem:[#allocation2 + $0x1d8] sm:$0xff]
        %v4793 = vld [vmem:[#allocation2 + $0x1e0] sm:$0xff]
        %v4794 = vld [vmem:[#allocation2 + $0x1e8] sm:$0xff]
        %v4795 = vld [vmem:[#allocation2 + $0x1f0] sm:$0xff]
        %v4796 = vld [vmem:[#allocation2 + $0x1f8] sm:$0xff]
        %v4797 = vld [vmem:[#allocation2 + $0x200] sm:$0xff]
        %v4798 = vld [vmem:[#allocation2 + $0x208] sm:$0xff]
        %v4799 = vld [vmem:[#allocation2 + $0x210] sm:$0xff]
        %v4800 = vld [vmem:[#allocation2 + $0x218] sm:$0xff]
        %v4801 = vld [vmem:[#allocation2 + $0x220] sm:$0xff]
        %v4802 = vld [vmem:[#allocation2 + $0x228] sm:$0xff]
        %v4803 = vld [vmem:[#allocation2 + $0x230] sm:$0xff]
        %v4804 = vld [vmem:[#allocation2 + $0x238] sm:$0xff]
        %v4805 = vld [vmem:[#allocation2 + $0x240] sm:$0xff]
        %v4806 = vld [vmem:[#allocation2 + $0x248] sm:$0xff]
        %v4807 = vld [vmem:[#allocation2 + $0x250] sm:$0x7f]
        %v4808 = vld [vmem:[#allocation2 + $0x258] sm:$0x7f]
        %s4809 = scalar_lea.vmem [#allocation9], 1536
        %v4810 = vld [vmem:[%s4809] sm:$0xff]
        %v4811 = vld [vmem:[%s4809 + $0x8] sm:$0xff]
        %v4812 = vld [vmem:[%s4809 + $0x10] sm:$0xff]
        %v4813 = vld [vmem:[%s4809 + $0x18] sm:$0xff]
        %v4814 = vld [vmem:[%s4809 + $0x20] sm:$0xff]
        %v4815 = vld [vmem:[%s4809 + $0x28] sm:$0xff]
        %v4816 = vld [vmem:[%s4809 + $0x30] sm:$0xff]
        %v4817 = vld [vmem:[%s4809 + $0x38] sm:$0xff]
        %v4818 = vld [vmem:[%s4809 + $0x40] sm:$0xff]
        %v4819 = vld [vmem:[%s4809 + $0x48] sm:$0xff]
        %v4820 = vld [vmem:[%s4809 + $0x50] sm:$0xff]
        %v4821 = vld [vmem:[%s4809 + $0x58] sm:$0xff]
        %v4822 = vld [vmem:[%s4809 + $0x60] sm:$0xff]
        %v4823 = vld [vmem:[%s4809 + $0x68] sm:$0xff]
        %v4824 = vld [vmem:[%s4809 + $0x70] sm:$0xff]
        %v4825 = vld [vmem:[%s4809 + $0x78] sm:$0xff]
        %v4826 = vld [vmem:[%s4809 + $0x80] sm:$0xff]
        %v4827 = vld [vmem:[%s4809 + $0x88] sm:$0xff]
        %v4828 = vld [vmem:[%s4809 + $0x90] sm:$0xff]
        %v4829 = vld [vmem:[%s4809 + $0x98] sm:$0xff]
        %v4830 = vld [vmem:[%s4809 + $0xa0] sm:$0xff]
        %v4831 = vld [vmem:[%s4809 + $0xa8] sm:$0xff]
        %v4832 = vld [vmem:[%s4809 + $0xb0] sm:$0xff]
        %v4833 = vld [vmem:[%s4809 + $0xb8] sm:$0xff]
        %v4834 = vld [vmem:[%s4809 + $0xc0] sm:$0xff]
        %v4835 = vld [vmem:[%s4809 + $0xc8] sm:$0xff]
        %v4836 = vld [vmem:[%s4809 + $0xd0] sm:$0xff]
        %v4837 = vld [vmem:[%s4809 + $0xd8] sm:$0xff]
        %v4838 = vld [vmem:[%s4809 + $0xe0] sm:$0xff]
        %v4839 = vld [vmem:[%s4809 + $0xe8] sm:$0xff]
        %v4840 = vld [vmem:[%s4809 + $0xf0] sm:$0xff]
        %v4841 = vld [vmem:[%s4809 + $0xf8] sm:$0xff]
        %v4908 = vrot.slane %v4743, 7
        %v4909 = vrot.slane %v4745, 7
        %v4910 = vsel %vm1596, %v4908, %v4909
        %v4911 = vrot.slane %v4744, 7
        %v4912 = vrot.slane %v4746, 7
        %v4913 = vsel %vm1596, %v4911, %v4912
        %v4914 = vrot.slane %v4747, 7
        %v4915 = vsel %vm1596, %v4909, %v4914
        %v4916 = vrot.slane %v4748, 7
        %v4917 = vsel %vm1596, %v4912, %v4916
        %v4918 = vrot.slane %v4749, 7
        %v4919 = vsel %vm1596, %v4914, %v4918
        %v4920 = vrot.slane %v4750, 7
        %v4921 = vsel %vm1596, %v4916, %v4920
        %v4922 = vrot.slane %v4751, 7
        %v4923 = vsel %vm1596, %v4918, %v4922
        %v4924 = vrot.slane %v4752, 7
        %v4925 = vsel %vm1596, %v4920, %v4924
        %v4926 = vrot.slane %v4753, 7
        %v4927 = vsel %vm1596, %v4922, %v4926
        %v4928 = vrot.slane %v4754, 7
        %v4929 = vsel %vm1596, %v4924, %v4928
        %v4930 = vrot.slane %v4755, 7
        %v4931 = vsel %vm1596, %v4926, %v4930
        %v4932 = vrot.slane %v4756, 7
        %v4933 = vsel %vm1596, %v4928, %v4932
        %v4934 = vrot.slane %v4757, 7
        %v4935 = vsel %vm1596, %v4930, %v4934
        %v4936 = vrot.slane %v4758, 7
        %v4937 = vsel %vm1596, %v4932, %v4936
        %v4938 = vrot.slane %v4759, 7
        %v4939 = vsel %vm1596, %v4934, %v4938
        %v4940 = vrot.slane %v4760, 7
        %v4941 = vsel %vm1596, %v4936, %v4940
        %v4942 = vrot.slane %v4761, 7
        %v4943 = vsel %vm1596, %v4938, %v4942
        %v4944 = vrot.slane %v4762, 7
        %v4945 = vsel %vm1596, %v4940, %v4944
        %v4946 = vrot.slane %v4763, 7
        %v4947 = vsel %vm1596, %v4942, %v4946
        %v4948 = vrot.slane %v4764, 7
        %v4949 = vsel %vm1596, %v4944, %v4948
        %v4950 = vrot.slane %v4765, 7
        %v4951 = vsel %vm1596, %v4946, %v4950
        %v4952 = vrot.slane %v4766, 7
        %v4953 = vsel %vm1596, %v4948, %v4952
        %v4954 = vrot.slane %v4767, 7
        %v4955 = vsel %vm1596, %v4950, %v4954
        %v4956 = vrot.slane %v4768, 7
        %v4957 = vsel %vm1596, %v4952, %v4956
        %v4958 = vrot.slane %v4769, 7
        %v4959 = vsel %vm1596, %v4954, %v4958
        %v4960 = vrot.slane %v4770, 7
        %v4961 = vsel %vm1596, %v4956, %v4960
        %v4962 = vrot.slane %v4771, 7
        %v4963 = vsel %vm1596, %v4958, %v4962
        %v4964 = vrot.slane %v4772, 7
        %v4965 = vsel %vm1596, %v4960, %v4964
        %v4966 = vrot.slane %v4773, 7
        %v4967 = vsel %vm1596, %v4962, %v4966
        %v4968 = vrot.slane %v4774, 7
        %v4969 = vsel %vm1596, %v4964, %v4968
        %v4970 = vrot.slane %v4775, 7
        %v4971 = vsel %vm1596, %v4966, %v4970
        %v4972 = vrot.slane %v4776, 7
        %v4973 = vsel %vm1596, %v4968, %v4972
        %v4974 = vrot.slane %v4777, 7
        %v4975 = vsel %vm1596, %v4970, %v4974
        %v4976 = vrot.slane %v4778, 7
        %v4977 = vsel %vm1596, %v4972, %v4976
        %v4978 = vrot.slane %v4779, 7
        %v4979 = vsel %vm1596, %v4974, %v4978
        %v4980 = vrot.slane %v4780, 7
        %v4981 = vsel %vm1596, %v4976, %v4980
        %v4982 = vrot.slane %v4781, 7
        %v4983 = vsel %vm1596, %v4978, %v4982
        %v4984 = vrot.slane %v4782, 7
        %v4985 = vsel %vm1596, %v4980, %v4984
        %v4986 = vrot.slane %v4783, 7
        %v4987 = vsel %vm1596, %v4982, %v4986
        %v4988 = vrot.slane %v4784, 7
        %v4989 = vsel %vm1596, %v4984, %v4988
        %v4990 = vrot.slane %v4785, 7
        %v4991 = vsel %vm1596, %v4986, %v4990
        %v4992 = vrot.slane %v4786, 7
        %v4993 = vsel %vm1596, %v4988, %v4992
        %v4994 = vrot.slane %v4787, 7
        %v4995 = vsel %vm1596, %v4990, %v4994
        %v4996 = vrot.slane %v4788, 7
        %v4997 = vsel %vm1596, %v4992, %v4996
        %v4998 = vrot.slane %v4789, 7
        %v4999 = vsel %vm1596, %v4994, %v4998
        %v5000 = vrot.slane %v4790, 7
        %v5001 = vsel %vm1596, %v4996, %v5000
        %v5002 = vrot.slane %v4791, 7
        %v5003 = vsel %vm1596, %v4998, %v5002
        %v5004 = vrot.slane %v4792, 7
        %v5005 = vsel %vm1596, %v5000, %v5004
        %v5006 = vrot.slane %v4793, 7
        %v5007 = vsel %vm1596, %v5002, %v5006
        %v5008 = vrot.slane %v4794, 7
        %v5009 = vsel %vm1596, %v5004, %v5008
        %v5010 = vrot.slane %v4795, 7
        %v5011 = vsel %vm1596, %v5006, %v5010
        %v5012 = vrot.slane %v4796, 7
        %v5013 = vsel %vm1596, %v5008, %v5012
        %v5014 = vrot.slane %v4797, 7
        %v5015 = vsel %vm1596, %v5010, %v5014
        %v5016 = vrot.slane %v4798, 7
        %v5017 = vsel %vm1596, %v5012, %v5016
        %v5018 = vrot.slane %v4799, 7
        %v5019 = vsel %vm1596, %v5014, %v5018
        %v5020 = vrot.slane %v4800, 7
        %v5021 = vsel %vm1596, %v5016, %v5020
        %v5022 = vrot.slane %v4801, 7
        %v5023 = vsel %vm1596, %v5018, %v5022
        %v5024 = vrot.slane %v4802, 7
        %v5025 = vsel %vm1596, %v5020, %v5024
        %v5026 = vrot.slane %v4803, 7
        %v5027 = vsel %vm1596, %v5022, %v5026
        %v5028 = vrot.slane %v4804, 7
        %v5029 = vsel %vm1596, %v5024, %v5028
        %v5030 = vrot.slane %v4805, 7
        %v5031 = vsel %vm1596, %v5026, %v5030
        %v5032 = vrot.slane %v4806, 7
        %v5033 = vsel %vm1596, %v5028, %v5032
        %v5034 = vrot.slane %v4807, 7
        %v5035 = vsel %vm1596, %v5030, %v5034
        %v5036 = vrot.slane %v4808, 7
        %v5037 = vsel %vm1596, %v5032, %v5036
        %5102 = vmatpush.msra.mxu0 %v4825
        %5103 = vmatpush.msra.mxu0 %v4824
        %5104 = vmatpush.msra.mxu0 %v4823
        %5105 = vmatpush.msra.mxu0 %v4822
        %5106 = vmatpush.msra.mxu0 %v4821
        %5107 = vmatpush.msra.mxu0 %v4820
        %5108 = vmatpush.msra.mxu0 %v4819
        %5109 = vmatpush.msra.mxu0 %v4818
        %5110 = vmatpush.msra.mxu0 %v4817
        %5111 = vmatpush.msra.mxu0 %v4816
        %5112 = vmatpush.msra.mxu0 %v4815
        %5113 = vmatpush.msra.mxu0 %v4814
        %5114 = vmatpush.msra.mxu0 %v4813
        %5115 = vmatpush.msra.mxu0 %v4812
        %5116 = vmatpush.msra.mxu0 %v4811
        %5117 = vmatpush.msra.mxu0 %v4810
        %5118 = vmatmul.f32.gmra.mxu0 %v4910
        %v5119 = vpop.f32.mrf.mxu0
        %v5120 = vadd.f32 0.0, %v5119
        %5121 = vmatmul.f32.gmra.mxu0 %v4915
        %v5122 = vpop.f32.mrf.mxu0
        %v5123 = vadd.f32 0.0, %v5122
        %5124 = vmatmul.f32.gmra.mxu0 %v4919
        %v5125 = vpop.f32.mrf.mxu0
        %v5126 = vadd.f32 0.0, %v5125
        %5127 = vmatmul.f32.gmra.mxu0 %v4923
        %v5128 = vpop.f32.mrf.mxu0
        %v5129 = vadd.f32 0.0, %v5128
        %5130 = vmatmul.f32.gmra.mxu0 %v4927
        %v5131 = vpop.f32.mrf.mxu0
        %v5132 = vadd.f32 0.0, %v5131
        %5133 = vmatmul.f32.gmra.mxu0 %v4931
        %v5134 = vpop.f32.mrf.mxu0
        %v5135 = vadd.f32 0.0, %v5134
        %5136 = vmatmul.f32.gmra.mxu0 %v4935
        %v5137 = vpop.f32.mrf.mxu0
        %v5138 = vadd.f32 0.0, %v5137
        %5139 = vmatmul.f32.gmra.mxu0 %v4939
        %v5140 = vpop.f32.mrf.mxu0
        %v5141 = vadd.f32 0.0, %v5140
        %5142 = vmatmul.f32.gmra.mxu0 %v4943
        %v5143 = vpop.f32.mrf.mxu0
        %v5144 = vadd.f32 0.0, %v5143
        %5145 = vmatmul.f32.gmra.mxu0 %v4947
        %v5146 = vpop.f32.mrf.mxu0
        %v5147 = vadd.f32 0.0, %v5146
        %5148 = vmatmul.f32.gmra.mxu0 %v4951
        %v5149 = vpop.f32.mrf.mxu0
        %v5150 = vadd.f32 0.0, %v5149
        %5151 = vmatmul.f32.gmra.mxu0 %v4955
        %v5152 = vpop.f32.mrf.mxu0
        %v5153 = vadd.f32 0.0, %v5152
        %5154 = vmatmul.f32.gmra.mxu0 %v4959
        %v5155 = vpop.f32.mrf.mxu0
        %v5156 = vadd.f32 0.0, %v5155
        %5157 = vmatmul.f32.gmra.mxu0 %v4963
        %v5158 = vpop.f32.mrf.mxu0
        %v5159 = vadd.f32 0.0, %v5158
        %5160 = vmatmul.f32.gmra.mxu0 %v4967
        %v5161 = vpop.f32.mrf.mxu0
        %v5162 = vadd.f32 0.0, %v5161
        %5163 = vmatmul.f32.gmra.mxu0 %v4971
        %v5164 = vpop.f32.mrf.mxu0
        %v5165 = vadd.f32 0.0, %v5164
        %5166 = vmatmul.f32.gmra.mxu0 %v4975
        %v5167 = vpop.f32.mrf.mxu0
        %v5168 = vadd.f32 0.0, %v5167
        %5169 = vmatmul.f32.gmra.mxu0 %v4979
        %v5170 = vpop.f32.mrf.mxu0
        %v5171 = vadd.f32 0.0, %v5170
        %5172 = vmatmul.f32.gmra.mxu0 %v4983
        %v5173 = vpop.f32.mrf.mxu0
        %v5174 = vadd.f32 0.0, %v5173
        %5175 = vmatmul.f32.gmra.mxu0 %v4987
        %v5176 = vpop.f32.mrf.mxu0
        %v5177 = vadd.f32 0.0, %v5176
        %5178 = vmatmul.f32.gmra.mxu0 %v4991
        %v5179 = vpop.f32.mrf.mxu0
        %v5180 = vadd.f32 0.0, %v5179
        %5181 = vmatmul.f32.gmra.mxu0 %v4995
        %v5182 = vpop.f32.mrf.mxu0
        %v5183 = vadd.f32 0.0, %v5182
        %5184 = vmatmul.f32.gmra.mxu0 %v4999
        %v5185 = vpop.f32.mrf.mxu0
        %v5186 = vadd.f32 0.0, %v5185
        %5187 = vmatmul.f32.gmra.mxu0 %v5003
        %v5188 = vpop.f32.mrf.mxu0
        %v5189 = vadd.f32 0.0, %v5188
        %5190 = vmatmul.f32.gmra.mxu0 %v5007
        %v5191 = vpop.f32.mrf.mxu0
        %v5192 = vadd.f32 0.0, %v5191
        %5193 = vmatmul.f32.gmra.mxu0 %v5011
        %v5194 = vpop.f32.mrf.mxu0
        %v5195 = vadd.f32 0.0, %v5194
        %5196 = vmatmul.f32.gmra.mxu0 %v5015
        %v5197 = vpop.f32.mrf.mxu0
        %v5198 = vadd.f32 0.0, %v5197
        %5199 = vmatmul.f32.gmra.mxu0 %v5019
        %v5200 = vpop.f32.mrf.mxu0
        %v5201 = vadd.f32 0.0, %v5200
        %5202 = vmatmul.f32.gmra.mxu0 %v5023
        %v5203 = vpop.f32.mrf.mxu0
        %v5204 = vadd.f32 0.0, %v5203
        %5205 = vmatmul.f32.gmra.mxu0 %v5027
        %v5206 = vpop.f32.mrf.mxu0
        %v5207 = vadd.f32 0.0, %v5206
        %5208 = vmatmul.f32.gmra.mxu0 %v5031
        %v5209 = vpop.f32.mrf.mxu0
        %v5210 = vadd.f32 0.0, %v5209
        %5211 = vmatmul.f32.gmra.mxu0 %v5035
        %v5212 = vpop.f32.mrf.mxu0
        %v5213 = vadd.f32 0.0, %v5212
        %5214 = vdwg.mxu0
        %5215 = vmatpush.msra.mxu0 %v4841
        %5216 = vmatpush.msra.mxu0 %v4840
        %5217 = vmatpush.msra.mxu0 %v4839
        %5218 = vmatpush.msra.mxu0 %v4838
        %5219 = vmatpush.msra.mxu0 %v4837
        %5220 = vmatpush.msra.mxu0 %v4836
        %5221 = vmatpush.msra.mxu0 %v4835
        %5222 = vmatpush.msra.mxu0 %v4834
        %5223 = vmatpush.msra.mxu0 %v4833
        %5224 = vmatpush.msra.mxu0 %v4832
        %5225 = vmatpush.msra.mxu0 %v4831
        %5226 = vmatpush.msra.mxu0 %v4830
        %5227 = vmatpush.msra.mxu0 %v4829
        %5228 = vmatpush.msra.mxu0 %v4828
        %5229 = vmatpush.msra.mxu0 %v4827
        %5230 = vmatpush.msra.mxu0 %v4826
        %5231 = vmatmul.f32.gmra.mxu0 %v4913
        %v5232 = vpop.f32.mrf.mxu0
        %v5233 = vadd.f32 %v5120, %v5232
        %5234 = vmatmul.f32.gmra.mxu0 %v4917
        %v5235 = vpop.f32.mrf.mxu0
        %v5236 = vadd.f32 %v5123, %v5235
        %5237 = vmatmul.f32.gmra.mxu0 %v4921
        %v5238 = vpop.f32.mrf.mxu0
        %v5239 = vadd.f32 %v5126, %v5238
        %5240 = vmatmul.f32.gmra.mxu0 %v4925
        %v5241 = vpop.f32.mrf.mxu0
        %v5242 = vadd.f32 %v5129, %v5241
        %5243 = vmatmul.f32.gmra.mxu0 %v4929
        %v5244 = vpop.f32.mrf.mxu0
        %v5245 = vadd.f32 %v5132, %v5244
        %5246 = vmatmul.f32.gmra.mxu0 %v4933
        %v5247 = vpop.f32.mrf.mxu0
        %v5248 = vadd.f32 %v5135, %v5247
        %5249 = vmatmul.f32.gmra.mxu0 %v4937
        %v5250 = vpop.f32.mrf.mxu0
        %v5251 = vadd.f32 %v5138, %v5250
        %5252 = vmatmul.f32.gmra.mxu0 %v4941
        %v5253 = vpop.f32.mrf.mxu0
        %v5254 = vadd.f32 %v5141, %v5253
        %5255 = vmatmul.f32.gmra.mxu0 %v4945
        %v5256 = vpop.f32.mrf.mxu0
        %v5257 = vadd.f32 %v5144, %v5256
        %5258 = vmatmul.f32.gmra.mxu0 %v4949
        %v5259 = vpop.f32.mrf.mxu0
        %v5260 = vadd.f32 %v5147, %v5259
        %5261 = vmatmul.f32.gmra.mxu0 %v4953
        %v5262 = vpop.f32.mrf.mxu0
        %v5263 = vadd.f32 %v5150, %v5262
        %5264 = vmatmul.f32.gmra.mxu0 %v4957
        %v5265 = vpop.f32.mrf.mxu0
        %v5266 = vadd.f32 %v5153, %v5265
        %5267 = vmatmul.f32.gmra.mxu0 %v4961
        %v5268 = vpop.f32.mrf.mxu0
        %v5269 = vadd.f32 %v5156, %v5268
        %5270 = vmatmul.f32.gmra.mxu0 %v4965
        %v5271 = vpop.f32.mrf.mxu0
        %v5272 = vadd.f32 %v5159, %v5271
        %5273 = vmatmul.f32.gmra.mxu0 %v4969
        %v5274 = vpop.f32.mrf.mxu0
        %v5275 = vadd.f32 %v5162, %v5274
        %5276 = vmatmul.f32.gmra.mxu0 %v4973
        %v5277 = vpop.f32.mrf.mxu0
        %v5278 = vadd.f32 %v5165, %v5277
        %5279 = vmatmul.f32.gmra.mxu0 %v4977
        %v5280 = vpop.f32.mrf.mxu0
        %v5281 = vadd.f32 %v5168, %v5280
        %5282 = vmatmul.f32.gmra.mxu0 %v4981
        %v5283 = vpop.f32.mrf.mxu0
        %v5284 = vadd.f32 %v5171, %v5283
        %5285 = vmatmul.f32.gmra.mxu0 %v4985
        %v5286 = vpop.f32.mrf.mxu0
        %v5287 = vadd.f32 %v5174, %v5286
        %5288 = vmatmul.f32.gmra.mxu0 %v4989
        %v5289 = vpop.f32.mrf.mxu0
        %v5290 = vadd.f32 %v5177, %v5289
        %5291 = vmatmul.f32.gmra.mxu0 %v4993
        %v5292 = vpop.f32.mrf.mxu0
        %v5293 = vadd.f32 %v5180, %v5292
        %5294 = vmatmul.f32.gmra.mxu0 %v4997
        %v5295 = vpop.f32.mrf.mxu0
        %v5296 = vadd.f32 %v5183, %v5295
        %5297 = vmatmul.f32.gmra.mxu0 %v5001
        %v5298 = vpop.f32.mrf.mxu0
        %v5299 = vadd.f32 %v5186, %v5298
        %5300 = vmatmul.f32.gmra.mxu0 %v5005
        %v5301 = vpop.f32.mrf.mxu0
        %v5302 = vadd.f32 %v5189, %v5301
        %5303 = vmatmul.f32.gmra.mxu0 %v5009
        %v5304 = vpop.f32.mrf.mxu0
        %v5305 = vadd.f32 %v5192, %v5304
        %5306 = vmatmul.f32.gmra.mxu0 %v5013
        %v5307 = vpop.f32.mrf.mxu0
        %v5308 = vadd.f32 %v5195, %v5307
        %5309 = vmatmul.f32.gmra.mxu0 %v5017
        %v5310 = vpop.f32.mrf.mxu0
        %v5311 = vadd.f32 %v5198, %v5310
        %5312 = vmatmul.f32.gmra.mxu0 %v5021
        %v5313 = vpop.f32.mrf.mxu0
        %v5314 = vadd.f32 %v5201, %v5313
        %5315 = vmatmul.f32.gmra.mxu0 %v5025
        %v5316 = vpop.f32.mrf.mxu0
        %v5317 = vadd.f32 %v5204, %v5316
        %5318 = vmatmul.f32.gmra.mxu0 %v5029
        %v5319 = vpop.f32.mrf.mxu0
        %v5320 = vadd.f32 %v5207, %v5319
        %5321 = vmatmul.f32.gmra.mxu0 %v5033
        %v5322 = vpop.f32.mrf.mxu0
        %v5323 = vadd.f32 %v5210, %v5322
        %5324 = vmatmul.f32.gmra.mxu0 %v5037
        %v5325 = vpop.f32.mrf.mxu0
        %v5326 = vadd.f32 %v5213, %v5325
        %5327 = vdwg.mxu0
        %v5328 = vsel %vm2049, %v5233, 0.0
        %v5329 = vsel %vm2050, %v5236, 0.0
        %v5330 = vsel %vm2051, %v5239, 0.0
        %v5331 = vsel %vm2052, %v5242, 0.0
        %v5332 = vsel %vm2053, %v5245, 0.0
        %v5333 = vsel %vm2054, %v5248, 0.0
        %v5334 = vsel %vm2055, %v5251, 0.0
        %v5335 = vsel %vm2056, %v5254, 0.0
        %v5336 = vsel %vm2057, %v5257, 0.0
        %v5337 = vsel %vm2058, %v5260, 0.0
        %v5338 = vsel %vm2059, %v5263, 0.0
        %v5339 = vsel %vm2060, %v5266, 0.0
        %v5340 = vsel %vm2061, %v5269, 0.0
        %v5341 = vsel %vm2062, %v5272, 0.0
        %v5342 = vsel %vm2063, %v5275, 0.0
        %v5343 = vsel %vm2064, %v5278, 0.0
        %v5344 = vsel %vm2065, %v5281, 0.0
        %v5345 = vsel %vm2066, %v5284, 0.0
        %v5346 = vsel %vm2067, %v5287, 0.0
        %v5347 = vsel %vm2068, %v5290, 0.0
        %v5348 = vsel %vm2069, %v5293, 0.0
        %v5349 = vsel %vm2070, %v5296, 0.0
        %v5350 = vsel %vm2071, %v5299, 0.0
        %v5351 = vsel %vm2072, %v5302, 0.0
        %v5352 = vsel %vm2073, %v5305, 0.0
        %v5353 = vsel %vm2074, %v5308, 0.0
        %v5354 = vsel %vm2075, %v5311, 0.0
        %v5355 = vsel %vm2076, %v5314, 0.0
        %v5356 = vsel %vm2077, %v5317, 0.0
        %v5357 = vsel %vm2078, %v5320, 0.0
        %v5358 = vsel %vm2079, %v5323, 0.0
        %v5359 = vsel %vm2080, %v5326, 0.0
        %v5360 = vadd.f32 %v4711, %v5328
        %v5361 = vadd.f32 %v4712, %v5329
        %v5362 = vadd.f32 %v4713, %v5330
        %v5363 = vadd.f32 %v4714, %v5331
        %v5364 = vadd.f32 %v4715, %v5332
        %v5365 = vadd.f32 %v4716, %v5333
        %v5366 = vadd.f32 %v4717, %v5334
        %v5367 = vadd.f32 %v4718, %v5335
        %v5368 = vadd.f32 %v4719, %v5336
        %v5369 = vadd.f32 %v4720, %v5337
        %v5370 = vadd.f32 %v4721, %v5338
        %v5371 = vadd.f32 %v4722, %v5339
        %v5372 = vadd.f32 %v4723, %v5340
        %v5373 = vadd.f32 %v4724, %v5341
        %v5374 = vadd.f32 %v4725, %v5342
        %v5375 = vadd.f32 %v4726, %v5343
        %v5376 = vadd.f32 %v4727, %v5344
        %v5377 = vadd.f32 %v4728, %v5345
        %v5378 = vadd.f32 %v4729, %v5346
        %v5379 = vadd.f32 %v4730, %v5347
        %v5380 = vadd.f32 %v4731, %v5348
        %v5381 = vadd.f32 %v4732, %v5349
        %v5382 = vadd.f32 %v4733, %v5350
        %v5383 = vadd.f32 %v4734, %v5351
        %v5384 = vadd.f32 %v4735, %v5352
        %v5385 = vadd.f32 %v4736, %v5353
        %v5386 = vadd.f32 %v4737, %v5354
        %v5387 = vadd.f32 %v4738, %v5355
        %v5388 = vadd.f32 %v4739, %v5356
        %v5389 = vadd.f32 %v4740, %v5357
        %v5390 = vadd.f32 %v4741, %v5358
        %v5391 = vadd.f32 %v4742, %v5359
        %v5392 = vld [vmem:[#allocation2 + $0x250] sm:$0xff]
        %v5393 = vld [vmem:[#allocation2 + $0x258] sm:$0xff]
        %s5394 = scalar_lea.vmem [#allocation9], 1792
        %v5395 = vld [vmem:[%s5394] sm:$0xff]
        %v5396 = vld [vmem:[%s5394 + $0x8] sm:$0xff]
        %v5397 = vld [vmem:[%s5394 + $0x10] sm:$0xff]
        %v5398 = vld [vmem:[%s5394 + $0x18] sm:$0xff]
        %v5399 = vld [vmem:[%s5394 + $0x20] sm:$0xff]
        %v5400 = vld [vmem:[%s5394 + $0x28] sm:$0xff]
        %v5401 = vld [vmem:[%s5394 + $0x30] sm:$0xff]
        %v5402 = vld [vmem:[%s5394 + $0x38] sm:$0xff]
        %v5403 = vld [vmem:[%s5394 + $0x40] sm:$0xff]
        %v5404 = vld [vmem:[%s5394 + $0x48] sm:$0xff]
        %v5405 = vld [vmem:[%s5394 + $0x50] sm:$0xff]
        %v5406 = vld [vmem:[%s5394 + $0x58] sm:$0xff]
        %v5407 = vld [vmem:[%s5394 + $0x60] sm:$0xff]
        %v5408 = vld [vmem:[%s5394 + $0x68] sm:$0xff]
        %v5409 = vld [vmem:[%s5394 + $0x70] sm:$0xff]
        %v5410 = vld [vmem:[%s5394 + $0x78] sm:$0xff]
        %v5411 = vld [vmem:[%s5394 + $0x80] sm:$0xff]
        %v5412 = vld [vmem:[%s5394 + $0x88] sm:$0xff]
        %v5413 = vld [vmem:[%s5394 + $0x90] sm:$0xff]
        %v5414 = vld [vmem:[%s5394 + $0x98] sm:$0xff]
        %v5415 = vld [vmem:[%s5394 + $0xa0] sm:$0xff]
        %v5416 = vld [vmem:[%s5394 + $0xa8] sm:$0xff]
        %v5417 = vld [vmem:[%s5394 + $0xb0] sm:$0xff]
        %v5418 = vld [vmem:[%s5394 + $0xb8] sm:$0xff]
        %v5419 = vld [vmem:[%s5394 + $0xc0] sm:$0xff]
        %v5420 = vld [vmem:[%s5394 + $0xc8] sm:$0xff]
        %v5421 = vld [vmem:[%s5394 + $0xd0] sm:$0xff]
        %v5422 = vld [vmem:[%s5394 + $0xd8] sm:$0xff]
        %v5423 = vld [vmem:[%s5394 + $0xe0] sm:$0xff]
        %v5424 = vld [vmem:[%s5394 + $0xe8] sm:$0xff]
        %v5425 = vld [vmem:[%s5394 + $0xf0] sm:$0xff]
        %v5426 = vld [vmem:[%s5394 + $0xf8] sm:$0xff]
        %5427 = vmatpush.msra.mxu0 %v5410
        %5428 = vmatpush.msra.mxu0 %v5409
        %5429 = vmatpush.msra.mxu0 %v5408
        %5430 = vmatpush.msra.mxu0 %v5407
        %5431 = vmatpush.msra.mxu0 %v5406
        %5432 = vmatpush.msra.mxu0 %v5405
        %5433 = vmatpush.msra.mxu0 %v5404
        %5434 = vmatpush.msra.mxu0 %v5403
        %5435 = vmatpush.msra.mxu0 %v5402
        %5436 = vmatpush.msra.mxu0 %v5401
        %5437 = vmatpush.msra.mxu0 %v5400
        %5438 = vmatpush.msra.mxu0 %v5399
        %5439 = vmatpush.msra.mxu0 %v5398
        %5440 = vmatpush.msra.mxu0 %v5397
        %5441 = vmatpush.msra.mxu0 %v5396
        %5442 = vmatpush.msra.mxu0 %v5395
        %5443 = vmatmul.f32.gmra.mxu0 %v4745
        %v5444 = vpop.f32.mrf.mxu0
        %v5445 = vadd.f32 0.0, %v5444
        %5446 = vmatmul.f32.gmra.mxu0 %v4747
        %v5447 = vpop.f32.mrf.mxu0
        %v5448 = vadd.f32 0.0, %v5447
        %5449 = vmatmul.f32.gmra.mxu0 %v4749
        %v5450 = vpop.f32.mrf.mxu0
        %v5451 = vadd.f32 0.0, %v5450
        %5452 = vmatmul.f32.gmra.mxu0 %v4751
        %v5453 = vpop.f32.mrf.mxu0
        %v5454 = vadd.f32 0.0, %v5453
        %5455 = vmatmul.f32.gmra.mxu0 %v4753
        %v5456 = vpop.f32.mrf.mxu0
        %v5457 = vadd.f32 0.0, %v5456
        %5458 = vmatmul.f32.gmra.mxu0 %v4755
        %v5459 = vpop.f32.mrf.mxu0
        %v5460 = vadd.f32 0.0, %v5459
        %5461 = vmatmul.f32.gmra.mxu0 %v4757
        %v5462 = vpop.f32.mrf.mxu0
        %v5463 = vadd.f32 0.0, %v5462
        %5464 = vmatmul.f32.gmra.mxu0 %v4759
        %v5465 = vpop.f32.mrf.mxu0
        %v5466 = vadd.f32 0.0, %v5465
        %5467 = vmatmul.f32.gmra.mxu0 %v4761
        %v5468 = vpop.f32.mrf.mxu0
        %v5469 = vadd.f32 0.0, %v5468
        %5470 = vmatmul.f32.gmra.mxu0 %v4763
        %v5471 = vpop.f32.mrf.mxu0
        %v5472 = vadd.f32 0.0, %v5471
        %5473 = vmatmul.f32.gmra.mxu0 %v4765
        %v5474 = vpop.f32.mrf.mxu0
        %v5475 = vadd.f32 0.0, %v5474
        %5476 = vmatmul.f32.gmra.mxu0 %v4767
        %v5477 = vpop.f32.mrf.mxu0
        %v5478 = vadd.f32 0.0, %v5477
        %5479 = vmatmul.f32.gmra.mxu0 %v4769
        %v5480 = vpop.f32.mrf.mxu0
        %v5481 = vadd.f32 0.0, %v5480
        %5482 = vmatmul.f32.gmra.mxu0 %v4771
        %v5483 = vpop.f32.mrf.mxu0
        %v5484 = vadd.f32 0.0, %v5483
        %5485 = vmatmul.f32.gmra.mxu0 %v4773
        %v5486 = vpop.f32.mrf.mxu0
        %v5487 = vadd.f32 0.0, %v5486
        %5488 = vmatmul.f32.gmra.mxu0 %v4775
        %v5489 = vpop.f32.mrf.mxu0
        %v5490 = vadd.f32 0.0, %v5489
        %5491 = vmatmul.f32.gmra.mxu0 %v4777
        %v5492 = vpop.f32.mrf.mxu0
        %v5493 = vadd.f32 0.0, %v5492
        %5494 = vmatmul.f32.gmra.mxu0 %v4779
        %v5495 = vpop.f32.mrf.mxu0
        %v5496 = vadd.f32 0.0, %v5495
        %5497 = vmatmul.f32.gmra.mxu0 %v4781
        %v5498 = vpop.f32.mrf.mxu0
        %v5499 = vadd.f32 0.0, %v5498
        %5500 = vmatmul.f32.gmra.mxu0 %v4783
        %v5501 = vpop.f32.mrf.mxu0
        %v5502 = vadd.f32 0.0, %v5501
        %5503 = vmatmul.f32.gmra.mxu0 %v4785
        %v5504 = vpop.f32.mrf.mxu0
        %v5505 = vadd.f32 0.0, %v5504
        %5506 = vmatmul.f32.gmra.mxu0 %v4787
        %v5507 = vpop.f32.mrf.mxu0
        %v5508 = vadd.f32 0.0, %v5507
        %5509 = vmatmul.f32.gmra.mxu0 %v4789
        %v5510 = vpop.f32.mrf.mxu0
        %v5511 = vadd.f32 0.0, %v5510
        %5512 = vmatmul.f32.gmra.mxu0 %v4791
        %v5513 = vpop.f32.mrf.mxu0
        %v5514 = vadd.f32 0.0, %v5513
        %5515 = vmatmul.f32.gmra.mxu0 %v4793
        %v5516 = vpop.f32.mrf.mxu0
        %v5517 = vadd.f32 0.0, %v5516
        %5518 = vmatmul.f32.gmra.mxu0 %v4795
        %v5519 = vpop.f32.mrf.mxu0
        %v5520 = vadd.f32 0.0, %v5519
        %5521 = vmatmul.f32.gmra.mxu0 %v4797
        %v5522 = vpop.f32.mrf.mxu0
        %v5523 = vadd.f32 0.0, %v5522
        %5524 = vmatmul.f32.gmra.mxu0 %v4799
        %v5525 = vpop.f32.mrf.mxu0
        %v5526 = vadd.f32 0.0, %v5525
        %5527 = vmatmul.f32.gmra.mxu0 %v4801
        %v5528 = vpop.f32.mrf.mxu0
        %v5529 = vadd.f32 0.0, %v5528
        %5530 = vmatmul.f32.gmra.mxu0 %v4803
        %v5531 = vpop.f32.mrf.mxu0
        %v5532 = vadd.f32 0.0, %v5531
        %5533 = vmatmul.f32.gmra.mxu0 %v4805
        %v5534 = vpop.f32.mrf.mxu0
        %v5535 = vadd.f32 0.0, %v5534
        %5536 = vmatmul.f32.gmra.mxu0 %v5392
        %v5537 = vpop.f32.mrf.mxu0
        %v5538 = vadd.f32 0.0, %v5537
        %5539 = vdwg.mxu0
        %5540 = vmatpush.msra.mxu0 %v5426
        %5541 = vmatpush.msra.mxu0 %v5425
        %5542 = vmatpush.msra.mxu0 %v5424
        %5543 = vmatpush.msra.mxu0 %v5423
        %5544 = vmatpush.msra.mxu0 %v5422
        %5545 = vmatpush.msra.mxu0 %v5421
        %5546 = vmatpush.msra.mxu0 %v5420
        %5547 = vmatpush.msra.mxu0 %v5419
        %5548 = vmatpush.msra.mxu0 %v5418
        %5549 = vmatpush.msra.mxu0 %v5417
        %5550 = vmatpush.msra.mxu0 %v5416
        %5551 = vmatpush.msra.mxu0 %v5415
        %5552 = vmatpush.msra.mxu0 %v5414
        %5553 = vmatpush.msra.mxu0 %v5413
        %5554 = vmatpush.msra.mxu0 %v5412
        %5555 = vmatpush.msra.mxu0 %v5411
        %5556 = vmatmul.f32.gmra.mxu0 %v4746
        %v5557 = vpop.f32.mrf.mxu0
        %v5558 = vadd.f32 %v5445, %v5557
        %5559 = vmatmul.f32.gmra.mxu0 %v4748
        %v5560 = vpop.f32.mrf.mxu0
        %v5561 = vadd.f32 %v5448, %v5560
        %5562 = vmatmul.f32.gmra.mxu0 %v4750
        %v5563 = vpop.f32.mrf.mxu0
        %v5564 = vadd.f32 %v5451, %v5563
        %5565 = vmatmul.f32.gmra.mxu0 %v4752
        %v5566 = vpop.f32.mrf.mxu0
        %v5567 = vadd.f32 %v5454, %v5566
        %5568 = vmatmul.f32.gmra.mxu0 %v4754
        %v5569 = vpop.f32.mrf.mxu0
        %v5570 = vadd.f32 %v5457, %v5569
        %5571 = vmatmul.f32.gmra.mxu0 %v4756
        %v5572 = vpop.f32.mrf.mxu0
        %v5573 = vadd.f32 %v5460, %v5572
        %5574 = vmatmul.f32.gmra.mxu0 %v4758
        %v5575 = vpop.f32.mrf.mxu0
        %v5576 = vadd.f32 %v5463, %v5575
        %5577 = vmatmul.f32.gmra.mxu0 %v4760
        %v5578 = vpop.f32.mrf.mxu0
        %v5579 = vadd.f32 %v5466, %v5578
        %5580 = vmatmul.f32.gmra.mxu0 %v4762
        %v5581 = vpop.f32.mrf.mxu0
        %v5582 = vadd.f32 %v5469, %v5581
        %5583 = vmatmul.f32.gmra.mxu0 %v4764
        %v5584 = vpop.f32.mrf.mxu0
        %v5585 = vadd.f32 %v5472, %v5584
        %5586 = vmatmul.f32.gmra.mxu0 %v4766
        %v5587 = vpop.f32.mrf.mxu0
        %v5588 = vadd.f32 %v5475, %v5587
        %5589 = vmatmul.f32.gmra.mxu0 %v4768
        %v5590 = vpop.f32.mrf.mxu0
        %v5591 = vadd.f32 %v5478, %v5590
        %5592 = vmatmul.f32.gmra.mxu0 %v4770
        %v5593 = vpop.f32.mrf.mxu0
        %v5594 = vadd.f32 %v5481, %v5593
        %5595 = vmatmul.f32.gmra.mxu0 %v4772
        %v5596 = vpop.f32.mrf.mxu0
        %v5597 = vadd.f32 %v5484, %v5596
        %5598 = vmatmul.f32.gmra.mxu0 %v4774
        %v5599 = vpop.f32.mrf.mxu0
        %v5600 = vadd.f32 %v5487, %v5599
        %5601 = vmatmul.f32.gmra.mxu0 %v4776
        %v5602 = vpop.f32.mrf.mxu0
        %v5603 = vadd.f32 %v5490, %v5602
        %5604 = vmatmul.f32.gmra.mxu0 %v4778
        %v5605 = vpop.f32.mrf.mxu0
        %v5606 = vadd.f32 %v5493, %v5605
        %5607 = vmatmul.f32.gmra.mxu0 %v4780
        %v5608 = vpop.f32.mrf.mxu0
        %v5609 = vadd.f32 %v5496, %v5608
        %5610 = vmatmul.f32.gmra.mxu0 %v4782
        %v5611 = vpop.f32.mrf.mxu0
        %v5612 = vadd.f32 %v5499, %v5611
        %5613 = vmatmul.f32.gmra.mxu0 %v4784
        %v5614 = vpop.f32.mrf.mxu0
        %v5615 = vadd.f32 %v5502, %v5614
        %5616 = vmatmul.f32.gmra.mxu0 %v4786
        %v5617 = vpop.f32.mrf.mxu0
        %v5618 = vadd.f32 %v5505, %v5617
        %5619 = vmatmul.f32.gmra.mxu0 %v4788
        %v5620 = vpop.f32.mrf.mxu0
        %v5621 = vadd.f32 %v5508, %v5620
        %5622 = vmatmul.f32.gmra.mxu0 %v4790
        %v5623 = vpop.f32.mrf.mxu0
        %v5624 = vadd.f32 %v5511, %v5623
        %5625 = vmatmul.f32.gmra.mxu0 %v4792
        %v5626 = vpop.f32.mrf.mxu0
        %v5627 = vadd.f32 %v5514, %v5626
        %5628 = vmatmul.f32.gmra.mxu0 %v4794
        %v5629 = vpop.f32.mrf.mxu0
        %v5630 = vadd.f32 %v5517, %v5629
        %5631 = vmatmul.f32.gmra.mxu0 %v4796
        %v5632 = vpop.f32.mrf.mxu0
        %v5633 = vadd.f32 %v5520, %v5632
        %5634 = vmatmul.f32.gmra.mxu0 %v4798
        %v5635 = vpop.f32.mrf.mxu0
        %v5636 = vadd.f32 %v5523, %v5635
        %5637 = vmatmul.f32.gmra.mxu0 %v4800
        %v5638 = vpop.f32.mrf.mxu0
        %v5639 = vadd.f32 %v5526, %v5638
        %5640 = vmatmul.f32.gmra.mxu0 %v4802
        %v5641 = vpop.f32.mrf.mxu0
        %v5642 = vadd.f32 %v5529, %v5641
        %5643 = vmatmul.f32.gmra.mxu0 %v4804
        %v5644 = vpop.f32.mrf.mxu0
        %v5645 = vadd.f32 %v5532, %v5644
        %5646 = vmatmul.f32.gmra.mxu0 %v4806
        %v5647 = vpop.f32.mrf.mxu0
        %v5648 = vadd.f32 %v5535, %v5647
        %5649 = vmatmul.f32.gmra.mxu0 %v5393
        %v5650 = vpop.f32.mrf.mxu0
        %v5651 = vadd.f32 %v5538, %v5650
        %5652 = vdwg.mxu0
        %v5653 = vadd.f32 %v5360, %v5558
        %v5654 = vadd.f32 %v5361, %v5561
        %v5655 = vadd.f32 %v5362, %v5564
        %v5656 = vadd.f32 %v5363, %v5567
        %v5657 = vadd.f32 %v5364, %v5570
        %v5658 = vadd.f32 %v5365, %v5573
        %v5659 = vadd.f32 %v5366, %v5576
        %v5660 = vadd.f32 %v5367, %v5579
        %v5661 = vadd.f32 %v5368, %v5582
        %v5662 = vadd.f32 %v5369, %v5585
        %v5663 = vadd.f32 %v5370, %v5588
        %v5664 = vadd.f32 %v5371, %v5591
        %v5665 = vadd.f32 %v5372, %v5594
        %v5666 = vadd.f32 %v5373, %v5597
        %v5667 = vadd.f32 %v5374, %v5600
        %v5668 = vadd.f32 %v5375, %v5603
        %v5669 = vadd.f32 %v5376, %v5606
        %v5670 = vadd.f32 %v5377, %v5609
        %v5671 = vadd.f32 %v5378, %v5612
        %v5672 = vadd.f32 %v5379, %v5615
        %v5673 = vadd.f32 %v5380, %v5618
        %v5674 = vadd.f32 %v5381, %v5621
        %v5675 = vadd.f32 %v5382, %v5624
        %v5676 = vadd.f32 %v5383, %v5627
        %v5677 = vadd.f32 %v5384, %v5630
        %v5678 = vadd.f32 %v5385, %v5633
        %v5679 = vadd.f32 %v5386, %v5636
        %v5680 = vadd.f32 %v5387, %v5639
        %v5681 = vadd.f32 %v5388, %v5642
        %v5682 = vadd.f32 %v5389, %v5645
        %v5683 = vadd.f32 %v5390, %v5648
        %v5684 = vadd.f32 %v5391, %v5651
        %v5685 = vld [vmem:[#allocation2 + $0x60] sm:$0xfe]
        %v5686 = vld [vmem:[#allocation2 + $0x68] sm:$0xfe]
        %v5687 = vld [vmem:[#allocation2 + $0x70] sm:$0xff]
        %v5688 = vld [vmem:[#allocation2 + $0x78] sm:$0xff]
        %v5689 = vld [vmem:[#allocation2 + $0x80] sm:$0xff]
        %v5690 = vld [vmem:[#allocation2 + $0x88] sm:$0xff]
        %v5691 = vld [vmem:[#allocation2 + $0x90] sm:$0xff]
        %v5692 = vld [vmem:[#allocation2 + $0x98] sm:$0xff]
        %v5693 = vld [vmem:[#allocation2 + $0xa0] sm:$0xff]
        %v5694 = vld [vmem:[#allocation2 + $0xa8] sm:$0xff]
        %v5695 = vld [vmem:[#allocation2 + $0xb0] sm:$0xff]
        %v5696 = vld [vmem:[#allocation2 + $0xb8] sm:$0xff]
        %v5697 = vld [vmem:[#allocation2 + $0xc0] sm:$0xff]
        %v5698 = vld [vmem:[#allocation2 + $0xc8] sm:$0xff]
        %v5699 = vld [vmem:[#allocation2 + $0xd0] sm:$0xff]
        %v5700 = vld [vmem:[#allocation2 + $0xd8] sm:$0xff]
        %v5701 = vld [vmem:[#allocation2 + $0xe0] sm:$0xff]
        %v5702 = vld [vmem:[#allocation2 + $0xe8] sm:$0xff]
        %v5703 = vld [vmem:[#allocation2 + $0xf0] sm:$0xff]
        %v5704 = vld [vmem:[#allocation2 + $0xf8] sm:$0xff]
        %v5705 = vld [vmem:[#allocation2 + $0x100] sm:$0xff]
        %v5706 = vld [vmem:[#allocation2 + $0x108] sm:$0xff]
        %v5707 = vld [vmem:[#allocation2 + $0x110] sm:$0xff]
        %v5708 = vld [vmem:[#allocation2 + $0x118] sm:$0xff]
        %v5709 = vld [vmem:[#allocation2 + $0x120] sm:$0xff]
        %v5710 = vld [vmem:[#allocation2 + $0x128] sm:$0xff]
        %v5711 = vld [vmem:[#allocation2 + $0x130] sm:$0xff]
        %v5712 = vld [vmem:[#allocation2 + $0x138] sm:$0xff]
        %v5713 = vld [vmem:[#allocation2 + $0x140] sm:$0xff]
        %v5714 = vld [vmem:[#allocation2 + $0x148] sm:$0xff]
        %v5715 = vld [vmem:[#allocation2 + $0x150] sm:$0xff]
        %v5716 = vld [vmem:[#allocation2 + $0x158] sm:$0xff]
        %v5717 = vld [vmem:[#allocation2 + $0x160] sm:$0xff]
        %v5718 = vld [vmem:[#allocation2 + $0x168] sm:$0xff]
        %v5719 = vld [vmem:[#allocation2 + $0x170] sm:$0xff]
        %v5720 = vld [vmem:[#allocation2 + $0x178] sm:$0xff]
        %v5721 = vld [vmem:[#allocation2 + $0x180] sm:$0xff]
        %v5722 = vld [vmem:[#allocation2 + $0x188] sm:$0xff]
        %v5723 = vld [vmem:[#allocation2 + $0x190] sm:$0xff]
        %v5724 = vld [vmem:[#allocation2 + $0x198] sm:$0xff]
        %v5725 = vld [vmem:[#allocation2 + $0x1a0] sm:$0xff]
        %v5726 = vld [vmem:[#allocation2 + $0x1a8] sm:$0xff]
        %v5727 = vld [vmem:[#allocation2 + $0x1b0] sm:$0xff]
        %v5728 = vld [vmem:[#allocation2 + $0x1b8] sm:$0xff]
        %v5729 = vld [vmem:[#allocation2 + $0x1c0] sm:$0xff]
        %v5730 = vld [vmem:[#allocation2 + $0x1c8] sm:$0xff]
        %v5731 = vld [vmem:[#allocation2 + $0x1d0] sm:$0xff]
        %v5732 = vld [vmem:[#allocation2 + $0x1d8] sm:$0xff]
        %v5733 = vld [vmem:[#allocation2 + $0x1e0] sm:$0xff]
        %v5734 = vld [vmem:[#allocation2 + $0x1e8] sm:$0xff]
        %v5735 = vld [vmem:[#allocation2 + $0x1f0] sm:$0xff]
        %v5736 = vld [vmem:[#allocation2 + $0x1f8] sm:$0xff]
        %v5737 = vld [vmem:[#allocation2 + $0x200] sm:$0xff]
        %v5738 = vld [vmem:[#allocation2 + $0x208] sm:$0xff]
        %v5739 = vld [vmem:[#allocation2 + $0x210] sm:$0xff]
        %v5740 = vld [vmem:[#allocation2 + $0x218] sm:$0xff]
        %v5741 = vld [vmem:[#allocation2 + $0x220] sm:$0xff]
        %v5742 = vld [vmem:[#allocation2 + $0x228] sm:$0xff]
        %v5743 = vld [vmem:[#allocation2 + $0x230] sm:$0xff]
        %v5744 = vld [vmem:[#allocation2 + $0x238] sm:$0xff]
        %v5745 = vld [vmem:[#allocation2 + $0x240] sm:$0xff]
        %v5746 = vld [vmem:[#allocation2 + $0x248] sm:$0xff]
        %v5747 = vld [vmem:[#allocation2 + $0x250] sm:$0xff]
        %v5748 = vld [vmem:[#allocation2 + $0x258] sm:$0xff]
        %v5749 = vld [vmem:[#allocation2 + $0x260] sm:$0x1]
        %v5750 = vld [vmem:[#allocation2 + $0x268] sm:$0x1]
        %s5751 = scalar_lea.vmem [#allocation9], 2048
        %v5752 = vld [vmem:[%s5751] sm:$0xff]
        %v5753 = vld [vmem:[%s5751 + $0x8] sm:$0xff]
        %v5754 = vld [vmem:[%s5751 + $0x10] sm:$0xff]
        %v5755 = vld [vmem:[%s5751 + $0x18] sm:$0xff]
        %v5756 = vld [vmem:[%s5751 + $0x20] sm:$0xff]
        %v5757 = vld [vmem:[%s5751 + $0x28] sm:$0xff]
        %v5758 = vld [vmem:[%s5751 + $0x30] sm:$0xff]
        %v5759 = vld [vmem:[%s5751 + $0x38] sm:$0xff]
        %v5760 = vld [vmem:[%s5751 + $0x40] sm:$0xff]
        %v5761 = vld [vmem:[%s5751 + $0x48] sm:$0xff]
        %v5762 = vld [vmem:[%s5751 + $0x50] sm:$0xff]
        %v5763 = vld [vmem:[%s5751 + $0x58] sm:$0xff]
        %v5764 = vld [vmem:[%s5751 + $0x60] sm:$0xff]
        %v5765 = vld [vmem:[%s5751 + $0x68] sm:$0xff]
        %v5766 = vld [vmem:[%s5751 + $0x70] sm:$0xff]
        %v5767 = vld [vmem:[%s5751 + $0x78] sm:$0xff]
        %v5768 = vld [vmem:[%s5751 + $0x80] sm:$0xff]
        %v5769 = vld [vmem:[%s5751 + $0x88] sm:$0xff]
        %v5770 = vld [vmem:[%s5751 + $0x90] sm:$0xff]
        %v5771 = vld [vmem:[%s5751 + $0x98] sm:$0xff]
        %v5772 = vld [vmem:[%s5751 + $0xa0] sm:$0xff]
        %v5773 = vld [vmem:[%s5751 + $0xa8] sm:$0xff]
        %v5774 = vld [vmem:[%s5751 + $0xb0] sm:$0xff]
        %v5775 = vld [vmem:[%s5751 + $0xb8] sm:$0xff]
        %v5776 = vld [vmem:[%s5751 + $0xc0] sm:$0xff]
        %v5777 = vld [vmem:[%s5751 + $0xc8] sm:$0xff]
        %v5778 = vld [vmem:[%s5751 + $0xd0] sm:$0xff]
        %v5779 = vld [vmem:[%s5751 + $0xd8] sm:$0xff]
        %v5780 = vld [vmem:[%s5751 + $0xe0] sm:$0xff]
        %v5781 = vld [vmem:[%s5751 + $0xe8] sm:$0xff]
        %v5782 = vld [vmem:[%s5751 + $0xf0] sm:$0xff]
        %v5783 = vld [vmem:[%s5751 + $0xf8] sm:$0xff]
        %v5850 = vrot.slane %v5685, 1
        %v5851 = vrot.slane %v5687, 1
        %v5852 = vsel %vm2603, %v5850, %v5851
        %v5853 = vrot.slane %v5686, 1
        %v5854 = vrot.slane %v5688, 1
        %v5855 = vsel %vm2603, %v5853, %v5854
        %v5856 = vrot.slane %v5689, 1
        %v5857 = vsel %vm2603, %v5851, %v5856
        %v5858 = vrot.slane %v5690, 1
        %v5859 = vsel %vm2603, %v5854, %v5858
        %v5860 = vrot.slane %v5691, 1
        %v5861 = vsel %vm2603, %v5856, %v5860
        %v5862 = vrot.slane %v5692, 1
        %v5863 = vsel %vm2603, %v5858, %v5862
        %v5864 = vrot.slane %v5693, 1
        %v5865 = vsel %vm2603, %v5860, %v5864
        %v5866 = vrot.slane %v5694, 1
        %v5867 = vsel %vm2603, %v5862, %v5866
        %v5868 = vrot.slane %v5695, 1
        %v5869 = vsel %vm2603, %v5864, %v5868
        %v5870 = vrot.slane %v5696, 1
        %v5871 = vsel %vm2603, %v5866, %v5870
        %v5872 = vrot.slane %v5697, 1
        %v5873 = vsel %vm2603, %v5868, %v5872
        %v5874 = vrot.slane %v5698, 1
        %v5875 = vsel %vm2603, %v5870, %v5874
        %v5876 = vrot.slane %v5699, 1
        %v5877 = vsel %vm2603, %v5872, %v5876
        %v5878 = vrot.slane %v5700, 1
        %v5879 = vsel %vm2603, %v5874, %v5878
        %v5880 = vrot.slane %v5701, 1
        %v5881 = vsel %vm2603, %v5876, %v5880
        %v5882 = vrot.slane %v5702, 1
        %v5883 = vsel %vm2603, %v5878, %v5882
        %v5884 = vrot.slane %v5703, 1
        %v5885 = vsel %vm2603, %v5880, %v5884
        %v5886 = vrot.slane %v5704, 1
        %v5887 = vsel %vm2603, %v5882, %v5886
        %v5888 = vrot.slane %v5705, 1
        %v5889 = vsel %vm2603, %v5884, %v5888
        %v5890 = vrot.slane %v5706, 1
        %v5891 = vsel %vm2603, %v5886, %v5890
        %v5892 = vrot.slane %v5707, 1
        %v5893 = vsel %vm2603, %v5888, %v5892
        %v5894 = vrot.slane %v5708, 1
        %v5895 = vsel %vm2603, %v5890, %v5894
        %v5896 = vrot.slane %v5709, 1
        %v5897 = vsel %vm2603, %v5892, %v5896
        %v5898 = vrot.slane %v5710, 1
        %v5899 = vsel %vm2603, %v5894, %v5898
        %v5900 = vrot.slane %v5711, 1
        %v5901 = vsel %vm2603, %v5896, %v5900
        %v5902 = vrot.slane %v5712, 1
        %v5903 = vsel %vm2603, %v5898, %v5902
        %v5904 = vrot.slane %v5713, 1
        %v5905 = vsel %vm2603, %v5900, %v5904
        %v5906 = vrot.slane %v5714, 1
        %v5907 = vsel %vm2603, %v5902, %v5906
        %v5908 = vrot.slane %v5715, 1
        %v5909 = vsel %vm2603, %v5904, %v5908
        %v5910 = vrot.slane %v5716, 1
        %v5911 = vsel %vm2603, %v5906, %v5910
        %v5912 = vrot.slane %v5717, 1
        %v5913 = vsel %vm2603, %v5908, %v5912
        %v5914 = vrot.slane %v5718, 1
        %v5915 = vsel %vm2603, %v5910, %v5914
        %v5916 = vrot.slane %v5719, 1
        %v5917 = vsel %vm2603, %v5912, %v5916
        %v5918 = vrot.slane %v5720, 1
        %v5919 = vsel %vm2603, %v5914, %v5918
        %v5920 = vrot.slane %v5721, 1
        %v5921 = vsel %vm2603, %v5916, %v5920
        %v5922 = vrot.slane %v5722, 1
        %v5923 = vsel %vm2603, %v5918, %v5922
        %v5924 = vrot.slane %v5723, 1
        %v5925 = vsel %vm2603, %v5920, %v5924
        %v5926 = vrot.slane %v5724, 1
        %v5927 = vsel %vm2603, %v5922, %v5926
        %v5928 = vrot.slane %v5725, 1
        %v5929 = vsel %vm2603, %v5924, %v5928
        %v5930 = vrot.slane %v5726, 1
        %v5931 = vsel %vm2603, %v5926, %v5930
        %v5932 = vrot.slane %v5727, 1
        %v5933 = vsel %vm2603, %v5928, %v5932
        %v5934 = vrot.slane %v5728, 1
        %v5935 = vsel %vm2603, %v5930, %v5934
        %v5936 = vrot.slane %v5729, 1
        %v5937 = vsel %vm2603, %v5932, %v5936
        %v5938 = vrot.slane %v5730, 1
        %v5939 = vsel %vm2603, %v5934, %v5938
        %v5940 = vrot.slane %v5731, 1
        %v5941 = vsel %vm2603, %v5936, %v5940
        %v5942 = vrot.slane %v5732, 1
        %v5943 = vsel %vm2603, %v5938, %v5942
        %v5944 = vrot.slane %v5733, 1
        %v5945 = vsel %vm2603, %v5940, %v5944
        %v5946 = vrot.slane %v5734, 1
        %v5947 = vsel %vm2603, %v5942, %v5946
        %v5948 = vrot.slane %v5735, 1
        %v5949 = vsel %vm2603, %v5944, %v5948
        %v5950 = vrot.slane %v5736, 1
        %v5951 = vsel %vm2603, %v5946, %v5950
        %v5952 = vrot.slane %v5737, 1
        %v5953 = vsel %vm2603, %v5948, %v5952
        %v5954 = vrot.slane %v5738, 1
        %v5955 = vsel %vm2603, %v5950, %v5954
        %v5956 = vrot.slane %v5739, 1
        %v5957 = vsel %vm2603, %v5952, %v5956
        %v5958 = vrot.slane %v5740, 1
        %v5959 = vsel %vm2603, %v5954, %v5958
        %v5960 = vrot.slane %v5741, 1
        %v5961 = vsel %vm2603, %v5956, %v5960
        %v5962 = vrot.slane %v5742, 1
        %v5963 = vsel %vm2603, %v5958, %v5962
        %v5964 = vrot.slane %v5743, 1
        %v5965 = vsel %vm2603, %v5960, %v5964
        %v5966 = vrot.slane %v5744, 1
        %v5967 = vsel %vm2603, %v5962, %v5966
        %v5968 = vrot.slane %v5745, 1
        %v5969 = vsel %vm2603, %v5964, %v5968
        %v5970 = vrot.slane %v5746, 1
        %v5971 = vsel %vm2603, %v5966, %v5970
        %v5972 = vrot.slane %v5747, 1
        %v5973 = vsel %vm2603, %v5968, %v5972
        %v5974 = vrot.slane %v5748, 1
        %v5975 = vsel %vm2603, %v5970, %v5974
        %v5976 = vrot.slane %v5749, 1
        %v5977 = vsel %vm2603, %v5972, %v5976
        %v5978 = vrot.slane %v5750, 1
        %v5979 = vsel %vm2603, %v5974, %v5978
        %6044 = vmatpush.msra.mxu0 %v5767
        %6045 = vmatpush.msra.mxu0 %v5766
        %6046 = vmatpush.msra.mxu0 %v5765
        %6047 = vmatpush.msra.mxu0 %v5764
        %6048 = vmatpush.msra.mxu0 %v5763
        %6049 = vmatpush.msra.mxu0 %v5762
        %6050 = vmatpush.msra.mxu0 %v5761
        %6051 = vmatpush.msra.mxu0 %v5760
        %6052 = vmatpush.msra.mxu0 %v5759
        %6053 = vmatpush.msra.mxu0 %v5758
        %6054 = vmatpush.msra.mxu0 %v5757
        %6055 = vmatpush.msra.mxu0 %v5756
        %6056 = vmatpush.msra.mxu0 %v5755
        %6057 = vmatpush.msra.mxu0 %v5754
        %6058 = vmatpush.msra.mxu0 %v5753
        %6059 = vmatpush.msra.mxu0 %v5752
        %6060 = vmatmul.f32.gmra.mxu0 %v5852
        %v6061 = vpop.f32.mrf.mxu0
        %v6062 = vadd.f32 0.0, %v6061
        %6063 = vmatmul.f32.gmra.mxu0 %v5857
        %v6064 = vpop.f32.mrf.mxu0
        %v6065 = vadd.f32 0.0, %v6064
        %6066 = vmatmul.f32.gmra.mxu0 %v5861
        %v6067 = vpop.f32.mrf.mxu0
        %v6068 = vadd.f32 0.0, %v6067
        %6069 = vmatmul.f32.gmra.mxu0 %v5865
        %v6070 = vpop.f32.mrf.mxu0
        %v6071 = vadd.f32 0.0, %v6070
        %6072 = vmatmul.f32.gmra.mxu0 %v5869
        %v6073 = vpop.f32.mrf.mxu0
        %v6074 = vadd.f32 0.0, %v6073
        %6075 = vmatmul.f32.gmra.mxu0 %v5873
        %v6076 = vpop.f32.mrf.mxu0
        %v6077 = vadd.f32 0.0, %v6076
        %6078 = vmatmul.f32.gmra.mxu0 %v5877
        %v6079 = vpop.f32.mrf.mxu0
        %v6080 = vadd.f32 0.0, %v6079
        %6081 = vmatmul.f32.gmra.mxu0 %v5881
        %v6082 = vpop.f32.mrf.mxu0
        %v6083 = vadd.f32 0.0, %v6082
        %6084 = vmatmul.f32.gmra.mxu0 %v5885
        %v6085 = vpop.f32.mrf.mxu0
        %v6086 = vadd.f32 0.0, %v6085
        %6087 = vmatmul.f32.gmra.mxu0 %v5889
        %v6088 = vpop.f32.mrf.mxu0
        %v6089 = vadd.f32 0.0, %v6088
        %6090 = vmatmul.f32.gmra.mxu0 %v5893
        %v6091 = vpop.f32.mrf.mxu0
        %v6092 = vadd.f32 0.0, %v6091
        %6093 = vmatmul.f32.gmra.mxu0 %v5897
        %v6094 = vpop.f32.mrf.mxu0
        %v6095 = vadd.f32 0.0, %v6094
        %6096 = vmatmul.f32.gmra.mxu0 %v5901
        %v6097 = vpop.f32.mrf.mxu0
        %v6098 = vadd.f32 0.0, %v6097
        %6099 = vmatmul.f32.gmra.mxu0 %v5905
        %v6100 = vpop.f32.mrf.mxu0
        %v6101 = vadd.f32 0.0, %v6100
        %6102 = vmatmul.f32.gmra.mxu0 %v5909
        %v6103 = vpop.f32.mrf.mxu0
        %v6104 = vadd.f32 0.0, %v6103
        %6105 = vmatmul.f32.gmra.mxu0 %v5913
        %v6106 = vpop.f32.mrf.mxu0
        %v6107 = vadd.f32 0.0, %v6106
        %6108 = vmatmul.f32.gmra.mxu0 %v5917
        %v6109 = vpop.f32.mrf.mxu0
        %v6110 = vadd.f32 0.0, %v6109
        %6111 = vmatmul.f32.gmra.mxu0 %v5921
        %v6112 = vpop.f32.mrf.mxu0
        %v6113 = vadd.f32 0.0, %v6112
        %6114 = vmatmul.f32.gmra.mxu0 %v5925
        %v6115 = vpop.f32.mrf.mxu0
        %v6116 = vadd.f32 0.0, %v6115
        %6117 = vmatmul.f32.gmra.mxu0 %v5929
        %v6118 = vpop.f32.mrf.mxu0
        %v6119 = vadd.f32 0.0, %v6118
        %6120 = vmatmul.f32.gmra.mxu0 %v5933
        %v6121 = vpop.f32.mrf.mxu0
        %v6122 = vadd.f32 0.0, %v6121
        %6123 = vmatmul.f32.gmra.mxu0 %v5937
        %v6124 = vpop.f32.mrf.mxu0
        %v6125 = vadd.f32 0.0, %v6124
        %6126 = vmatmul.f32.gmra.mxu0 %v5941
        %v6127 = vpop.f32.mrf.mxu0
        %v6128 = vadd.f32 0.0, %v6127
        %6129 = vmatmul.f32.gmra.mxu0 %v5945
        %v6130 = vpop.f32.mrf.mxu0
        %v6131 = vadd.f32 0.0, %v6130
        %6132 = vmatmul.f32.gmra.mxu0 %v5949
        %v6133 = vpop.f32.mrf.mxu0
        %v6134 = vadd.f32 0.0, %v6133
        %6135 = vmatmul.f32.gmra.mxu0 %v5953
        %v6136 = vpop.f32.mrf.mxu0
        %v6137 = vadd.f32 0.0, %v6136
        %6138 = vmatmul.f32.gmra.mxu0 %v5957
        %v6139 = vpop.f32.mrf.mxu0
        %v6140 = vadd.f32 0.0, %v6139
        %6141 = vmatmul.f32.gmra.mxu0 %v5961
        %v6142 = vpop.f32.mrf.mxu0
        %v6143 = vadd.f32 0.0, %v6142
        %6144 = vmatmul.f32.gmra.mxu0 %v5965
        %v6145 = vpop.f32.mrf.mxu0
        %v6146 = vadd.f32 0.0, %v6145
        %6147 = vmatmul.f32.gmra.mxu0 %v5969
        %v6148 = vpop.f32.mrf.mxu0
        %v6149 = vadd.f32 0.0, %v6148
        %6150 = vmatmul.f32.gmra.mxu0 %v5973
        %v6151 = vpop.f32.mrf.mxu0
        %v6152 = vadd.f32 0.0, %v6151
        %6153 = vmatmul.f32.gmra.mxu0 %v5977
        %v6154 = vpop.f32.mrf.mxu0
        %v6155 = vadd.f32 0.0, %v6154
        %6156 = vdwg.mxu0
        %6157 = vmatpush.msra.mxu0 %v5783
        %6158 = vmatpush.msra.mxu0 %v5782
        %6159 = vmatpush.msra.mxu0 %v5781
        %6160 = vmatpush.msra.mxu0 %v5780
        %6161 = vmatpush.msra.mxu0 %v5779
        %6162 = vmatpush.msra.mxu0 %v5778
        %6163 = vmatpush.msra.mxu0 %v5777
        %6164 = vmatpush.msra.mxu0 %v5776
        %6165 = vmatpush.msra.mxu0 %v5775
        %6166 = vmatpush.msra.mxu0 %v5774
        %6167 = vmatpush.msra.mxu0 %v5773
        %6168 = vmatpush.msra.mxu0 %v5772
        %6169 = vmatpush.msra.mxu0 %v5771
        %6170 = vmatpush.msra.mxu0 %v5770
        %6171 = vmatpush.msra.mxu0 %v5769
        %6172 = vmatpush.msra.mxu0 %v5768
        %6173 = vmatmul.f32.gmra.mxu0 %v5855
        %v6174 = vpop.f32.mrf.mxu0
        %v6175 = vadd.f32 %v6062, %v6174
        %6176 = vmatmul.f32.gmra.mxu0 %v5859
        %v6177 = vpop.f32.mrf.mxu0
        %v6178 = vadd.f32 %v6065, %v6177
        %6179 = vmatmul.f32.gmra.mxu0 %v5863
        %v6180 = vpop.f32.mrf.mxu0
        %v6181 = vadd.f32 %v6068, %v6180
        %6182 = vmatmul.f32.gmra.mxu0 %v5867
        %v6183 = vpop.f32.mrf.mxu0
        %v6184 = vadd.f32 %v6071, %v6183
        %6185 = vmatmul.f32.gmra.mxu0 %v5871
        %v6186 = vpop.f32.mrf.mxu0
        %v6187 = vadd.f32 %v6074, %v6186
        %6188 = vmatmul.f32.gmra.mxu0 %v5875
        %v6189 = vpop.f32.mrf.mxu0
        %v6190 = vadd.f32 %v6077, %v6189
        %6191 = vmatmul.f32.gmra.mxu0 %v5879
        %v6192 = vpop.f32.mrf.mxu0
        %v6193 = vadd.f32 %v6080, %v6192
        %6194 = vmatmul.f32.gmra.mxu0 %v5883
        %v6195 = vpop.f32.mrf.mxu0
        %v6196 = vadd.f32 %v6083, %v6195
        %6197 = vmatmul.f32.gmra.mxu0 %v5887
        %v6198 = vpop.f32.mrf.mxu0
        %v6199 = vadd.f32 %v6086, %v6198
        %6200 = vmatmul.f32.gmra.mxu0 %v5891
        %v6201 = vpop.f32.mrf.mxu0
        %v6202 = vadd.f32 %v6089, %v6201
        %6203 = vmatmul.f32.gmra.mxu0 %v5895
        %v6204 = vpop.f32.mrf.mxu0
        %v6205 = vadd.f32 %v6092, %v6204
        %6206 = vmatmul.f32.gmra.mxu0 %v5899
        %v6207 = vpop.f32.mrf.mxu0
        %v6208 = vadd.f32 %v6095, %v6207
        %6209 = vmatmul.f32.gmra.mxu0 %v5903
        %v6210 = vpop.f32.mrf.mxu0
        %v6211 = vadd.f32 %v6098, %v6210
        %6212 = vmatmul.f32.gmra.mxu0 %v5907
        %v6213 = vpop.f32.mrf.mxu0
        %v6214 = vadd.f32 %v6101, %v6213
        %6215 = vmatmul.f32.gmra.mxu0 %v5911
        %v6216 = vpop.f32.mrf.mxu0
        %v6217 = vadd.f32 %v6104, %v6216
        %6218 = vmatmul.f32.gmra.mxu0 %v5915
        %v6219 = vpop.f32.mrf.mxu0
        %v6220 = vadd.f32 %v6107, %v6219
        %6221 = vmatmul.f32.gmra.mxu0 %v5919
        %v6222 = vpop.f32.mrf.mxu0
        %v6223 = vadd.f32 %v6110, %v6222
        %6224 = vmatmul.f32.gmra.mxu0 %v5923
        %v6225 = vpop.f32.mrf.mxu0
        %v6226 = vadd.f32 %v6113, %v6225
        %6227 = vmatmul.f32.gmra.mxu0 %v5927
        %v6228 = vpop.f32.mrf.mxu0
        %v6229 = vadd.f32 %v6116, %v6228
        %6230 = vmatmul.f32.gmra.mxu0 %v5931
        %v6231 = vpop.f32.mrf.mxu0
        %v6232 = vadd.f32 %v6119, %v6231
        %6233 = vmatmul.f32.gmra.mxu0 %v5935
        %v6234 = vpop.f32.mrf.mxu0
        %v6235 = vadd.f32 %v6122, %v6234
        %6236 = vmatmul.f32.gmra.mxu0 %v5939
        %v6237 = vpop.f32.mrf.mxu0
        %v6238 = vadd.f32 %v6125, %v6237
        %6239 = vmatmul.f32.gmra.mxu0 %v5943
        %v6240 = vpop.f32.mrf.mxu0
        %v6241 = vadd.f32 %v6128, %v6240
        %6242 = vmatmul.f32.gmra.mxu0 %v5947
        %v6243 = vpop.f32.mrf.mxu0
        %v6244 = vadd.f32 %v6131, %v6243
        %6245 = vmatmul.f32.gmra.mxu0 %v5951
        %v6246 = vpop.f32.mrf.mxu0
        %v6247 = vadd.f32 %v6134, %v6246
        %6248 = vmatmul.f32.gmra.mxu0 %v5955
        %v6249 = vpop.f32.mrf.mxu0
        %v6250 = vadd.f32 %v6137, %v6249
        %6251 = vmatmul.f32.gmra.mxu0 %v5959
        %v6252 = vpop.f32.mrf.mxu0
        %v6253 = vadd.f32 %v6140, %v6252
        %6254 = vmatmul.f32.gmra.mxu0 %v5963
        %v6255 = vpop.f32.mrf.mxu0
        %v6256 = vadd.f32 %v6143, %v6255
        %6257 = vmatmul.f32.gmra.mxu0 %v5967
        %v6258 = vpop.f32.mrf.mxu0
        %v6259 = vadd.f32 %v6146, %v6258
        %6260 = vmatmul.f32.gmra.mxu0 %v5971
        %v6261 = vpop.f32.mrf.mxu0
        %v6262 = vadd.f32 %v6149, %v6261
        %6263 = vmatmul.f32.gmra.mxu0 %v5975
        %v6264 = vpop.f32.mrf.mxu0
        %v6265 = vadd.f32 %v6152, %v6264
        %6266 = vmatmul.f32.gmra.mxu0 %v5979
        %v6267 = vpop.f32.mrf.mxu0
        %v6268 = vadd.f32 %v6155, %v6267
        %6269 = vdwg.mxu0
        %v6270 = vsel %vm3056, %v6175, 0.0
        %v6271 = vsel %vm3057, %v6178, 0.0
        %v6272 = vsel %vm3058, %v6181, 0.0
        %v6273 = vsel %vm3059, %v6184, 0.0
        %v6274 = vsel %vm3060, %v6187, 0.0
        %v6275 = vsel %vm3061, %v6190, 0.0
        %v6276 = vsel %vm3062, %v6193, 0.0
        %v6277 = vsel %vm3063, %v6196, 0.0
        %v6278 = vsel %vm3064, %v6199, 0.0
        %v6279 = vsel %vm3065, %v6202, 0.0
        %v6280 = vsel %vm3066, %v6205, 0.0
        %v6281 = vsel %vm3067, %v6208, 0.0
        %v6282 = vsel %vm3068, %v6211, 0.0
        %v6283 = vsel %vm3069, %v6214, 0.0
        %v6284 = vsel %vm3070, %v6217, 0.0
        %v6285 = vsel %vm3071, %v6220, 0.0
        %v6286 = vsel %vm3072, %v6223, 0.0
        %v6287 = vsel %vm3073, %v6226, 0.0
        %v6288 = vsel %vm3074, %v6229, 0.0
        %v6289 = vsel %vm3075, %v6232, 0.0
        %v6290 = vsel %vm3076, %v6235, 0.0
        %v6291 = vsel %vm3077, %v6238, 0.0
        %v6292 = vsel %vm3078, %v6241, 0.0
        %v6293 = vsel %vm3079, %v6244, 0.0
        %v6294 = vsel %vm3080, %v6247, 0.0
        %v6295 = vsel %vm3081, %v6250, 0.0
        %v6296 = vsel %vm3082, %v6253, 0.0
        %v6297 = vsel %vm3083, %v6256, 0.0
        %v6298 = vsel %vm3084, %v6259, 0.0
        %v6299 = vsel %vm3085, %v6262, 0.0
        %v6300 = vsel %vm3086, %v6265, 0.0
        %v6301 = vsel %vm3087, %v6268, 0.0
        %v6302 = vadd.f32 %v5653, %v6270
        %v6303 = vadd.f32 %v5654, %v6271
        %v6304 = vadd.f32 %v5655, %v6272
        %v6305 = vadd.f32 %v5656, %v6273
        %v6306 = vadd.f32 %v5657, %v6274
        %v6307 = vadd.f32 %v5658, %v6275
        %v6308 = vadd.f32 %v5659, %v6276
        %v6309 = vadd.f32 %v5660, %v6277
        %v6310 = vadd.f32 %v5661, %v6278
        %v6311 = vadd.f32 %v5662, %v6279
        %v6312 = vadd.f32 %v5663, %v6280
        %v6313 = vadd.f32 %v5664, %v6281
        %v6314 = vadd.f32 %v5665, %v6282
        %v6315 = vadd.f32 %v5666, %v6283
        %v6316 = vadd.f32 %v5667, %v6284
        %v6317 = vadd.f32 %v5668, %v6285
        %v6318 = vadd.f32 %v5669, %v6286
        %v6319 = vadd.f32 %v5670, %v6287
        %v6320 = vadd.f32 %v5671, %v6288
        %v6321 = vadd.f32 %v5672, %v6289
        %v6322 = vadd.f32 %v5673, %v6290
        %v6323 = vadd.f32 %v5674, %v6291
        %v6324 = vadd.f32 %v5675, %v6292
        %v6325 = vadd.f32 %v5676, %v6293
        %v6326 = vadd.f32 %v5677, %v6294
        %v6327 = vadd.f32 %v5678, %v6295
        %v6328 = vadd.f32 %v5679, %v6296
        %v6329 = vadd.f32 %v5680, %v6297
        %v6330 = vadd.f32 %v5681, %v6298
        %v6331 = vadd.f32 %v5682, %v6299
        %v6332 = vadd.f32 %v5683, %v6300
        %v6333 = vadd.f32 %v5684, %v6301
        %v6334 = vld [vmem:[#allocation10] sm:$0x1]
        %v6336 = vperm.slane %v6334, 0
        %v6338 = vadd.f32 %v6302, %v6336
        %v6339 = vadd.f32 %v6303, %v6336
        %v6340 = vadd.f32 %v6304, %v6336
        %v6341 = vadd.f32 %v6305, %v6336
        %v6342 = vadd.f32 %v6306, %v6336
        %v6343 = vadd.f32 %v6307, %v6336
        %v6344 = vadd.f32 %v6308, %v6336
        %v6345 = vadd.f32 %v6309, %v6336
        %v6346 = vadd.f32 %v6310, %v6336
        %v6347 = vadd.f32 %v6311, %v6336
        %v6348 = vadd.f32 %v6312, %v6336
        %v6349 = vadd.f32 %v6313, %v6336
        %v6350 = vadd.f32 %v6314, %v6336
        %v6351 = vadd.f32 %v6315, %v6336
        %v6352 = vadd.f32 %v6316, %v6336
        %v6353 = vadd.f32 %v6317, %v6336
        %v6354 = vadd.f32 %v6318, %v6336
        %v6355 = vadd.f32 %v6319, %v6336
        %v6356 = vadd.f32 %v6320, %v6336
        %v6357 = vadd.f32 %v6321, %v6336
        %v6358 = vadd.f32 %v6322, %v6336
        %v6359 = vadd.f32 %v6323, %v6336
        %v6360 = vadd.f32 %v6324, %v6336
        %v6361 = vadd.f32 %v6325, %v6336
        %v6362 = vadd.f32 %v6326, %v6336
        %v6363 = vadd.f32 %v6327, %v6336
        %v6364 = vadd.f32 %v6328, %v6336
        %v6365 = vadd.f32 %v6329, %v6336
        %v6366 = vadd.f32 %v6330, %v6336
        %v6367 = vadd.f32 %v6331, %v6336
        %v6368 = vadd.f32 %v6332, %v6336
        %v6369 = vadd.f32 %v6333, %v6336
        %v6370 = vmax.f32 %v6338, 0.0
        %v6371 = vmax.f32 %v6339, 0.0
        %v6372 = vmax.f32 %v6340, 0.0
        %v6373 = vmax.f32 %v6341, 0.0
        %v6374 = vmax.f32 %v6342, 0.0
        %v6375 = vmax.f32 %v6343, 0.0
        %v6376 = vmax.f32 %v6344, 0.0
        %v6377 = vmax.f32 %v6345, 0.0
        %v6378 = vmax.f32 %v6346, 0.0
        %v6379 = vmax.f32 %v6347, 0.0
        %v6380 = vmax.f32 %v6348, 0.0
        %v6381 = vmax.f32 %v6349, 0.0
        %v6382 = vmax.f32 %v6350, 0.0
        %v6383 = vmax.f32 %v6351, 0.0
        %v6384 = vmax.f32 %v6352, 0.0
        %v6385 = vmax.f32 %v6353, 0.0
        %v6386 = vmax.f32 %v6354, 0.0
        %v6387 = vmax.f32 %v6355, 0.0
        %v6388 = vmax.f32 %v6356, 0.0
        %v6389 = vmax.f32 %v6357, 0.0
        %v6390 = vmax.f32 %v6358, 0.0
        %v6391 = vmax.f32 %v6359, 0.0
        %v6392 = vmax.f32 %v6360, 0.0
        %v6393 = vmax.f32 %v6361, 0.0
        %v6394 = vmax.f32 %v6362, 0.0
        %v6395 = vmax.f32 %v6363, 0.0
        %v6396 = vmax.f32 %v6364, 0.0
        %v6397 = vmax.f32 %v6365, 0.0
        %v6398 = vmax.f32 %v6366, 0.0
        %v6399 = vmax.f32 %v6367, 0.0
        %v6400 = vmax.f32 %v6368, 0.0
        %v6401 = vmax.f32 %v6369, 0.0
        %6402 = vst [vmem:[#allocation3] sm:$0xff] 0.0
        %6403 = vst [vmem:[#allocation3 + $0x8] sm:$0xff] 0.0
        %6404 = vst [vmem:[#allocation3 + $0x10] sm:$0xff] 0.0
        %6405 = vst [vmem:[#allocation3 + $0x18] sm:$0xff] 0.0
        %6406 = vst [vmem:[#allocation3 + $0x20] sm:$0xff] %v6370
        %6407 = vst [vmem:[#allocation3 + $0x28] sm:$0xff] %v6371
        %6408 = vst [vmem:[#allocation3 + $0x30] sm:$0xff] %v6372
        %6409 = vst [vmem:[#allocation3 + $0x38] sm:$0xff] %v6373
        %6410 = vst [vmem:[#allocation3 + $0x40] sm:$0xff] %v6374
        %6411 = vst [vmem:[#allocation3 + $0x48] sm:$0xff] %v6375
        %6412 = vst [vmem:[#allocation3 + $0x50] sm:$0xff] %v6376
        %6413 = vst [vmem:[#allocation3 + $0x58] sm:$0xff] %v6377
        %6414 = vst [vmem:[#allocation3 + $0x60] sm:$0xff] %v6378
        %6415 = vst [vmem:[#allocation3 + $0x68] sm:$0xff] %v6379
        %6416 = vst [vmem:[#allocation3 + $0x70] sm:$0xff] %v6380
        %6417 = vst [vmem:[#allocation3 + $0x78] sm:$0xff] %v6381
        %6418 = vst [vmem:[#allocation3 + $0x80] sm:$0xff] %v6382
        %6419 = vst [vmem:[#allocation3 + $0x88] sm:$0xff] %v6383
        %6420 = vst [vmem:[#allocation3 + $0x90] sm:$0xff] %v6384
        %6421 = vst [vmem:[#allocation3 + $0x98] sm:$0xff] %v6385
        %6422 = vst [vmem:[#allocation3 + $0xa0] sm:$0xff] %v6386
        %6423 = vst [vmem:[#allocation3 + $0xa8] sm:$0xff] %v6387
        %6424 = vst [vmem:[#allocation3 + $0xb0] sm:$0xff] %v6388
        %6425 = vst [vmem:[#allocation3 + $0xb8] sm:$0xff] %v6389
        %6426 = vst [vmem:[#allocation3 + $0xc0] sm:$0xff] %v6390
        %6427 = vst [vmem:[#allocation3 + $0xc8] sm:$0xff] %v6391
        %6428 = vst [vmem:[#allocation3 + $0xd0] sm:$0xff] %v6392
        %6429 = vst [vmem:[#allocation3 + $0xd8] sm:$0xff] %v6393
        %6430 = vst [vmem:[#allocation3 + $0xe0] sm:$0xff] %v6394
        %6431 = vst [vmem:[#allocation3 + $0xe8] sm:$0xff] %v6395
        %6432 = vst [vmem:[#allocation3 + $0xf0] sm:$0xff] %v6396
        %6433 = vst [vmem:[#allocation3 + $0xf8] sm:$0xff] %v6397
        %6434 = vst [vmem:[#allocation3 + $0x100] sm:$0xff] %v6398
        %6435 = vst [vmem:[#allocation3 + $0x108] sm:$0xff] %v6399
        %6436 = vst [vmem:[#allocation3 + $0x110] sm:$0xff] %v6400
        %6437 = vst [vmem:[#allocation3 + $0x118] sm:$0xff] %v6401
        %6438 = vst [vmem:[#allocation3 + $0x120] sm:$0xff] 0.0
        %6439 = vst [vmem:[#allocation3 + $0x128] sm:$0xff] 0.0
        %6440 = vst [vmem:[#allocation3 + $0x130] sm:$0xff] 0.0
        %6441 = vst [vmem:[#allocation3 + $0x138] sm:$0xff] 0.0
        %v6442 = vld [vmem:[#allocation3 + $0xf] sm:$0xff]
        %v6443 = vld [vmem:[#allocation3 + $0x17] sm:$0xff]
        %v6444 = vld [vmem:[#allocation3 + $0x1f] sm:$0xff]
        %v6445 = vld [vmem:[#allocation3 + $0x27] sm:$0xff]
        %v6446 = vld [vmem:[#allocation3 + $0x2f] sm:$0xff]
        %v6447 = vld [vmem:[#allocation3 + $0x37] sm:$0xff]
        %v6448 = vld [vmem:[#allocation3 + $0x3f] sm:$0xff]
        %v6449 = vld [vmem:[#allocation3 + $0x47] sm:$0xff]
        %v6450 = vld [vmem:[#allocation3 + $0x4f] sm:$0xff]
        %v6451 = vld [vmem:[#allocation3 + $0x57] sm:$0xff]
        %v6452 = vld [vmem:[#allocation3 + $0x5f] sm:$0xff]
        %v6453 = vld [vmem:[#allocation3 + $0x67] sm:$0xff]
        %v6454 = vld [vmem:[#allocation3 + $0x6f] sm:$0xff]
        %v6455 = vld [vmem:[#allocation3 + $0x77] sm:$0xff]
        %v6456 = vld [vmem:[#allocation3 + $0x7f] sm:$0xff]
        %v6457 = vld [vmem:[#allocation3 + $0x87] sm:$0xff]
        %v6458 = vld [vmem:[#allocation3 + $0x8f] sm:$0xff]
        %v6459 = vld [vmem:[#allocation3 + $0x97] sm:$0xff]
        %v6460 = vld [vmem:[#allocation3 + $0x9f] sm:$0xff]
        %v6461 = vld [vmem:[#allocation3 + $0xa7] sm:$0xff]
        %v6462 = vld [vmem:[#allocation3 + $0xaf] sm:$0xff]
        %v6463 = vld [vmem:[#allocation3 + $0xb7] sm:$0xff]
        %v6464 = vld [vmem:[#allocation3 + $0xbf] sm:$0xff]
        %v6465 = vld [vmem:[#allocation3 + $0xc7] sm:$0xff]
        %v6466 = vld [vmem:[#allocation3 + $0xcf] sm:$0xff]
        %v6467 = vld [vmem:[#allocation3 + $0xd7] sm:$0xff]
        %v6468 = vld [vmem:[#allocation3 + $0xdf] sm:$0xff]
        %v6469 = vld [vmem:[#allocation3 + $0xe7] sm:$0xff]
        %v6470 = vld [vmem:[#allocation3 + $0xef] sm:$0xff]
        %v6471 = vld [vmem:[#allocation3 + $0xf7] sm:$0xff]
        %v6472 = vld [vmem:[#allocation3 + $0xff] sm:$0xff]
        %v6473 = vld [vmem:[#allocation3 + $0x107] sm:$0xff]
        %v6474 = vld [vmem:[#allocation12] sm:$0xff]
        %v6475 = vld [vmem:[#allocation12 + $0x8] sm:$0xff]
        %v6476 = vld [vmem:[#allocation12 + $0x10] sm:$0xff]
        %v6477 = vld [vmem:[#allocation12 + $0x18] sm:$0xff]
        %v6478 = vld [vmem:[#allocation12 + $0x20] sm:$0xff]
        %v6479 = vld [vmem:[#allocation12 + $0x28] sm:$0xff]
        %v6480 = vld [vmem:[#allocation12 + $0x30] sm:$0xff]
        %v6481 = vld [vmem:[#allocation12 + $0x38] sm:$0xff]
        %v6482 = vld [vmem:[#allocation12 + $0x40] sm:$0xff]
        %v6483 = vld [vmem:[#allocation12 + $0x48] sm:$0xff]
        %v6484 = vld [vmem:[#allocation12 + $0x50] sm:$0xff]
        %v6485 = vld [vmem:[#allocation12 + $0x58] sm:$0xff]
        %v6486 = vld [vmem:[#allocation12 + $0x60] sm:$0xff]
        %v6487 = vld [vmem:[#allocation12 + $0x68] sm:$0xff]
        %v6488 = vld [vmem:[#allocation12 + $0x70] sm:$0xff]
        %v6489 = vld [vmem:[#allocation12 + $0x78] sm:$0xff]
        %6490 = vmatpush.msra.mxu0 %v6489
        %6491 = vmatpush.msra.mxu0 %v6488
        %6492 = vmatpush.msra.mxu0 %v6487
        %6493 = vmatpush.msra.mxu0 %v6486
        %6494 = vmatpush.msra.mxu0 %v6485
        %6495 = vmatpush.msra.mxu0 %v6484
        %6496 = vmatpush.msra.mxu0 %v6483
        %6497 = vmatpush.msra.mxu0 %v6482
        %6498 = vmatpush.msra.mxu0 %v6481
        %6499 = vmatpush.msra.mxu0 %v6480
        %6500 = vmatpush.msra.mxu0 %v6479
        %6501 = vmatpush.msra.mxu0 %v6478
        %6502 = vmatpush.msra.mxu0 %v6477
        %6503 = vmatpush.msra.mxu0 %v6476
        %6504 = vmatpush.msra.mxu0 %v6475
        %6505 = vmatpush.msra.mxu0 %v6474
        %6506 = vmatmul.f32.gmra.mxu0 %v6442
        %v6507 = vpop.f32.mrf.mxu0
        %v6508 = vadd.f32 0.0, %v6507
        %6509 = vmatmul.f32.gmra.mxu0 %v6443
        %v6510 = vpop.f32.mrf.mxu0
        %v6511 = vadd.f32 0.0, %v6510
        %6512 = vmatmul.f32.gmra.mxu0 %v6444
        %v6513 = vpop.f32.mrf.mxu0
        %v6514 = vadd.f32 0.0, %v6513
        %6515 = vmatmul.f32.gmra.mxu0 %v6445
        %v6516 = vpop.f32.mrf.mxu0
        %v6517 = vadd.f32 0.0, %v6516
        %6518 = vmatmul.f32.gmra.mxu0 %v6446
        %v6519 = vpop.f32.mrf.mxu0
        %v6520 = vadd.f32 0.0, %v6519
        %6521 = vmatmul.f32.gmra.mxu0 %v6447
        %v6522 = vpop.f32.mrf.mxu0
        %v6523 = vadd.f32 0.0, %v6522
        %6524 = vmatmul.f32.gmra.mxu0 %v6448
        %v6525 = vpop.f32.mrf.mxu0
        %v6526 = vadd.f32 0.0, %v6525
        %6527 = vmatmul.f32.gmra.mxu0 %v6449
        %v6528 = vpop.f32.mrf.mxu0
        %v6529 = vadd.f32 0.0, %v6528
        %6530 = vmatmul.f32.gmra.mxu0 %v6450
        %v6531 = vpop.f32.mrf.mxu0
        %v6532 = vadd.f32 0.0, %v6531
        %6533 = vmatmul.f32.gmra.mxu0 %v6451
        %v6534 = vpop.f32.mrf.mxu0
        %v6535 = vadd.f32 0.0, %v6534
        %6536 = vmatmul.f32.gmra.mxu0 %v6452
        %v6537 = vpop.f32.mrf.mxu0
        %v6538 = vadd.f32 0.0, %v6537
        %6539 = vmatmul.f32.gmra.mxu0 %v6453
        %v6540 = vpop.f32.mrf.mxu0
        %v6541 = vadd.f32 0.0, %v6540
        %6542 = vmatmul.f32.gmra.mxu0 %v6454
        %v6543 = vpop.f32.mrf.mxu0
        %v6544 = vadd.f32 0.0, %v6543
        %6545 = vmatmul.f32.gmra.mxu0 %v6455
        %v6546 = vpop.f32.mrf.mxu0
        %v6547 = vadd.f32 0.0, %v6546
        %6548 = vmatmul.f32.gmra.mxu0 %v6456
        %v6549 = vpop.f32.mrf.mxu0
        %v6550 = vadd.f32 0.0, %v6549
        %6551 = vmatmul.f32.gmra.mxu0 %v6457
        %v6552 = vpop.f32.mrf.mxu0
        %v6553 = vadd.f32 0.0, %v6552
        %6554 = vmatmul.f32.gmra.mxu0 %v6458
        %v6555 = vpop.f32.mrf.mxu0
        %v6556 = vadd.f32 0.0, %v6555
        %6557 = vmatmul.f32.gmra.mxu0 %v6459
        %v6558 = vpop.f32.mrf.mxu0
        %v6559 = vadd.f32 0.0, %v6558
        %6560 = vmatmul.f32.gmra.mxu0 %v6460
        %v6561 = vpop.f32.mrf.mxu0
        %v6562 = vadd.f32 0.0, %v6561
        %6563 = vmatmul.f32.gmra.mxu0 %v6461
        %v6564 = vpop.f32.mrf.mxu0
        %v6565 = vadd.f32 0.0, %v6564
        %6566 = vmatmul.f32.gmra.mxu0 %v6462
        %v6567 = vpop.f32.mrf.mxu0
        %v6568 = vadd.f32 0.0, %v6567
        %6569 = vmatmul.f32.gmra.mxu0 %v6463
        %v6570 = vpop.f32.mrf.mxu0
        %v6571 = vadd.f32 0.0, %v6570
        %6572 = vmatmul.f32.gmra.mxu0 %v6464
        %v6573 = vpop.f32.mrf.mxu0
        %v6574 = vadd.f32 0.0, %v6573
        %6575 = vmatmul.f32.gmra.mxu0 %v6465
        %v6576 = vpop.f32.mrf.mxu0
        %v6577 = vadd.f32 0.0, %v6576
        %6578 = vmatmul.f32.gmra.mxu0 %v6466
        %v6579 = vpop.f32.mrf.mxu0
        %v6580 = vadd.f32 0.0, %v6579
        %6581 = vmatmul.f32.gmra.mxu0 %v6467
        %v6582 = vpop.f32.mrf.mxu0
        %v6583 = vadd.f32 0.0, %v6582
        %6584 = vmatmul.f32.gmra.mxu0 %v6468
        %v6585 = vpop.f32.mrf.mxu0
        %v6586 = vadd.f32 0.0, %v6585
        %6587 = vmatmul.f32.gmra.mxu0 %v6469
        %v6588 = vpop.f32.mrf.mxu0
        %v6589 = vadd.f32 0.0, %v6588
        %6590 = vmatmul.f32.gmra.mxu0 %v6470
        %v6591 = vpop.f32.mrf.mxu0
        %v6592 = vadd.f32 0.0, %v6591
        %6593 = vmatmul.f32.gmra.mxu0 %v6471
        %v6594 = vpop.f32.mrf.mxu0
        %v6595 = vadd.f32 0.0, %v6594
        %6596 = vmatmul.f32.gmra.mxu0 %v6472
        %v6597 = vpop.f32.mrf.mxu0
        %v6598 = vadd.f32 0.0, %v6597
        %6599 = vmatmul.f32.gmra.mxu0 %v6473
        %v6600 = vpop.f32.mrf.mxu0
        %v6601 = vadd.f32 0.0, %v6600
        %6602 = vdwg.mxu0
        %v6603 = vsel %vm2049, %v6508, 0.0
        %v6604 = vsel %vm2050, %v6511, 0.0
        %v6605 = vsel %vm2051, %v6514, 0.0
        %v6606 = vsel %vm2052, %v6517, 0.0
        %v6607 = vsel %vm2053, %v6520, 0.0
        %v6608 = vsel %vm2054, %v6523, 0.0
        %v6609 = vsel %vm2055, %v6526, 0.0
        %v6610 = vsel %vm2056, %v6529, 0.0
        %v6611 = vsel %vm2057, %v6532, 0.0
        %v6612 = vsel %vm2058, %v6535, 0.0
        %v6613 = vsel %vm2059, %v6538, 0.0
        %v6614 = vsel %vm2060, %v6541, 0.0
        %v6615 = vsel %vm2061, %v6544, 0.0
        %v6616 = vsel %vm2062, %v6547, 0.0
        %v6617 = vsel %vm2063, %v6550, 0.0
        %v6618 = vsel %vm2064, %v6553, 0.0
        %v6619 = vsel %vm2065, %v6556, 0.0
        %v6620 = vsel %vm2066, %v6559, 0.0
        %v6621 = vsel %vm2067, %v6562, 0.0
        %v6622 = vsel %vm2068, %v6565, 0.0
        %v6623 = vsel %vm2069, %v6568, 0.0
        %v6624 = vsel %vm2070, %v6571, 0.0
        %v6625 = vsel %vm2071, %v6574, 0.0
        %v6626 = vsel %vm2072, %v6577, 0.0
        %v6627 = vsel %vm2073, %v6580, 0.0
        %v6628 = vsel %vm2074, %v6583, 0.0
        %v6629 = vsel %vm2075, %v6586, 0.0
        %v6630 = vsel %vm2076, %v6589, 0.0
        %v6631 = vsel %vm2077, %v6592, 0.0
        %v6632 = vsel %vm2078, %v6595, 0.0
        %v6633 = vsel %vm2079, %v6598, 0.0
        %v6634 = vsel %vm2080, %v6601, 0.0
        %v6635 = vadd.f32 %v6603, 0.0
        %v6636 = vadd.f32 %v6604, 0.0
        %v6637 = vadd.f32 %v6605, 0.0
        %v6638 = vadd.f32 %v6606, 0.0
        %v6639 = vadd.f32 %v6607, 0.0
        %v6640 = vadd.f32 %v6608, 0.0
        %v6641 = vadd.f32 %v6609, 0.0
        %v6642 = vadd.f32 %v6610, 0.0
        %v6643 = vadd.f32 %v6611, 0.0
        %v6644 = vadd.f32 %v6612, 0.0
        %v6645 = vadd.f32 %v6613, 0.0
        %v6646 = vadd.f32 %v6614, 0.0
        %v6647 = vadd.f32 %v6615, 0.0
        %v6648 = vadd.f32 %v6616, 0.0
        %v6649 = vadd.f32 %v6617, 0.0
        %v6650 = vadd.f32 %v6618, 0.0
        %v6651 = vadd.f32 %v6619, 0.0
        %v6652 = vadd.f32 %v6620, 0.0
        %v6653 = vadd.f32 %v6621, 0.0
        %v6654 = vadd.f32 %v6622, 0.0
        %v6655 = vadd.f32 %v6623, 0.0
        %v6656 = vadd.f32 %v6624, 0.0
        %v6657 = vadd.f32 %v6625, 0.0
        %v6658 = vadd.f32 %v6626, 0.0
        %v6659 = vadd.f32 %v6627, 0.0
        %v6660 = vadd.f32 %v6628, 0.0
        %v6661 = vadd.f32 %v6629, 0.0
        %v6662 = vadd.f32 %v6630, 0.0
        %v6663 = vadd.f32 %v6631, 0.0
        %v6664 = vadd.f32 %v6632, 0.0
        %v6665 = vadd.f32 %v6633, 0.0
        %v6666 = vadd.f32 %v6634, 0.0
        %v6667 = vld [vmem:[#allocation3 + $0x10] sm:$0xff]
        %v6668 = vld [vmem:[#allocation3 + $0x18] sm:$0xff]
        %v6669 = vld [vmem:[#allocation3 + $0x20] sm:$0xff]
        %v6670 = vld [vmem:[#allocation3 + $0x28] sm:$0xff]
        %v6671 = vld [vmem:[#allocation3 + $0x30] sm:$0xff]
        %v6672 = vld [vmem:[#allocation3 + $0x38] sm:$0xff]
        %v6673 = vld [vmem:[#allocation3 + $0x40] sm:$0xff]
        %v6674 = vld [vmem:[#allocation3 + $0x48] sm:$0xff]
        %v6675 = vld [vmem:[#allocation3 + $0x50] sm:$0xff]
        %v6676 = vld [vmem:[#allocation3 + $0x58] sm:$0xff]
        %v6677 = vld [vmem:[#allocation3 + $0x60] sm:$0xff]
        %v6678 = vld [vmem:[#allocation3 + $0x68] sm:$0xff]
        %v6679 = vld [vmem:[#allocation3 + $0x70] sm:$0xff]
        %v6680 = vld [vmem:[#allocation3 + $0x78] sm:$0xff]
        %v6681 = vld [vmem:[#allocation3 + $0x80] sm:$0xff]
        %v6682 = vld [vmem:[#allocation3 + $0x88] sm:$0xff]
        %v6683 = vld [vmem:[#allocation3 + $0x90] sm:$0xff]
        %v6684 = vld [vmem:[#allocation3 + $0x98] sm:$0xff]
        %v6685 = vld [vmem:[#allocation3 + $0xa0] sm:$0xff]
        %v6686 = vld [vmem:[#allocation3 + $0xa8] sm:$0xff]
        %v6687 = vld [vmem:[#allocation3 + $0xb0] sm:$0xff]
        %v6688 = vld [vmem:[#allocation3 + $0xb8] sm:$0xff]
        %v6689 = vld [vmem:[#allocation3 + $0xc0] sm:$0xff]
        %v6690 = vld [vmem:[#allocation3 + $0xc8] sm:$0xff]
        %v6691 = vld [vmem:[#allocation3 + $0xd0] sm:$0xff]
        %v6692 = vld [vmem:[#allocation3 + $0xd8] sm:$0xff]
        %v6693 = vld [vmem:[#allocation3 + $0xe0] sm:$0xff]
        %v6694 = vld [vmem:[#allocation3 + $0xe8] sm:$0xff]
        %v6695 = vld [vmem:[#allocation3 + $0xf0] sm:$0xff]
        %v6696 = vld [vmem:[#allocation3 + $0xf8] sm:$0xff]
        %v6697 = vld [vmem:[#allocation3 + $0x100] sm:$0xff]
        %v6698 = vld [vmem:[#allocation3 + $0x108] sm:$0xff]
        %s6699 = scalar_lea.vmem [#allocation12], 128
        %v6700 = vld [vmem:[%s6699] sm:$0xff]
        %v6701 = vld [vmem:[%s6699 + $0x8] sm:$0xff]
        %v6702 = vld [vmem:[%s6699 + $0x10] sm:$0xff]
        %v6703 = vld [vmem:[%s6699 + $0x18] sm:$0xff]
        %v6704 = vld [vmem:[%s6699 + $0x20] sm:$0xff]
        %v6705 = vld [vmem:[%s6699 + $0x28] sm:$0xff]
        %v6706 = vld [vmem:[%s6699 + $0x30] sm:$0xff]
        %v6707 = vld [vmem:[%s6699 + $0x38] sm:$0xff]
        %v6708 = vld [vmem:[%s6699 + $0x40] sm:$0xff]
        %v6709 = vld [vmem:[%s6699 + $0x48] sm:$0xff]
        %v6710 = vld [vmem:[%s6699 + $0x50] sm:$0xff]
        %v6711 = vld [vmem:[%s6699 + $0x58] sm:$0xff]
        %v6712 = vld [vmem:[%s6699 + $0x60] sm:$0xff]
        %v6713 = vld [vmem:[%s6699 + $0x68] sm:$0xff]
        %v6714 = vld [vmem:[%s6699 + $0x70] sm:$0xff]
        %v6715 = vld [vmem:[%s6699 + $0x78] sm:$0xff]
        %6716 = vmatpush.msra.mxu0 %v6715
        %6717 = vmatpush.msra.mxu0 %v6714
        %6718 = vmatpush.msra.mxu0 %v6713
        %6719 = vmatpush.msra.mxu0 %v6712
        %6720 = vmatpush.msra.mxu0 %v6711
        %6721 = vmatpush.msra.mxu0 %v6710
        %6722 = vmatpush.msra.mxu0 %v6709
        %6723 = vmatpush.msra.mxu0 %v6708
        %6724 = vmatpush.msra.mxu0 %v6707
        %6725 = vmatpush.msra.mxu0 %v6706
        %6726 = vmatpush.msra.mxu0 %v6705
        %6727 = vmatpush.msra.mxu0 %v6704
        %6728 = vmatpush.msra.mxu0 %v6703
        %6729 = vmatpush.msra.mxu0 %v6702
        %6730 = vmatpush.msra.mxu0 %v6701
        %6731 = vmatpush.msra.mxu0 %v6700
        %6732 = vmatmul.f32.gmra.mxu0 %v6667
        %v6733 = vpop.f32.mrf.mxu0
        %v6734 = vadd.f32 0.0, %v6733
        %6735 = vmatmul.f32.gmra.mxu0 %v6668
        %v6736 = vpop.f32.mrf.mxu0
        %v6737 = vadd.f32 0.0, %v6736
        %6738 = vmatmul.f32.gmra.mxu0 %v6669
        %v6739 = vpop.f32.mrf.mxu0
        %v6740 = vadd.f32 0.0, %v6739
        %6741 = vmatmul.f32.gmra.mxu0 %v6670
        %v6742 = vpop.f32.mrf.mxu0
        %v6743 = vadd.f32 0.0, %v6742
        %6744 = vmatmul.f32.gmra.mxu0 %v6671
        %v6745 = vpop.f32.mrf.mxu0
        %v6746 = vadd.f32 0.0, %v6745
        %6747 = vmatmul.f32.gmra.mxu0 %v6672
        %v6748 = vpop.f32.mrf.mxu0
        %v6749 = vadd.f32 0.0, %v6748
        %6750 = vmatmul.f32.gmra.mxu0 %v6673
        %v6751 = vpop.f32.mrf.mxu0
        %v6752 = vadd.f32 0.0, %v6751
        %6753 = vmatmul.f32.gmra.mxu0 %v6674
        %v6754 = vpop.f32.mrf.mxu0
        %v6755 = vadd.f32 0.0, %v6754
        %6756 = vmatmul.f32.gmra.mxu0 %v6675
        %v6757 = vpop.f32.mrf.mxu0
        %v6758 = vadd.f32 0.0, %v6757
        %6759 = vmatmul.f32.gmra.mxu0 %v6676
        %v6760 = vpop.f32.mrf.mxu0
        %v6761 = vadd.f32 0.0, %v6760
        %6762 = vmatmul.f32.gmra.mxu0 %v6677
        %v6763 = vpop.f32.mrf.mxu0
        %v6764 = vadd.f32 0.0, %v6763
        %6765 = vmatmul.f32.gmra.mxu0 %v6678
        %v6766 = vpop.f32.mrf.mxu0
        %v6767 = vadd.f32 0.0, %v6766
        %6768 = vmatmul.f32.gmra.mxu0 %v6679
        %v6769 = vpop.f32.mrf.mxu0
        %v6770 = vadd.f32 0.0, %v6769
        %6771 = vmatmul.f32.gmra.mxu0 %v6680
        %v6772 = vpop.f32.mrf.mxu0
        %v6773 = vadd.f32 0.0, %v6772
        %6774 = vmatmul.f32.gmra.mxu0 %v6681
        %v6775 = vpop.f32.mrf.mxu0
        %v6776 = vadd.f32 0.0, %v6775
        %6777 = vmatmul.f32.gmra.mxu0 %v6682
        %v6778 = vpop.f32.mrf.mxu0
        %v6779 = vadd.f32 0.0, %v6778
        %6780 = vmatmul.f32.gmra.mxu0 %v6683
        %v6781 = vpop.f32.mrf.mxu0
        %v6782 = vadd.f32 0.0, %v6781
        %6783 = vmatmul.f32.gmra.mxu0 %v6684
        %v6784 = vpop.f32.mrf.mxu0
        %v6785 = vadd.f32 0.0, %v6784
        %6786 = vmatmul.f32.gmra.mxu0 %v6685
        %v6787 = vpop.f32.mrf.mxu0
        %v6788 = vadd.f32 0.0, %v6787
        %6789 = vmatmul.f32.gmra.mxu0 %v6686
        %v6790 = vpop.f32.mrf.mxu0
        %v6791 = vadd.f32 0.0, %v6790
        %6792 = vmatmul.f32.gmra.mxu0 %v6687
        %v6793 = vpop.f32.mrf.mxu0
        %v6794 = vadd.f32 0.0, %v6793
        %6795 = vmatmul.f32.gmra.mxu0 %v6688
        %v6796 = vpop.f32.mrf.mxu0
        %v6797 = vadd.f32 0.0, %v6796
        %6798 = vmatmul.f32.gmra.mxu0 %v6689
        %v6799 = vpop.f32.mrf.mxu0
        %v6800 = vadd.f32 0.0, %v6799
        %6801 = vmatmul.f32.gmra.mxu0 %v6690
        %v6802 = vpop.f32.mrf.mxu0
        %v6803 = vadd.f32 0.0, %v6802
        %6804 = vmatmul.f32.gmra.mxu0 %v6691
        %v6805 = vpop.f32.mrf.mxu0
        %v6806 = vadd.f32 0.0, %v6805
        %6807 = vmatmul.f32.gmra.mxu0 %v6692
        %v6808 = vpop.f32.mrf.mxu0
        %v6809 = vadd.f32 0.0, %v6808
        %6810 = vmatmul.f32.gmra.mxu0 %v6693
        %v6811 = vpop.f32.mrf.mxu0
        %v6812 = vadd.f32 0.0, %v6811
        %6813 = vmatmul.f32.gmra.mxu0 %v6694
        %v6814 = vpop.f32.mrf.mxu0
        %v6815 = vadd.f32 0.0, %v6814
        %6816 = vmatmul.f32.gmra.mxu0 %v6695
        %v6817 = vpop.f32.mrf.mxu0
        %v6818 = vadd.f32 0.0, %v6817
        %6819 = vmatmul.f32.gmra.mxu0 %v6696
        %v6820 = vpop.f32.mrf.mxu0
        %v6821 = vadd.f32 0.0, %v6820
        %6822 = vmatmul.f32.gmra.mxu0 %v6697
        %v6823 = vpop.f32.mrf.mxu0
        %v6824 = vadd.f32 0.0, %v6823
        %6825 = vmatmul.f32.gmra.mxu0 %v6698
        %v6826 = vpop.f32.mrf.mxu0
        %v6827 = vadd.f32 0.0, %v6826
        %6828 = vdwg.mxu0
        %v6829 = vadd.f32 %v6635, %v6734
        %v6830 = vadd.f32 %v6636, %v6737
        %v6831 = vadd.f32 %v6637, %v6740
        %v6832 = vadd.f32 %v6638, %v6743
        %v6833 = vadd.f32 %v6639, %v6746
        %v6834 = vadd.f32 %v6640, %v6749
        %v6835 = vadd.f32 %v6641, %v6752
        %v6836 = vadd.f32 %v6642, %v6755
        %v6837 = vadd.f32 %v6643, %v6758
        %v6838 = vadd.f32 %v6644, %v6761
        %v6839 = vadd.f32 %v6645, %v6764
        %v6840 = vadd.f32 %v6646, %v6767
        %v6841 = vadd.f32 %v6647, %v6770
        %v6842 = vadd.f32 %v6648, %v6773
        %v6843 = vadd.f32 %v6649, %v6776
        %v6844 = vadd.f32 %v6650, %v6779
        %v6845 = vadd.f32 %v6651, %v6782
        %v6846 = vadd.f32 %v6652, %v6785
        %v6847 = vadd.f32 %v6653, %v6788
        %v6848 = vadd.f32 %v6654, %v6791
        %v6849 = vadd.f32 %v6655, %v6794
        %v6850 = vadd.f32 %v6656, %v6797
        %v6851 = vadd.f32 %v6657, %v6800
        %v6852 = vadd.f32 %v6658, %v6803
        %v6853 = vadd.f32 %v6659, %v6806
        %v6854 = vadd.f32 %v6660, %v6809
        %v6855 = vadd.f32 %v6661, %v6812
        %v6856 = vadd.f32 %v6662, %v6815
        %v6857 = vadd.f32 %v6663, %v6818
        %v6858 = vadd.f32 %v6664, %v6821
        %v6859 = vadd.f32 %v6665, %v6824
        %v6860 = vadd.f32 %v6666, %v6827
        %v6861 = vld [vmem:[#allocation3 + $0x11] sm:$0xff]
        %v6862 = vld [vmem:[#allocation3 + $0x19] sm:$0xff]
        %v6863 = vld [vmem:[#allocation3 + $0x21] sm:$0xff]
        %v6864 = vld [vmem:[#allocation3 + $0x29] sm:$0xff]
        %v6865 = vld [vmem:[#allocation3 + $0x31] sm:$0xff]
        %v6866 = vld [vmem:[#allocation3 + $0x39] sm:$0xff]
        %v6867 = vld [vmem:[#allocation3 + $0x41] sm:$0xff]
        %v6868 = vld [vmem:[#allocation3 + $0x49] sm:$0xff]
        %v6869 = vld [vmem:[#allocation3 + $0x51] sm:$0xff]
        %v6870 = vld [vmem:[#allocation3 + $0x59] sm:$0xff]
        %v6871 = vld [vmem:[#allocation3 + $0x61] sm:$0xff]
        %v6872 = vld [vmem:[#allocation3 + $0x69] sm:$0xff]
        %v6873 = vld [vmem:[#allocation3 + $0x71] sm:$0xff]
        %v6874 = vld [vmem:[#allocation3 + $0x79] sm:$0xff]
        %v6875 = vld [vmem:[#allocation3 + $0x81] sm:$0xff]
        %v6876 = vld [vmem:[#allocation3 + $0x89] sm:$0xff]
        %v6877 = vld [vmem:[#allocation3 + $0x91] sm:$0xff]
        %v6878 = vld [vmem:[#allocation3 + $0x99] sm:$0xff]
        %v6879 = vld [vmem:[#allocation3 + $0xa1] sm:$0xff]
        %v6880 = vld [vmem:[#allocation3 + $0xa9] sm:$0xff]
        %v6881 = vld [vmem:[#allocation3 + $0xb1] sm:$0xff]
        %v6882 = vld [vmem:[#allocation3 + $0xb9] sm:$0xff]
        %v6883 = vld [vmem:[#allocation3 + $0xc1] sm:$0xff]
        %v6884 = vld [vmem:[#allocation3 + $0xc9] sm:$0xff]
        %v6885 = vld [vmem:[#allocation3 + $0xd1] sm:$0xff]
        %v6886 = vld [vmem:[#allocation3 + $0xd9] sm:$0xff]
        %v6887 = vld [vmem:[#allocation3 + $0xe1] sm:$0xff]
        %v6888 = vld [vmem:[#allocation3 + $0xe9] sm:$0xff]
        %v6889 = vld [vmem:[#allocation3 + $0xf1] sm:$0xff]
        %v6890 = vld [vmem:[#allocation3 + $0xf9] sm:$0xff]
        %v6891 = vld [vmem:[#allocation3 + $0x101] sm:$0xff]
        %v6892 = vld [vmem:[#allocation3 + $0x109] sm:$0xff]
        %s6893 = scalar_lea.vmem [#allocation12], 256
        %v6894 = vld [vmem:[%s6893] sm:$0xff]
        %v6895 = vld [vmem:[%s6893 + $0x8] sm:$0xff]
        %v6896 = vld [vmem:[%s6893 + $0x10] sm:$0xff]
        %v6897 = vld [vmem:[%s6893 + $0x18] sm:$0xff]
        %v6898 = vld [vmem:[%s6893 + $0x20] sm:$0xff]
        %v6899 = vld [vmem:[%s6893 + $0x28] sm:$0xff]
        %v6900 = vld [vmem:[%s6893 + $0x30] sm:$0xff]
        %v6901 = vld [vmem:[%s6893 + $0x38] sm:$0xff]
        %v6902 = vld [vmem:[%s6893 + $0x40] sm:$0xff]
        %v6903 = vld [vmem:[%s6893 + $0x48] sm:$0xff]
        %v6904 = vld [vmem:[%s6893 + $0x50] sm:$0xff]
        %v6905 = vld [vmem:[%s6893 + $0x58] sm:$0xff]
        %v6906 = vld [vmem:[%s6893 + $0x60] sm:$0xff]
        %v6907 = vld [vmem:[%s6893 + $0x68] sm:$0xff]
        %v6908 = vld [vmem:[%s6893 + $0x70] sm:$0xff]
        %v6909 = vld [vmem:[%s6893 + $0x78] sm:$0xff]
        %6910 = vmatpush.msra.mxu0 %v6909
        %6911 = vmatpush.msra.mxu0 %v6908
        %6912 = vmatpush.msra.mxu0 %v6907
        %6913 = vmatpush.msra.mxu0 %v6906
        %6914 = vmatpush.msra.mxu0 %v6905
        %6915 = vmatpush.msra.mxu0 %v6904
        %6916 = vmatpush.msra.mxu0 %v6903
        %6917 = vmatpush.msra.mxu0 %v6902
        %6918 = vmatpush.msra.mxu0 %v6901
        %6919 = vmatpush.msra.mxu0 %v6900
        %6920 = vmatpush.msra.mxu0 %v6899
        %6921 = vmatpush.msra.mxu0 %v6898
        %6922 = vmatpush.msra.mxu0 %v6897
        %6923 = vmatpush.msra.mxu0 %v6896
        %6924 = vmatpush.msra.mxu0 %v6895
        %6925 = vmatpush.msra.mxu0 %v6894
        %6926 = vmatmul.f32.gmra.mxu0 %v6861
        %v6927 = vpop.f32.mrf.mxu0
        %v6928 = vadd.f32 0.0, %v6927
        %6929 = vmatmul.f32.gmra.mxu0 %v6862
        %v6930 = vpop.f32.mrf.mxu0
        %v6931 = vadd.f32 0.0, %v6930
        %6932 = vmatmul.f32.gmra.mxu0 %v6863
        %v6933 = vpop.f32.mrf.mxu0
        %v6934 = vadd.f32 0.0, %v6933
        %6935 = vmatmul.f32.gmra.mxu0 %v6864
        %v6936 = vpop.f32.mrf.mxu0
        %v6937 = vadd.f32 0.0, %v6936
        %6938 = vmatmul.f32.gmra.mxu0 %v6865
        %v6939 = vpop.f32.mrf.mxu0
        %v6940 = vadd.f32 0.0, %v6939
        %6941 = vmatmul.f32.gmra.mxu0 %v6866
        %v6942 = vpop.f32.mrf.mxu0
        %v6943 = vadd.f32 0.0, %v6942
        %6944 = vmatmul.f32.gmra.mxu0 %v6867
        %v6945 = vpop.f32.mrf.mxu0
        %v6946 = vadd.f32 0.0, %v6945
        %6947 = vmatmul.f32.gmra.mxu0 %v6868
        %v6948 = vpop.f32.mrf.mxu0
        %v6949 = vadd.f32 0.0, %v6948
        %6950 = vmatmul.f32.gmra.mxu0 %v6869
        %v6951 = vpop.f32.mrf.mxu0
        %v6952 = vadd.f32 0.0, %v6951
        %6953 = vmatmul.f32.gmra.mxu0 %v6870
        %v6954 = vpop.f32.mrf.mxu0
        %v6955 = vadd.f32 0.0, %v6954
        %6956 = vmatmul.f32.gmra.mxu0 %v6871
        %v6957 = vpop.f32.mrf.mxu0
        %v6958 = vadd.f32 0.0, %v6957
        %6959 = vmatmul.f32.gmra.mxu0 %v6872
        %v6960 = vpop.f32.mrf.mxu0
        %v6961 = vadd.f32 0.0, %v6960
        %6962 = vmatmul.f32.gmra.mxu0 %v6873
        %v6963 = vpop.f32.mrf.mxu0
        %v6964 = vadd.f32 0.0, %v6963
        %6965 = vmatmul.f32.gmra.mxu0 %v6874
        %v6966 = vpop.f32.mrf.mxu0
        %v6967 = vadd.f32 0.0, %v6966
        %6968 = vmatmul.f32.gmra.mxu0 %v6875
        %v6969 = vpop.f32.mrf.mxu0
        %v6970 = vadd.f32 0.0, %v6969
        %6971 = vmatmul.f32.gmra.mxu0 %v6876
        %v6972 = vpop.f32.mrf.mxu0
        %v6973 = vadd.f32 0.0, %v6972
        %6974 = vmatmul.f32.gmra.mxu0 %v6877
        %v6975 = vpop.f32.mrf.mxu0
        %v6976 = vadd.f32 0.0, %v6975
        %6977 = vmatmul.f32.gmra.mxu0 %v6878
        %v6978 = vpop.f32.mrf.mxu0
        %v6979 = vadd.f32 0.0, %v6978
        %6980 = vmatmul.f32.gmra.mxu0 %v6879
        %v6981 = vpop.f32.mrf.mxu0
        %v6982 = vadd.f32 0.0, %v6981
        %6983 = vmatmul.f32.gmra.mxu0 %v6880
        %v6984 = vpop.f32.mrf.mxu0
        %v6985 = vadd.f32 0.0, %v6984
        %6986 = vmatmul.f32.gmra.mxu0 %v6881
        %v6987 = vpop.f32.mrf.mxu0
        %v6988 = vadd.f32 0.0, %v6987
        %6989 = vmatmul.f32.gmra.mxu0 %v6882
        %v6990 = vpop.f32.mrf.mxu0
        %v6991 = vadd.f32 0.0, %v6990
        %6992 = vmatmul.f32.gmra.mxu0 %v6883
        %v6993 = vpop.f32.mrf.mxu0
        %v6994 = vadd.f32 0.0, %v6993
        %6995 = vmatmul.f32.gmra.mxu0 %v6884
        %v6996 = vpop.f32.mrf.mxu0
        %v6997 = vadd.f32 0.0, %v6996
        %6998 = vmatmul.f32.gmra.mxu0 %v6885
        %v6999 = vpop.f32.mrf.mxu0
        %v7000 = vadd.f32 0.0, %v6999
        %7001 = vmatmul.f32.gmra.mxu0 %v6886
        %v7002 = vpop.f32.mrf.mxu0
        %v7003 = vadd.f32 0.0, %v7002
        %7004 = vmatmul.f32.gmra.mxu0 %v6887
        %v7005 = vpop.f32.mrf.mxu0
        %v7006 = vadd.f32 0.0, %v7005
        %7007 = vmatmul.f32.gmra.mxu0 %v6888
        %v7008 = vpop.f32.mrf.mxu0
        %v7009 = vadd.f32 0.0, %v7008
        %7010 = vmatmul.f32.gmra.mxu0 %v6889
        %v7011 = vpop.f32.mrf.mxu0
        %v7012 = vadd.f32 0.0, %v7011
        %7013 = vmatmul.f32.gmra.mxu0 %v6890
        %v7014 = vpop.f32.mrf.mxu0
        %v7015 = vadd.f32 0.0, %v7014
        %7016 = vmatmul.f32.gmra.mxu0 %v6891
        %v7017 = vpop.f32.mrf.mxu0
        %v7018 = vadd.f32 0.0, %v7017
        %7019 = vmatmul.f32.gmra.mxu0 %v6892
        %v7020 = vpop.f32.mrf.mxu0
        %v7021 = vadd.f32 0.0, %v7020
        %7022 = vdwg.mxu0
        %v7023 = vsel %vm3056, %v6928, 0.0
        %v7024 = vsel %vm3057, %v6931, 0.0
        %v7025 = vsel %vm3058, %v6934, 0.0
        %v7026 = vsel %vm3059, %v6937, 0.0
        %v7027 = vsel %vm3060, %v6940, 0.0
        %v7028 = vsel %vm3061, %v6943, 0.0
        %v7029 = vsel %vm3062, %v6946, 0.0
        %v7030 = vsel %vm3063, %v6949, 0.0
        %v7031 = vsel %vm3064, %v6952, 0.0
        %v7032 = vsel %vm3065, %v6955, 0.0
        %v7033 = vsel %vm3066, %v6958, 0.0
        %v7034 = vsel %vm3067, %v6961, 0.0
        %v7035 = vsel %vm3068, %v6964, 0.0
        %v7036 = vsel %vm3069, %v6967, 0.0
        %v7037 = vsel %vm3070, %v6970, 0.0
        %v7038 = vsel %vm3071, %v6973, 0.0
        %v7039 = vsel %vm3072, %v6976, 0.0
        %v7040 = vsel %vm3073, %v6979, 0.0
        %v7041 = vsel %vm3074, %v6982, 0.0
        %v7042 = vsel %vm3075, %v6985, 0.0
        %v7043 = vsel %vm3076, %v6988, 0.0
        %v7044 = vsel %vm3077, %v6991, 0.0
        %v7045 = vsel %vm3078, %v6994, 0.0
        %v7046 = vsel %vm3079, %v6997, 0.0
        %v7047 = vsel %vm3080, %v7000, 0.0
        %v7048 = vsel %vm3081, %v7003, 0.0
        %v7049 = vsel %vm3082, %v7006, 0.0
        %v7050 = vsel %vm3083, %v7009, 0.0
        %v7051 = vsel %vm3084, %v7012, 0.0
        %v7052 = vsel %vm3085, %v7015, 0.0
        %v7053 = vsel %vm3086, %v7018, 0.0
        %v7054 = vsel %vm3087, %v7021, 0.0
        %v7055 = vadd.f32 %v6829, %v7023
        %v7056 = vadd.f32 %v6830, %v7024
        %v7057 = vadd.f32 %v6831, %v7025
        %v7058 = vadd.f32 %v6832, %v7026
        %v7059 = vadd.f32 %v6833, %v7027
        %v7060 = vadd.f32 %v6834, %v7028
        %v7061 = vadd.f32 %v6835, %v7029
        %v7062 = vadd.f32 %v6836, %v7030
        %v7063 = vadd.f32 %v6837, %v7031
        %v7064 = vadd.f32 %v6838, %v7032
        %v7065 = vadd.f32 %v6839, %v7033
        %v7066 = vadd.f32 %v6840, %v7034
        %v7067 = vadd.f32 %v6841, %v7035
        %v7068 = vadd.f32 %v6842, %v7036
        %v7069 = vadd.f32 %v6843, %v7037
        %v7070 = vadd.f32 %v6844, %v7038
        %v7071 = vadd.f32 %v6845, %v7039
        %v7072 = vadd.f32 %v6846, %v7040
        %v7073 = vadd.f32 %v6847, %v7041
        %v7074 = vadd.f32 %v6848, %v7042
        %v7075 = vadd.f32 %v6849, %v7043
        %v7076 = vadd.f32 %v6850, %v7044
        %v7077 = vadd.f32 %v6851, %v7045
        %v7078 = vadd.f32 %v6852, %v7046
        %v7079 = vadd.f32 %v6853, %v7047
        %v7080 = vadd.f32 %v6854, %v7048
        %v7081 = vadd.f32 %v6855, %v7049
        %v7082 = vadd.f32 %v6856, %v7050
        %v7083 = vadd.f32 %v6857, %v7051
        %v7084 = vadd.f32 %v6858, %v7052
        %v7085 = vadd.f32 %v6859, %v7053
        %v7086 = vadd.f32 %v6860, %v7054
        %v7087 = vld [vmem:[#allocation3 + $0x1f] sm:$0xff]
        %v7088 = vld [vmem:[#allocation3 + $0x27] sm:$0xff]
        %v7089 = vld [vmem:[#allocation3 + $0x2f] sm:$0xff]
        %v7090 = vld [vmem:[#allocation3 + $0x37] sm:$0xff]
        %v7091 = vld [vmem:[#allocation3 + $0x3f] sm:$0xff]
        %v7092 = vld [vmem:[#allocation3 + $0x47] sm:$0xff]
        %v7093 = vld [vmem:[#allocation3 + $0x4f] sm:$0xff]
        %v7094 = vld [vmem:[#allocation3 + $0x57] sm:$0xff]
        %v7095 = vld [vmem:[#allocation3 + $0x5f] sm:$0xff]
        %v7096 = vld [vmem:[#allocation3 + $0x67] sm:$0xff]
        %v7097 = vld [vmem:[#allocation3 + $0x6f] sm:$0xff]
        %v7098 = vld [vmem:[#allocation3 + $0x77] sm:$0xff]
        %v7099 = vld [vmem:[#allocation3 + $0x7f] sm:$0xff]
        %v7100 = vld [vmem:[#allocation3 + $0x87] sm:$0xff]
        %v7101 = vld [vmem:[#allocation3 + $0x8f] sm:$0xff]
        %v7102 = vld [vmem:[#allocation3 + $0x97] sm:$0xff]
        %v7103 = vld [vmem:[#allocation3 + $0x9f] sm:$0xff]
        %v7104 = vld [vmem:[#allocation3 + $0xa7] sm:$0xff]
        %v7105 = vld [vmem:[#allocation3 + $0xaf] sm:$0xff]
        %v7106 = vld [vmem:[#allocation3 + $0xb7] sm:$0xff]
        %v7107 = vld [vmem:[#allocation3 + $0xbf] sm:$0xff]
        %v7108 = vld [vmem:[#allocation3 + $0xc7] sm:$0xff]
        %v7109 = vld [vmem:[#allocation3 + $0xcf] sm:$0xff]
        %v7110 = vld [vmem:[#allocation3 + $0xd7] sm:$0xff]
        %v7111 = vld [vmem:[#allocation3 + $0xdf] sm:$0xff]
        %v7112 = vld [vmem:[#allocation3 + $0xe7] sm:$0xff]
        %v7113 = vld [vmem:[#allocation3 + $0xef] sm:$0xff]
        %v7114 = vld [vmem:[#allocation3 + $0xf7] sm:$0xff]
        %v7115 = vld [vmem:[#allocation3 + $0xff] sm:$0xff]
        %v7116 = vld [vmem:[#allocation3 + $0x107] sm:$0xff]
        %v7117 = vld [vmem:[#allocation3 + $0x10f] sm:$0xff]
        %v7118 = vld [vmem:[#allocation3 + $0x117] sm:$0xff]
        %s7119 = scalar_lea.vmem [#allocation12], 384
        %v7120 = vld [vmem:[%s7119] sm:$0xff]
        %v7121 = vld [vmem:[%s7119 + $0x8] sm:$0xff]
        %v7122 = vld [vmem:[%s7119 + $0x10] sm:$0xff]
        %v7123 = vld [vmem:[%s7119 + $0x18] sm:$0xff]
        %v7124 = vld [vmem:[%s7119 + $0x20] sm:$0xff]
        %v7125 = vld [vmem:[%s7119 + $0x28] sm:$0xff]
        %v7126 = vld [vmem:[%s7119 + $0x30] sm:$0xff]
        %v7127 = vld [vmem:[%s7119 + $0x38] sm:$0xff]
        %v7128 = vld [vmem:[%s7119 + $0x40] sm:$0xff]
        %v7129 = vld [vmem:[%s7119 + $0x48] sm:$0xff]
        %v7130 = vld [vmem:[%s7119 + $0x50] sm:$0xff]
        %v7131 = vld [vmem:[%s7119 + $0x58] sm:$0xff]
        %v7132 = vld [vmem:[%s7119 + $0x60] sm:$0xff]
        %v7133 = vld [vmem:[%s7119 + $0x68] sm:$0xff]
        %v7134 = vld [vmem:[%s7119 + $0x70] sm:$0xff]
        %v7135 = vld [vmem:[%s7119 + $0x78] sm:$0xff]
        %7136 = vmatpush.msra.mxu0 %v7135
        %7137 = vmatpush.msra.mxu0 %v7134
        %7138 = vmatpush.msra.mxu0 %v7133
        %7139 = vmatpush.msra.mxu0 %v7132
        %7140 = vmatpush.msra.mxu0 %v7131
        %7141 = vmatpush.msra.mxu0 %v7130
        %7142 = vmatpush.msra.mxu0 %v7129
        %7143 = vmatpush.msra.mxu0 %v7128
        %7144 = vmatpush.msra.mxu0 %v7127
        %7145 = vmatpush.msra.mxu0 %v7126
        %7146 = vmatpush.msra.mxu0 %v7125
        %7147 = vmatpush.msra.mxu0 %v7124
        %7148 = vmatpush.msra.mxu0 %v7123
        %7149 = vmatpush.msra.mxu0 %v7122
        %7150 = vmatpush.msra.mxu0 %v7121
        %7151 = vmatpush.msra.mxu0 %v7120
        %7152 = vmatmul.f32.gmra.mxu0 %v7087
        %v7153 = vpop.f32.mrf.mxu0
        %v7154 = vadd.f32 0.0, %v7153
        %7155 = vmatmul.f32.gmra.mxu0 %v7088
        %v7156 = vpop.f32.mrf.mxu0
        %v7157 = vadd.f32 0.0, %v7156
        %7158 = vmatmul.f32.gmra.mxu0 %v7089
        %v7159 = vpop.f32.mrf.mxu0
        %v7160 = vadd.f32 0.0, %v7159
        %7161 = vmatmul.f32.gmra.mxu0 %v7090
        %v7162 = vpop.f32.mrf.mxu0
        %v7163 = vadd.f32 0.0, %v7162
        %7164 = vmatmul.f32.gmra.mxu0 %v7091
        %v7165 = vpop.f32.mrf.mxu0
        %v7166 = vadd.f32 0.0, %v7165
        %7167 = vmatmul.f32.gmra.mxu0 %v7092
        %v7168 = vpop.f32.mrf.mxu0
        %v7169 = vadd.f32 0.0, %v7168
        %7170 = vmatmul.f32.gmra.mxu0 %v7093
        %v7171 = vpop.f32.mrf.mxu0
        %v7172 = vadd.f32 0.0, %v7171
        %7173 = vmatmul.f32.gmra.mxu0 %v7094
        %v7174 = vpop.f32.mrf.mxu0
        %v7175 = vadd.f32 0.0, %v7174
        %7176 = vmatmul.f32.gmra.mxu0 %v7095
        %v7177 = vpop.f32.mrf.mxu0
        %v7178 = vadd.f32 0.0, %v7177
        %7179 = vmatmul.f32.gmra.mxu0 %v7096
        %v7180 = vpop.f32.mrf.mxu0
        %v7181 = vadd.f32 0.0, %v7180
        %7182 = vmatmul.f32.gmra.mxu0 %v7097
        %v7183 = vpop.f32.mrf.mxu0
        %v7184 = vadd.f32 0.0, %v7183
        %7185 = vmatmul.f32.gmra.mxu0 %v7098
        %v7186 = vpop.f32.mrf.mxu0
        %v7187 = vadd.f32 0.0, %v7186
        %7188 = vmatmul.f32.gmra.mxu0 %v7099
        %v7189 = vpop.f32.mrf.mxu0
        %v7190 = vadd.f32 0.0, %v7189
        %7191 = vmatmul.f32.gmra.mxu0 %v7100
        %v7192 = vpop.f32.mrf.mxu0
        %v7193 = vadd.f32 0.0, %v7192
        %7194 = vmatmul.f32.gmra.mxu0 %v7101
        %v7195 = vpop.f32.mrf.mxu0
        %v7196 = vadd.f32 0.0, %v7195
        %7197 = vmatmul.f32.gmra.mxu0 %v7102
        %v7198 = vpop.f32.mrf.mxu0
        %v7199 = vadd.f32 0.0, %v7198
        %7200 = vmatmul.f32.gmra.mxu0 %v7103
        %v7201 = vpop.f32.mrf.mxu0
        %v7202 = vadd.f32 0.0, %v7201
        %7203 = vmatmul.f32.gmra.mxu0 %v7104
        %v7204 = vpop.f32.mrf.mxu0
        %v7205 = vadd.f32 0.0, %v7204
        %7206 = vmatmul.f32.gmra.mxu0 %v7105
        %v7207 = vpop.f32.mrf.mxu0
        %v7208 = vadd.f32 0.0, %v7207
        %7209 = vmatmul.f32.gmra.mxu0 %v7106
        %v7210 = vpop.f32.mrf.mxu0
        %v7211 = vadd.f32 0.0, %v7210
        %7212 = vmatmul.f32.gmra.mxu0 %v7107
        %v7213 = vpop.f32.mrf.mxu0
        %v7214 = vadd.f32 0.0, %v7213
        %7215 = vmatmul.f32.gmra.mxu0 %v7108
        %v7216 = vpop.f32.mrf.mxu0
        %v7217 = vadd.f32 0.0, %v7216
        %7218 = vmatmul.f32.gmra.mxu0 %v7109
        %v7219 = vpop.f32.mrf.mxu0
        %v7220 = vadd.f32 0.0, %v7219
        %7221 = vmatmul.f32.gmra.mxu0 %v7110
        %v7222 = vpop.f32.mrf.mxu0
        %v7223 = vadd.f32 0.0, %v7222
        %7224 = vmatmul.f32.gmra.mxu0 %v7111
        %v7225 = vpop.f32.mrf.mxu0
        %v7226 = vadd.f32 0.0, %v7225
        %7227 = vmatmul.f32.gmra.mxu0 %v7112
        %v7228 = vpop.f32.mrf.mxu0
        %v7229 = vadd.f32 0.0, %v7228
        %7230 = vmatmul.f32.gmra.mxu0 %v7113
        %v7231 = vpop.f32.mrf.mxu0
        %v7232 = vadd.f32 0.0, %v7231
        %7233 = vmatmul.f32.gmra.mxu0 %v7114
        %v7234 = vpop.f32.mrf.mxu0
        %v7235 = vadd.f32 0.0, %v7234
        %7236 = vmatmul.f32.gmra.mxu0 %v7115
        %v7237 = vpop.f32.mrf.mxu0
        %v7238 = vadd.f32 0.0, %v7237
        %7239 = vmatmul.f32.gmra.mxu0 %v7116
        %v7240 = vpop.f32.mrf.mxu0
        %v7241 = vadd.f32 0.0, %v7240
        %7242 = vmatmul.f32.gmra.mxu0 %v7117
        %v7243 = vpop.f32.mrf.mxu0
        %v7244 = vadd.f32 0.0, %v7243
        %7245 = vmatmul.f32.gmra.mxu0 %v7118
        %v7246 = vpop.f32.mrf.mxu0
        %v7247 = vadd.f32 0.0, %v7246
        %7248 = vdwg.mxu0
        %v7249 = vsel %vm2049, %v7154, 0.0
        %v7250 = vsel %vm2050, %v7157, 0.0
        %v7251 = vsel %vm2051, %v7160, 0.0
        %v7252 = vsel %vm2052, %v7163, 0.0
        %v7253 = vsel %vm2053, %v7166, 0.0
        %v7254 = vsel %vm2054, %v7169, 0.0
        %v7255 = vsel %vm2055, %v7172, 0.0
        %v7256 = vsel %vm2056, %v7175, 0.0
        %v7257 = vsel %vm2057, %v7178, 0.0
        %v7258 = vsel %vm2058, %v7181, 0.0
        %v7259 = vsel %vm2059, %v7184, 0.0
        %v7260 = vsel %vm2060, %v7187, 0.0
        %v7261 = vsel %vm2061, %v7190, 0.0
        %v7262 = vsel %vm2062, %v7193, 0.0
        %v7263 = vsel %vm2063, %v7196, 0.0
        %v7264 = vsel %vm2064, %v7199, 0.0
        %v7265 = vsel %vm2065, %v7202, 0.0
        %v7266 = vsel %vm2066, %v7205, 0.0
        %v7267 = vsel %vm2067, %v7208, 0.0
        %v7268 = vsel %vm2068, %v7211, 0.0
        %v7269 = vsel %vm2069, %v7214, 0.0
        %v7270 = vsel %vm2070, %v7217, 0.0
        %v7271 = vsel %vm2071, %v7220, 0.0
        %v7272 = vsel %vm2072, %v7223, 0.0
        %v7273 = vsel %vm2073, %v7226, 0.0
        %v7274 = vsel %vm2074, %v7229, 0.0
        %v7275 = vsel %vm2075, %v7232, 0.0
        %v7276 = vsel %vm2076, %v7235, 0.0
        %v7277 = vsel %vm2077, %v7238, 0.0
        %v7278 = vsel %vm2078, %v7241, 0.0
        %v7279 = vsel %vm2079, %v7244, 0.0
        %v7280 = vsel %vm2080, %v7247, 0.0
        %v7281 = vadd.f32 %v7055, %v7249
        %v7282 = vadd.f32 %v7056, %v7250
        %v7283 = vadd.f32 %v7057, %v7251
        %v7284 = vadd.f32 %v7058, %v7252
        %v7285 = vadd.f32 %v7059, %v7253
        %v7286 = vadd.f32 %v7060, %v7254
        %v7287 = vadd.f32 %v7061, %v7255
        %v7288 = vadd.f32 %v7062, %v7256
        %v7289 = vadd.f32 %v7063, %v7257
        %v7290 = vadd.f32 %v7064, %v7258
        %v7291 = vadd.f32 %v7065, %v7259
        %v7292 = vadd.f32 %v7066, %v7260
        %v7293 = vadd.f32 %v7067, %v7261
        %v7294 = vadd.f32 %v7068, %v7262
        %v7295 = vadd.f32 %v7069, %v7263
        %v7296 = vadd.f32 %v7070, %v7264
        %v7297 = vadd.f32 %v7071, %v7265
        %v7298 = vadd.f32 %v7072, %v7266
        %v7299 = vadd.f32 %v7073, %v7267
        %v7300 = vadd.f32 %v7074, %v7268
        %v7301 = vadd.f32 %v7075, %v7269
        %v7302 = vadd.f32 %v7076, %v7270
        %v7303 = vadd.f32 %v7077, %v7271
        %v7304 = vadd.f32 %v7078, %v7272
        %v7305 = vadd.f32 %v7079, %v7273
        %v7306 = vadd.f32 %v7080, %v7274
        %v7307 = vadd.f32 %v7081, %v7275
        %v7308 = vadd.f32 %v7082, %v7276
        %v7309 = vadd.f32 %v7083, %v7277
        %v7310 = vadd.f32 %v7084, %v7278
        %v7311 = vadd.f32 %v7085, %v7279
        %v7312 = vadd.f32 %v7086, %v7280
        %v7313 = vld [vmem:[#allocation3 + $0x20] sm:$0xff]
        %v7314 = vld [vmem:[#allocation3 + $0x28] sm:$0xff]
        %v7315 = vld [vmem:[#allocation3 + $0x30] sm:$0xff]
        %v7316 = vld [vmem:[#allocation3 + $0x38] sm:$0xff]
        %v7317 = vld [vmem:[#allocation3 + $0x40] sm:$0xff]
        %v7318 = vld [vmem:[#allocation3 + $0x48] sm:$0xff]
        %v7319 = vld [vmem:[#allocation3 + $0x50] sm:$0xff]
        %v7320 = vld [vmem:[#allocation3 + $0x58] sm:$0xff]
        %v7321 = vld [vmem:[#allocation3 + $0x60] sm:$0xff]
        %v7322 = vld [vmem:[#allocation3 + $0x68] sm:$0xff]
        %v7323 = vld [vmem:[#allocation3 + $0x70] sm:$0xff]
        %v7324 = vld [vmem:[#allocation3 + $0x78] sm:$0xff]
        %v7325 = vld [vmem:[#allocation3 + $0x80] sm:$0xff]
        %v7326 = vld [vmem:[#allocation3 + $0x88] sm:$0xff]
        %v7327 = vld [vmem:[#allocation3 + $0x90] sm:$0xff]
        %v7328 = vld [vmem:[#allocation3 + $0x98] sm:$0xff]
        %v7329 = vld [vmem:[#allocation3 + $0xa0] sm:$0xff]
        %v7330 = vld [vmem:[#allocation3 + $0xa8] sm:$0xff]
        %v7331 = vld [vmem:[#allocation3 + $0xb0] sm:$0xff]
        %v7332 = vld [vmem:[#allocation3 + $0xb8] sm:$0xff]
        %v7333 = vld [vmem:[#allocation3 + $0xc0] sm:$0xff]
        %v7334 = vld [vmem:[#allocation3 + $0xc8] sm:$0xff]
        %v7335 = vld [vmem:[#allocation3 + $0xd0] sm:$0xff]
        %v7336 = vld [vmem:[#allocation3 + $0xd8] sm:$0xff]
        %v7337 = vld [vmem:[#allocation3 + $0xe0] sm:$0xff]
        %v7338 = vld [vmem:[#allocation3 + $0xe8] sm:$0xff]
        %v7339 = vld [vmem:[#allocation3 + $0xf0] sm:$0xff]
        %v7340 = vld [vmem:[#allocation3 + $0xf8] sm:$0xff]
        %v7341 = vld [vmem:[#allocation3 + $0x100] sm:$0xff]
        %v7342 = vld [vmem:[#allocation3 + $0x108] sm:$0xff]
        %v7343 = vld [vmem:[#allocation3 + $0x110] sm:$0xff]
        %v7344 = vld [vmem:[#allocation3 + $0x118] sm:$0xff]
        %s7345 = scalar_lea.vmem [#allocation12], 512
        %v7346 = vld [vmem:[%s7345] sm:$0xff]
        %v7347 = vld [vmem:[%s7345 + $0x8] sm:$0xff]
        %v7348 = vld [vmem:[%s7345 + $0x10] sm:$0xff]
        %v7349 = vld [vmem:[%s7345 + $0x18] sm:$0xff]
        %v7350 = vld [vmem:[%s7345 + $0x20] sm:$0xff]
        %v7351 = vld [vmem:[%s7345 + $0x28] sm:$0xff]
        %v7352 = vld [vmem:[%s7345 + $0x30] sm:$0xff]
        %v7353 = vld [vmem:[%s7345 + $0x38] sm:$0xff]
        %v7354 = vld [vmem:[%s7345 + $0x40] sm:$0xff]
        %v7355 = vld [vmem:[%s7345 + $0x48] sm:$0xff]
        %v7356 = vld [vmem:[%s7345 + $0x50] sm:$0xff]
        %v7357 = vld [vmem:[%s7345 + $0x58] sm:$0xff]
        %v7358 = vld [vmem:[%s7345 + $0x60] sm:$0xff]
        %v7359 = vld [vmem:[%s7345 + $0x68] sm:$0xff]
        %v7360 = vld [vmem:[%s7345 + $0x70] sm:$0xff]
        %v7361 = vld [vmem:[%s7345 + $0x78] sm:$0xff]
        %7362 = vmatpush.msra.mxu0 %v7361
        %7363 = vmatpush.msra.mxu0 %v7360
        %7364 = vmatpush.msra.mxu0 %v7359
        %7365 = vmatpush.msra.mxu0 %v7358
        %7366 = vmatpush.msra.mxu0 %v7357
        %7367 = vmatpush.msra.mxu0 %v7356
        %7368 = vmatpush.msra.mxu0 %v7355
        %7369 = vmatpush.msra.mxu0 %v7354
        %7370 = vmatpush.msra.mxu0 %v7353
        %7371 = vmatpush.msra.mxu0 %v7352
        %7372 = vmatpush.msra.mxu0 %v7351
        %7373 = vmatpush.msra.mxu0 %v7350
        %7374 = vmatpush.msra.mxu0 %v7349
        %7375 = vmatpush.msra.mxu0 %v7348
        %7376 = vmatpush.msra.mxu0 %v7347
        %7377 = vmatpush.msra.mxu0 %v7346
        %7378 = vmatmul.f32.gmra.mxu0 %v7313
        %v7379 = vpop.f32.mrf.mxu0
        %v7380 = vadd.f32 0.0, %v7379
        %7381 = vmatmul.f32.gmra.mxu0 %v7314
        %v7382 = vpop.f32.mrf.mxu0
        %v7383 = vadd.f32 0.0, %v7382
        %7384 = vmatmul.f32.gmra.mxu0 %v7315
        %v7385 = vpop.f32.mrf.mxu0
        %v7386 = vadd.f32 0.0, %v7385
        %7387 = vmatmul.f32.gmra.mxu0 %v7316
        %v7388 = vpop.f32.mrf.mxu0
        %v7389 = vadd.f32 0.0, %v7388
        %7390 = vmatmul.f32.gmra.mxu0 %v7317
        %v7391 = vpop.f32.mrf.mxu0
        %v7392 = vadd.f32 0.0, %v7391
        %7393 = vmatmul.f32.gmra.mxu0 %v7318
        %v7394 = vpop.f32.mrf.mxu0
        %v7395 = vadd.f32 0.0, %v7394
        %7396 = vmatmul.f32.gmra.mxu0 %v7319
        %v7397 = vpop.f32.mrf.mxu0
        %v7398 = vadd.f32 0.0, %v7397
        %7399 = vmatmul.f32.gmra.mxu0 %v7320
        %v7400 = vpop.f32.mrf.mxu0
        %v7401 = vadd.f32 0.0, %v7400
        %7402 = vmatmul.f32.gmra.mxu0 %v7321
        %v7403 = vpop.f32.mrf.mxu0
        %v7404 = vadd.f32 0.0, %v7403
        %7405 = vmatmul.f32.gmra.mxu0 %v7322
        %v7406 = vpop.f32.mrf.mxu0
        %v7407 = vadd.f32 0.0, %v7406
        %7408 = vmatmul.f32.gmra.mxu0 %v7323
        %v7409 = vpop.f32.mrf.mxu0
        %v7410 = vadd.f32 0.0, %v7409
        %7411 = vmatmul.f32.gmra.mxu0 %v7324
        %v7412 = vpop.f32.mrf.mxu0
        %v7413 = vadd.f32 0.0, %v7412
        %7414 = vmatmul.f32.gmra.mxu0 %v7325
        %v7415 = vpop.f32.mrf.mxu0
        %v7416 = vadd.f32 0.0, %v7415
        %7417 = vmatmul.f32.gmra.mxu0 %v7326
        %v7418 = vpop.f32.mrf.mxu0
        %v7419 = vadd.f32 0.0, %v7418
        %7420 = vmatmul.f32.gmra.mxu0 %v7327
        %v7421 = vpop.f32.mrf.mxu0
        %v7422 = vadd.f32 0.0, %v7421
        %7423 = vmatmul.f32.gmra.mxu0 %v7328
        %v7424 = vpop.f32.mrf.mxu0
        %v7425 = vadd.f32 0.0, %v7424
        %7426 = vmatmul.f32.gmra.mxu0 %v7329
        %v7427 = vpop.f32.mrf.mxu0
        %v7428 = vadd.f32 0.0, %v7427
        %7429 = vmatmul.f32.gmra.mxu0 %v7330
        %v7430 = vpop.f32.mrf.mxu0
        %v7431 = vadd.f32 0.0, %v7430
        %7432 = vmatmul.f32.gmra.mxu0 %v7331
        %v7433 = vpop.f32.mrf.mxu0
        %v7434 = vadd.f32 0.0, %v7433
        %7435 = vmatmul.f32.gmra.mxu0 %v7332
        %v7436 = vpop.f32.mrf.mxu0
        %v7437 = vadd.f32 0.0, %v7436
        %7438 = vmatmul.f32.gmra.mxu0 %v7333
        %v7439 = vpop.f32.mrf.mxu0
        %v7440 = vadd.f32 0.0, %v7439
        %7441 = vmatmul.f32.gmra.mxu0 %v7334
        %v7442 = vpop.f32.mrf.mxu0
        %v7443 = vadd.f32 0.0, %v7442
        %7444 = vmatmul.f32.gmra.mxu0 %v7335
        %v7445 = vpop.f32.mrf.mxu0
        %v7446 = vadd.f32 0.0, %v7445
        %7447 = vmatmul.f32.gmra.mxu0 %v7336
        %v7448 = vpop.f32.mrf.mxu0
        %v7449 = vadd.f32 0.0, %v7448
        %7450 = vmatmul.f32.gmra.mxu0 %v7337
        %v7451 = vpop.f32.mrf.mxu0
        %v7452 = vadd.f32 0.0, %v7451
        %7453 = vmatmul.f32.gmra.mxu0 %v7338
        %v7454 = vpop.f32.mrf.mxu0
        %v7455 = vadd.f32 0.0, %v7454
        %7456 = vmatmul.f32.gmra.mxu0 %v7339
        %v7457 = vpop.f32.mrf.mxu0
        %v7458 = vadd.f32 0.0, %v7457
        %7459 = vmatmul.f32.gmra.mxu0 %v7340
        %v7460 = vpop.f32.mrf.mxu0
        %v7461 = vadd.f32 0.0, %v7460
        %7462 = vmatmul.f32.gmra.mxu0 %v7341
        %v7463 = vpop.f32.mrf.mxu0
        %v7464 = vadd.f32 0.0, %v7463
        %7465 = vmatmul.f32.gmra.mxu0 %v7342
        %v7466 = vpop.f32.mrf.mxu0
        %v7467 = vadd.f32 0.0, %v7466
        %7468 = vmatmul.f32.gmra.mxu0 %v7343
        %v7469 = vpop.f32.mrf.mxu0
        %v7470 = vadd.f32 0.0, %v7469
        %7471 = vmatmul.f32.gmra.mxu0 %v7344
        %v7472 = vpop.f32.mrf.mxu0
        %v7473 = vadd.f32 0.0, %v7472
        %7474 = vdwg.mxu0
        %v7475 = vadd.f32 %v7281, %v7380
        %v7476 = vadd.f32 %v7282, %v7383
        %v7477 = vadd.f32 %v7283, %v7386
        %v7478 = vadd.f32 %v7284, %v7389
        %v7479 = vadd.f32 %v7285, %v7392
        %v7480 = vadd.f32 %v7286, %v7395
        %v7481 = vadd.f32 %v7287, %v7398
        %v7482 = vadd.f32 %v7288, %v7401
        %v7483 = vadd.f32 %v7289, %v7404
        %v7484 = vadd.f32 %v7290, %v7407
        %v7485 = vadd.f32 %v7291, %v7410
        %v7486 = vadd.f32 %v7292, %v7413
        %v7487 = vadd.f32 %v7293, %v7416
        %v7488 = vadd.f32 %v7294, %v7419
        %v7489 = vadd.f32 %v7295, %v7422
        %v7490 = vadd.f32 %v7296, %v7425
        %v7491 = vadd.f32 %v7297, %v7428
        %v7492 = vadd.f32 %v7298, %v7431
        %v7493 = vadd.f32 %v7299, %v7434
        %v7494 = vadd.f32 %v7300, %v7437
        %v7495 = vadd.f32 %v7301, %v7440
        %v7496 = vadd.f32 %v7302, %v7443
        %v7497 = vadd.f32 %v7303, %v7446
        %v7498 = vadd.f32 %v7304, %v7449
        %v7499 = vadd.f32 %v7305, %v7452
        %v7500 = vadd.f32 %v7306, %v7455
        %v7501 = vadd.f32 %v7307, %v7458
        %v7502 = vadd.f32 %v7308, %v7461
        %v7503 = vadd.f32 %v7309, %v7464
        %v7504 = vadd.f32 %v7310, %v7467
        %v7505 = vadd.f32 %v7311, %v7470
        %v7506 = vadd.f32 %v7312, %v7473
        %v7507 = vld [vmem:[#allocation3 + $0x21] sm:$0xff]
        %v7508 = vld [vmem:[#allocation3 + $0x29] sm:$0xff]
        %v7509 = vld [vmem:[#allocation3 + $0x31] sm:$0xff]
        %v7510 = vld [vmem:[#allocation3 + $0x39] sm:$0xff]
        %v7511 = vld [vmem:[#allocation3 + $0x41] sm:$0xff]
        %v7512 = vld [vmem:[#allocation3 + $0x49] sm:$0xff]
        %v7513 = vld [vmem:[#allocation3 + $0x51] sm:$0xff]
        %v7514 = vld [vmem:[#allocation3 + $0x59] sm:$0xff]
        %v7515 = vld [vmem:[#allocation3 + $0x61] sm:$0xff]
        %v7516 = vld [vmem:[#allocation3 + $0x69] sm:$0xff]
        %v7517 = vld [vmem:[#allocation3 + $0x71] sm:$0xff]
        %v7518 = vld [vmem:[#allocation3 + $0x79] sm:$0xff]
        %v7519 = vld [vmem:[#allocation3 + $0x81] sm:$0xff]
        %v7520 = vld [vmem:[#allocation3 + $0x89] sm:$0xff]
        %v7521 = vld [vmem:[#allocation3 + $0x91] sm:$0xff]
        %v7522 = vld [vmem:[#allocation3 + $0x99] sm:$0xff]
        %v7523 = vld [vmem:[#allocation3 + $0xa1] sm:$0xff]
        %v7524 = vld [vmem:[#allocation3 + $0xa9] sm:$0xff]
        %v7525 = vld [vmem:[#allocation3 + $0xb1] sm:$0xff]
        %v7526 = vld [vmem:[#allocation3 + $0xb9] sm:$0xff]
        %v7527 = vld [vmem:[#allocation3 + $0xc1] sm:$0xff]
        %v7528 = vld [vmem:[#allocation3 + $0xc9] sm:$0xff]
        %v7529 = vld [vmem:[#allocation3 + $0xd1] sm:$0xff]
        %v7530 = vld [vmem:[#allocation3 + $0xd9] sm:$0xff]
        %v7531 = vld [vmem:[#allocation3 + $0xe1] sm:$0xff]
        %v7532 = vld [vmem:[#allocation3 + $0xe9] sm:$0xff]
        %v7533 = vld [vmem:[#allocation3 + $0xf1] sm:$0xff]
        %v7534 = vld [vmem:[#allocation3 + $0xf9] sm:$0xff]
        %v7535 = vld [vmem:[#allocation3 + $0x101] sm:$0xff]
        %v7536 = vld [vmem:[#allocation3 + $0x109] sm:$0xff]
        %v7537 = vld [vmem:[#allocation3 + $0x111] sm:$0xff]
        %v7538 = vld [vmem:[#allocation3 + $0x119] sm:$0xff]
        %s7539 = scalar_lea.vmem [#allocation12], 640
        %v7540 = vld [vmem:[%s7539] sm:$0xff]
        %v7541 = vld [vmem:[%s7539 + $0x8] sm:$0xff]
        %v7542 = vld [vmem:[%s7539 + $0x10] sm:$0xff]
        %v7543 = vld [vmem:[%s7539 + $0x18] sm:$0xff]
        %v7544 = vld [vmem:[%s7539 + $0x20] sm:$0xff]
        %v7545 = vld [vmem:[%s7539 + $0x28] sm:$0xff]
        %v7546 = vld [vmem:[%s7539 + $0x30] sm:$0xff]
        %v7547 = vld [vmem:[%s7539 + $0x38] sm:$0xff]
        %v7548 = vld [vmem:[%s7539 + $0x40] sm:$0xff]
        %v7549 = vld [vmem:[%s7539 + $0x48] sm:$0xff]
        %v7550 = vld [vmem:[%s7539 + $0x50] sm:$0xff]
        %v7551 = vld [vmem:[%s7539 + $0x58] sm:$0xff]
        %v7552 = vld [vmem:[%s7539 + $0x60] sm:$0xff]
        %v7553 = vld [vmem:[%s7539 + $0x68] sm:$0xff]
        %v7554 = vld [vmem:[%s7539 + $0x70] sm:$0xff]
        %v7555 = vld [vmem:[%s7539 + $0x78] sm:$0xff]
        %7556 = vmatpush.msra.mxu0 %v7555
        %7557 = vmatpush.msra.mxu0 %v7554
        %7558 = vmatpush.msra.mxu0 %v7553
        %7559 = vmatpush.msra.mxu0 %v7552
        %7560 = vmatpush.msra.mxu0 %v7551
        %7561 = vmatpush.msra.mxu0 %v7550
        %7562 = vmatpush.msra.mxu0 %v7549
        %7563 = vmatpush.msra.mxu0 %v7548
        %7564 = vmatpush.msra.mxu0 %v7547
        %7565 = vmatpush.msra.mxu0 %v7546
        %7566 = vmatpush.msra.mxu0 %v7545
        %7567 = vmatpush.msra.mxu0 %v7544
        %7568 = vmatpush.msra.mxu0 %v7543
        %7569 = vmatpush.msra.mxu0 %v7542
        %7570 = vmatpush.msra.mxu0 %v7541
        %7571 = vmatpush.msra.mxu0 %v7540
        %7572 = vmatmul.f32.gmra.mxu0 %v7507
        %v7573 = vpop.f32.mrf.mxu0
        %v7574 = vadd.f32 0.0, %v7573
        %7575 = vmatmul.f32.gmra.mxu0 %v7508
        %v7576 = vpop.f32.mrf.mxu0
        %v7577 = vadd.f32 0.0, %v7576
        %7578 = vmatmul.f32.gmra.mxu0 %v7509
        %v7579 = vpop.f32.mrf.mxu0
        %v7580 = vadd.f32 0.0, %v7579
        %7581 = vmatmul.f32.gmra.mxu0 %v7510
        %v7582 = vpop.f32.mrf.mxu0
        %v7583 = vadd.f32 0.0, %v7582
        %7584 = vmatmul.f32.gmra.mxu0 %v7511
        %v7585 = vpop.f32.mrf.mxu0
        %v7586 = vadd.f32 0.0, %v7585
        %7587 = vmatmul.f32.gmra.mxu0 %v7512
        %v7588 = vpop.f32.mrf.mxu0
        %v7589 = vadd.f32 0.0, %v7588
        %7590 = vmatmul.f32.gmra.mxu0 %v7513
        %v7591 = vpop.f32.mrf.mxu0
        %v7592 = vadd.f32 0.0, %v7591
        %7593 = vmatmul.f32.gmra.mxu0 %v7514
        %v7594 = vpop.f32.mrf.mxu0
        %v7595 = vadd.f32 0.0, %v7594
        %7596 = vmatmul.f32.gmra.mxu0 %v7515
        %v7597 = vpop.f32.mrf.mxu0
        %v7598 = vadd.f32 0.0, %v7597
        %7599 = vmatmul.f32.gmra.mxu0 %v7516
        %v7600 = vpop.f32.mrf.mxu0
        %v7601 = vadd.f32 0.0, %v7600
        %7602 = vmatmul.f32.gmra.mxu0 %v7517
        %v7603 = vpop.f32.mrf.mxu0
        %v7604 = vadd.f32 0.0, %v7603
        %7605 = vmatmul.f32.gmra.mxu0 %v7518
        %v7606 = vpop.f32.mrf.mxu0
        %v7607 = vadd.f32 0.0, %v7606
        %7608 = vmatmul.f32.gmra.mxu0 %v7519
        %v7609 = vpop.f32.mrf.mxu0
        %v7610 = vadd.f32 0.0, %v7609
        %7611 = vmatmul.f32.gmra.mxu0 %v7520
        %v7612 = vpop.f32.mrf.mxu0
        %v7613 = vadd.f32 0.0, %v7612
        %7614 = vmatmul.f32.gmra.mxu0 %v7521
        %v7615 = vpop.f32.mrf.mxu0
        %v7616 = vadd.f32 0.0, %v7615
        %7617 = vmatmul.f32.gmra.mxu0 %v7522
        %v7618 = vpop.f32.mrf.mxu0
        %v7619 = vadd.f32 0.0, %v7618
        %7620 = vmatmul.f32.gmra.mxu0 %v7523
        %v7621 = vpop.f32.mrf.mxu0
        %v7622 = vadd.f32 0.0, %v7621
        %7623 = vmatmul.f32.gmra.mxu0 %v7524
        %v7624 = vpop.f32.mrf.mxu0
        %v7625 = vadd.f32 0.0, %v7624
        %7626 = vmatmul.f32.gmra.mxu0 %v7525
        %v7627 = vpop.f32.mrf.mxu0
        %v7628 = vadd.f32 0.0, %v7627
        %7629 = vmatmul.f32.gmra.mxu0 %v7526
        %v7630 = vpop.f32.mrf.mxu0
        %v7631 = vadd.f32 0.0, %v7630
        %7632 = vmatmul.f32.gmra.mxu0 %v7527
        %v7633 = vpop.f32.mrf.mxu0
        %v7634 = vadd.f32 0.0, %v7633
        %7635 = vmatmul.f32.gmra.mxu0 %v7528
        %v7636 = vpop.f32.mrf.mxu0
        %v7637 = vadd.f32 0.0, %v7636
        %7638 = vmatmul.f32.gmra.mxu0 %v7529
        %v7639 = vpop.f32.mrf.mxu0
        %v7640 = vadd.f32 0.0, %v7639
        %7641 = vmatmul.f32.gmra.mxu0 %v7530
        %v7642 = vpop.f32.mrf.mxu0
        %v7643 = vadd.f32 0.0, %v7642
        %7644 = vmatmul.f32.gmra.mxu0 %v7531
        %v7645 = vpop.f32.mrf.mxu0
        %v7646 = vadd.f32 0.0, %v7645
        %7647 = vmatmul.f32.gmra.mxu0 %v7532
        %v7648 = vpop.f32.mrf.mxu0
        %v7649 = vadd.f32 0.0, %v7648
        %7650 = vmatmul.f32.gmra.mxu0 %v7533
        %v7651 = vpop.f32.mrf.mxu0
        %v7652 = vadd.f32 0.0, %v7651
        %7653 = vmatmul.f32.gmra.mxu0 %v7534
        %v7654 = vpop.f32.mrf.mxu0
        %v7655 = vadd.f32 0.0, %v7654
        %7656 = vmatmul.f32.gmra.mxu0 %v7535
        %v7657 = vpop.f32.mrf.mxu0
        %v7658 = vadd.f32 0.0, %v7657
        %7659 = vmatmul.f32.gmra.mxu0 %v7536
        %v7660 = vpop.f32.mrf.mxu0
        %v7661 = vadd.f32 0.0, %v7660
        %7662 = vmatmul.f32.gmra.mxu0 %v7537
        %v7663 = vpop.f32.mrf.mxu0
        %v7664 = vadd.f32 0.0, %v7663
        %7665 = vmatmul.f32.gmra.mxu0 %v7538
        %v7666 = vpop.f32.mrf.mxu0
        %v7667 = vadd.f32 0.0, %v7666
        %7668 = vdwg.mxu0
        %v7669 = vsel %vm3056, %v7574, 0.0
        %v7670 = vsel %vm3057, %v7577, 0.0
        %v7671 = vsel %vm3058, %v7580, 0.0
        %v7672 = vsel %vm3059, %v7583, 0.0
        %v7673 = vsel %vm3060, %v7586, 0.0
        %v7674 = vsel %vm3061, %v7589, 0.0
        %v7675 = vsel %vm3062, %v7592, 0.0
        %v7676 = vsel %vm3063, %v7595, 0.0
        %v7677 = vsel %vm3064, %v7598, 0.0
        %v7678 = vsel %vm3065, %v7601, 0.0
        %v7679 = vsel %vm3066, %v7604, 0.0
        %v7680 = vsel %vm3067, %v7607, 0.0
        %v7681 = vsel %vm3068, %v7610, 0.0
        %v7682 = vsel %vm3069, %v7613, 0.0
        %v7683 = vsel %vm3070, %v7616, 0.0
        %v7684 = vsel %vm3071, %v7619, 0.0
        %v7685 = vsel %vm3072, %v7622, 0.0
        %v7686 = vsel %vm3073, %v7625, 0.0
        %v7687 = vsel %vm3074, %v7628, 0.0
        %v7688 = vsel %vm3075, %v7631, 0.0
        %v7689 = vsel %vm3076, %v7634, 0.0
        %v7690 = vsel %vm3077, %v7637, 0.0
        %v7691 = vsel %vm3078, %v7640, 0.0
        %v7692 = vsel %vm3079, %v7643, 0.0
        %v7693 = vsel %vm3080, %v7646, 0.0
        %v7694 = vsel %vm3081, %v7649, 0.0
        %v7695 = vsel %vm3082, %v7652, 0.0
        %v7696 = vsel %vm3083, %v7655, 0.0
        %v7697 = vsel %vm3084, %v7658, 0.0
        %v7698 = vsel %vm3085, %v7661, 0.0
        %v7699 = vsel %vm3086, %v7664, 0.0
        %v7700 = vsel %vm3087, %v7667, 0.0
        %v7701 = vadd.f32 %v7475, %v7669
        %v7702 = vadd.f32 %v7476, %v7670
        %v7703 = vadd.f32 %v7477, %v7671
        %v7704 = vadd.f32 %v7478, %v7672
        %v7705 = vadd.f32 %v7479, %v7673
        %v7706 = vadd.f32 %v7480, %v7674
        %v7707 = vadd.f32 %v7481, %v7675
        %v7708 = vadd.f32 %v7482, %v7676
        %v7709 = vadd.f32 %v7483, %v7677
        %v7710 = vadd.f32 %v7484, %v7678
        %v7711 = vadd.f32 %v7485, %v7679
        %v7712 = vadd.f32 %v7486, %v7680
        %v7713 = vadd.f32 %v7487, %v7681
        %v7714 = vadd.f32 %v7488, %v7682
        %v7715 = vadd.f32 %v7489, %v7683
        %v7716 = vadd.f32 %v7490, %v7684
        %v7717 = vadd.f32 %v7491, %v7685
        %v7718 = vadd.f32 %v7492, %v7686
        %v7719 = vadd.f32 %v7493, %v7687
        %v7720 = vadd.f32 %v7494, %v7688
        %v7721 = vadd.f32 %v7495, %v7689
        %v7722 = vadd.f32 %v7496, %v7690
        %v7723 = vadd.f32 %v7497, %v7691
        %v7724 = vadd.f32 %v7498, %v7692
        %v7725 = vadd.f32 %v7499, %v7693
        %v7726 = vadd.f32 %v7500, %v7694
        %v7727 = vadd.f32 %v7501, %v7695
        %v7728 = vadd.f32 %v7502, %v7696
        %v7729 = vadd.f32 %v7503, %v7697
        %v7730 = vadd.f32 %v7504, %v7698
        %v7731 = vadd.f32 %v7505, %v7699
        %v7732 = vadd.f32 %v7506, %v7700
        %v7733 = vld [vmem:[#allocation3 + $0x2f] sm:$0xff]
        %v7734 = vld [vmem:[#allocation3 + $0x37] sm:$0xff]
        %v7735 = vld [vmem:[#allocation3 + $0x3f] sm:$0xff]
        %v7736 = vld [vmem:[#allocation3 + $0x47] sm:$0xff]
        %v7737 = vld [vmem:[#allocation3 + $0x4f] sm:$0xff]
        %v7738 = vld [vmem:[#allocation3 + $0x57] sm:$0xff]
        %v7739 = vld [vmem:[#allocation3 + $0x5f] sm:$0xff]
        %v7740 = vld [vmem:[#allocation3 + $0x67] sm:$0xff]
        %v7741 = vld [vmem:[#allocation3 + $0x6f] sm:$0xff]
        %v7742 = vld [vmem:[#allocation3 + $0x77] sm:$0xff]
        %v7743 = vld [vmem:[#allocation3 + $0x7f] sm:$0xff]
        %v7744 = vld [vmem:[#allocation3 + $0x87] sm:$0xff]
        %v7745 = vld [vmem:[#allocation3 + $0x8f] sm:$0xff]
        %v7746 = vld [vmem:[#allocation3 + $0x97] sm:$0xff]
        %v7747 = vld [vmem:[#allocation3 + $0x9f] sm:$0xff]
        %v7748 = vld [vmem:[#allocation3 + $0xa7] sm:$0xff]
        %v7749 = vld [vmem:[#allocation3 + $0xaf] sm:$0xff]
        %v7750 = vld [vmem:[#allocation3 + $0xb7] sm:$0xff]
        %v7751 = vld [vmem:[#allocation3 + $0xbf] sm:$0xff]
        %v7752 = vld [vmem:[#allocation3 + $0xc7] sm:$0xff]
        %v7753 = vld [vmem:[#allocation3 + $0xcf] sm:$0xff]
        %v7754 = vld [vmem:[#allocation3 + $0xd7] sm:$0xff]
        %v7755 = vld [vmem:[#allocation3 + $0xdf] sm:$0xff]
        %v7756 = vld [vmem:[#allocation3 + $0xe7] sm:$0xff]
        %v7757 = vld [vmem:[#allocation3 + $0xef] sm:$0xff]
        %v7758 = vld [vmem:[#allocation3 + $0xf7] sm:$0xff]
        %v7759 = vld [vmem:[#allocation3 + $0xff] sm:$0xff]
        %v7760 = vld [vmem:[#allocation3 + $0x107] sm:$0xff]
        %v7761 = vld [vmem:[#allocation3 + $0x10f] sm:$0xff]
        %v7762 = vld [vmem:[#allocation3 + $0x117] sm:$0xff]
        %v7763 = vld [vmem:[#allocation3 + $0x11f] sm:$0xff]
        %v7764 = vld [vmem:[#allocation3 + $0x127] sm:$0xff]
        %s7765 = scalar_lea.vmem [#allocation12], 768
        %v7766 = vld [vmem:[%s7765] sm:$0xff]
        %v7767 = vld [vmem:[%s7765 + $0x8] sm:$0xff]
        %v7768 = vld [vmem:[%s7765 + $0x10] sm:$0xff]
        %v7769 = vld [vmem:[%s7765 + $0x18] sm:$0xff]
        %v7770 = vld [vmem:[%s7765 + $0x20] sm:$0xff]
        %v7771 = vld [vmem:[%s7765 + $0x28] sm:$0xff]
        %v7772 = vld [vmem:[%s7765 + $0x30] sm:$0xff]
        %v7773 = vld [vmem:[%s7765 + $0x38] sm:$0xff]
        %v7774 = vld [vmem:[%s7765 + $0x40] sm:$0xff]
        %v7775 = vld [vmem:[%s7765 + $0x48] sm:$0xff]
        %v7776 = vld [vmem:[%s7765 + $0x50] sm:$0xff]
        %v7777 = vld [vmem:[%s7765 + $0x58] sm:$0xff]
        %v7778 = vld [vmem:[%s7765 + $0x60] sm:$0xff]
        %v7779 = vld [vmem:[%s7765 + $0x68] sm:$0xff]
        %v7780 = vld [vmem:[%s7765 + $0x70] sm:$0xff]
        %v7781 = vld [vmem:[%s7765 + $0x78] sm:$0xff]
        %7782 = vmatpush.msra.mxu0 %v7781
        %7783 = vmatpush.msra.mxu0 %v7780
        %7784 = vmatpush.msra.mxu0 %v7779
        %7785 = vmatpush.msra.mxu0 %v7778
        %7786 = vmatpush.msra.mxu0 %v7777
        %7787 = vmatpush.msra.mxu0 %v7776
        %7788 = vmatpush.msra.mxu0 %v7775
        %7789 = vmatpush.msra.mxu0 %v7774
        %7790 = vmatpush.msra.mxu0 %v7773
        %7791 = vmatpush.msra.mxu0 %v7772
        %7792 = vmatpush.msra.mxu0 %v7771
        %7793 = vmatpush.msra.mxu0 %v7770
        %7794 = vmatpush.msra.mxu0 %v7769
        %7795 = vmatpush.msra.mxu0 %v7768
        %7796 = vmatpush.msra.mxu0 %v7767
        %7797 = vmatpush.msra.mxu0 %v7766
        %7798 = vmatmul.f32.gmra.mxu0 %v7733
        %v7799 = vpop.f32.mrf.mxu0
        %v7800 = vadd.f32 0.0, %v7799
        %7801 = vmatmul.f32.gmra.mxu0 %v7734
        %v7802 = vpop.f32.mrf.mxu0
        %v7803 = vadd.f32 0.0, %v7802
        %7804 = vmatmul.f32.gmra.mxu0 %v7735
        %v7805 = vpop.f32.mrf.mxu0
        %v7806 = vadd.f32 0.0, %v7805
        %7807 = vmatmul.f32.gmra.mxu0 %v7736
        %v7808 = vpop.f32.mrf.mxu0
        %v7809 = vadd.f32 0.0, %v7808
        %7810 = vmatmul.f32.gmra.mxu0 %v7737
        %v7811 = vpop.f32.mrf.mxu0
        %v7812 = vadd.f32 0.0, %v7811
        %7813 = vmatmul.f32.gmra.mxu0 %v7738
        %v7814 = vpop.f32.mrf.mxu0
        %v7815 = vadd.f32 0.0, %v7814
        %7816 = vmatmul.f32.gmra.mxu0 %v7739
        %v7817 = vpop.f32.mrf.mxu0
        %v7818 = vadd.f32 0.0, %v7817
        %7819 = vmatmul.f32.gmra.mxu0 %v7740
        %v7820 = vpop.f32.mrf.mxu0
        %v7821 = vadd.f32 0.0, %v7820
        %7822 = vmatmul.f32.gmra.mxu0 %v7741
        %v7823 = vpop.f32.mrf.mxu0
        %v7824 = vadd.f32 0.0, %v7823
        %7825 = vmatmul.f32.gmra.mxu0 %v7742
        %v7826 = vpop.f32.mrf.mxu0
        %v7827 = vadd.f32 0.0, %v7826
        %7828 = vmatmul.f32.gmra.mxu0 %v7743
        %v7829 = vpop.f32.mrf.mxu0
        %v7830 = vadd.f32 0.0, %v7829
        %7831 = vmatmul.f32.gmra.mxu0 %v7744
        %v7832 = vpop.f32.mrf.mxu0
        %v7833 = vadd.f32 0.0, %v7832
        %7834 = vmatmul.f32.gmra.mxu0 %v7745
        %v7835 = vpop.f32.mrf.mxu0
        %v7836 = vadd.f32 0.0, %v7835
        %7837 = vmatmul.f32.gmra.mxu0 %v7746
        %v7838 = vpop.f32.mrf.mxu0
        %v7839 = vadd.f32 0.0, %v7838
        %7840 = vmatmul.f32.gmra.mxu0 %v7747
        %v7841 = vpop.f32.mrf.mxu0
        %v7842 = vadd.f32 0.0, %v7841
        %7843 = vmatmul.f32.gmra.mxu0 %v7748
        %v7844 = vpop.f32.mrf.mxu0
        %v7845 = vadd.f32 0.0, %v7844
        %7846 = vmatmul.f32.gmra.mxu0 %v7749
        %v7847 = vpop.f32.mrf.mxu0
        %v7848 = vadd.f32 0.0, %v7847
        %7849 = vmatmul.f32.gmra.mxu0 %v7750
        %v7850 = vpop.f32.mrf.mxu0
        %v7851 = vadd.f32 0.0, %v7850
        %7852 = vmatmul.f32.gmra.mxu0 %v7751
        %v7853 = vpop.f32.mrf.mxu0
        %v7854 = vadd.f32 0.0, %v7853
        %7855 = vmatmul.f32.gmra.mxu0 %v7752
        %v7856 = vpop.f32.mrf.mxu0
        %v7857 = vadd.f32 0.0, %v7856
        %7858 = vmatmul.f32.gmra.mxu0 %v7753
        %v7859 = vpop.f32.mrf.mxu0
        %v7860 = vadd.f32 0.0, %v7859
        %7861 = vmatmul.f32.gmra.mxu0 %v7754
        %v7862 = vpop.f32.mrf.mxu0
        %v7863 = vadd.f32 0.0, %v7862
        %7864 = vmatmul.f32.gmra.mxu0 %v7755
        %v7865 = vpop.f32.mrf.mxu0
        %v7866 = vadd.f32 0.0, %v7865
        %7867 = vmatmul.f32.gmra.mxu0 %v7756
        %v7868 = vpop.f32.mrf.mxu0
        %v7869 = vadd.f32 0.0, %v7868
        %7870 = vmatmul.f32.gmra.mxu0 %v7757
        %v7871 = vpop.f32.mrf.mxu0
        %v7872 = vadd.f32 0.0, %v7871
        %7873 = vmatmul.f32.gmra.mxu0 %v7758
        %v7874 = vpop.f32.mrf.mxu0
        %v7875 = vadd.f32 0.0, %v7874
        %7876 = vmatmul.f32.gmra.mxu0 %v7759
        %v7877 = vpop.f32.mrf.mxu0
        %v7878 = vadd.f32 0.0, %v7877
        %7879 = vmatmul.f32.gmra.mxu0 %v7760
        %v7880 = vpop.f32.mrf.mxu0
        %v7881 = vadd.f32 0.0, %v7880
        %7882 = vmatmul.f32.gmra.mxu0 %v7761
        %v7883 = vpop.f32.mrf.mxu0
        %v7884 = vadd.f32 0.0, %v7883
        %7885 = vmatmul.f32.gmra.mxu0 %v7762
        %v7886 = vpop.f32.mrf.mxu0
        %v7887 = vadd.f32 0.0, %v7886
        %7888 = vmatmul.f32.gmra.mxu0 %v7763
        %v7889 = vpop.f32.mrf.mxu0
        %v7890 = vadd.f32 0.0, %v7889
        %7891 = vmatmul.f32.gmra.mxu0 %v7764
        %v7892 = vpop.f32.mrf.mxu0
        %v7893 = vadd.f32 0.0, %v7892
        %7894 = vdwg.mxu0
        %v7895 = vsel %vm2049, %v7800, 0.0
        %v7896 = vsel %vm2050, %v7803, 0.0
        %v7897 = vsel %vm2051, %v7806, 0.0
        %v7898 = vsel %vm2052, %v7809, 0.0
        %v7899 = vsel %vm2053, %v7812, 0.0
        %v7900 = vsel %vm2054, %v7815, 0.0
        %v7901 = vsel %vm2055, %v7818, 0.0
        %v7902 = vsel %vm2056, %v7821, 0.0
        %v7903 = vsel %vm2057, %v7824, 0.0
        %v7904 = vsel %vm2058, %v7827, 0.0
        %v7905 = vsel %vm2059, %v7830, 0.0
        %v7906 = vsel %vm2060, %v7833, 0.0
        %v7907 = vsel %vm2061, %v7836, 0.0
        %v7908 = vsel %vm2062, %v7839, 0.0
        %v7909 = vsel %vm2063, %v7842, 0.0
        %v7910 = vsel %vm2064, %v7845, 0.0
        %v7911 = vsel %vm2065, %v7848, 0.0
        %v7912 = vsel %vm2066, %v7851, 0.0
        %v7913 = vsel %vm2067, %v7854, 0.0
        %v7914 = vsel %vm2068, %v7857, 0.0
        %v7915 = vsel %vm2069, %v7860, 0.0
        %v7916 = vsel %vm2070, %v7863, 0.0
        %v7917 = vsel %vm2071, %v7866, 0.0
        %v7918 = vsel %vm2072, %v7869, 0.0
        %v7919 = vsel %vm2073, %v7872, 0.0
        %v7920 = vsel %vm2074, %v7875, 0.0
        %v7921 = vsel %vm2075, %v7878, 0.0
        %v7922 = vsel %vm2076, %v7881, 0.0
        %v7923 = vsel %vm2077, %v7884, 0.0
        %v7924 = vsel %vm2078, %v7887, 0.0
        %v7925 = vsel %vm2079, %v7890, 0.0
        %v7926 = vsel %vm2080, %v7893, 0.0
        %v7927 = vadd.f32 %v7701, %v7895
        %v7928 = vadd.f32 %v7702, %v7896
        %v7929 = vadd.f32 %v7703, %v7897
        %v7930 = vadd.f32 %v7704, %v7898
        %v7931 = vadd.f32 %v7705, %v7899
        %v7932 = vadd.f32 %v7706, %v7900
        %v7933 = vadd.f32 %v7707, %v7901
        %v7934 = vadd.f32 %v7708, %v7902
        %v7935 = vadd.f32 %v7709, %v7903
        %v7936 = vadd.f32 %v7710, %v7904
        %v7937 = vadd.f32 %v7711, %v7905
        %v7938 = vadd.f32 %v7712, %v7906
        %v7939 = vadd.f32 %v7713, %v7907
        %v7940 = vadd.f32 %v7714, %v7908
        %v7941 = vadd.f32 %v7715, %v7909
        %v7942 = vadd.f32 %v7716, %v7910
        %v7943 = vadd.f32 %v7717, %v7911
        %v7944 = vadd.f32 %v7718, %v7912
        %v7945 = vadd.f32 %v7719, %v7913
        %v7946 = vadd.f32 %v7720, %v7914
        %v7947 = vadd.f32 %v7721, %v7915
        %v7948 = vadd.f32 %v7722, %v7916
        %v7949 = vadd.f32 %v7723, %v7917
        %v7950 = vadd.f32 %v7724, %v7918
        %v7951 = vadd.f32 %v7725, %v7919
        %v7952 = vadd.f32 %v7726, %v7920
        %v7953 = vadd.f32 %v7727, %v7921
        %v7954 = vadd.f32 %v7728, %v7922
        %v7955 = vadd.f32 %v7729, %v7923
        %v7956 = vadd.f32 %v7730, %v7924
        %v7957 = vadd.f32 %v7731, %v7925
        %v7958 = vadd.f32 %v7732, %v7926
        %v7959 = vld [vmem:[#allocation3 + $0x30] sm:$0xff]
        %v7960 = vld [vmem:[#allocation3 + $0x38] sm:$0xff]
        %v7961 = vld [vmem:[#allocation3 + $0x40] sm:$0xff]
        %v7962 = vld [vmem:[#allocation3 + $0x48] sm:$0xff]
        %v7963 = vld [vmem:[#allocation3 + $0x50] sm:$0xff]
        %v7964 = vld [vmem:[#allocation3 + $0x58] sm:$0xff]
        %v7965 = vld [vmem:[#allocation3 + $0x60] sm:$0xff]
        %v7966 = vld [vmem:[#allocation3 + $0x68] sm:$0xff]
        %v7967 = vld [vmem:[#allocation3 + $0x70] sm:$0xff]
        %v7968 = vld [vmem:[#allocation3 + $0x78] sm:$0xff]
        %v7969 = vld [vmem:[#allocation3 + $0x80] sm:$0xff]
        %v7970 = vld [vmem:[#allocation3 + $0x88] sm:$0xff]
        %v7971 = vld [vmem:[#allocation3 + $0x90] sm:$0xff]
        %v7972 = vld [vmem:[#allocation3 + $0x98] sm:$0xff]
        %v7973 = vld [vmem:[#allocation3 + $0xa0] sm:$0xff]
        %v7974 = vld [vmem:[#allocation3 + $0xa8] sm:$0xff]
        %v7975 = vld [vmem:[#allocation3 + $0xb0] sm:$0xff]
        %v7976 = vld [vmem:[#allocation3 + $0xb8] sm:$0xff]
        %v7977 = vld [vmem:[#allocation3 + $0xc0] sm:$0xff]
        %v7978 = vld [vmem:[#allocation3 + $0xc8] sm:$0xff]
        %v7979 = vld [vmem:[#allocation3 + $0xd0] sm:$0xff]
        %v7980 = vld [vmem:[#allocation3 + $0xd8] sm:$0xff]
        %v7981 = vld [vmem:[#allocation3 + $0xe0] sm:$0xff]
        %v7982 = vld [vmem:[#allocation3 + $0xe8] sm:$0xff]
        %v7983 = vld [vmem:[#allocation3 + $0xf0] sm:$0xff]
        %v7984 = vld [vmem:[#allocation3 + $0xf8] sm:$0xff]
        %v7985 = vld [vmem:[#allocation3 + $0x100] sm:$0xff]
        %v7986 = vld [vmem:[#allocation3 + $0x108] sm:$0xff]
        %v7987 = vld [vmem:[#allocation3 + $0x110] sm:$0xff]
        %v7988 = vld [vmem:[#allocation3 + $0x118] sm:$0xff]
        %v7989 = vld [vmem:[#allocation3 + $0x120] sm:$0xff]
        %v7990 = vld [vmem:[#allocation3 + $0x128] sm:$0xff]
        %s7991 = scalar_lea.vmem [#allocation12], 896
        %v7992 = vld [vmem:[%s7991] sm:$0xff]
        %v7993 = vld [vmem:[%s7991 + $0x8] sm:$0xff]
        %v7994 = vld [vmem:[%s7991 + $0x10] sm:$0xff]
        %v7995 = vld [vmem:[%s7991 + $0x18] sm:$0xff]
        %v7996 = vld [vmem:[%s7991 + $0x20] sm:$0xff]
        %v7997 = vld [vmem:[%s7991 + $0x28] sm:$0xff]
        %v7998 = vld [vmem:[%s7991 + $0x30] sm:$0xff]
        %v7999 = vld [vmem:[%s7991 + $0x38] sm:$0xff]
        %v8000 = vld [vmem:[%s7991 + $0x40] sm:$0xff]
        %v8001 = vld [vmem:[%s7991 + $0x48] sm:$0xff]
        %v8002 = vld [vmem:[%s7991 + $0x50] sm:$0xff]
        %v8003 = vld [vmem:[%s7991 + $0x58] sm:$0xff]
        %v8004 = vld [vmem:[%s7991 + $0x60] sm:$0xff]
        %v8005 = vld [vmem:[%s7991 + $0x68] sm:$0xff]
        %v8006 = vld [vmem:[%s7991 + $0x70] sm:$0xff]
        %v8007 = vld [vmem:[%s7991 + $0x78] sm:$0xff]
        %8008 = vmatpush.msra.mxu0 %v8007
        %8009 = vmatpush.msra.mxu0 %v8006
        %8010 = vmatpush.msra.mxu0 %v8005
        %8011 = vmatpush.msra.mxu0 %v8004
        %8012 = vmatpush.msra.mxu0 %v8003
        %8013 = vmatpush.msra.mxu0 %v8002
        %8014 = vmatpush.msra.mxu0 %v8001
        %8015 = vmatpush.msra.mxu0 %v8000
        %8016 = vmatpush.msra.mxu0 %v7999
        %8017 = vmatpush.msra.mxu0 %v7998
        %8018 = vmatpush.msra.mxu0 %v7997
        %8019 = vmatpush.msra.mxu0 %v7996
        %8020 = vmatpush.msra.mxu0 %v7995
        %8021 = vmatpush.msra.mxu0 %v7994
        %8022 = vmatpush.msra.mxu0 %v7993
        %8023 = vmatpush.msra.mxu0 %v7992
        %8024 = vmatmul.f32.gmra.mxu0 %v7959
        %v8025 = vpop.f32.mrf.mxu0
        %v8026 = vadd.f32 0.0, %v8025
        %8027 = vmatmul.f32.gmra.mxu0 %v7960
        %v8028 = vpop.f32.mrf.mxu0
        %v8029 = vadd.f32 0.0, %v8028
        %8030 = vmatmul.f32.gmra.mxu0 %v7961
        %v8031 = vpop.f32.mrf.mxu0
        %v8032 = vadd.f32 0.0, %v8031
        %8033 = vmatmul.f32.gmra.mxu0 %v7962
        %v8034 = vpop.f32.mrf.mxu0
        %v8035 = vadd.f32 0.0, %v8034
        %8036 = vmatmul.f32.gmra.mxu0 %v7963
        %v8037 = vpop.f32.mrf.mxu0
        %v8038 = vadd.f32 0.0, %v8037
        %8039 = vmatmul.f32.gmra.mxu0 %v7964
        %v8040 = vpop.f32.mrf.mxu0
        %v8041 = vadd.f32 0.0, %v8040
        %8042 = vmatmul.f32.gmra.mxu0 %v7965
        %v8043 = vpop.f32.mrf.mxu0
        %v8044 = vadd.f32 0.0, %v8043
        %8045 = vmatmul.f32.gmra.mxu0 %v7966
        %v8046 = vpop.f32.mrf.mxu0
        %v8047 = vadd.f32 0.0, %v8046
        %8048 = vmatmul.f32.gmra.mxu0 %v7967
        %v8049 = vpop.f32.mrf.mxu0
        %v8050 = vadd.f32 0.0, %v8049
        %8051 = vmatmul.f32.gmra.mxu0 %v7968
        %v8052 = vpop.f32.mrf.mxu0
        %v8053 = vadd.f32 0.0, %v8052
        %8054 = vmatmul.f32.gmra.mxu0 %v7969
        %v8055 = vpop.f32.mrf.mxu0
        %v8056 = vadd.f32 0.0, %v8055
        %8057 = vmatmul.f32.gmra.mxu0 %v7970
        %v8058 = vpop.f32.mrf.mxu0
        %v8059 = vadd.f32 0.0, %v8058
        %8060 = vmatmul.f32.gmra.mxu0 %v7971
        %v8061 = vpop.f32.mrf.mxu0
        %v8062 = vadd.f32 0.0, %v8061
        %8063 = vmatmul.f32.gmra.mxu0 %v7972
        %v8064 = vpop.f32.mrf.mxu0
        %v8065 = vadd.f32 0.0, %v8064
        %8066 = vmatmul.f32.gmra.mxu0 %v7973
        %v8067 = vpop.f32.mrf.mxu0
        %v8068 = vadd.f32 0.0, %v8067
        %8069 = vmatmul.f32.gmra.mxu0 %v7974
        %v8070 = vpop.f32.mrf.mxu0
        %v8071 = vadd.f32 0.0, %v8070
        %8072 = vmatmul.f32.gmra.mxu0 %v7975
        %v8073 = vpop.f32.mrf.mxu0
        %v8074 = vadd.f32 0.0, %v8073
        %8075 = vmatmul.f32.gmra.mxu0 %v7976
        %v8076 = vpop.f32.mrf.mxu0
        %v8077 = vadd.f32 0.0, %v8076
        %8078 = vmatmul.f32.gmra.mxu0 %v7977
        %v8079 = vpop.f32.mrf.mxu0
        %v8080 = vadd.f32 0.0, %v8079
        %8081 = vmatmul.f32.gmra.mxu0 %v7978
        %v8082 = vpop.f32.mrf.mxu0
        %v8083 = vadd.f32 0.0, %v8082
        %8084 = vmatmul.f32.gmra.mxu0 %v7979
        %v8085 = vpop.f32.mrf.mxu0
        %v8086 = vadd.f32 0.0, %v8085
        %8087 = vmatmul.f32.gmra.mxu0 %v7980
        %v8088 = vpop.f32.mrf.mxu0
        %v8089 = vadd.f32 0.0, %v8088
        %8090 = vmatmul.f32.gmra.mxu0 %v7981
        %v8091 = vpop.f32.mrf.mxu0
        %v8092 = vadd.f32 0.0, %v8091
        %8093 = vmatmul.f32.gmra.mxu0 %v7982
        %v8094 = vpop.f32.mrf.mxu0
        %v8095 = vadd.f32 0.0, %v8094
        %8096 = vmatmul.f32.gmra.mxu0 %v7983
        %v8097 = vpop.f32.mrf.mxu0
        %v8098 = vadd.f32 0.0, %v8097
        %8099 = vmatmul.f32.gmra.mxu0 %v7984
        %v8100 = vpop.f32.mrf.mxu0
        %v8101 = vadd.f32 0.0, %v8100
        %8102 = vmatmul.f32.gmra.mxu0 %v7985
        %v8103 = vpop.f32.mrf.mxu0
        %v8104 = vadd.f32 0.0, %v8103
        %8105 = vmatmul.f32.gmra.mxu0 %v7986
        %v8106 = vpop.f32.mrf.mxu0
        %v8107 = vadd.f32 0.0, %v8106
        %8108 = vmatmul.f32.gmra.mxu0 %v7987
        %v8109 = vpop.f32.mrf.mxu0
        %v8110 = vadd.f32 0.0, %v8109
        %8111 = vmatmul.f32.gmra.mxu0 %v7988
        %v8112 = vpop.f32.mrf.mxu0
        %v8113 = vadd.f32 0.0, %v8112
        %8114 = vmatmul.f32.gmra.mxu0 %v7989
        %v8115 = vpop.f32.mrf.mxu0
        %v8116 = vadd.f32 0.0, %v8115
        %8117 = vmatmul.f32.gmra.mxu0 %v7990
        %v8118 = vpop.f32.mrf.mxu0
        %v8119 = vadd.f32 0.0, %v8118
        %8120 = vdwg.mxu0
        %v8121 = vadd.f32 %v7927, %v8026
        %v8122 = vadd.f32 %v7928, %v8029
        %v8123 = vadd.f32 %v7929, %v8032
        %v8124 = vadd.f32 %v7930, %v8035
        %v8125 = vadd.f32 %v7931, %v8038
        %v8126 = vadd.f32 %v7932, %v8041
        %v8127 = vadd.f32 %v7933, %v8044
        %v8128 = vadd.f32 %v7934, %v8047
        %v8129 = vadd.f32 %v7935, %v8050
        %v8130 = vadd.f32 %v7936, %v8053
        %v8131 = vadd.f32 %v7937, %v8056
        %v8132 = vadd.f32 %v7938, %v8059
        %v8133 = vadd.f32 %v7939, %v8062
        %v8134 = vadd.f32 %v7940, %v8065
        %v8135 = vadd.f32 %v7941, %v8068
        %v8136 = vadd.f32 %v7942, %v8071
        %v8137 = vadd.f32 %v7943, %v8074
        %v8138 = vadd.f32 %v7944, %v8077
        %v8139 = vadd.f32 %v7945, %v8080
        %v8140 = vadd.f32 %v7946, %v8083
        %v8141 = vadd.f32 %v7947, %v8086
        %v8142 = vadd.f32 %v7948, %v8089
        %v8143 = vadd.f32 %v7949, %v8092
        %v8144 = vadd.f32 %v7950, %v8095
        %v8145 = vadd.f32 %v7951, %v8098
        %v8146 = vadd.f32 %v7952, %v8101
        %v8147 = vadd.f32 %v7953, %v8104
        %v8148 = vadd.f32 %v7954, %v8107
        %v8149 = vadd.f32 %v7955, %v8110
        %v8150 = vadd.f32 %v7956, %v8113
        %v8151 = vadd.f32 %v7957, %v8116
        %v8152 = vadd.f32 %v7958, %v8119
        %v8153 = vld [vmem:[#allocation3 + $0x31] sm:$0xff]
        %v8154 = vld [vmem:[#allocation3 + $0x39] sm:$0xff]
        %v8155 = vld [vmem:[#allocation3 + $0x41] sm:$0xff]
        %v8156 = vld [vmem:[#allocation3 + $0x49] sm:$0xff]
        %v8157 = vld [vmem:[#allocation3 + $0x51] sm:$0xff]
        %v8158 = vld [vmem:[#allocation3 + $0x59] sm:$0xff]
        %v8159 = vld [vmem:[#allocation3 + $0x61] sm:$0xff]
        %v8160 = vld [vmem:[#allocation3 + $0x69] sm:$0xff]
        %v8161 = vld [vmem:[#allocation3 + $0x71] sm:$0xff]
        %v8162 = vld [vmem:[#allocation3 + $0x79] sm:$0xff]
        %v8163 = vld [vmem:[#allocation3 + $0x81] sm:$0xff]
        %v8164 = vld [vmem:[#allocation3 + $0x89] sm:$0xff]
        %v8165 = vld [vmem:[#allocation3 + $0x91] sm:$0xff]
        %v8166 = vld [vmem:[#allocation3 + $0x99] sm:$0xff]
        %v8167 = vld [vmem:[#allocation3 + $0xa1] sm:$0xff]
        %v8168 = vld [vmem:[#allocation3 + $0xa9] sm:$0xff]
        %v8169 = vld [vmem:[#allocation3 + $0xb1] sm:$0xff]
        %v8170 = vld [vmem:[#allocation3 + $0xb9] sm:$0xff]
        %v8171 = vld [vmem:[#allocation3 + $0xc1] sm:$0xff]
        %v8172 = vld [vmem:[#allocation3 + $0xc9] sm:$0xff]
        %v8173 = vld [vmem:[#allocation3 + $0xd1] sm:$0xff]
        %v8174 = vld [vmem:[#allocation3 + $0xd9] sm:$0xff]
        %v8175 = vld [vmem:[#allocation3 + $0xe1] sm:$0xff]
        %v8176 = vld [vmem:[#allocation3 + $0xe9] sm:$0xff]
        %v8177 = vld [vmem:[#allocation3 + $0xf1] sm:$0xff]
        %v8178 = vld [vmem:[#allocation3 + $0xf9] sm:$0xff]
        %v8179 = vld [vmem:[#allocation3 + $0x101] sm:$0xff]
        %v8180 = vld [vmem:[#allocation3 + $0x109] sm:$0xff]
        %v8181 = vld [vmem:[#allocation3 + $0x111] sm:$0xff]
        %v8182 = vld [vmem:[#allocation3 + $0x119] sm:$0xff]
        %v8183 = vld [vmem:[#allocation3 + $0x121] sm:$0xff]
        %v8184 = vld [vmem:[#allocation3 + $0x129] sm:$0xff]
        %s8185 = scalar_lea.vmem [#allocation12], 1024
        %v8186 = vld [vmem:[%s8185] sm:$0xff]
        %v8187 = vld [vmem:[%s8185 + $0x8] sm:$0xff]
        %v8188 = vld [vmem:[%s8185 + $0x10] sm:$0xff]
        %v8189 = vld [vmem:[%s8185 + $0x18] sm:$0xff]
        %v8190 = vld [vmem:[%s8185 + $0x20] sm:$0xff]
        %v8191 = vld [vmem:[%s8185 + $0x28] sm:$0xff]
        %v8192 = vld [vmem:[%s8185 + $0x30] sm:$0xff]
        %v8193 = vld [vmem:[%s8185 + $0x38] sm:$0xff]
        %v8194 = vld [vmem:[%s8185 + $0x40] sm:$0xff]
        %v8195 = vld [vmem:[%s8185 + $0x48] sm:$0xff]
        %v8196 = vld [vmem:[%s8185 + $0x50] sm:$0xff]
        %v8197 = vld [vmem:[%s8185 + $0x58] sm:$0xff]
        %v8198 = vld [vmem:[%s8185 + $0x60] sm:$0xff]
        %v8199 = vld [vmem:[%s8185 + $0x68] sm:$0xff]
        %v8200 = vld [vmem:[%s8185 + $0x70] sm:$0xff]
        %v8201 = vld [vmem:[%s8185 + $0x78] sm:$0xff]
        %8202 = vmatpush.msra.mxu0 %v8201
        %8203 = vmatpush.msra.mxu0 %v8200
        %8204 = vmatpush.msra.mxu0 %v8199
        %8205 = vmatpush.msra.mxu0 %v8198
        %8206 = vmatpush.msra.mxu0 %v8197
        %8207 = vmatpush.msra.mxu0 %v8196
        %8208 = vmatpush.msra.mxu0 %v8195
        %8209 = vmatpush.msra.mxu0 %v8194
        %8210 = vmatpush.msra.mxu0 %v8193
        %8211 = vmatpush.msra.mxu0 %v8192
        %8212 = vmatpush.msra.mxu0 %v8191
        %8213 = vmatpush.msra.mxu0 %v8190
        %8214 = vmatpush.msra.mxu0 %v8189
        %8215 = vmatpush.msra.mxu0 %v8188
        %8216 = vmatpush.msra.mxu0 %v8187
        %8217 = vmatpush.msra.mxu0 %v8186
        %8218 = vmatmul.f32.gmra.mxu0 %v8153
        %v8219 = vpop.f32.mrf.mxu0
        %v8220 = vadd.f32 0.0, %v8219
        %8221 = vmatmul.f32.gmra.mxu0 %v8154
        %v8222 = vpop.f32.mrf.mxu0
        %v8223 = vadd.f32 0.0, %v8222
        %8224 = vmatmul.f32.gmra.mxu0 %v8155
        %v8225 = vpop.f32.mrf.mxu0
        %v8226 = vadd.f32 0.0, %v8225
        %8227 = vmatmul.f32.gmra.mxu0 %v8156
        %v8228 = vpop.f32.mrf.mxu0
        %v8229 = vadd.f32 0.0, %v8228
        %8230 = vmatmul.f32.gmra.mxu0 %v8157
        %v8231 = vpop.f32.mrf.mxu0
        %v8232 = vadd.f32 0.0, %v8231
        %8233 = vmatmul.f32.gmra.mxu0 %v8158
        %v8234 = vpop.f32.mrf.mxu0
        %v8235 = vadd.f32 0.0, %v8234
        %8236 = vmatmul.f32.gmra.mxu0 %v8159
        %v8237 = vpop.f32.mrf.mxu0
        %v8238 = vadd.f32 0.0, %v8237
        %8239 = vmatmul.f32.gmra.mxu0 %v8160
        %v8240 = vpop.f32.mrf.mxu0
        %v8241 = vadd.f32 0.0, %v8240
        %8242 = vmatmul.f32.gmra.mxu0 %v8161
        %v8243 = vpop.f32.mrf.mxu0
        %v8244 = vadd.f32 0.0, %v8243
        %8245 = vmatmul.f32.gmra.mxu0 %v8162
        %v8246 = vpop.f32.mrf.mxu0
        %v8247 = vadd.f32 0.0, %v8246
        %8248 = vmatmul.f32.gmra.mxu0 %v8163
        %v8249 = vpop.f32.mrf.mxu0
        %v8250 = vadd.f32 0.0, %v8249
        %8251 = vmatmul.f32.gmra.mxu0 %v8164
        %v8252 = vpop.f32.mrf.mxu0
        %v8253 = vadd.f32 0.0, %v8252
        %8254 = vmatmul.f32.gmra.mxu0 %v8165
        %v8255 = vpop.f32.mrf.mxu0
        %v8256 = vadd.f32 0.0, %v8255
        %8257 = vmatmul.f32.gmra.mxu0 %v8166
        %v8258 = vpop.f32.mrf.mxu0
        %v8259 = vadd.f32 0.0, %v8258
        %8260 = vmatmul.f32.gmra.mxu0 %v8167
        %v8261 = vpop.f32.mrf.mxu0
        %v8262 = vadd.f32 0.0, %v8261
        %8263 = vmatmul.f32.gmra.mxu0 %v8168
        %v8264 = vpop.f32.mrf.mxu0
        %v8265 = vadd.f32 0.0, %v8264
        %8266 = vmatmul.f32.gmra.mxu0 %v8169
        %v8267 = vpop.f32.mrf.mxu0
        %v8268 = vadd.f32 0.0, %v8267
        %8269 = vmatmul.f32.gmra.mxu0 %v8170
        %v8270 = vpop.f32.mrf.mxu0
        %v8271 = vadd.f32 0.0, %v8270
        %8272 = vmatmul.f32.gmra.mxu0 %v8171
        %v8273 = vpop.f32.mrf.mxu0
        %v8274 = vadd.f32 0.0, %v8273
        %8275 = vmatmul.f32.gmra.mxu0 %v8172
        %v8276 = vpop.f32.mrf.mxu0
        %v8277 = vadd.f32 0.0, %v8276
        %8278 = vmatmul.f32.gmra.mxu0 %v8173
        %v8279 = vpop.f32.mrf.mxu0
        %v8280 = vadd.f32 0.0, %v8279
        %8281 = vmatmul.f32.gmra.mxu0 %v8174
        %v8282 = vpop.f32.mrf.mxu0
        %v8283 = vadd.f32 0.0, %v8282
        %8284 = vmatmul.f32.gmra.mxu0 %v8175
        %v8285 = vpop.f32.mrf.mxu0
        %v8286 = vadd.f32 0.0, %v8285
        %8287 = vmatmul.f32.gmra.mxu0 %v8176
        %v8288 = vpop.f32.mrf.mxu0
        %v8289 = vadd.f32 0.0, %v8288
        %8290 = vmatmul.f32.gmra.mxu0 %v8177
        %v8291 = vpop.f32.mrf.mxu0
        %v8292 = vadd.f32 0.0, %v8291
        %8293 = vmatmul.f32.gmra.mxu0 %v8178
        %v8294 = vpop.f32.mrf.mxu0
        %v8295 = vadd.f32 0.0, %v8294
        %8296 = vmatmul.f32.gmra.mxu0 %v8179
        %v8297 = vpop.f32.mrf.mxu0
        %v8298 = vadd.f32 0.0, %v8297
        %8299 = vmatmul.f32.gmra.mxu0 %v8180
        %v8300 = vpop.f32.mrf.mxu0
        %v8301 = vadd.f32 0.0, %v8300
        %8302 = vmatmul.f32.gmra.mxu0 %v8181
        %v8303 = vpop.f32.mrf.mxu0
        %v8304 = vadd.f32 0.0, %v8303
        %8305 = vmatmul.f32.gmra.mxu0 %v8182
        %v8306 = vpop.f32.mrf.mxu0
        %v8307 = vadd.f32 0.0, %v8306
        %8308 = vmatmul.f32.gmra.mxu0 %v8183
        %v8309 = vpop.f32.mrf.mxu0
        %v8310 = vadd.f32 0.0, %v8309
        %8311 = vmatmul.f32.gmra.mxu0 %v8184
        %v8312 = vpop.f32.mrf.mxu0
        %v8313 = vadd.f32 0.0, %v8312
        %8314 = vdwg.mxu0
        %v8315 = vsel %vm3056, %v8220, 0.0
        %v8316 = vsel %vm3057, %v8223, 0.0
        %v8317 = vsel %vm3058, %v8226, 0.0
        %v8318 = vsel %vm3059, %v8229, 0.0
        %v8319 = vsel %vm3060, %v8232, 0.0
        %v8320 = vsel %vm3061, %v8235, 0.0
        %v8321 = vsel %vm3062, %v8238, 0.0
        %v8322 = vsel %vm3063, %v8241, 0.0
        %v8323 = vsel %vm3064, %v8244, 0.0
        %v8324 = vsel %vm3065, %v8247, 0.0
        %v8325 = vsel %vm3066, %v8250, 0.0
        %v8326 = vsel %vm3067, %v8253, 0.0
        %v8327 = vsel %vm3068, %v8256, 0.0
        %v8328 = vsel %vm3069, %v8259, 0.0
        %v8329 = vsel %vm3070, %v8262, 0.0
        %v8330 = vsel %vm3071, %v8265, 0.0
        %v8331 = vsel %vm3072, %v8268, 0.0
        %v8332 = vsel %vm3073, %v8271, 0.0
        %v8333 = vsel %vm3074, %v8274, 0.0
        %v8334 = vsel %vm3075, %v8277, 0.0
        %v8335 = vsel %vm3076, %v8280, 0.0
        %v8336 = vsel %vm3077, %v8283, 0.0
        %v8337 = vsel %vm3078, %v8286, 0.0
        %v8338 = vsel %vm3079, %v8289, 0.0
        %v8339 = vsel %vm3080, %v8292, 0.0
        %v8340 = vsel %vm3081, %v8295, 0.0
        %v8341 = vsel %vm3082, %v8298, 0.0
        %v8342 = vsel %vm3083, %v8301, 0.0
        %v8343 = vsel %vm3084, %v8304, 0.0
        %v8344 = vsel %vm3085, %v8307, 0.0
        %v8345 = vsel %vm3086, %v8310, 0.0
        %v8346 = vsel %vm3087, %v8313, 0.0
        %v8347 = vadd.f32 %v8121, %v8315
        %v8348 = vadd.f32 %v8122, %v8316
        %v8349 = vadd.f32 %v8123, %v8317
        %v8350 = vadd.f32 %v8124, %v8318
        %v8351 = vadd.f32 %v8125, %v8319
        %v8352 = vadd.f32 %v8126, %v8320
        %v8353 = vadd.f32 %v8127, %v8321
        %v8354 = vadd.f32 %v8128, %v8322
        %v8355 = vadd.f32 %v8129, %v8323
        %v8356 = vadd.f32 %v8130, %v8324
        %v8357 = vadd.f32 %v8131, %v8325
        %v8358 = vadd.f32 %v8132, %v8326
        %v8359 = vadd.f32 %v8133, %v8327
        %v8360 = vadd.f32 %v8134, %v8328
        %v8361 = vadd.f32 %v8135, %v8329
        %v8362 = vadd.f32 %v8136, %v8330
        %v8363 = vadd.f32 %v8137, %v8331
        %v8364 = vadd.f32 %v8138, %v8332
        %v8365 = vadd.f32 %v8139, %v8333
        %v8366 = vadd.f32 %v8140, %v8334
        %v8367 = vadd.f32 %v8141, %v8335
        %v8368 = vadd.f32 %v8142, %v8336
        %v8369 = vadd.f32 %v8143, %v8337
        %v8370 = vadd.f32 %v8144, %v8338
        %v8371 = vadd.f32 %v8145, %v8339
        %v8372 = vadd.f32 %v8146, %v8340
        %v8373 = vadd.f32 %v8147, %v8341
        %v8374 = vadd.f32 %v8148, %v8342
        %v8375 = vadd.f32 %v8149, %v8343
        %v8376 = vadd.f32 %v8150, %v8344
        %v8377 = vadd.f32 %v8151, %v8345
        %v8378 = vadd.f32 %v8152, %v8346
        %v8379 = vld [vmem:[#allocation13] sm:$0x1]
        %v8381 = vperm.slane %v8379, 0
        %v8383 = vadd.f32 %v8347, %v8381
        %v8384 = vadd.f32 %v8348, %v8381
        %v8385 = vadd.f32 %v8349, %v8381
        %v8386 = vadd.f32 %v8350, %v8381
        %v8387 = vadd.f32 %v8351, %v8381
        %v8388 = vadd.f32 %v8352, %v8381
        %v8389 = vadd.f32 %v8353, %v8381
        %v8390 = vadd.f32 %v8354, %v8381
        %v8391 = vadd.f32 %v8355, %v8381
        %v8392 = vadd.f32 %v8356, %v8381
        %v8393 = vadd.f32 %v8357, %v8381
        %v8394 = vadd.f32 %v8358, %v8381
        %v8395 = vadd.f32 %v8359, %v8381
        %v8396 = vadd.f32 %v8360, %v8381
        %v8397 = vadd.f32 %v8361, %v8381
        %v8398 = vadd.f32 %v8362, %v8381
        %v8399 = vadd.f32 %v8363, %v8381
        %v8400 = vadd.f32 %v8364, %v8381
        %v8401 = vadd.f32 %v8365, %v8381
        %v8402 = vadd.f32 %v8366, %v8381
        %v8403 = vadd.f32 %v8367, %v8381
        %v8404 = vadd.f32 %v8368, %v8381
        %v8405 = vadd.f32 %v8369, %v8381
        %v8406 = vadd.f32 %v8370, %v8381
        %v8407 = vadd.f32 %v8371, %v8381
        %v8408 = vadd.f32 %v8372, %v8381
        %v8409 = vadd.f32 %v8373, %v8381
        %v8410 = vadd.f32 %v8374, %v8381
        %v8411 = vadd.f32 %v8375, %v8381
        %v8412 = vadd.f32 %v8376, %v8381
        %v8413 = vadd.f32 %v8377, %v8381
        %v8414 = vadd.f32 %v8378, %v8381
        %v8415 = vmax.f32 %v8383, 0.0
        %v8416 = vmax.f32 %v8384, 0.0
        %v8417 = vmax.f32 %v8385, 0.0
        %v8418 = vmax.f32 %v8386, 0.0
        %v8419 = vmax.f32 %v8387, 0.0
        %v8420 = vmax.f32 %v8388, 0.0
        %v8421 = vmax.f32 %v8389, 0.0
        %v8422 = vmax.f32 %v8390, 0.0
        %v8423 = vmax.f32 %v8391, 0.0
        %v8424 = vmax.f32 %v8392, 0.0
        %v8425 = vmax.f32 %v8393, 0.0
        %v8426 = vmax.f32 %v8394, 0.0
        %v8427 = vmax.f32 %v8395, 0.0
        %v8428 = vmax.f32 %v8396, 0.0
        %v8429 = vmax.f32 %v8397, 0.0
        %v8430 = vmax.f32 %v8398, 0.0
        %v8431 = vmax.f32 %v8399, 0.0
        %v8432 = vmax.f32 %v8400, 0.0
        %v8433 = vmax.f32 %v8401, 0.0
        %v8434 = vmax.f32 %v8402, 0.0
        %v8435 = vmax.f32 %v8403, 0.0
        %v8436 = vmax.f32 %v8404, 0.0
        %v8437 = vmax.f32 %v8405, 0.0
        %v8438 = vmax.f32 %v8406, 0.0
        %v8439 = vmax.f32 %v8407, 0.0
        %v8440 = vmax.f32 %v8408, 0.0
        %v8441 = vmax.f32 %v8409, 0.0
        %v8442 = vmax.f32 %v8410, 0.0
        %v8443 = vmax.f32 %v8411, 0.0
        %v8444 = vmax.f32 %v8412, 0.0
        %v8445 = vmax.f32 %v8413, 0.0
        %v8446 = vmax.f32 %v8414, 0.0
        %v8447 = vadd.f32 %v8415, %v8416
        %v8448 = vadd.f32 %v8447, %v8417
        %v8449 = vadd.f32 %v8448, %v8418
        %v8450 = vadd.f32 %v8449, %v8419
        %v8451 = vadd.f32 %v8450, %v8420
        %v8452 = vadd.f32 %v8451, %v8421
        %v8453 = vadd.f32 %v8452, %v8422
        %v8454 = vadd.f32 %v8453, %v8423
        %v8455 = vadd.f32 %v8454, %v8424
        %v8456 = vadd.f32 %v8455, %v8425
        %v8457 = vadd.f32 %v8456, %v8426
        %v8458 = vadd.f32 %v8457, %v8427
        %v8459 = vadd.f32 %v8458, %v8428
        %v8460 = vadd.f32 %v8459, %v8429
        %v8461 = vadd.f32 %v8460, %v8430
        %v8462 = vadd.f32 %v8461, %v8431
        %v8463 = vadd.f32 %v8462, %v8432
        %v8464 = vadd.f32 %v8463, %v8433
        %v8465 = vadd.f32 %v8464, %v8434
        %v8466 = vadd.f32 %v8465, %v8435
        %v8467 = vadd.f32 %v8466, %v8436
        %v8468 = vadd.f32 %v8467, %v8437
        %v8469 = vadd.f32 %v8468, %v8438
        %v8470 = vadd.f32 %v8469, %v8439
        %v8471 = vadd.f32 %v8470, %v8440
        %v8472 = vadd.f32 %v8471, %v8441
        %v8473 = vadd.f32 %v8472, %v8442
        %v8474 = vadd.f32 %v8473, %v8443
        %v8475 = vadd.f32 %v8474, %v8444
        %v8476 = vadd.f32 %v8475, %v8445
        %v8477 = vadd.f32 %v8476, %v8446
        %v8478 = vrot.slane %v8477, 4
        %v8479 = vadd.f32 %v8477, %v8478
        %v8480 = vrot.slane %v8479, 2
        %v8481 = vadd.f32 %v8479, %v8480
        %v8482 = vrot.slane %v8481, 1
        %v8483 = vadd.f32 %v8481, %v8482
        %v8484 = vmul.f32 %v8483, 0.00390625
        %v8485 = vld [vmem:[%s7] sm:$0xff]
        %v8486 = vld [vmem:[%s7 + $0x8] sm:$0xff]
        %v8487 = vld [vmem:[%s7 + $0x10] sm:$0xff]
        %v8488 = vld [vmem:[%s7 + $0x18] sm:$0xff]
        %v8489 = vld [vmem:[%s7 + $0x20] sm:$0xff]
        %v8490 = vld [vmem:[%s7 + $0x28] sm:$0xff]
        %v8491 = vld [vmem:[%s7 + $0x30] sm:$0xff]
        %v8492 = vld [vmem:[%s7 + $0x38] sm:$0xff]
        %v8493 = vld [vmem:[%s7 + $0x40] sm:$0xff]
        %v8494 = vld [vmem:[%s7 + $0x48] sm:$0xff]
        %v8495 = vld [vmem:[%s7 + $0x50] sm:$0xff]
        %v8496 = vld [vmem:[%s7 + $0x58] sm:$0xff]
        %v8497 = vld [vmem:[%s7 + $0x60] sm:$0xff]
        %v8498 = vld [vmem:[%s7 + $0x68] sm:$0xff]
        %v8499 = vld [vmem:[%s7 + $0x70] sm:$0xff]
        %v8500 = vld [vmem:[%s7 + $0x78] sm:$0xff]
        %v8501 = vld [vmem:[#allocation15] sm:$0x1]
        %8502 = vmatpush.msra.mxu0 %v8500
        %8503 = vmatpush.msra.mxu0 %v8499
        %8504 = vmatpush.msra.mxu0 %v8498
        %8505 = vmatpush.msra.mxu0 %v8497
        %8506 = vmatpush.msra.mxu0 %v8496
        %8507 = vmatpush.msra.mxu0 %v8495
        %8508 = vmatpush.msra.mxu0 %v8494
        %8509 = vmatpush.msra.mxu0 %v8493
        %8510 = vmatpush.msra.mxu0 %v8492
        %8511 = vmatpush.msra.mxu0 %v8491
        %8512 = vmatpush.msra.mxu0 %v8490
        %8513 = vmatpush.msra.mxu0 %v8489
        %8514 = vmatpush.msra.mxu0 %v8488
        %8515 = vmatpush.msra.mxu0 %v8487
        %8516 = vmatpush.msra.mxu0 %v8486
        %8517 = vmatpush.msra.mxu0 %v8485
        %8518 = vmatmul.f32.gmra.mxu0 %v8484
        %v8519 = vpop.f32.mrf.mxu0
        %v8520 = vadd.f32 %v8501, %v8519
        %8521 = vdwg.mxu0
        %v8522 = vmul.f32 %v8520, 0.01
        %vm8523 = vcmask 40960
        %8524 = vst.msk [vmem:[%s430] sm:$0x1] %vm8523, %v8522
        %s8525 = sand.u32 %s229, 1
        %s8526 = scalar_lea.sflag [#allocation6], %s8525
        %s8527 = sand.u32 %s229, 1
        %s8528 = scalar_lea.vmem [#allocation16], %s8527
        // Predicated region
        $region85: #{tpu_custom_call.1} parent=55 // pred_check
          %p8529 = pneg %p239
        $region86: #{tpu_custom_call.1} parent=55 // pred_check_branch
          %8531 = sbr.rel (%p8529) target = $region88
        $region87: #{tpu_custom_call.1} parent=55 // pred_region
          %8533 = vsyncadd %s8526, 0
          %s8534 = scalar_lea.hbm %s9, %s27
          %s8536 = sshll.u32 %s8528, 4
          %s8537 = int_to_ptr.vmem [resolvable:$true] %s8536
          %s8538 = sshll.u32 %s8534, 4
          %s8539 = int_to_ptr.hbm [resolvable:$true] %s8538
          %8541 = dma.vmem_to_hbm [thread:$0]  %s8537, 16, %s8539, %s8526
        $region88: #{tpu_custom_call.1} parent=55 // pred_fallthru
          _
      $region56: #{tpu_custom_call.1} parent=5 // pred_fallthru
        _
      %p8542 = scmp.le.s32.totalorder 2, %s22
      // Predicated region
      $region89: #{tpu_custom_call.1} parent=5 // pred_check
        %p8543 = pneg %p8542
      $region90: #{tpu_custom_call.1} parent=5 // pred_check_branch
        %8545 = sbr.rel (%p8543) target = $region92
      $region91: #{tpu_custom_call.1} parent=5 // pred_region
        %s8546 = ssub.s32 %s22, 2
        // Predicated region
        $region93: #{tpu_custom_call.1} parent=91 // pred_check
          %p8547 = pneg %p245
        $region94: #{tpu_custom_call.1} parent=91 // pred_check_branch
          %8549 = sbr.rel (%p8547) target = $region96
        $region95: #{tpu_custom_call.1} parent=91 // pred_region
          %s8550 = sand.u32 %s230, 1
          %s8551 = scalar_lea.sflag [#allocation6], %s8550
          %s8552 = sand.u32 %s230, 1
          %s8553 = scalar_lea.vmem [#allocation16], %s8552
          %8555 = dma.done %s8551, 16
        $region96: #{tpu_custom_call.1} parent=91 // pred_fallthru
          _
      $region92: #{tpu_custom_call.1} parent=5 // pred_fallthru
        _
    $region6: #{tpu_custom_call.1} parent=1 // loop_footer
      %s26 = sadd.s32 1, %s22
    $region7: #{tpu_custom_call.1} parent=1 // loop_footer_branch
      %21 = sbr.rel target = $region3
    $region8: #{tpu_custom_call.1} parent=1 // loop_exit
      _
    %8556 = vsyncpa [#allocation5], 1
    %s8557 = scalar_lea.sflag [#allocation5], 1
    %8558 = vsyncpa %s8557, 1
    %8559 = vsyncpa [#allocation8], 1
    %8560 = vsyncpa [#allocation11], 1
    %8561 = vsyncpa [#allocation14], 1
    %8562 = vsyncpa [#allocation6], 1
    %s8563 = scalar_lea.sflag [#allocation6], 1
    %8564 = vsyncpa %s8563, 1

</llo_original>
